<compile_context>
chip_gen: v6e
topology: v6e:2x2x1
jax: 0.10.0
libtpu: 0.0.40
codegen_flags: <defaults>
</compile_context>

<pallas_src>
import numpy as np
import jax
import jax.numpy as jnp
from jax import lax
from jax.experimental import pallas as pl
from jax.experimental.pallas import tpu as pltpu

BN_EPS = 1e-5
SOFTPLUS_THRESHOLD = 20.0  # PyTorch F.softplus threshold used inside Mish


# ---------------------------------------------------------------------------
# Single fused kernel: (upsample+pad+concat+conv) as matmuls + BN + Mish
# ---------------------------------------------------------------------------
def up_fused_kernel(x1_ref, x2_ref, w1_ref, w2_ref, sel_ref, selT_ref,
                    g_ref, b_ref, o_ref):
    # Folded linear map: y[n, o*HW + p*W + q] = conv(BN-input)[n, o, p, q]
    y = jnp.dot(x1_ref[...], w1_ref[...], preferred_element_type=jnp.float32)
    y = y + jnp.dot(x2_ref[...], w2_ref[...], preferred_element_type=jnp.float32)
    # y: (N, Cout*H2*W2) float32, lane-dense (last dim multiple of 128).

    n_rows = y.shape[0]
    n_cols = y.shape[1]
    cout = g_ref.shape[1]
    inv_count = 1.0 / float(n_rows * (n_cols // cout))   # 1 / (N*H2*W2), static

    # --- BatchNorm2d (train mode): one-pass per-channel sum & sum-of-squares ---
    sel = sel_ref[...]                                   # (F, Cout) channel selector
    colsum = jnp.sum(y, axis=0, keepdims=True)           # (1, F)
    colsq = jnp.sum(y * y, axis=0, keepdims=True)        # (1, F)
    s_c = jnp.dot(colsum, sel, preferred_element_type=jnp.float32)    # (1, Cout)
    ss_c = jnp.dot(colsq, sel, preferred_element_type=jnp.float32)    # (1, Cout)
    mean_c = s_c * inv_count
    var_c = ss_c * inv_count - mean_c * mean_c           # biased variance
    scale_c = g_ref[...] * lax.rsqrt(var_c + BN_EPS)     # (1, Cout)
    shift_c = b_ref[...] - mean_c * scale_c              # (1, Cout)
    # Broadcast per-channel scale/shift back to the (1, F) layout via selector^T (MXU).
    scale_f = jnp.dot(scale_c, selT_ref[...], preferred_element_type=jnp.float32)
    shift_f = jnp.dot(shift_c, selT_ref[...], preferred_element_type=jnp.float32)

    z = y * scale_f + shift_f

    # --- Mish: z * tanh(softplus(z)) with PyTorch's threshold=20 ---
    sp = jnp.where(z > SOFTPLUS_THRESHOLD, z,
                   jnp.log1p(jnp.exp(jnp.minimum(z, SOFTPLUS_THRESHOLD))))
    o_ref[...] = z * jnp.tanh(sp)


# ---------------------------------------------------------------------------
# Trace-time (NumPy) construction of the folded linear operators
# ---------------------------------------------------------------------------
def _bilinear_matrix(in_size, out_size):
    """1-D interpolation matrix of nn.Upsample(mode='bilinear', align_corners=True)."""
    A = np.zeros((out_size, in_size), dtype=np.float64)
    if out_size == 1 or in_size == 1:
        A[:, 0] = 1.0
        return A
    scale = (in_size - 1) / (out_size - 1)
    for i in range(out_size):
        pos = i * scale
        i0 = min(int(np.floor(pos)), in_size - 1)
        i1 = min(i0 + 1, in_size - 1)
        frac = pos - i0
        A[i, i0] += 1.0 - frac
        A[i, i1] += frac
    return A


def _pad_matrix(out_size, in_size, pad_before):
    """Zero-padding (F.pad) as a selection matrix (out_size, in_size)."""
    P = np.zeros((out_size, in_size), dtype=np.float64)
    P[pad_before:pad_before + in_size, :] = np.eye(in_size)
    return P


def _build_effective_weights(conv_weight, C1, H1, W1, C2, H2, W2):
    """Fold bilinear upsample + F.pad + channel concat + Conv2d(k,s=1,p=1) into
    two dense maps from flattened x1 / x2 to the flattened (Cout, H2, W2) output."""
    Wnp = np.asarray(conv_weight, dtype=np.float64)
    Cout, Cin, KH, KW = Wnp.shape
    assert Cin == C1 + C2
    PAD = 1  # module uses kernel_size=3, padding=1

    Hu, Wu = 2 * H1, 2 * W1
    diffY, diffX = H2 - Hu, W2 - Wu
    assert diffY >= 0 and diffX >= 0, "x2 must be at least as large as upsampled x1"
    # upsample followed by F.pad, as (H2, H1) / (W2, W1) matrices
    Ph = _pad_matrix(H2, Hu, diffY // 2) @ _bilinear_matrix(H1, Hu)
    Pw = _pad_matrix(W2, Wu, diffX // 2) @ _bilinear_matrix(W1, Wu)

    # conv spatial shift-selection matrices (stride 1, zero padding PAD)
    Sh = np.stack([np.eye(H2, k=k - PAD) for k in range(KH)])   # (KH, H2, H2)
    Sw = np.stack([np.eye(W2, k=k - PAD) for k in range(KW)])   # (KW, W2, W2)

    # x2 path (first C2 channels of the concat): conv only
    W2_eff = np.einsum('ocij,iph,jqw->chwopq', Wnp[:, :C2], Sh, Sw,
                       optimize=True).reshape(C2 * H2 * W2, Cout * H2 * W2)

    # x1 path (last C1 channels): (upsample + pad) composed with conv
    Ah = np.einsum('kpr,rh->kph', Sh, Ph)                        # (KH, H2, H1)
    Aw = np.einsum('kqr,rw->kqw', Sw, Pw)                        # (KW, W2, W1)
    W1_eff = np.einsum('ocij,iph,jqw->chwopq', Wnp[:, C2:], Ah, Aw,
                       optimize=True).reshape(C1 * H1 * W1, Cout * H2 * W2)

    return jnp.asarray(W1_eff, jnp.float32), jnp.asarray(W2_eff, jnp.float32)


# ---------------------------------------------------------------------------
# Wrapper
# ---------------------------------------------------------------------------
def up_forward(x1, x2, conv_weight, bn_gamma, bn_beta):
    """x1: (N, C1, H1, W1), x2: (N, C2, H2, W2); returns (N, Cout, H2, W2)."""
    N, C1, H1, W1 = x1.shape
    N2, C2, H2, W2 = x2.shape
    Cout, Cin, KH, KW = conv_weight.shape
    assert N == N2 and Cin == C1 + C2

    W1_eff, W2_eff = _build_effective_weights(conv_weight, C1, H1, W1, C2, H2, W2)
    HW = H2 * W2
    F_out = Cout * HW                       # 8 * 256 = 2048 -> 16 x 128, lane-dense

    # one-hot channel selector for per-channel BN reduce / broadcast on the MXU
    sel_np = np.repeat(np.eye(Cout, dtype=np.float32), HW, axis=0)   # (F, Cout)
    sel = jnp.asarray(sel_np)
    selT = jnp.asarray(np.ascontiguousarray(sel_np.T))               # (Cout, F)

    x1f = x1.reshape(N, C1 * H1 * W1).astype(jnp.float32)
    x2f = x2.reshape(N, C2 * H2 * W2).astype(jnp.float32)
    gamma = bn_gamma.reshape(1, Cout).astype(jnp.float32)
    beta = bn_beta.reshape(1, Cout).astype(jnp.float32)

    out2d = pl.pallas_call(
        up_fused_kernel,
        out_shape=jax.ShapeDtypeStruct((N, F_out), jnp.float32),
        grid=(1,),
        in_specs=[
            pl.BlockSpec((N, C1 * H1 * W1), lambda i: (0, 0)),
            pl.BlockSpec((N, C2 * H2 * W2), lambda i: (0, 0)),
            pl.BlockSpec((C1 * H1 * W1, F_out), lambda i: (0, 0)),
            pl.BlockSpec((C2 * H2 * W2, F_out), lambda i: (0, 0)),
            pl.BlockSpec((F_out, Cout), lambda i: (0, 0)),
            pl.BlockSpec((Cout, F_out), lambda i: (0, 0)),
            pl.BlockSpec((1, Cout), lambda i: (0, 0)),
            pl.BlockSpec((1, Cout), lambda i: (0, 0)),
        ],
        out_specs=pl.BlockSpec((N, F_out), lambda i: (0, 0)),
        compiler_params=pltpu.CompilerParams(
            dimension_semantics=("arbitrary",),   # single step; BN needs whole batch
            vmem_limit_bytes=48 * 1024 * 1024,    # well under v7x's 64 MiB physical VMEM
        ),
    )(x1f, x2f, W1_eff, W2_eff, sel, selT, gamma, beta)

    # channel-major / spatial-minor flat layout == NCHW flatten -> free reshape
    return out2d.reshape(N, Cout, H2, W2)


# ---------------------------------------------------------------------------
# Pure-JAX reference (independent path, for correctness checking only)
# ---------------------------------------------------------------------------
def reference_forward(x1, x2, conv_weight, bn_gamma, bn_beta):
    N, C1, H1, W1 = x1.shape
    _, C2, H2, W2 = x2.shape
    Hu, Wu = 2 * H1, 2 * W1
    Uh = jnp.asarray(_bilinear_matrix(H1, Hu), jnp.float32)
    Uw = jnp.asarray(_bilinear_matrix(W1, Wu), jnp.float32)
    x1u = jnp.einsum('ph,nchw,qw->ncpq', Uh, x1, Uw)
    diffY, diffX = H2 - Hu, W2 - Wu
    x1u = jnp.pad(x1u, ((0, 0), (0, 0),
                        (diffY // 2, diffY - diffY // 2),
                        (diffX // 2, diffX - diffX // 2)))
    xin = jnp.concatenate([x2, x1u], axis=1)
    y = lax.conv_general_dilated(xin, conv_weight, (1, 1), ((1, 1), (1, 1)),
                                 dimension_numbers=("NCHW", "OIHW", "NCHW"))
    mean = jnp.mean(y, axis=(0, 2, 3), keepdims=True)
    var = jnp.mean((y - mean) ** 2, axis=(0, 2, 3), keepdims=True)
    z = (y - mean) * lax.rsqrt(var + BN_EPS)
    z = z * bn_gamma.reshape(1, -1, 1, 1) + bn_beta.reshape(1, -1, 1, 1)
    sp = jnp.where(z > SOFTPLUS_THRESHOLD, z,
                   jnp.log1p(jnp.exp(jnp.minimum(z, SOFTPLUS_THRESHOLD))))
    return z * jnp.tanh(sp)


if __name__ == "__main__":
    key = jax.random.PRNGKey(0)
    k1, k2, kw, kg, kb = jax.random.split(key, 5)

    # U-Net style shapes: x1 = decoder features (low-res), x2 = skip connection (2x spatial)
    N, C1, H1, W1 = 2, 4, 8, 8
    C2, H2, W2 = 4, 16, 16
    Cin, Cout = C1 + C2, 8              # Up(in_channels=8, out_channels=8, bilinear=True)

    x1 = jax.random.normal(k1, (N, C1, H1, W1), dtype=jnp.float32)
    x2 = jax.random.normal(k2, (N, C2, H2, W2), dtype=jnp.float32)
    conv_weight = 0.1 * jax.random.normal(kw, (Cout, Cin, 3, 3), dtype=jnp.float32)
    bn_gamma = 1.0 + 0.1 * jax.random.normal(kg, (Cout,), dtype=jnp.float32)
    bn_beta = 0.1 * jax.random.normal(kb, (Cout,), dtype=jnp.float32)

    out = up_forward(x1, x2, conv_weight, bn_gamma, bn_beta)
    out = jax.block_until_ready(out)

    ref = reference_forward(x1, x2, conv_weight, bn_gamma, bn_beta)
    assert out.shape == (N, Cout, H2, W2)
    max_err = float(jnp.max(jnp.abs(out - ref)))
    assert jnp.allclose(out, ref, atol=3e-4, rtol=3e-4), (
        "mismatch vs reference, max abs err = %e" % max_err)

    # TODO(synk): train-mode BatchNorm running-mean/var buffer updates are a stateful
    # side effect of nn.BatchNorm2d and are not produced (they do not affect the output).
    print("KERNEL_OK")
</pallas_src>

<mosaic_0001>
module attributes {stable_mosaic.version = 11 : i64} {
  func.func @up_fused_kernel(%arg0: i32, %arg1: memref<2x256xf32, #tpu.memory_space<vmem>>, %arg2: memref<2x1024xf32, #tpu.memory_space<vmem>>, %arg3: memref<256x2048xf32, #tpu.memory_space<vmem>>, %arg4: memref<1024x2048xf32, #tpu.memory_space<vmem>>, %arg5: memref<2048x8xf32, #tpu.memory_space<vmem>>, %arg6: memref<8x2048xf32, #tpu.memory_space<vmem>>, %arg7: memref<1x8xf32, #tpu.memory_space<vmem>>, %arg8: memref<1x8xf32, #tpu.memory_space<vmem>>, %arg9: memref<2x2048xf32, #tpu.memory_space<vmem>>) attributes {dimension_semantics = [#tpu.dimension_semantics<arbitrary>], iteration_bounds = array<i64: 1>, scalar_prefetch = 0 : i64, scratch_operands = 0 : i64, tpu.core_type = #tpu.core_type<tc>, window_params = [{pipeline_mode = #tpu.pipeline_mode<synchronous>, transform_indices = @transform_0, window_bounds = array<i64: 2, 256>}, {pipeline_mode = #tpu.pipeline_mode<synchronous>, transform_indices = @transform_1, window_bounds = array<i64: 2, 1024>}, {pipeline_mode = #tpu.pipeline_mode<synchronous>, transform_indices = @transform_2, window_bounds = array<i64: 256, 2048>}, {pipeline_mode = #tpu.pipeline_mode<synchronous>, transform_indices = @transform_3, window_bounds = array<i64: 1024, 2048>}, {pipeline_mode = #tpu.pipeline_mode<synchronous>, transform_indices = @transform_4, window_bounds = array<i64: 2048, 8>}, {pipeline_mode = #tpu.pipeline_mode<synchronous>, transform_indices = @transform_5, window_bounds = array<i64: 8, 2048>}, {pipeline_mode = #tpu.pipeline_mode<synchronous>, transform_indices = @transform_6, window_bounds = array<i64: 1, 8>}, {pipeline_mode = #tpu.pipeline_mode<synchronous>, transform_indices = @transform_7, window_bounds = array<i64: 1, 8>}, {pipeline_mode = #tpu.pipeline_mode<synchronous>, transform_indices = @transform_8, window_bounds = array<i64: 2, 2048>}]} {
    %c0 = arith.constant 0 : index
    %c0_0 = arith.constant 0 : index
    %0 = vector.load %arg1[%c0, %c0_0] : memref<2x256xf32, #tpu.memory_space<vmem>>, vector<2x256xf32>
    %c0_1 = arith.constant 0 : index
    %c0_2 = arith.constant 0 : index
    %1 = vector.load %arg3[%c0_1, %c0_2] : memref<256x2048xf32, #tpu.memory_space<vmem>>, vector<256x2048xf32>
    %cst = arith.constant dense<0.000000e+00> : vector<2x2048xf32>
    %2 = tpu.matmul %0, %1, %cst {dimension_numbers = #tpu.dot_dimension_numbers<[1], [0], [0], [1], [0, 0, 1, 1], [], []>} : vector<2x256xf32>, vector<256x2048xf32>, vector<2x2048xf32> -> vector<2x2048xf32>
    %c0_3 = arith.constant 0 : index
    %c0_4 = arith.constant 0 : index
    %3 = vector.load %arg2[%c0_3, %c0_4] : memref<2x1024xf32, #tpu.memory_space<vmem>>, vector<2x1024xf32>
    %c0_5 = arith.constant 0 : index
    %c0_6 = arith.constant 0 : index
    %4 = vector.load %arg4[%c0_5, %c0_6] : memref<1024x2048xf32, #tpu.memory_space<vmem>>, vector<1024x2048xf32>
    %cst_7 = arith.constant dense<0.000000e+00> : vector<2x2048xf32>
    %5 = tpu.matmul %3, %4, %cst_7 {dimension_numbers = #tpu.dot_dimension_numbers<[1], [0], [0], [1], [0, 0, 1, 1], [], []>} : vector<2x1024xf32>, vector<1024x2048xf32>, vector<2x2048xf32> -> vector<2x2048xf32>
    %6 = arith.addf %2, %5 : vector<2x2048xf32>
    %c0_8 = arith.constant 0 : index
    %c0_9 = arith.constant 0 : index
    %7 = vector.load %arg5[%c0_8, %c0_9] : memref<2048x8xf32, #tpu.memory_space<vmem>>, vector<2048x8xf32>
    %cst_10 = arith.constant dense<0.000000e+00> : vector<2048xf32>
    %8 = vector.multi_reduction <add>, %6, %cst_10 [0] : vector<2x2048xf32> to vector<2048xf32>
    %9 = vector.shape_cast %8 : vector<2048xf32> to vector<1x2048xf32>
    %10 = arith.mulf %6, %6 : vector<2x2048xf32>
    %cst_11 = arith.constant dense<0.000000e+00> : vector<2048xf32>
    %11 = vector.multi_reduction <add>, %10, %cst_11 [0] : vector<2x2048xf32> to vector<2048xf32>
    %12 = vector.shape_cast %11 : vector<2048xf32> to vector<1x2048xf32>
    %cst_12 = arith.constant dense<0.000000e+00> : vector<1x8xf32>
    %13 = tpu.matmul %9, %7, %cst_12 {dimension_numbers = #tpu.dot_dimension_numbers<[1], [0], [0], [1], [0, 0, 1, 1], [], []>} : vector<1x2048xf32>, vector<2048x8xf32>, vector<1x8xf32> -> vector<1x8xf32>
    %cst_13 = arith.constant dense<0.000000e+00> : vector<1x8xf32>
    %14 = tpu.matmul %12, %7, %cst_13 {dimension_numbers = #tpu.dot_dimension_numbers<[1], [0], [0], [1], [0, 0, 1, 1], [], []>} : vector<1x2048xf32>, vector<2048x8xf32>, vector<1x8xf32> -> vector<1x8xf32>
    %cst_14 = arith.constant 0.001953125 : f32
    %15 = vector.broadcast %cst_14 : f32 to vector<1x8xf32>
    %16 = arith.mulf %13, %15 : vector<1x8xf32>
    %cst_15 = arith.constant 0.001953125 : f32
    %17 = vector.broadcast %cst_15 : f32 to vector<1x8xf32>
    %18 = arith.mulf %14, %17 : vector<1x8xf32>
    %19 = arith.mulf %16, %16 : vector<1x8xf32>
    %20 = arith.subf %18, %19 : vector<1x8xf32>
    %c0_16 = arith.constant 0 : index
    %c0_17 = arith.constant 0 : index
    %21 = vector.load %arg7[%c0_16, %c0_17] : memref<1x8xf32, #tpu.memory_space<vmem>>, vector<1x8xf32>
    %cst_18 = arith.constant 9.99999974E-6 : f32
    %22 = vector.broadcast %cst_18 : f32 to vector<1x8xf32>
    %23 = arith.addf %20, %22 : vector<1x8xf32>
    %24 = math.rsqrt %23 : vector<1x8xf32>
    %25 = arith.mulf %21, %24 : vector<1x8xf32>
    %c0_19 = arith.constant 0 : index
    %c0_20 = arith.constant 0 : index
    %26 = vector.load %arg8[%c0_19, %c0_20] : memref<1x8xf32, #tpu.memory_space<vmem>>, vector<1x8xf32>
    %27 = arith.mulf %16, %25 : vector<1x8xf32>
    %28 = arith.subf %26, %27 : vector<1x8xf32>
    %c0_21 = arith.constant 0 : index
    %c0_22 = arith.constant 0 : index
    %29 = vector.load %arg6[%c0_21, %c0_22] : memref<8x2048xf32, #tpu.memory_space<vmem>>, vector<8x2048xf32>
    %cst_23 = arith.constant dense<0.000000e+00> : vector<1x2048xf32>
    %30 = tpu.matmul %25, %29, %cst_23 {dimension_numbers = #tpu.dot_dimension_numbers<[1], [0], [0], [1], [0, 0, 1, 1], [], []>} : vector<1x8xf32>, vector<8x2048xf32>, vector<1x2048xf32> -> vector<1x2048xf32>
    %c0_24 = arith.constant 0 : index
    %c0_25 = arith.constant 0 : index
    %31 = vector.load %arg6[%c0_24, %c0_25] : memref<8x2048xf32, #tpu.memory_space<vmem>>, vector<8x2048xf32>
    %cst_26 = arith.constant dense<0.000000e+00> : vector<1x2048xf32>
    %32 = tpu.matmul %28, %31, %cst_26 {dimension_numbers = #tpu.dot_dimension_numbers<[1], [0], [0], [1], [0, 0, 1, 1], [], []>} : vector<1x8xf32>, vector<8x2048xf32>, vector<1x2048xf32> -> vector<1x2048xf32>
    %33 = vector.broadcast %30 : vector<1x2048xf32> to vector<2x2048xf32>
    %34 = arith.mulf %6, %33 : vector<2x2048xf32>
    %35 = vector.broadcast %32 : vector<1x2048xf32> to vector<2x2048xf32>
    %36 = arith.addf %34, %35 : vector<2x2048xf32>
    %cst_27 = arith.constant 2.000000e+01 : f32
    %37 = vector.broadcast %cst_27 : f32 to vector<2x2048xf32>
    %38 = arith.cmpf ogt, %36, %37 : vector<2x2048xf32>
    %cst_28 = arith.constant 2.000000e+01 : f32
    %39 = vector.broadcast %cst_28 : f32 to vector<2x2048xf32>
    %40 = arith.minimumf %36, %39 : vector<2x2048xf32>
    %41 = math.exp %40 : vector<2x2048xf32>
    %42 = math.log1p %41 : vector<2x2048xf32>
    %43 = arith.select %38, %36, %42 : vector<2x2048xi1>, vector<2x2048xf32>
    %44 = math.tanh %43 : vector<2x2048xf32>
    %45 = arith.mulf %36, %44 : vector<2x2048xf32>
    %c0_29 = arith.constant 0 : index
    %c0_30 = arith.constant 0 : index
    %46 = vector.load %arg9[%c0_29, %c0_30] : memref<2x2048xf32, #tpu.memory_space<vmem>>, vector<2x2048xf32>
    tpu.vector_store %arg9[%c0_29, %c0_30], %45 {strides = array<i32>} : memref<2x2048xf32, #tpu.memory_space<vmem>>, vector<2x2048xf32>,
    return
  }
  func.func @transform_0(%arg0: i32) -> (i32, i32) {
    %c0_i32 = arith.constant 0 : i32
    %c0_i32_0 = arith.constant 0 : i32
    %c0_i32_1 = arith.constant 0 : i32
    return %c0_i32, %c0_i32_0 : i32, i32
  }
  func.func @transform_1(%arg0: i32) -> (i32, i32) {
    %c0_i32 = arith.constant 0 : i32
    %c0_i32_0 = arith.constant 0 : i32
    %c0_i32_1 = arith.constant 0 : i32
    return %c0_i32, %c0_i32_0 : i32, i32
  }
  func.func @transform_2(%arg0: i32) -> (i32, i32) {
    %c0_i32 = arith.constant 0 : i32
    %c0_i32_0 = arith.constant 0 : i32
    %c0_i32_1 = arith.constant 0 : i32
    return %c0_i32, %c0_i32_0 : i32, i32
  }
  func.func @transform_3(%arg0: i32) -> (i32, i32) {
    %c0_i32 = arith.constant 0 : i32
    %c0_i32_0 = arith.constant 0 : i32
    %c0_i32_1 = arith.constant 0 : i32
    return %c0_i32, %c0_i32_0 : i32, i32
  }
  func.func @transform_4(%arg0: i32) -> (i32, i32) {
    %c0_i32 = arith.constant 0 : i32
    %c0_i32_0 = arith.constant 0 : i32
    %c0_i32_1 = arith.constant 0 : i32
    return %c0_i32, %c0_i32_0 : i32, i32
  }
  func.func @transform_5(%arg0: i32) -> (i32, i32) {
    %c0_i32 = arith.constant 0 : i32
    %c0_i32_0 = arith.constant 0 : i32
    %c0_i32_1 = arith.constant 0 : i32
    return %c0_i32, %c0_i32_0 : i32, i32
  }
  func.func @transform_6(%arg0: i32) -> (i32, i32) {
    %c0_i32 = arith.constant 0 : i32
    %c0_i32_0 = arith.constant 0 : i32
    %c0_i32_1 = arith.constant 0 : i32
    return %c0_i32, %c0_i32_0 : i32, i32
  }
  func.func @transform_7(%arg0: i32) -> (i32, i32) {
    %c0_i32 = arith.constant 0 : i32
    %c0_i32_0 = arith.constant 0 : i32
    %c0_i32_1 = arith.constant 0 : i32
    return %c0_i32, %c0_i32_0 : i32, i32
  }
  func.func @transform_8(%arg0: i32) -> (i32, i32) {
    %c0_i32 = arith.constant 0 : i32
    %c0_i32_0 = arith.constant 0 : i32
    %c0_i32_1 = arith.constant 0 : i32
    return %c0_i32, %c0_i32_0 : i32, i32
  }
}

</mosaic_0001>

<llo_original>
// kernel: tpu_custom_call.1
$region0: #{tpu_custom_call.1}
  #allocation0 [shape = 'u32[]', space=smem, size = 0x4, offset = 0x4, fixed_abs, tag = 'smem constant byte address 0x4 - core index']
  #allocation1 [shape = 'u32[144,128]{1,0:T(1,128)}', space=vmem, size = 0x12000, scoped, tag = 'internal scratch']
  %s0 = inlined_call_operand.hbm [shape: f32[2,256], index: 0, kind: input, shape index: {}]
  %s1 = inlined_call_operand.hbm [shape: f32[2,1024], index: 1, kind: input, shape index: {}]
  %s2 = inlined_call_operand.hbm [shape: f32[256,2048], index: 2, kind: input, shape index: {}]
  %s3 = inlined_call_operand.hbm [shape: f32[1024,2048], index: 3, kind: input, shape index: {}]
  %s4 = inlined_call_operand.vmem [shape: f32[2048,8], index: 4, kind: input, shape index: {}]
  %s5 = inlined_call_operand.hbm [shape: f32[8,2048], index: 5, kind: input, shape index: {}]
  %s6 = inlined_call_operand.hbm [shape: f32[1,8], index: 6, kind: input, shape index: {}]
  %s7 = inlined_call_operand.hbm [shape: f32[1,8], index: 7, kind: input, shape index: {}]
  %s8 = inlined_call_operand.hbm [shape: f32[2,2048], index: 8, kind: output, shape index: {}]
  %s9 = sld [smem:[#allocation0]]
  $region70: #{tpu_custom_call.1} parent=0
    _
  %s11 = ssub.s32 1, %s9
  %s12 = scalar_select 0, %s11, %s9
  $region1: #{tpu_custom_call.1} parent=0
    #allocation2 [shape = 'u8[2048]{0}', space=vmem, size = 0x800, scoped, tag = 'input window, operand 0, single buffered']
    #allocation3 [shape = 's32[1]{0}', space=sflag, size = 0x4, scoped, tag = 'scoped memory for tpu_custom_call.1']
    #allocation4 [shape = 's32[1]{0}', space=sflag, size = 0x4, scoped, tag = 'scoped memory for tpu_custom_call.1']
    #allocation5 [shape = 'u8[8192]{0}', space=vmem, size = 0x2000, scoped, tag = 'input window, operand 1, single buffered']
    #allocation6 [shape = 's32[1]{0}', space=sflag, size = 0x4, scoped, tag = 'scoped memory for tpu_custom_call.1']
    #allocation7 [shape = 'u8[2097152]{0}', space=vmem, size = 0x200000, scoped, tag = 'input window, operand 2, single buffered']
    #allocation8 [shape = 'u8[8388608]{0}', space=vmem, size = 0x800000, scoped, tag = 'input window, operand 3, single buffered']
    #allocation9 [shape = 's32[1]{0}', space=sflag, size = 0x4, scoped, tag = 'scoped memory for tpu_custom_call.1']
    #allocation10 [shape = 'u8[65536]{0}', space=vmem, size = 0x10000, scoped, tag = 'input window, operand 5, single buffered']
    #allocation11 [shape = 'u8[512]{0}', space=vmem, size = 0x400, scoped, tag = 'input window, operand 6, single buffered']
    #allocation12 [shape = 's32[1]{0}', space=sflag, size = 0x4, scoped, tag = 'scoped memory for tpu_custom_call.1']
    #allocation13 [shape = 'u8[512]{0}', space=vmem, size = 0x400, scoped, tag = 'input window, operand 7, single buffered']
    #allocation14 [shape = 'u8[16384]{0}', space=vmem, size = 0x4000, scoped, tag = 'output window, operand 0, single buffered']
    %13 = vsyncpa [#allocation3], 0
    %14 = vsyncpa [#allocation6], 0
    %15 = vsyncpa [#allocation9], 0
    %16 = vsyncpa [#allocation12], 0
    %17 = vsyncpa [#allocation4], 0
    // Predicated region
    $region2: #{tpu_custom_call.1} parent=1 // pred_check
      _
    $region3: #{tpu_custom_call.1} parent=1 // pred_check_branch
      %19 = sbr.rel (0) target = $region5
    $region4: #{tpu_custom_call.1} parent=1 // pred_region
      %s21 = ssub.s32 64, 64
      %22 = vsyncadd [#allocation3], %s21
      %s24 = sshll.u32 [#allocation2], 4
      %s25 = int_to_ptr.vmem [resolvable:$true] %s24
      %27 = dma.hbm_to_vmem [thread:$0]  %s0, 64, %s25, [#allocation3]
    $region5: #{tpu_custom_call.1} parent=1 // pred_fallthru
      _
    // Predicated region
    $region6: #{tpu_custom_call.1} parent=1 // pred_check
      _
    $region7: #{tpu_custom_call.1} parent=1 // pred_check_branch
      %29 = sbr.rel (0) target = $region9
    $region8: #{tpu_custom_call.1} parent=1 // pred_region
      %s31 = ssub.s32 256, 256
      %32 = vsyncadd [#allocation6], %s31
      %s34 = sshll.u32 [#allocation5], 4
      %s35 = int_to_ptr.vmem [resolvable:$true] %s34
      %37 = dma.hbm_to_vmem [thread:$0]  %s1, 256, %s35, [#allocation6]
    $region9: #{tpu_custom_call.1} parent=1 // pred_fallthru
      _
    // Predicated region
    $region10: #{tpu_custom_call.1} parent=1 // pred_check
      _
    $region11: #{tpu_custom_call.1} parent=1 // pred_check_branch
      %39 = sbr.rel (0) target = $region13
    $region12: #{tpu_custom_call.1} parent=1 // pred_region
      %s41 = ssub.s32 65536, 65536
      %42 = vsyncadd [#allocation6], %s41
      %s43 = sshll.u32 [#allocation7], 4
      %s44 = int_to_ptr.vmem [resolvable:$true] %s43
      %49 = dma.hbm_to_vmem [thread:$0]  %s2, 65536, %s44, [#allocation6], 2048, 2048, 128
    $region13: #{tpu_custom_call.1} parent=1 // pred_fallthru
      _
    // Predicated region
    $region14: #{tpu_custom_call.1} parent=1 // pred_check
      _
    $region15: #{tpu_custom_call.1} parent=1 // pred_check_branch
      %51 = sbr.rel (0) target = $region17
    $region16: #{tpu_custom_call.1} parent=1 // pred_region
      %s53 = ssub.s32 262144, 262144
      %54 = vsyncadd [#allocation9], %s53
      %s55 = sshll.u32 [#allocation8], 4
      %s56 = int_to_ptr.vmem [resolvable:$true] %s55
      %61 = dma.hbm_to_vmem [thread:$0]  %s3, 262144, %s56, [#allocation9], 2048, 2048, 128
    $region17: #{tpu_custom_call.1} parent=1 // pred_fallthru
      _
    // Predicated region
    $region18: #{tpu_custom_call.1} parent=1 // pred_check
      _
    $region19: #{tpu_custom_call.1} parent=1 // pred_check_branch
      %63 = sbr.rel (0) target = $region21
    $region20: #{tpu_custom_call.1} parent=1 // pred_region
      _
    $region21: #{tpu_custom_call.1} parent=1 // pred_fallthru
      _
    // Predicated region
    $region22: #{tpu_custom_call.1} parent=1 // pred_check
      _
    $region23: #{tpu_custom_call.1} parent=1 // pred_check_branch
      %65 = sbr.rel (0) target = $region25
    $region24: #{tpu_custom_call.1} parent=1 // pred_region
      %s67 = ssub.s32 2048, 2048
      %68 = vsyncadd [#allocation9], %s67
      %s70 = sshll.u32 [#allocation10], 4
      %s71 = int_to_ptr.vmem [resolvable:$true] %s70
      %73 = dma.hbm_to_vmem [thread:$0]  %s5, 2048, %s71, [#allocation9]
    $region25: #{tpu_custom_call.1} parent=1 // pred_fallthru
      _
    // Predicated region
    $region26: #{tpu_custom_call.1} parent=1 // pred_check
      _
    $region27: #{tpu_custom_call.1} parent=1 // pred_check_branch
      %75 = sbr.rel (0) target = $region29
    $region28: #{tpu_custom_call.1} parent=1 // pred_region
      %s77 = ssub.s32 16, 16
      %78 = vsyncadd [#allocation12], %s77
      %s80 = sshll.u32 [#allocation11], 4
      %s81 = int_to_ptr.vmem [resolvable:$true] %s80
      %83 = dma.hbm_to_vmem [thread:$0]  %s6, 16, %s81, [#allocation12]
    $region29: #{tpu_custom_call.1} parent=1 // pred_fallthru
      _
    // Predicated region
    $region30: #{tpu_custom_call.1} parent=1 // pred_check
      _
    $region31: #{tpu_custom_call.1} parent=1 // pred_check_branch
      %85 = sbr.rel (0) target = $region33
    $region32: #{tpu_custom_call.1} parent=1 // pred_region
      %s87 = ssub.s32 16, 16
      %88 = vsyncadd [#allocation12], %s87
      %s90 = sshll.u32 [#allocation13], 4
      %s91 = int_to_ptr.vmem [resolvable:$true] %s90
      %93 = dma.hbm_to_vmem [thread:$0]  %s7, 16, %s91, [#allocation12]
    $region33: #{tpu_custom_call.1} parent=1 // pred_fallthru
      _
    // Predicated region
    $region34: #{tpu_custom_call.1} parent=1 // pred_check
      _
    $region35: #{tpu_custom_call.1} parent=1 // pred_check_branch
      %95 = sbr.rel (0) target = $region37
    $region36: #{tpu_custom_call.1} parent=1 // pred_region
      %96 = dma.done [#allocation3], 64
    $region37: #{tpu_custom_call.1} parent=1 // pred_fallthru
      _
    // Predicated region
    $region38: #{tpu_custom_call.1} parent=1 // pred_check
      _
    $region39: #{tpu_custom_call.1} parent=1 // pred_check_branch
      %98 = sbr.rel (0) target = $region41
    $region40: #{tpu_custom_call.1} parent=1 // pred_region
      %99 = dma.done [#allocation6], 256
    $region41: #{tpu_custom_call.1} parent=1 // pred_fallthru
      _
    // Predicated region
    $region42: #{tpu_custom_call.1} parent=1 // pred_check
      _
    $region43: #{tpu_custom_call.1} parent=1 // pred_check_branch
      %101 = sbr.rel (0) target = $region45
    $region44: #{tpu_custom_call.1} parent=1 // pred_region
      %102 = dma.done [#allocation6], 65536
    $region45: #{tpu_custom_call.1} parent=1 // pred_fallthru
      _
    // Predicated region
    $region46: #{tpu_custom_call.1} parent=1 // pred_check
      _
    $region47: #{tpu_custom_call.1} parent=1 // pred_check_branch
      %104 = sbr.rel (0) target = $region49
    $region48: #{tpu_custom_call.1} parent=1 // pred_region
      %105 = dma.done [#allocation9], 262144
    $region49: #{tpu_custom_call.1} parent=1 // pred_fallthru
      _
    // Predicated region
    $region50: #{tpu_custom_call.1} parent=1 // pred_check
      _
    $region51: #{tpu_custom_call.1} parent=1 // pred_check_branch
      %107 = sbr.rel (0) target = $region53
    $region52: #{tpu_custom_call.1} parent=1 // pred_region
      %108 = dma.done [#allocation9], 2048
    $region53: #{tpu_custom_call.1} parent=1 // pred_fallthru
      _
    // Predicated region
    $region54: #{tpu_custom_call.1} parent=1 // pred_check
      _
    $region55: #{tpu_custom_call.1} parent=1 // pred_check_branch
      %110 = sbr.rel (0) target = $region57
    $region56: #{tpu_custom_call.1} parent=1 // pred_region
      %111 = dma.done [#allocation12], 16
    $region57: #{tpu_custom_call.1} parent=1 // pred_fallthru
      _
    // Predicated region
    $region58: #{tpu_custom_call.1} parent=1 // pred_check
      _
    $region59: #{tpu_custom_call.1} parent=1 // pred_check_branch
      %113 = sbr.rel (0) target = $region61
    $region60: #{tpu_custom_call.1} parent=1 // pred_region
      %114 = dma.done [#allocation12], 16
    $region61: #{tpu_custom_call.1} parent=1 // pred_fallthru
      _
    %v115 = vld [vmem:[#allocation2] sm:$0xf]
    %v116 = vld [vmem:[#allocation7] sm:$0xff]
    %v117 = vld [vmem:[#allocation7 + $0x8] sm:$0xff]
    %v118 = vld [vmem:[#allocation7 + $0x10] sm:$0xff]
    %v119 = vld [vmem:[#allocation7 + $0x18] sm:$0xff]
    %v120 = vld [vmem:[#allocation7 + $0x20] sm:$0xff]
    %v121 = vld [vmem:[#allocation7 + $0x28] sm:$0xff]
    %v122 = vld [vmem:[#allocation7 + $0x30] sm:$0xff]
    %v123 = vld [vmem:[#allocation7 + $0x38] sm:$0xff]
    %v124 = vld [vmem:[#allocation7 + $0x40] sm:$0xff]
    %v125 = vld [vmem:[#allocation7 + $0x48] sm:$0xff]
    %v126 = vld [vmem:[#allocation7 + $0x50] sm:$0xff]
    %v127 = vld [vmem:[#allocation7 + $0x58] sm:$0xff]
    %v128 = vld [vmem:[#allocation7 + $0x60] sm:$0xff]
    %v129 = vld [vmem:[#allocation7 + $0x68] sm:$0xff]
    %v130 = vld [vmem:[#allocation7 + $0x70] sm:$0xff]
    %v131 = vld [vmem:[#allocation7 + $0x78] sm:$0xff]
    %v132 = vld [vmem:[#allocation7 + $0x80] sm:$0xff]
    %v133 = vld [vmem:[#allocation7 + $0x88] sm:$0xff]
    %v134 = vld [vmem:[#allocation7 + $0x90] sm:$0xff]
    %v135 = vld [vmem:[#allocation7 + $0x98] sm:$0xff]
    %v136 = vld [vmem:[#allocation7 + $0xa0] sm:$0xff]
    %v137 = vld [vmem:[#allocation7 + $0xa8] sm:$0xff]
    %v138 = vld [vmem:[#allocation7 + $0xb0] sm:$0xff]
    %v139 = vld [vmem:[#allocation7 + $0xb8] sm:$0xff]
    %v140 = vld [vmem:[#allocation7 + $0xc0] sm:$0xff]
    %v141 = vld [vmem:[#allocation7 + $0xc8] sm:$0xff]
    %v142 = vld [vmem:[#allocation7 + $0xd0] sm:$0xff]
    %v143 = vld [vmem:[#allocation7 + $0xd8] sm:$0xff]
    %v144 = vld [vmem:[#allocation7 + $0xe0] sm:$0xff]
    %v145 = vld [vmem:[#allocation7 + $0xe8] sm:$0xff]
    %v146 = vld [vmem:[#allocation7 + $0xf0] sm:$0xff]
    %v147 = vld [vmem:[#allocation7 + $0xf8] sm:$0xff]
    %v148 = vld [vmem:[#allocation7 + $0x100] sm:$0xff]
    %v149 = vld [vmem:[#allocation7 + $0x108] sm:$0xff]
    %v150 = vld [vmem:[#allocation7 + $0x110] sm:$0xff]
    %v151 = vld [vmem:[#allocation7 + $0x118] sm:$0xff]
    %v152 = vld [vmem:[#allocation7 + $0x120] sm:$0xff]
    %v153 = vld [vmem:[#allocation7 + $0x128] sm:$0xff]
    %v154 = vld [vmem:[#allocation7 + $0x130] sm:$0xff]
    %v155 = vld [vmem:[#allocation7 + $0x138] sm:$0xff]
    %v156 = vld [vmem:[#allocation7 + $0x140] sm:$0xff]
    %v157 = vld [vmem:[#allocation7 + $0x148] sm:$0xff]
    %v158 = vld [vmem:[#allocation7 + $0x150] sm:$0xff]
    %v159 = vld [vmem:[#allocation7 + $0x158] sm:$0xff]
    %v160 = vld [vmem:[#allocation7 + $0x160] sm:$0xff]
    %v161 = vld [vmem:[#allocation7 + $0x168] sm:$0xff]
    %v162 = vld [vmem:[#allocation7 + $0x170] sm:$0xff]
    %v163 = vld [vmem:[#allocation7 + $0x178] sm:$0xff]
    %v164 = vld [vmem:[#allocation7 + $0x180] sm:$0xff]
    %v165 = vld [vmem:[#allocation7 + $0x188] sm:$0xff]
    %v166 = vld [vmem:[#allocation7 + $0x190] sm:$0xff]
    %v167 = vld [vmem:[#allocation7 + $0x198] sm:$0xff]
    %v168 = vld [vmem:[#allocation7 + $0x1a0] sm:$0xff]
    %v169 = vld [vmem:[#allocation7 + $0x1a8] sm:$0xff]
    %v170 = vld [vmem:[#allocation7 + $0x1b0] sm:$0xff]
    %v171 = vld [vmem:[#allocation7 + $0x1b8] sm:$0xff]
    %v172 = vld [vmem:[#allocation7 + $0x1c0] sm:$0xff]
    %v173 = vld [vmem:[#allocation7 + $0x1c8] sm:$0xff]
    %v174 = vld [vmem:[#allocation7 + $0x1d0] sm:$0xff]
    %v175 = vld [vmem:[#allocation7 + $0x1d8] sm:$0xff]
    %v176 = vld [vmem:[#allocation7 + $0x1e0] sm:$0xff]
    %v177 = vld [vmem:[#allocation7 + $0x1e8] sm:$0xff]
    %v178 = vld [vmem:[#allocation7 + $0x1f0] sm:$0xff]
    %v179 = vld [vmem:[#allocation7 + $0x1f8] sm:$0xff]
    %v180 = vld [vmem:[#allocation7 + $0x200] sm:$0xff]
    %v181 = vld [vmem:[#allocation7 + $0x208] sm:$0xff]
    %v182 = vld [vmem:[#allocation7 + $0x210] sm:$0xff]
    %v183 = vld [vmem:[#allocation7 + $0x218] sm:$0xff]
    %v184 = vld [vmem:[#allocation7 + $0x220] sm:$0xff]
    %v185 = vld [vmem:[#allocation7 + $0x228] sm:$0xff]
    %v186 = vld [vmem:[#allocation7 + $0x230] sm:$0xff]
    %v187 = vld [vmem:[#allocation7 + $0x238] sm:$0xff]
    %v188 = vld [vmem:[#allocation7 + $0x240] sm:$0xff]
    %v189 = vld [vmem:[#allocation7 + $0x248] sm:$0xff]
    %v190 = vld [vmem:[#allocation7 + $0x250] sm:$0xff]
    %v191 = vld [vmem:[#allocation7 + $0x258] sm:$0xff]
    %v192 = vld [vmem:[#allocation7 + $0x260] sm:$0xff]
    %v193 = vld [vmem:[#allocation7 + $0x268] sm:$0xff]
    %v194 = vld [vmem:[#allocation7 + $0x270] sm:$0xff]
    %v195 = vld [vmem:[#allocation7 + $0x278] sm:$0xff]
    %v196 = vld [vmem:[#allocation7 + $0x280] sm:$0xff]
    %v197 = vld [vmem:[#allocation7 + $0x288] sm:$0xff]
    %v198 = vld [vmem:[#allocation7 + $0x290] sm:$0xff]
    %v199 = vld [vmem:[#allocation7 + $0x298] sm:$0xff]
    %v200 = vld [vmem:[#allocation7 + $0x2a0] sm:$0xff]
    %v201 = vld [vmem:[#allocation7 + $0x2a8] sm:$0xff]
    %v202 = vld [vmem:[#allocation7 + $0x2b0] sm:$0xff]
    %v203 = vld [vmem:[#allocation7 + $0x2b8] sm:$0xff]
    %v204 = vld [vmem:[#allocation7 + $0x2c0] sm:$0xff]
    %v205 = vld [vmem:[#allocation7 + $0x2c8] sm:$0xff]
    %v206 = vld [vmem:[#allocation7 + $0x2d0] sm:$0xff]
    %v207 = vld [vmem:[#allocation7 + $0x2d8] sm:$0xff]
    %v208 = vld [vmem:[#allocation7 + $0x2e0] sm:$0xff]
    %v209 = vld [vmem:[#allocation7 + $0x2e8] sm:$0xff]
    %v210 = vld [vmem:[#allocation7 + $0x2f0] sm:$0xff]
    %v211 = vld [vmem:[#allocation7 + $0x2f8] sm:$0xff]
    %v212 = vld [vmem:[#allocation7 + $0x300] sm:$0xff]
    %v213 = vld [vmem:[#allocation7 + $0x308] sm:$0xff]
    %v214 = vld [vmem:[#allocation7 + $0x310] sm:$0xff]
    %v215 = vld [vmem:[#allocation7 + $0x318] sm:$0xff]
    %v216 = vld [vmem:[#allocation7 + $0x320] sm:$0xff]
    %v217 = vld [vmem:[#allocation7 + $0x328] sm:$0xff]
    %v218 = vld [vmem:[#allocation7 + $0x330] sm:$0xff]
    %v219 = vld [vmem:[#allocation7 + $0x338] sm:$0xff]
    %v220 = vld [vmem:[#allocation7 + $0x340] sm:$0xff]
    %v221 = vld [vmem:[#allocation7 + $0x348] sm:$0xff]
    %v222 = vld [vmem:[#allocation7 + $0x350] sm:$0xff]
    %v223 = vld [vmem:[#allocation7 + $0x358] sm:$0xff]
    %v224 = vld [vmem:[#allocation7 + $0x360] sm:$0xff]
    %v225 = vld [vmem:[#allocation7 + $0x368] sm:$0xff]
    %v226 = vld [vmem:[#allocation7 + $0x370] sm:$0xff]
    %v227 = vld [vmem:[#allocation7 + $0x378] sm:$0xff]
    %v228 = vld [vmem:[#allocation7 + $0x380] sm:$0xff]
    %v229 = vld [vmem:[#allocation7 + $0x388] sm:$0xff]
    %v230 = vld [vmem:[#allocation7 + $0x390] sm:$0xff]
    %v231 = vld [vmem:[#allocation7 + $0x398] sm:$0xff]
    %v232 = vld [vmem:[#allocation7 + $0x3a0] sm:$0xff]
    %v233 = vld [vmem:[#allocation7 + $0x3a8] sm:$0xff]
    %v234 = vld [vmem:[#allocation7 + $0x3b0] sm:$0xff]
    %v235 = vld [vmem:[#allocation7 + $0x3b8] sm:$0xff]
    %v236 = vld [vmem:[#allocation7 + $0x3c0] sm:$0xff]
    %v237 = vld [vmem:[#allocation7 + $0x3c8] sm:$0xff]
    %v238 = vld [vmem:[#allocation7 + $0x3d0] sm:$0xff]
    %v239 = vld [vmem:[#allocation7 + $0x3d8] sm:$0xff]
    %v240 = vld [vmem:[#allocation7 + $0x3e0] sm:$0xff]
    %v241 = vld [vmem:[#allocation7 + $0x3e8] sm:$0xff]
    %v242 = vld [vmem:[#allocation7 + $0x3f0] sm:$0xff]
    %v243 = vld [vmem:[#allocation7 + $0x3f8] sm:$0xff]
    %v244 = vld [vmem:[#allocation7 + $0x400] sm:$0xff]
    %v245 = vld [vmem:[#allocation7 + $0x408] sm:$0xff]
    %v246 = vld [vmem:[#allocation7 + $0x410] sm:$0xff]
    %v247 = vld [vmem:[#allocation7 + $0x418] sm:$0xff]
    %v248 = vld [vmem:[#allocation7 + $0x420] sm:$0xff]
    %v249 = vld [vmem:[#allocation7 + $0x428] sm:$0xff]
    %v250 = vld [vmem:[#allocation7 + $0x430] sm:$0xff]
    %v251 = vld [vmem:[#allocation7 + $0x438] sm:$0xff]
    %v252 = vld [vmem:[#allocation7 + $0x440] sm:$0xff]
    %v253 = vld [vmem:[#allocation7 + $0x448] sm:$0xff]
    %v254 = vld [vmem:[#allocation7 + $0x450] sm:$0xff]
    %v255 = vld [vmem:[#allocation7 + $0x458] sm:$0xff]
    %v256 = vld [vmem:[#allocation7 + $0x460] sm:$0xff]
    %v257 = vld [vmem:[#allocation7 + $0x468] sm:$0xff]
    %v258 = vld [vmem:[#allocation7 + $0x470] sm:$0xff]
    %v259 = vld [vmem:[#allocation7 + $0x478] sm:$0xff]
    %v260 = vld [vmem:[#allocation7 + $0x480] sm:$0xff]
    %v261 = vld [vmem:[#allocation7 + $0x488] sm:$0xff]
    %v262 = vld [vmem:[#allocation7 + $0x490] sm:$0xff]
    %v263 = vld [vmem:[#allocation7 + $0x498] sm:$0xff]
    %v264 = vld [vmem:[#allocation7 + $0x4a0] sm:$0xff]
    %v265 = vld [vmem:[#allocation7 + $0x4a8] sm:$0xff]
    %v266 = vld [vmem:[#allocation7 + $0x4b0] sm:$0xff]
    %v267 = vld [vmem:[#allocation7 + $0x4b8] sm:$0xff]
    %v268 = vld [vmem:[#allocation7 + $0x4c0] sm:$0xff]
    %v269 = vld [vmem:[#allocation7 + $0x4c8] sm:$0xff]
    %v270 = vld [vmem:[#allocation7 + $0x4d0] sm:$0xff]
    %v271 = vld [vmem:[#allocation7 + $0x4d8] sm:$0xff]
    %v272 = vld [vmem:[#allocation7 + $0x4e0] sm:$0xff]
    %v273 = vld [vmem:[#allocation7 + $0x4e8] sm:$0xff]
    %v274 = vld [vmem:[#allocation7 + $0x4f0] sm:$0xff]
    %v275 = vld [vmem:[#allocation7 + $0x4f8] sm:$0xff]
    %v276 = vld [vmem:[#allocation7 + $0x500] sm:$0xff]
    %v277 = vld [vmem:[#allocation7 + $0x508] sm:$0xff]
    %v278 = vld [vmem:[#allocation7 + $0x510] sm:$0xff]
    %v279 = vld [vmem:[#allocation7 + $0x518] sm:$0xff]
    %v280 = vld [vmem:[#allocation7 + $0x520] sm:$0xff]
    %v281 = vld [vmem:[#allocation7 + $0x528] sm:$0xff]
    %v282 = vld [vmem:[#allocation7 + $0x530] sm:$0xff]
    %v283 = vld [vmem:[#allocation7 + $0x538] sm:$0xff]
    %v284 = vld [vmem:[#allocation7 + $0x540] sm:$0xff]
    %v285 = vld [vmem:[#allocation7 + $0x548] sm:$0xff]
    %v286 = vld [vmem:[#allocation7 + $0x550] sm:$0xff]
    %v287 = vld [vmem:[#allocation7 + $0x558] sm:$0xff]
    %v288 = vld [vmem:[#allocation7 + $0x560] sm:$0xff]
    %v289 = vld [vmem:[#allocation7 + $0x568] sm:$0xff]
    %v290 = vld [vmem:[#allocation7 + $0x570] sm:$0xff]
    %v291 = vld [vmem:[#allocation7 + $0x578] sm:$0xff]
    %v292 = vld [vmem:[#allocation7 + $0x580] sm:$0xff]
    %v293 = vld [vmem:[#allocation7 + $0x588] sm:$0xff]
    %v294 = vld [vmem:[#allocation7 + $0x590] sm:$0xff]
    %v295 = vld [vmem:[#allocation7 + $0x598] sm:$0xff]
    %v296 = vld [vmem:[#allocation7 + $0x5a0] sm:$0xff]
    %v297 = vld [vmem:[#allocation7 + $0x5a8] sm:$0xff]
    %v298 = vld [vmem:[#allocation7 + $0x5b0] sm:$0xff]
    %v299 = vld [vmem:[#allocation7 + $0x5b8] sm:$0xff]
    %v300 = vld [vmem:[#allocation7 + $0x5c0] sm:$0xff]
    %v301 = vld [vmem:[#allocation7 + $0x5c8] sm:$0xff]
    %v302 = vld [vmem:[#allocation7 + $0x5d0] sm:$0xff]
    %v303 = vld [vmem:[#allocation7 + $0x5d8] sm:$0xff]
    %v304 = vld [vmem:[#allocation7 + $0x5e0] sm:$0xff]
    %v305 = vld [vmem:[#allocation7 + $0x5e8] sm:$0xff]
    %v306 = vld [vmem:[#allocation7 + $0x5f0] sm:$0xff]
    %v307 = vld [vmem:[#allocation7 + $0x5f8] sm:$0xff]
    %v308 = vld [vmem:[#allocation7 + $0x600] sm:$0xff]
    %v309 = vld [vmem:[#allocation7 + $0x608] sm:$0xff]
    %v310 = vld [vmem:[#allocation7 + $0x610] sm:$0xff]
    %v311 = vld [vmem:[#allocation7 + $0x618] sm:$0xff]
    %v312 = vld [vmem:[#allocation7 + $0x620] sm:$0xff]
    %v313 = vld [vmem:[#allocation7 + $0x628] sm:$0xff]
    %v314 = vld [vmem:[#allocation7 + $0x630] sm:$0xff]
    %v315 = vld [vmem:[#allocation7 + $0x638] sm:$0xff]
    %v316 = vld [vmem:[#allocation7 + $0x640] sm:$0xff]
    %v317 = vld [vmem:[#allocation7 + $0x648] sm:$0xff]
    %v318 = vld [vmem:[#allocation7 + $0x650] sm:$0xff]
    %v319 = vld [vmem:[#allocation7 + $0x658] sm:$0xff]
    %v320 = vld [vmem:[#allocation7 + $0x660] sm:$0xff]
    %v321 = vld [vmem:[#allocation7 + $0x668] sm:$0xff]
    %v322 = vld [vmem:[#allocation7 + $0x670] sm:$0xff]
    %v323 = vld [vmem:[#allocation7 + $0x678] sm:$0xff]
    %v324 = vld [vmem:[#allocation7 + $0x680] sm:$0xff]
    %v325 = vld [vmem:[#allocation7 + $0x688] sm:$0xff]
    %v326 = vld [vmem:[#allocation7 + $0x690] sm:$0xff]
    %v327 = vld [vmem:[#allocation7 + $0x698] sm:$0xff]
    %v328 = vld [vmem:[#allocation7 + $0x6a0] sm:$0xff]
    %v329 = vld [vmem:[#allocation7 + $0x6a8] sm:$0xff]
    %v330 = vld [vmem:[#allocation7 + $0x6b0] sm:$0xff]
    %v331 = vld [vmem:[#allocation7 + $0x6b8] sm:$0xff]
    %v332 = vld [vmem:[#allocation7 + $0x6c0] sm:$0xff]
    %v333 = vld [vmem:[#allocation7 + $0x6c8] sm:$0xff]
    %v334 = vld [vmem:[#allocation7 + $0x6d0] sm:$0xff]
    %v335 = vld [vmem:[#allocation7 + $0x6d8] sm:$0xff]
    %v336 = vld [vmem:[#allocation7 + $0x6e0] sm:$0xff]
    %v337 = vld [vmem:[#allocation7 + $0x6e8] sm:$0xff]
    %v338 = vld [vmem:[#allocation7 + $0x6f0] sm:$0xff]
    %v339 = vld [vmem:[#allocation7 + $0x6f8] sm:$0xff]
    %v340 = vld [vmem:[#allocation7 + $0x700] sm:$0xff]
    %v341 = vld [vmem:[#allocation7 + $0x708] sm:$0xff]
    %v342 = vld [vmem:[#allocation7 + $0x710] sm:$0xff]
    %v343 = vld [vmem:[#allocation7 + $0x718] sm:$0xff]
    %v344 = vld [vmem:[#allocation7 + $0x720] sm:$0xff]
    %v345 = vld [vmem:[#allocation7 + $0x728] sm:$0xff]
    %v346 = vld [vmem:[#allocation7 + $0x730] sm:$0xff]
    %v347 = vld [vmem:[#allocation7 + $0x738] sm:$0xff]
    %v348 = vld [vmem:[#allocation7 + $0x740] sm:$0xff]
    %v349 = vld [vmem:[#allocation7 + $0x748] sm:$0xff]
    %v350 = vld [vmem:[#allocation7 + $0x750] sm:$0xff]
    %v351 = vld [vmem:[#allocation7 + $0x758] sm:$0xff]
    %v352 = vld [vmem:[#allocation7 + $0x760] sm:$0xff]
    %v353 = vld [vmem:[#allocation7 + $0x768] sm:$0xff]
    %v354 = vld [vmem:[#allocation7 + $0x770] sm:$0xff]
    %v355 = vld [vmem:[#allocation7 + $0x778] sm:$0xff]
    %v356 = vld [vmem:[#allocation7 + $0x780] sm:$0xff]
    %v357 = vld [vmem:[#allocation7 + $0x788] sm:$0xff]
    %v358 = vld [vmem:[#allocation7 + $0x790] sm:$0xff]
    %v359 = vld [vmem:[#allocation7 + $0x798] sm:$0xff]
    %v360 = vld [vmem:[#allocation7 + $0x7a0] sm:$0xff]
    %v361 = vld [vmem:[#allocation7 + $0x7a8] sm:$0xff]
    %v362 = vld [vmem:[#allocation7 + $0x7b0] sm:$0xff]
    %v363 = vld [vmem:[#allocation7 + $0x7b8] sm:$0xff]
    %v364 = vld [vmem:[#allocation7 + $0x7c0] sm:$0xff]
    %v365 = vld [vmem:[#allocation7 + $0x7c8] sm:$0xff]
    %v366 = vld [vmem:[#allocation7 + $0x7d0] sm:$0xff]
    %v367 = vld [vmem:[#allocation7 + $0x7d8] sm:$0xff]
    %v368 = vld [vmem:[#allocation7 + $0x7e0] sm:$0xff]
    %v369 = vld [vmem:[#allocation7 + $0x7e8] sm:$0xff]
    %v370 = vld [vmem:[#allocation7 + $0x7f0] sm:$0xff]
    %v371 = vld [vmem:[#allocation7 + $0x7f8] sm:$0xff]
    %v372 = vld [vmem:[#allocation7 + $0x800] sm:$0xff]
    %v373 = vld [vmem:[#allocation7 + $0x808] sm:$0xff]
    %v374 = vld [vmem:[#allocation7 + $0x810] sm:$0xff]
    %v375 = vld [vmem:[#allocation7 + $0x818] sm:$0xff]
    %v376 = vld [vmem:[#allocation7 + $0x820] sm:$0xff]
    %v377 = vld [vmem:[#allocation7 + $0x828] sm:$0xff]
    %v378 = vld [vmem:[#allocation7 + $0x830] sm:$0xff]
    %v379 = vld [vmem:[#allocation7 + $0x838] sm:$0xff]
    %v380 = vld [vmem:[#allocation7 + $0x840] sm:$0xff]
    %v381 = vld [vmem:[#allocation7 + $0x848] sm:$0xff]
    %v382 = vld [vmem:[#allocation7 + $0x850] sm:$0xff]
    %v383 = vld [vmem:[#allocation7 + $0x858] sm:$0xff]
    %v384 = vld [vmem:[#allocation7 + $0x860] sm:$0xff]
    %v385 = vld [vmem:[#allocation7 + $0x868] sm:$0xff]
    %v386 = vld [vmem:[#allocation7 + $0x870] sm:$0xff]
    %v387 = vld [vmem:[#allocation7 + $0x878] sm:$0xff]
    %v388 = vld [vmem:[#allocation7 + $0x880] sm:$0xff]
    %v389 = vld [vmem:[#allocation7 + $0x888] sm:$0xff]
    %v390 = vld [vmem:[#allocation7 + $0x890] sm:$0xff]
    %v391 = vld [vmem:[#allocation7 + $0x898] sm:$0xff]
    %v392 = vld [vmem:[#allocation7 + $0x8a0] sm:$0xff]
    %v393 = vld [vmem:[#allocation7 + $0x8a8] sm:$0xff]
    %v394 = vld [vmem:[#allocation7 + $0x8b0] sm:$0xff]
    %v395 = vld [vmem:[#allocation7 + $0x8b8] sm:$0xff]
    %v396 = vld [vmem:[#allocation7 + $0x8c0] sm:$0xff]
    %v397 = vld [vmem:[#allocation7 + $0x8c8] sm:$0xff]
    %v398 = vld [vmem:[#allocation7 + $0x8d0] sm:$0xff]
    %v399 = vld [vmem:[#allocation7 + $0x8d8] sm:$0xff]
    %v400 = vld [vmem:[#allocation7 + $0x8e0] sm:$0xff]
    %v401 = vld [vmem:[#allocation7 + $0x8e8] sm:$0xff]
    %v402 = vld [vmem:[#allocation7 + $0x8f0] sm:$0xff]
    %v403 = vld [vmem:[#allocation7 + $0x8f8] sm:$0xff]
    %v404 = vld [vmem:[#allocation7 + $0x900] sm:$0xff]
    %v405 = vld [vmem:[#allocation7 + $0x908] sm:$0xff]
    %v406 = vld [vmem:[#allocation7 + $0x910] sm:$0xff]
    %v407 = vld [vmem:[#allocation7 + $0x918] sm:$0xff]
    %v408 = vld [vmem:[#allocation7 + $0x920] sm:$0xff]
    %v409 = vld [vmem:[#allocation7 + $0x928] sm:$0xff]
    %v410 = vld [vmem:[#allocation7 + $0x930] sm:$0xff]
    %v411 = vld [vmem:[#allocation7 + $0x938] sm:$0xff]
    %v412 = vld [vmem:[#allocation7 + $0x940] sm:$0xff]
    %v413 = vld [vmem:[#allocation7 + $0x948] sm:$0xff]
    %v414 = vld [vmem:[#allocation7 + $0x950] sm:$0xff]
    %v415 = vld [vmem:[#allocation7 + $0x958] sm:$0xff]
    %v416 = vld [vmem:[#allocation7 + $0x960] sm:$0xff]
    %v417 = vld [vmem:[#allocation7 + $0x968] sm:$0xff]
    %v418 = vld [vmem:[#allocation7 + $0x970] sm:$0xff]
    %v419 = vld [vmem:[#allocation7 + $0x978] sm:$0xff]
    %v420 = vld [vmem:[#allocation7 + $0x980] sm:$0xff]
    %v421 = vld [vmem:[#allocation7 + $0x988] sm:$0xff]
    %v422 = vld [vmem:[#allocation7 + $0x990] sm:$0xff]
    %v423 = vld [vmem:[#allocation7 + $0x998] sm:$0xff]
    %v424 = vld [vmem:[#allocation7 + $0x9a0] sm:$0xff]
    %v425 = vld [vmem:[#allocation7 + $0x9a8] sm:$0xff]
    %v426 = vld [vmem:[#allocation7 + $0x9b0] sm:$0xff]
    %v427 = vld [vmem:[#allocation7 + $0x9b8] sm:$0xff]
    %v428 = vld [vmem:[#allocation7 + $0x9c0] sm:$0xff]
    %v429 = vld [vmem:[#allocation7 + $0x9c8] sm:$0xff]
    %v430 = vld [vmem:[#allocation7 + $0x9d0] sm:$0xff]
    %v431 = vld [vmem:[#allocation7 + $0x9d8] sm:$0xff]
    %v432 = vld [vmem:[#allocation7 + $0x9e0] sm:$0xff]
    %v433 = vld [vmem:[#allocation7 + $0x9e8] sm:$0xff]
    %v434 = vld [vmem:[#allocation7 + $0x9f0] sm:$0xff]
    %v435 = vld [vmem:[#allocation7 + $0x9f8] sm:$0xff]
    %v436 = vld [vmem:[#allocation7 + $0xa00] sm:$0xff]
    %v437 = vld [vmem:[#allocation7 + $0xa08] sm:$0xff]
    %v438 = vld [vmem:[#allocation7 + $0xa10] sm:$0xff]
    %v439 = vld [vmem:[#allocation7 + $0xa18] sm:$0xff]
    %v440 = vld [vmem:[#allocation7 + $0xa20] sm:$0xff]
    %v441 = vld [vmem:[#allocation7 + $0xa28] sm:$0xff]
    %v442 = vld [vmem:[#allocation7 + $0xa30] sm:$0xff]
    %v443 = vld [vmem:[#allocation7 + $0xa38] sm:$0xff]
    %v444 = vld [vmem:[#allocation7 + $0xa40] sm:$0xff]
    %v445 = vld [vmem:[#allocation7 + $0xa48] sm:$0xff]
    %v446 = vld [vmem:[#allocation7 + $0xa50] sm:$0xff]
    %v447 = vld [vmem:[#allocation7 + $0xa58] sm:$0xff]
    %v448 = vld [vmem:[#allocation7 + $0xa60] sm:$0xff]
    %v449 = vld [vmem:[#allocation7 + $0xa68] sm:$0xff]
    %v450 = vld [vmem:[#allocation7 + $0xa70] sm:$0xff]
    %v451 = vld [vmem:[#allocation7 + $0xa78] sm:$0xff]
    %v452 = vld [vmem:[#allocation7 + $0xa80] sm:$0xff]
    %v453 = vld [vmem:[#allocation7 + $0xa88] sm:$0xff]
    %v454 = vld [vmem:[#allocation7 + $0xa90] sm:$0xff]
    %v455 = vld [vmem:[#allocation7 + $0xa98] sm:$0xff]
    %v456 = vld [vmem:[#allocation7 + $0xaa0] sm:$0xff]
    %v457 = vld [vmem:[#allocation7 + $0xaa8] sm:$0xff]
    %v458 = vld [vmem:[#allocation7 + $0xab0] sm:$0xff]
    %v459 = vld [vmem:[#allocation7 + $0xab8] sm:$0xff]
    %v460 = vld [vmem:[#allocation7 + $0xac0] sm:$0xff]
    %v461 = vld [vmem:[#allocation7 + $0xac8] sm:$0xff]
    %v462 = vld [vmem:[#allocation7 + $0xad0] sm:$0xff]
    %v463 = vld [vmem:[#allocation7 + $0xad8] sm:$0xff]
    %v464 = vld [vmem:[#allocation7 + $0xae0] sm:$0xff]
    %v465 = vld [vmem:[#allocation7 + $0xae8] sm:$0xff]
    %v466 = vld [vmem:[#allocation7 + $0xaf0] sm:$0xff]
    %v467 = vld [vmem:[#allocation7 + $0xaf8] sm:$0xff]
    %v468 = vld [vmem:[#allocation7 + $0xb00] sm:$0xff]
    %v469 = vld [vmem:[#allocation7 + $0xb08] sm:$0xff]
    %v470 = vld [vmem:[#allocation7 + $0xb10] sm:$0xff]
    %v471 = vld [vmem:[#allocation7 + $0xb18] sm:$0xff]
    %v472 = vld [vmem:[#allocation7 + $0xb20] sm:$0xff]
    %v473 = vld [vmem:[#allocation7 + $0xb28] sm:$0xff]
    %v474 = vld [vmem:[#allocation7 + $0xb30] sm:$0xff]
    %v475 = vld [vmem:[#allocation7 + $0xb38] sm:$0xff]
    %v476 = vld [vmem:[#allocation7 + $0xb40] sm:$0xff]
    %v477 = vld [vmem:[#allocation7 + $0xb48] sm:$0xff]
    %v478 = vld [vmem:[#allocation7 + $0xb50] sm:$0xff]
    %v479 = vld [vmem:[#allocation7 + $0xb58] sm:$0xff]
    %v480 = vld [vmem:[#allocation7 + $0xb60] sm:$0xff]
    %v481 = vld [vmem:[#allocation7 + $0xb68] sm:$0xff]
    %v482 = vld [vmem:[#allocation7 + $0xb70] sm:$0xff]
    %v483 = vld [vmem:[#allocation7 + $0xb78] sm:$0xff]
    %v484 = vld [vmem:[#allocation7 + $0xb80] sm:$0xff]
    %v485 = vld [vmem:[#allocation7 + $0xb88] sm:$0xff]
    %v486 = vld [vmem:[#allocation7 + $0xb90] sm:$0xff]
    %v487 = vld [vmem:[#allocation7 + $0xb98] sm:$0xff]
    %v488 = vld [vmem:[#allocation7 + $0xba0] sm:$0xff]
    %v489 = vld [vmem:[#allocation7 + $0xba8] sm:$0xff]
    %v490 = vld [vmem:[#allocation7 + $0xbb0] sm:$0xff]
    %v491 = vld [vmem:[#allocation7 + $0xbb8] sm:$0xff]
    %v492 = vld [vmem:[#allocation7 + $0xbc0] sm:$0xff]
    %v493 = vld [vmem:[#allocation7 + $0xbc8] sm:$0xff]
    %v494 = vld [vmem:[#allocation7 + $0xbd0] sm:$0xff]
    %v495 = vld [vmem:[#allocation7 + $0xbd8] sm:$0xff]
    %v496 = vld [vmem:[#allocation7 + $0xbe0] sm:$0xff]
    %v497 = vld [vmem:[#allocation7 + $0xbe8] sm:$0xff]
    %v498 = vld [vmem:[#allocation7 + $0xbf0] sm:$0xff]
    %v499 = vld [vmem:[#allocation7 + $0xbf8] sm:$0xff]
    %v500 = vld [vmem:[#allocation7 + $0xc00] sm:$0xff]
    %v501 = vld [vmem:[#allocation7 + $0xc08] sm:$0xff]
    %v502 = vld [vmem:[#allocation7 + $0xc10] sm:$0xff]
    %v503 = vld [vmem:[#allocation7 + $0xc18] sm:$0xff]
    %v504 = vld [vmem:[#allocation7 + $0xc20] sm:$0xff]
    %v505 = vld [vmem:[#allocation7 + $0xc28] sm:$0xff]
    %v506 = vld [vmem:[#allocation7 + $0xc30] sm:$0xff]
    %v507 = vld [vmem:[#allocation7 + $0xc38] sm:$0xff]
    %v508 = vld [vmem:[#allocation7 + $0xc40] sm:$0xff]
    %v509 = vld [vmem:[#allocation7 + $0xc48] sm:$0xff]
    %v510 = vld [vmem:[#allocation7 + $0xc50] sm:$0xff]
    %v511 = vld [vmem:[#allocation7 + $0xc58] sm:$0xff]
    %v512 = vld [vmem:[#allocation7 + $0xc60] sm:$0xff]
    %v513 = vld [vmem:[#allocation7 + $0xc68] sm:$0xff]
    %v514 = vld [vmem:[#allocation7 + $0xc70] sm:$0xff]
    %v515 = vld [vmem:[#allocation7 + $0xc78] sm:$0xff]
    %v516 = vld [vmem:[#allocation7 + $0xc80] sm:$0xff]
    %v517 = vld [vmem:[#allocation7 + $0xc88] sm:$0xff]
    %v518 = vld [vmem:[#allocation7 + $0xc90] sm:$0xff]
    %v519 = vld [vmem:[#allocation7 + $0xc98] sm:$0xff]
    %v520 = vld [vmem:[#allocation7 + $0xca0] sm:$0xff]
    %v521 = vld [vmem:[#allocation7 + $0xca8] sm:$0xff]
    %v522 = vld [vmem:[#allocation7 + $0xcb0] sm:$0xff]
    %v523 = vld [vmem:[#allocation7 + $0xcb8] sm:$0xff]
    %v524 = vld [vmem:[#allocation7 + $0xcc0] sm:$0xff]
    %v525 = vld [vmem:[#allocation7 + $0xcc8] sm:$0xff]
    %v526 = vld [vmem:[#allocation7 + $0xcd0] sm:$0xff]
    %v527 = vld [vmem:[#allocation7 + $0xcd8] sm:$0xff]
    %v528 = vld [vmem:[#allocation7 + $0xce0] sm:$0xff]
    %v529 = vld [vmem:[#allocation7 + $0xce8] sm:$0xff]
    %v530 = vld [vmem:[#allocation7 + $0xcf0] sm:$0xff]
    %v531 = vld [vmem:[#allocation7 + $0xcf8] sm:$0xff]
    %v532 = vld [vmem:[#allocation7 + $0xd00] sm:$0xff]
    %v533 = vld [vmem:[#allocation7 + $0xd08] sm:$0xff]
    %v534 = vld [vmem:[#allocation7 + $0xd10] sm:$0xff]
    %v535 = vld [vmem:[#allocation7 + $0xd18] sm:$0xff]
    %v536 = vld [vmem:[#allocation7 + $0xd20] sm:$0xff]
    %v537 = vld [vmem:[#allocation7 + $0xd28] sm:$0xff]
    %v538 = vld [vmem:[#allocation7 + $0xd30] sm:$0xff]
    %v539 = vld [vmem:[#allocation7 + $0xd38] sm:$0xff]
    %v540 = vld [vmem:[#allocation7 + $0xd40] sm:$0xff]
    %v541 = vld [vmem:[#allocation7 + $0xd48] sm:$0xff]
    %v542 = vld [vmem:[#allocation7 + $0xd50] sm:$0xff]
    %v543 = vld [vmem:[#allocation7 + $0xd58] sm:$0xff]
    %v544 = vld [vmem:[#allocation7 + $0xd60] sm:$0xff]
    %v545 = vld [vmem:[#allocation7 + $0xd68] sm:$0xff]
    %v546 = vld [vmem:[#allocation7 + $0xd70] sm:$0xff]
    %v547 = vld [vmem:[#allocation7 + $0xd78] sm:$0xff]
    %v548 = vld [vmem:[#allocation7 + $0xd80] sm:$0xff]
    %v549 = vld [vmem:[#allocation7 + $0xd88] sm:$0xff]
    %v550 = vld [vmem:[#allocation7 + $0xd90] sm:$0xff]
    %v551 = vld [vmem:[#allocation7 + $0xd98] sm:$0xff]
    %v552 = vld [vmem:[#allocation7 + $0xda0] sm:$0xff]
    %v553 = vld [vmem:[#allocation7 + $0xda8] sm:$0xff]
    %v554 = vld [vmem:[#allocation7 + $0xdb0] sm:$0xff]
    %v555 = vld [vmem:[#allocation7 + $0xdb8] sm:$0xff]
    %v556 = vld [vmem:[#allocation7 + $0xdc0] sm:$0xff]
    %v557 = vld [vmem:[#allocation7 + $0xdc8] sm:$0xff]
    %v558 = vld [vmem:[#allocation7 + $0xdd0] sm:$0xff]
    %v559 = vld [vmem:[#allocation7 + $0xdd8] sm:$0xff]
    %v560 = vld [vmem:[#allocation7 + $0xde0] sm:$0xff]
    %v561 = vld [vmem:[#allocation7 + $0xde8] sm:$0xff]
    %v562 = vld [vmem:[#allocation7 + $0xdf0] sm:$0xff]
    %v563 = vld [vmem:[#allocation7 + $0xdf8] sm:$0xff]
    %v564 = vld [vmem:[#allocation7 + $0xe00] sm:$0xff]
    %v565 = vld [vmem:[#allocation7 + $0xe08] sm:$0xff]
    %v566 = vld [vmem:[#allocation7 + $0xe10] sm:$0xff]
    %v567 = vld [vmem:[#allocation7 + $0xe18] sm:$0xff]
    %v568 = vld [vmem:[#allocation7 + $0xe20] sm:$0xff]
    %v569 = vld [vmem:[#allocation7 + $0xe28] sm:$0xff]
    %v570 = vld [vmem:[#allocation7 + $0xe30] sm:$0xff]
    %v571 = vld [vmem:[#allocation7 + $0xe38] sm:$0xff]
    %v572 = vld [vmem:[#allocation7 + $0xe40] sm:$0xff]
    %v573 = vld [vmem:[#allocation7 + $0xe48] sm:$0xff]
    %v574 = vld [vmem:[#allocation7 + $0xe50] sm:$0xff]
    %v575 = vld [vmem:[#allocation7 + $0xe58] sm:$0xff]
    %v576 = vld [vmem:[#allocation7 + $0xe60] sm:$0xff]
    %v577 = vld [vmem:[#allocation7 + $0xe68] sm:$0xff]
    %v578 = vld [vmem:[#allocation7 + $0xe70] sm:$0xff]
    %v579 = vld [vmem:[#allocation7 + $0xe78] sm:$0xff]
    %v580 = vld [vmem:[#allocation7 + $0xe80] sm:$0xff]
    %v581 = vld [vmem:[#allocation7 + $0xe88] sm:$0xff]
    %v582 = vld [vmem:[#allocation7 + $0xe90] sm:$0xff]
    %v583 = vld [vmem:[#allocation7 + $0xe98] sm:$0xff]
    %v584 = vld [vmem:[#allocation7 + $0xea0] sm:$0xff]
    %v585 = vld [vmem:[#allocation7 + $0xea8] sm:$0xff]
    %v586 = vld [vmem:[#allocation7 + $0xeb0] sm:$0xff]
    %v587 = vld [vmem:[#allocation7 + $0xeb8] sm:$0xff]
    %v588 = vld [vmem:[#allocation7 + $0xec0] sm:$0xff]
    %v589 = vld [vmem:[#allocation7 + $0xec8] sm:$0xff]
    %v590 = vld [vmem:[#allocation7 + $0xed0] sm:$0xff]
    %v591 = vld [vmem:[#allocation7 + $0xed8] sm:$0xff]
    %v592 = vld [vmem:[#allocation7 + $0xee0] sm:$0xff]
    %v593 = vld [vmem:[#allocation7 + $0xee8] sm:$0xff]
    %v594 = vld [vmem:[#allocation7 + $0xef0] sm:$0xff]
    %v595 = vld [vmem:[#allocation7 + $0xef8] sm:$0xff]
    %v596 = vld [vmem:[#allocation7 + $0xf00] sm:$0xff]
    %v597 = vld [vmem:[#allocation7 + $0xf08] sm:$0xff]
    %v598 = vld [vmem:[#allocation7 + $0xf10] sm:$0xff]
    %v599 = vld [vmem:[#allocation7 + $0xf18] sm:$0xff]
    %v600 = vld [vmem:[#allocation7 + $0xf20] sm:$0xff]
    %v601 = vld [vmem:[#allocation7 + $0xf28] sm:$0xff]
    %v602 = vld [vmem:[#allocation7 + $0xf30] sm:$0xff]
    %v603 = vld [vmem:[#allocation7 + $0xf38] sm:$0xff]
    %v604 = vld [vmem:[#allocation7 + $0xf40] sm:$0xff]
    %v605 = vld [vmem:[#allocation7 + $0xf48] sm:$0xff]
    %v606 = vld [vmem:[#allocation7 + $0xf50] sm:$0xff]
    %v607 = vld [vmem:[#allocation7 + $0xf58] sm:$0xff]
    %v608 = vld [vmem:[#allocation7 + $0xf60] sm:$0xff]
    %v609 = vld [vmem:[#allocation7 + $0xf68] sm:$0xff]
    %v610 = vld [vmem:[#allocation7 + $0xf70] sm:$0xff]
    %v611 = vld [vmem:[#allocation7 + $0xf78] sm:$0xff]
    %v612 = vld [vmem:[#allocation7 + $0xf80] sm:$0xff]
    %v613 = vld [vmem:[#allocation7 + $0xf88] sm:$0xff]
    %v614 = vld [vmem:[#allocation7 + $0xf90] sm:$0xff]
    %v615 = vld [vmem:[#allocation7 + $0xf98] sm:$0xff]
    %v616 = vld [vmem:[#allocation7 + $0xfa0] sm:$0xff]
    %v617 = vld [vmem:[#allocation7 + $0xfa8] sm:$0xff]
    %v618 = vld [vmem:[#allocation7 + $0xfb0] sm:$0xff]
    %v619 = vld [vmem:[#allocation7 + $0xfb8] sm:$0xff]
    %v620 = vld [vmem:[#allocation7 + $0xfc0] sm:$0xff]
    %v621 = vld [vmem:[#allocation7 + $0xfc8] sm:$0xff]
    %v622 = vld [vmem:[#allocation7 + $0xfd0] sm:$0xff]
    %v623 = vld [vmem:[#allocation7 + $0xfd8] sm:$0xff]
    %v624 = vld [vmem:[#allocation7 + $0xfe0] sm:$0xff]
    %v625 = vld [vmem:[#allocation7 + $0xfe8] sm:$0xff]
    %v626 = vld [vmem:[#allocation7 + $0xff0] sm:$0xff]
    %v627 = vld [vmem:[#allocation7 + $0xff8] sm:$0xff]
    %v628 = vld [vmem:[#allocation5] sm:$0xff]
    %v629 = vld [vmem:[#allocation5 + $0x8] sm:$0xff]
    %v630 = vld [vmem:[#allocation8] sm:$0xff]
    %v631 = vld [vmem:[#allocation8 + $0x8] sm:$0xff]
    %v632 = vld [vmem:[#allocation8 + $0x10] sm:$0xff]
    %v633 = vld [vmem:[#allocation8 + $0x18] sm:$0xff]
    %v634 = vld [vmem:[#allocation8 + $0x20] sm:$0xff]
    %v635 = vld [vmem:[#allocation8 + $0x28] sm:$0xff]
    %v636 = vld [vmem:[#allocation8 + $0x30] sm:$0xff]
    %v637 = vld [vmem:[#allocation8 + $0x38] sm:$0xff]
    %v638 = vld [vmem:[#allocation8 + $0x40] sm:$0xff]
    %v639 = vld [vmem:[#allocation8 + $0x48] sm:$0xff]
    %v640 = vld [vmem:[#allocation8 + $0x50] sm:$0xff]
    %v641 = vld [vmem:[#allocation8 + $0x58] sm:$0xff]
    %v642 = vld [vmem:[#allocation8 + $0x60] sm:$0xff]
    %v643 = vld [vmem:[#allocation8 + $0x68] sm:$0xff]
    %v644 = vld [vmem:[#allocation8 + $0x70] sm:$0xff]
    %v645 = vld [vmem:[#allocation8 + $0x78] sm:$0xff]
    %v646 = vld [vmem:[#allocation8 + $0x80] sm:$0xff]
    %v647 = vld [vmem:[#allocation8 + $0x88] sm:$0xff]
    %v648 = vld [vmem:[#allocation8 + $0x90] sm:$0xff]
    %v649 = vld [vmem:[#allocation8 + $0x98] sm:$0xff]
    %v650 = vld [vmem:[#allocation8 + $0xa0] sm:$0xff]
    %v651 = vld [vmem:[#allocation8 + $0xa8] sm:$0xff]
    %v652 = vld [vmem:[#allocation8 + $0xb0] sm:$0xff]
    %v653 = vld [vmem:[#allocation8 + $0xb8] sm:$0xff]
    %v654 = vld [vmem:[#allocation8 + $0xc0] sm:$0xff]
    %v655 = vld [vmem:[#allocation8 + $0xc8] sm:$0xff]
    %v656 = vld [vmem:[#allocation8 + $0xd0] sm:$0xff]
    %v657 = vld [vmem:[#allocation8 + $0xd8] sm:$0xff]
    %v658 = vld [vmem:[#allocation8 + $0xe0] sm:$0xff]
    %v659 = vld [vmem:[#allocation8 + $0xe8] sm:$0xff]
    %v660 = vld [vmem:[#allocation8 + $0xf0] sm:$0xff]
    %v661 = vld [vmem:[#allocation8 + $0xf8] sm:$0xff]
    %v662 = vld [vmem:[#allocation8 + $0x100] sm:$0xff]
    %v663 = vld [vmem:[#allocation8 + $0x108] sm:$0xff]
    %v664 = vld [vmem:[#allocation8 + $0x110] sm:$0xff]
    %v665 = vld [vmem:[#allocation8 + $0x118] sm:$0xff]
    %v666 = vld [vmem:[#allocation8 + $0x120] sm:$0xff]
    %v667 = vld [vmem:[#allocation8 + $0x128] sm:$0xff]
    %v668 = vld [vmem:[#allocation8 + $0x130] sm:$0xff]
    %v669 = vld [vmem:[#allocation8 + $0x138] sm:$0xff]
    %v670 = vld [vmem:[#allocation8 + $0x140] sm:$0xff]
    %v671 = vld [vmem:[#allocation8 + $0x148] sm:$0xff]
    %v672 = vld [vmem:[#allocation8 + $0x150] sm:$0xff]
    %v673 = vld [vmem:[#allocation8 + $0x158] sm:$0xff]
    %v674 = vld [vmem:[#allocation8 + $0x160] sm:$0xff]
    %v675 = vld [vmem:[#allocation8 + $0x168] sm:$0xff]
    %v676 = vld [vmem:[#allocation8 + $0x170] sm:$0xff]
    %v677 = vld [vmem:[#allocation8 + $0x178] sm:$0xff]
    %v678 = vld [vmem:[#allocation8 + $0x180] sm:$0xff]
    %v679 = vld [vmem:[#allocation8 + $0x188] sm:$0xff]
    %v680 = vld [vmem:[#allocation8 + $0x190] sm:$0xff]
    %v681 = vld [vmem:[#allocation8 + $0x198] sm:$0xff]
    %v682 = vld [vmem:[#allocation8 + $0x1a0] sm:$0xff]
    %v683 = vld [vmem:[#allocation8 + $0x1a8] sm:$0xff]
    %v684 = vld [vmem:[#allocation8 + $0x1b0] sm:$0xff]
    %v685 = vld [vmem:[#allocation8 + $0x1b8] sm:$0xff]
    %v686 = vld [vmem:[#allocation8 + $0x1c0] sm:$0xff]
    %v687 = vld [vmem:[#allocation8 + $0x1c8] sm:$0xff]
    %v688 = vld [vmem:[#allocation8 + $0x1d0] sm:$0xff]
    %v689 = vld [vmem:[#allocation8 + $0x1d8] sm:$0xff]
    %v690 = vld [vmem:[#allocation8 + $0x1e0] sm:$0xff]
    %v691 = vld [vmem:[#allocation8 + $0x1e8] sm:$0xff]
    %v692 = vld [vmem:[#allocation8 + $0x1f0] sm:$0xff]
    %v693 = vld [vmem:[#allocation8 + $0x1f8] sm:$0xff]
    %v694 = vld [vmem:[#allocation8 + $0x200] sm:$0xff]
    %v695 = vld [vmem:[#allocation8 + $0x208] sm:$0xff]
    %v696 = vld [vmem:[#allocation8 + $0x210] sm:$0xff]
    %v697 = vld [vmem:[#allocation8 + $0x218] sm:$0xff]
    %v698 = vld [vmem:[#allocation8 + $0x220] sm:$0xff]
    %v699 = vld [vmem:[#allocation8 + $0x228] sm:$0xff]
    %v700 = vld [vmem:[#allocation8 + $0x230] sm:$0xff]
    %v701 = vld [vmem:[#allocation8 + $0x238] sm:$0xff]
    %v702 = vld [vmem:[#allocation8 + $0x240] sm:$0xff]
    %v703 = vld [vmem:[#allocation8 + $0x248] sm:$0xff]
    %v704 = vld [vmem:[#allocation8 + $0x250] sm:$0xff]
    %v705 = vld [vmem:[#allocation8 + $0x258] sm:$0xff]
    %v706 = vld [vmem:[#allocation8 + $0x260] sm:$0xff]
    %v707 = vld [vmem:[#allocation8 + $0x268] sm:$0xff]
    %v708 = vld [vmem:[#allocation8 + $0x270] sm:$0xff]
    %v709 = vld [vmem:[#allocation8 + $0x278] sm:$0xff]
    %v710 = vld [vmem:[#allocation8 + $0x280] sm:$0xff]
    %v711 = vld [vmem:[#allocation8 + $0x288] sm:$0xff]
    %v712 = vld [vmem:[#allocation8 + $0x290] sm:$0xff]
    %v713 = vld [vmem:[#allocation8 + $0x298] sm:$0xff]
    %v714 = vld [vmem:[#allocation8 + $0x2a0] sm:$0xff]
    %v715 = vld [vmem:[#allocation8 + $0x2a8] sm:$0xff]
    %v716 = vld [vmem:[#allocation8 + $0x2b0] sm:$0xff]
    %v717 = vld [vmem:[#allocation8 + $0x2b8] sm:$0xff]
    %v718 = vld [vmem:[#allocation8 + $0x2c0] sm:$0xff]
    %v719 = vld [vmem:[#allocation8 + $0x2c8] sm:$0xff]
    %v720 = vld [vmem:[#allocation8 + $0x2d0] sm:$0xff]
    %v721 = vld [vmem:[#allocation8 + $0x2d8] sm:$0xff]
    %v722 = vld [vmem:[#allocation8 + $0x2e0] sm:$0xff]
    %v723 = vld [vmem:[#allocation8 + $0x2e8] sm:$0xff]
    %v724 = vld [vmem:[#allocation8 + $0x2f0] sm:$0xff]
    %v725 = vld [vmem:[#allocation8 + $0x2f8] sm:$0xff]
    %v726 = vld [vmem:[#allocation8 + $0x300] sm:$0xff]
    %v727 = vld [vmem:[#allocation8 + $0x308] sm:$0xff]
    %v728 = vld [vmem:[#allocation8 + $0x310] sm:$0xff]
    %v729 = vld [vmem:[#allocation8 + $0x318] sm:$0xff]
    %v730 = vld [vmem:[#allocation8 + $0x320] sm:$0xff]
    %v731 = vld [vmem:[#allocation8 + $0x328] sm:$0xff]
    %v732 = vld [vmem:[#allocation8 + $0x330] sm:$0xff]
    %v733 = vld [vmem:[#allocation8 + $0x338] sm:$0xff]
    %v734 = vld [vmem:[#allocation8 + $0x340] sm:$0xff]
    %v735 = vld [vmem:[#allocation8 + $0x348] sm:$0xff]
    %v736 = vld [vmem:[#allocation8 + $0x350] sm:$0xff]
    %v737 = vld [vmem:[#allocation8 + $0x358] sm:$0xff]
    %v738 = vld [vmem:[#allocation8 + $0x360] sm:$0xff]
    %v739 = vld [vmem:[#allocation8 + $0x368] sm:$0xff]
    %v740 = vld [vmem:[#allocation8 + $0x370] sm:$0xff]
    %v741 = vld [vmem:[#allocation8 + $0x378] sm:$0xff]
    %v742 = vld [vmem:[#allocation8 + $0x380] sm:$0xff]
    %v743 = vld [vmem:[#allocation8 + $0x388] sm:$0xff]
    %v744 = vld [vmem:[#allocation8 + $0x390] sm:$0xff]
    %v745 = vld [vmem:[#allocation8 + $0x398] sm:$0xff]
    %v746 = vld [vmem:[#allocation8 + $0x3a0] sm:$0xff]
    %v747 = vld [vmem:[#allocation8 + $0x3a8] sm:$0xff]
    %v748 = vld [vmem:[#allocation8 + $0x3b0] sm:$0xff]
    %v749 = vld [vmem:[#allocation8 + $0x3b8] sm:$0xff]
    %v750 = vld [vmem:[#allocation8 + $0x3c0] sm:$0xff]
    %v751 = vld [vmem:[#allocation8 + $0x3c8] sm:$0xff]
    %v752 = vld [vmem:[#allocation8 + $0x3d0] sm:$0xff]
    %v753 = vld [vmem:[#allocation8 + $0x3d8] sm:$0xff]
    %v754 = vld [vmem:[#allocation8 + $0x3e0] sm:$0xff]
    %v755 = vld [vmem:[#allocation8 + $0x3e8] sm:$0xff]
    %v756 = vld [vmem:[#allocation8 + $0x3f0] sm:$0xff]
    %v757 = vld [vmem:[#allocation8 + $0x3f8] sm:$0xff]
    %v758 = vld [vmem:[#allocation8 + $0x400] sm:$0xff]
    %v759 = vld [vmem:[#allocation8 + $0x408] sm:$0xff]
    %v760 = vld [vmem:[#allocation8 + $0x410] sm:$0xff]
    %v761 = vld [vmem:[#allocation8 + $0x418] sm:$0xff]
    %v762 = vld [vmem:[#allocation8 + $0x420] sm:$0xff]
    %v763 = vld [vmem:[#allocation8 + $0x428] sm:$0xff]
    %v764 = vld [vmem:[#allocation8 + $0x430] sm:$0xff]
    %v765 = vld [vmem:[#allocation8 + $0x438] sm:$0xff]
    %v766 = vld [vmem:[#allocation8 + $0x440] sm:$0xff]
    %v767 = vld [vmem:[#allocation8 + $0x448] sm:$0xff]
    %v768 = vld [vmem:[#allocation8 + $0x450] sm:$0xff]
    %v769 = vld [vmem:[#allocation8 + $0x458] sm:$0xff]
    %v770 = vld [vmem:[#allocation8 + $0x460] sm:$0xff]
    %v771 = vld [vmem:[#allocation8 + $0x468] sm:$0xff]
    %v772 = vld [vmem:[#allocation8 + $0x470] sm:$0xff]
    %v773 = vld [vmem:[#allocation8 + $0x478] sm:$0xff]
    %v774 = vld [vmem:[#allocation8 + $0x480] sm:$0xff]
    %v775 = vld [vmem:[#allocation8 + $0x488] sm:$0xff]
    %v776 = vld [vmem:[#allocation8 + $0x490] sm:$0xff]
    %v777 = vld [vmem:[#allocation8 + $0x498] sm:$0xff]
    %v778 = vld [vmem:[#allocation8 + $0x4a0] sm:$0xff]
    %v779 = vld [vmem:[#allocation8 + $0x4a8] sm:$0xff]
    %v780 = vld [vmem:[#allocation8 + $0x4b0] sm:$0xff]
    %v781 = vld [vmem:[#allocation8 + $0x4b8] sm:$0xff]
    %v782 = vld [vmem:[#allocation8 + $0x4c0] sm:$0xff]
    %v783 = vld [vmem:[#allocation8 + $0x4c8] sm:$0xff]
    %v784 = vld [vmem:[#allocation8 + $0x4d0] sm:$0xff]
    %v785 = vld [vmem:[#allocation8 + $0x4d8] sm:$0xff]
    %v786 = vld [vmem:[#allocation8 + $0x4e0] sm:$0xff]
    %v787 = vld [vmem:[#allocation8 + $0x4e8] sm:$0xff]
    %v788 = vld [vmem:[#allocation8 + $0x4f0] sm:$0xff]
    %v789 = vld [vmem:[#allocation8 + $0x4f8] sm:$0xff]
    %v790 = vld [vmem:[#allocation8 + $0x500] sm:$0xff]
    %v791 = vld [vmem:[#allocation8 + $0x508] sm:$0xff]
    %v792 = vld [vmem:[#allocation8 + $0x510] sm:$0xff]
    %v793 = vld [vmem:[#allocation8 + $0x518] sm:$0xff]
    %v794 = vld [vmem:[#allocation8 + $0x520] sm:$0xff]
    %v795 = vld [vmem:[#allocation8 + $0x528] sm:$0xff]
    %v796 = vld [vmem:[#allocation8 + $0x530] sm:$0xff]
    %v797 = vld [vmem:[#allocation8 + $0x538] sm:$0xff]
    %v798 = vld [vmem:[#allocation8 + $0x540] sm:$0xff]
    %v799 = vld [vmem:[#allocation8 + $0x548] sm:$0xff]
    %v800 = vld [vmem:[#allocation8 + $0x550] sm:$0xff]
    %v801 = vld [vmem:[#allocation8 + $0x558] sm:$0xff]
    %v802 = vld [vmem:[#allocation8 + $0x560] sm:$0xff]
    %v803 = vld [vmem:[#allocation8 + $0x568] sm:$0xff]
    %v804 = vld [vmem:[#allocation8 + $0x570] sm:$0xff]
    %v805 = vld [vmem:[#allocation8 + $0x578] sm:$0xff]
    %v806 = vld [vmem:[#allocation8 + $0x580] sm:$0xff]
    %v807 = vld [vmem:[#allocation8 + $0x588] sm:$0xff]
    %v808 = vld [vmem:[#allocation8 + $0x590] sm:$0xff]
    %v809 = vld [vmem:[#allocation8 + $0x598] sm:$0xff]
    %v810 = vld [vmem:[#allocation8 + $0x5a0] sm:$0xff]
    %v811 = vld [vmem:[#allocation8 + $0x5a8] sm:$0xff]
    %v812 = vld [vmem:[#allocation8 + $0x5b0] sm:$0xff]
    %v813 = vld [vmem:[#allocation8 + $0x5b8] sm:$0xff]
    %v814 = vld [vmem:[#allocation8 + $0x5c0] sm:$0xff]
    %v815 = vld [vmem:[#allocation8 + $0x5c8] sm:$0xff]
    %v816 = vld [vmem:[#allocation8 + $0x5d0] sm:$0xff]
    %v817 = vld [vmem:[#allocation8 + $0x5d8] sm:$0xff]
    %v818 = vld [vmem:[#allocation8 + $0x5e0] sm:$0xff]
    %v819 = vld [vmem:[#allocation8 + $0x5e8] sm:$0xff]
    %v820 = vld [vmem:[#allocation8 + $0x5f0] sm:$0xff]
    %v821 = vld [vmem:[#allocation8 + $0x5f8] sm:$0xff]
    %v822 = vld [vmem:[#allocation8 + $0x600] sm:$0xff]
    %v823 = vld [vmem:[#allocation8 + $0x608] sm:$0xff]
    %v824 = vld [vmem:[#allocation8 + $0x610] sm:$0xff]
    %v825 = vld [vmem:[#allocation8 + $0x618] sm:$0xff]
    %v826 = vld [vmem:[#allocation8 + $0x620] sm:$0xff]
    %v827 = vld [vmem:[#allocation8 + $0x628] sm:$0xff]
    %v828 = vld [vmem:[#allocation8 + $0x630] sm:$0xff]
    %v829 = vld [vmem:[#allocation8 + $0x638] sm:$0xff]
    %v830 = vld [vmem:[#allocation8 + $0x640] sm:$0xff]
    %v831 = vld [vmem:[#allocation8 + $0x648] sm:$0xff]
    %v832 = vld [vmem:[#allocation8 + $0x650] sm:$0xff]
    %v833 = vld [vmem:[#allocation8 + $0x658] sm:$0xff]
    %v834 = vld [vmem:[#allocation8 + $0x660] sm:$0xff]
    %v835 = vld [vmem:[#allocation8 + $0x668] sm:$0xff]
    %v836 = vld [vmem:[#allocation8 + $0x670] sm:$0xff]
    %v837 = vld [vmem:[#allocation8 + $0x678] sm:$0xff]
    %v838 = vld [vmem:[#allocation8 + $0x680] sm:$0xff]
    %v839 = vld [vmem:[#allocation8 + $0x688] sm:$0xff]
    %v840 = vld [vmem:[#allocation8 + $0x690] sm:$0xff]
    %v841 = vld [vmem:[#allocation8 + $0x698] sm:$0xff]
    %v842 = vld [vmem:[#allocation8 + $0x6a0] sm:$0xff]
    %v843 = vld [vmem:[#allocation8 + $0x6a8] sm:$0xff]
    %v844 = vld [vmem:[#allocation8 + $0x6b0] sm:$0xff]
    %v845 = vld [vmem:[#allocation8 + $0x6b8] sm:$0xff]
    %v846 = vld [vmem:[#allocation8 + $0x6c0] sm:$0xff]
    %v847 = vld [vmem:[#allocation8 + $0x6c8] sm:$0xff]
    %v848 = vld [vmem:[#allocation8 + $0x6d0] sm:$0xff]
    %v849 = vld [vmem:[#allocation8 + $0x6d8] sm:$0xff]
    %v850 = vld [vmem:[#allocation8 + $0x6e0] sm:$0xff]
    %v851 = vld [vmem:[#allocation8 + $0x6e8] sm:$0xff]
    %v852 = vld [vmem:[#allocation8 + $0x6f0] sm:$0xff]
    %v853 = vld [vmem:[#allocation8 + $0x6f8] sm:$0xff]
    %v854 = vld [vmem:[#allocation8 + $0x700] sm:$0xff]
    %v855 = vld [vmem:[#allocation8 + $0x708] sm:$0xff]
    %v856 = vld [vmem:[#allocation8 + $0x710] sm:$0xff]
    %v857 = vld [vmem:[#allocation8 + $0x718] sm:$0xff]
    %v858 = vld [vmem:[#allocation8 + $0x720] sm:$0xff]
    %v859 = vld [vmem:[#allocation8 + $0x728] sm:$0xff]
    %v860 = vld [vmem:[#allocation8 + $0x730] sm:$0xff]
    %v861 = vld [vmem:[#allocation8 + $0x738] sm:$0xff]
    %v862 = vld [vmem:[#allocation8 + $0x740] sm:$0xff]
    %v863 = vld [vmem:[#allocation8 + $0x748] sm:$0xff]
    %v864 = vld [vmem:[#allocation8 + $0x750] sm:$0xff]
    %v865 = vld [vmem:[#allocation8 + $0x758] sm:$0xff]
    %v866 = vld [vmem:[#allocation8 + $0x760] sm:$0xff]
    %v867 = vld [vmem:[#allocation8 + $0x768] sm:$0xff]
    %v868 = vld [vmem:[#allocation8 + $0x770] sm:$0xff]
    %v869 = vld [vmem:[#allocation8 + $0x778] sm:$0xff]
    %v870 = vld [vmem:[#allocation8 + $0x780] sm:$0xff]
    %v871 = vld [vmem:[#allocation8 + $0x788] sm:$0xff]
    %v872 = vld [vmem:[#allocation8 + $0x790] sm:$0xff]
    %v873 = vld [vmem:[#allocation8 + $0x798] sm:$0xff]
    %v874 = vld [vmem:[#allocation8 + $0x7a0] sm:$0xff]
    %v875 = vld [vmem:[#allocation8 + $0x7a8] sm:$0xff]
    %v876 = vld [vmem:[#allocation8 + $0x7b0] sm:$0xff]
    %v877 = vld [vmem:[#allocation8 + $0x7b8] sm:$0xff]
    %v878 = vld [vmem:[#allocation8 + $0x7c0] sm:$0xff]
    %v879 = vld [vmem:[#allocation8 + $0x7c8] sm:$0xff]
    %v880 = vld [vmem:[#allocation8 + $0x7d0] sm:$0xff]
    %v881 = vld [vmem:[#allocation8 + $0x7d8] sm:$0xff]
    %v882 = vld [vmem:[#allocation8 + $0x7e0] sm:$0xff]
    %v883 = vld [vmem:[#allocation8 + $0x7e8] sm:$0xff]
    %v884 = vld [vmem:[#allocation8 + $0x7f0] sm:$0xff]
    %v885 = vld [vmem:[#allocation8 + $0x7f8] sm:$0xff]
    %v886 = vld [vmem:[#allocation8 + $0x800] sm:$0xff]
    %v887 = vld [vmem:[#allocation8 + $0x808] sm:$0xff]
    %v888 = vld [vmem:[#allocation8 + $0x810] sm:$0xff]
    %v889 = vld [vmem:[#allocation8 + $0x818] sm:$0xff]
    %v890 = vld [vmem:[#allocation8 + $0x820] sm:$0xff]
    %v891 = vld [vmem:[#allocation8 + $0x828] sm:$0xff]
    %v892 = vld [vmem:[#allocation8 + $0x830] sm:$0xff]
    %v893 = vld [vmem:[#allocation8 + $0x838] sm:$0xff]
    %v894 = vld [vmem:[#allocation8 + $0x840] sm:$0xff]
    %v895 = vld [vmem:[#allocation8 + $0x848] sm:$0xff]
    %v896 = vld [vmem:[#allocation8 + $0x850] sm:$0xff]
    %v897 = vld [vmem:[#allocation8 + $0x858] sm:$0xff]
    %v898 = vld [vmem:[#allocation8 + $0x860] sm:$0xff]
    %v899 = vld [vmem:[#allocation8 + $0x868] sm:$0xff]
    %v900 = vld [vmem:[#allocation8 + $0x870] sm:$0xff]
    %v901 = vld [vmem:[#allocation8 + $0x878] sm:$0xff]
    %v902 = vld [vmem:[#allocation8 + $0x880] sm:$0xff]
    %v903 = vld [vmem:[#allocation8 + $0x888] sm:$0xff]
    %v904 = vld [vmem:[#allocation8 + $0x890] sm:$0xff]
    %v905 = vld [vmem:[#allocation8 + $0x898] sm:$0xff]
    %v906 = vld [vmem:[#allocation8 + $0x8a0] sm:$0xff]
    %v907 = vld [vmem:[#allocation8 + $0x8a8] sm:$0xff]
    %v908 = vld [vmem:[#allocation8 + $0x8b0] sm:$0xff]
    %v909 = vld [vmem:[#allocation8 + $0x8b8] sm:$0xff]
    %v910 = vld [vmem:[#allocation8 + $0x8c0] sm:$0xff]
    %v911 = vld [vmem:[#allocation8 + $0x8c8] sm:$0xff]
    %v912 = vld [vmem:[#allocation8 + $0x8d0] sm:$0xff]
    %v913 = vld [vmem:[#allocation8 + $0x8d8] sm:$0xff]
    %v914 = vld [vmem:[#allocation8 + $0x8e0] sm:$0xff]
    %v915 = vld [vmem:[#allocation8 + $0x8e8] sm:$0xff]
    %v916 = vld [vmem:[#allocation8 + $0x8f0] sm:$0xff]
    %v917 = vld [vmem:[#allocation8 + $0x8f8] sm:$0xff]
    %v918 = vld [vmem:[#allocation8 + $0x900] sm:$0xff]
    %v919 = vld [vmem:[#allocation8 + $0x908] sm:$0xff]
    %v920 = vld [vmem:[#allocation8 + $0x910] sm:$0xff]
    %v921 = vld [vmem:[#allocation8 + $0x918] sm:$0xff]
    %v922 = vld [vmem:[#allocation8 + $0x920] sm:$0xff]
    %v923 = vld [vmem:[#allocation8 + $0x928] sm:$0xff]
    %v924 = vld [vmem:[#allocation8 + $0x930] sm:$0xff]
    %v925 = vld [vmem:[#allocation8 + $0x938] sm:$0xff]
    %v926 = vld [vmem:[#allocation8 + $0x940] sm:$0xff]
    %v927 = vld [vmem:[#allocation8 + $0x948] sm:$0xff]
    %v928 = vld [vmem:[#allocation8 + $0x950] sm:$0xff]
    %v929 = vld [vmem:[#allocation8 + $0x958] sm:$0xff]
    %v930 = vld [vmem:[#allocation8 + $0x960] sm:$0xff]
    %v931 = vld [vmem:[#allocation8 + $0x968] sm:$0xff]
    %v932 = vld [vmem:[#allocation8 + $0x970] sm:$0xff]
    %v933 = vld [vmem:[#allocation8 + $0x978] sm:$0xff]
    %v934 = vld [vmem:[#allocation8 + $0x980] sm:$0xff]
    %v935 = vld [vmem:[#allocation8 + $0x988] sm:$0xff]
    %v936 = vld [vmem:[#allocation8 + $0x990] sm:$0xff]
    %v937 = vld [vmem:[#allocation8 + $0x998] sm:$0xff]
    %v938 = vld [vmem:[#allocation8 + $0x9a0] sm:$0xff]
    %v939 = vld [vmem:[#allocation8 + $0x9a8] sm:$0xff]
    %v940 = vld [vmem:[#allocation8 + $0x9b0] sm:$0xff]
    %v941 = vld [vmem:[#allocation8 + $0x9b8] sm:$0xff]
    %v942 = vld [vmem:[#allocation8 + $0x9c0] sm:$0xff]
    %v943 = vld [vmem:[#allocation8 + $0x9c8] sm:$0xff]
    %v944 = vld [vmem:[#allocation8 + $0x9d0] sm:$0xff]
    %v945 = vld [vmem:[#allocation8 + $0x9d8] sm:$0xff]
    %v946 = vld [vmem:[#allocation8 + $0x9e0] sm:$0xff]
    %v947 = vld [vmem:[#allocation8 + $0x9e8] sm:$0xff]
    %v948 = vld [vmem:[#allocation8 + $0x9f0] sm:$0xff]
    %v949 = vld [vmem:[#allocation8 + $0x9f8] sm:$0xff]
    %v950 = vld [vmem:[#allocation8 + $0xa00] sm:$0xff]
    %v951 = vld [vmem:[#allocation8 + $0xa08] sm:$0xff]
    %v952 = vld [vmem:[#allocation8 + $0xa10] sm:$0xff]
    %v953 = vld [vmem:[#allocation8 + $0xa18] sm:$0xff]
    %v954 = vld [vmem:[#allocation8 + $0xa20] sm:$0xff]
    %v955 = vld [vmem:[#allocation8 + $0xa28] sm:$0xff]
    %v956 = vld [vmem:[#allocation8 + $0xa30] sm:$0xff]
    %v957 = vld [vmem:[#allocation8 + $0xa38] sm:$0xff]
    %v958 = vld [vmem:[#allocation8 + $0xa40] sm:$0xff]
    %v959 = vld [vmem:[#allocation8 + $0xa48] sm:$0xff]
    %v960 = vld [vmem:[#allocation8 + $0xa50] sm:$0xff]
    %v961 = vld [vmem:[#allocation8 + $0xa58] sm:$0xff]
    %v962 = vld [vmem:[#allocation8 + $0xa60] sm:$0xff]
    %v963 = vld [vmem:[#allocation8 + $0xa68] sm:$0xff]
    %v964 = vld [vmem:[#allocation8 + $0xa70] sm:$0xff]
    %v965 = vld [vmem:[#allocation8 + $0xa78] sm:$0xff]
    %v966 = vld [vmem:[#allocation8 + $0xa80] sm:$0xff]
    %v967 = vld [vmem:[#allocation8 + $0xa88] sm:$0xff]
    %v968 = vld [vmem:[#allocation8 + $0xa90] sm:$0xff]
    %v969 = vld [vmem:[#allocation8 + $0xa98] sm:$0xff]
    %v970 = vld [vmem:[#allocation8 + $0xaa0] sm:$0xff]
    %v971 = vld [vmem:[#allocation8 + $0xaa8] sm:$0xff]
    %v972 = vld [vmem:[#allocation8 + $0xab0] sm:$0xff]
    %v973 = vld [vmem:[#allocation8 + $0xab8] sm:$0xff]
    %v974 = vld [vmem:[#allocation8 + $0xac0] sm:$0xff]
    %v975 = vld [vmem:[#allocation8 + $0xac8] sm:$0xff]
    %v976 = vld [vmem:[#allocation8 + $0xad0] sm:$0xff]
    %v977 = vld [vmem:[#allocation8 + $0xad8] sm:$0xff]
    %v978 = vld [vmem:[#allocation8 + $0xae0] sm:$0xff]
    %v979 = vld [vmem:[#allocation8 + $0xae8] sm:$0xff]
    %v980 = vld [vmem:[#allocation8 + $0xaf0] sm:$0xff]
    %v981 = vld [vmem:[#allocation8 + $0xaf8] sm:$0xff]
    %v982 = vld [vmem:[#allocation8 + $0xb00] sm:$0xff]
    %v983 = vld [vmem:[#allocation8 + $0xb08] sm:$0xff]
    %v984 = vld [vmem:[#allocation8 + $0xb10] sm:$0xff]
    %v985 = vld [vmem:[#allocation8 + $0xb18] sm:$0xff]
    %v986 = vld [vmem:[#allocation8 + $0xb20] sm:$0xff]
    %v987 = vld [vmem:[#allocation8 + $0xb28] sm:$0xff]
    %v988 = vld [vmem:[#allocation8 + $0xb30] sm:$0xff]
    %v989 = vld [vmem:[#allocation8 + $0xb38] sm:$0xff]
    %v990 = vld [vmem:[#allocation8 + $0xb40] sm:$0xff]
    %v991 = vld [vmem:[#allocation8 + $0xb48] sm:$0xff]
    %v992 = vld [vmem:[#allocation8 + $0xb50] sm:$0xff]
    %v993 = vld [vmem:[#allocation8 + $0xb58] sm:$0xff]
    %v994 = vld [vmem:[#allocation8 + $0xb60] sm:$0xff]
    %v995 = vld [vmem:[#allocation8 + $0xb68] sm:$0xff]
    %v996 = vld [vmem:[#allocation8 + $0xb70] sm:$0xff]
    %v997 = vld [vmem:[#allocation8 + $0xb78] sm:$0xff]
    %v998 = vld [vmem:[#allocation8 + $0xb80] sm:$0xff]
    %v999 = vld [vmem:[#allocation8 + $0xb88] sm:$0xff]
    %v1000 = vld [vmem:[#allocation8 + $0xb90] sm:$0xff]
    %v1001 = vld [vmem:[#allocation8 + $0xb98] sm:$0xff]
    %v1002 = vld [vmem:[#allocation8 + $0xba0] sm:$0xff]
    %v1003 = vld [vmem:[#allocation8 + $0xba8] sm:$0xff]
    %v1004 = vld [vmem:[#allocation8 + $0xbb0] sm:$0xff]
    %v1005 = vld [vmem:[#allocation8 + $0xbb8] sm:$0xff]
    %v1006 = vld [vmem:[#allocation8 + $0xbc0] sm:$0xff]
    %v1007 = vld [vmem:[#allocation8 + $0xbc8] sm:$0xff]
    %v1008 = vld [vmem:[#allocation8 + $0xbd0] sm:$0xff]
    %v1009 = vld [vmem:[#allocation8 + $0xbd8] sm:$0xff]
    %v1010 = vld [vmem:[#allocation8 + $0xbe0] sm:$0xff]
    %v1011 = vld [vmem:[#allocation8 + $0xbe8] sm:$0xff]
    %v1012 = vld [vmem:[#allocation8 + $0xbf0] sm:$0xff]
    %v1013 = vld [vmem:[#allocation8 + $0xbf8] sm:$0xff]
    %v1014 = vld [vmem:[#allocation8 + $0xc00] sm:$0xff]
    %v1015 = vld [vmem:[#allocation8 + $0xc08] sm:$0xff]
    %v1016 = vld [vmem:[#allocation8 + $0xc10] sm:$0xff]
    %v1017 = vld [vmem:[#allocation8 + $0xc18] sm:$0xff]
    %v1018 = vld [vmem:[#allocation8 + $0xc20] sm:$0xff]
    %v1019 = vld [vmem:[#allocation8 + $0xc28] sm:$0xff]
    %v1020 = vld [vmem:[#allocation8 + $0xc30] sm:$0xff]
    %v1021 = vld [vmem:[#allocation8 + $0xc38] sm:$0xff]
    %v1022 = vld [vmem:[#allocation8 + $0xc40] sm:$0xff]
    %v1023 = vld [vmem:[#allocation8 + $0xc48] sm:$0xff]
    %v1024 = vld [vmem:[#allocation8 + $0xc50] sm:$0xff]
    %v1025 = vld [vmem:[#allocation8 + $0xc58] sm:$0xff]
    %v1026 = vld [vmem:[#allocation8 + $0xc60] sm:$0xff]
    %v1027 = vld [vmem:[#allocation8 + $0xc68] sm:$0xff]
    %v1028 = vld [vmem:[#allocation8 + $0xc70] sm:$0xff]
    %v1029 = vld [vmem:[#allocation8 + $0xc78] sm:$0xff]
    %v1030 = vld [vmem:[#allocation8 + $0xc80] sm:$0xff]
    %v1031 = vld [vmem:[#allocation8 + $0xc88] sm:$0xff]
    %v1032 = vld [vmem:[#allocation8 + $0xc90] sm:$0xff]
    %v1033 = vld [vmem:[#allocation8 + $0xc98] sm:$0xff]
    %v1034 = vld [vmem:[#allocation8 + $0xca0] sm:$0xff]
    %v1035 = vld [vmem:[#allocation8 + $0xca8] sm:$0xff]
    %v1036 = vld [vmem:[#allocation8 + $0xcb0] sm:$0xff]
    %v1037 = vld [vmem:[#allocation8 + $0xcb8] sm:$0xff]
    %v1038 = vld [vmem:[#allocation8 + $0xcc0] sm:$0xff]
    %v1039 = vld [vmem:[#allocation8 + $0xcc8] sm:$0xff]
    %v1040 = vld [vmem:[#allocation8 + $0xcd0] sm:$0xff]
    %v1041 = vld [vmem:[#allocation8 + $0xcd8] sm:$0xff]
    %v1042 = vld [vmem:[#allocation8 + $0xce0] sm:$0xff]
    %v1043 = vld [vmem:[#allocation8 + $0xce8] sm:$0xff]
    %v1044 = vld [vmem:[#allocation8 + $0xcf0] sm:$0xff]
    %v1045 = vld [vmem:[#allocation8 + $0xcf8] sm:$0xff]
    %v1046 = vld [vmem:[#allocation8 + $0xd00] sm:$0xff]
    %v1047 = vld [vmem:[#allocation8 + $0xd08] sm:$0xff]
    %v1048 = vld [vmem:[#allocation8 + $0xd10] sm:$0xff]
    %v1049 = vld [vmem:[#allocation8 + $0xd18] sm:$0xff]
    %v1050 = vld [vmem:[#allocation8 + $0xd20] sm:$0xff]
    %v1051 = vld [vmem:[#allocation8 + $0xd28] sm:$0xff]
    %v1052 = vld [vmem:[#allocation8 + $0xd30] sm:$0xff]
    %v1053 = vld [vmem:[#allocation8 + $0xd38] sm:$0xff]
    %v1054 = vld [vmem:[#allocation8 + $0xd40] sm:$0xff]
    %v1055 = vld [vmem:[#allocation8 + $0xd48] sm:$0xff]
    %v1056 = vld [vmem:[#allocation8 + $0xd50] sm:$0xff]
    %v1057 = vld [vmem:[#allocation8 + $0xd58] sm:$0xff]
    %v1058 = vld [vmem:[#allocation8 + $0xd60] sm:$0xff]
    %v1059 = vld [vmem:[#allocation8 + $0xd68] sm:$0xff]
    %v1060 = vld [vmem:[#allocation8 + $0xd70] sm:$0xff]
    %v1061 = vld [vmem:[#allocation8 + $0xd78] sm:$0xff]
    %v1062 = vld [vmem:[#allocation8 + $0xd80] sm:$0xff]
    %v1063 = vld [vmem:[#allocation8 + $0xd88] sm:$0xff]
    %v1064 = vld [vmem:[#allocation8 + $0xd90] sm:$0xff]
    %v1065 = vld [vmem:[#allocation8 + $0xd98] sm:$0xff]
    %v1066 = vld [vmem:[#allocation8 + $0xda0] sm:$0xff]
    %v1067 = vld [vmem:[#allocation8 + $0xda8] sm:$0xff]
    %v1068 = vld [vmem:[#allocation8 + $0xdb0] sm:$0xff]
    %v1069 = vld [vmem:[#allocation8 + $0xdb8] sm:$0xff]
    %v1070 = vld [vmem:[#allocation8 + $0xdc0] sm:$0xff]
    %v1071 = vld [vmem:[#allocation8 + $0xdc8] sm:$0xff]
    %v1072 = vld [vmem:[#allocation8 + $0xdd0] sm:$0xff]
    %v1073 = vld [vmem:[#allocation8 + $0xdd8] sm:$0xff]
    %v1074 = vld [vmem:[#allocation8 + $0xde0] sm:$0xff]
    %v1075 = vld [vmem:[#allocation8 + $0xde8] sm:$0xff]
    %v1076 = vld [vmem:[#allocation8 + $0xdf0] sm:$0xff]
    %v1077 = vld [vmem:[#allocation8 + $0xdf8] sm:$0xff]
    %v1078 = vld [vmem:[#allocation8 + $0xe00] sm:$0xff]
    %v1079 = vld [vmem:[#allocation8 + $0xe08] sm:$0xff]
    %v1080 = vld [vmem:[#allocation8 + $0xe10] sm:$0xff]
    %v1081 = vld [vmem:[#allocation8 + $0xe18] sm:$0xff]
    %v1082 = vld [vmem:[#allocation8 + $0xe20] sm:$0xff]
    %v1083 = vld [vmem:[#allocation8 + $0xe28] sm:$0xff]
    %v1084 = vld [vmem:[#allocation8 + $0xe30] sm:$0xff]
    %v1085 = vld [vmem:[#allocation8 + $0xe38] sm:$0xff]
    %v1086 = vld [vmem:[#allocation8 + $0xe40] sm:$0xff]
    %v1087 = vld [vmem:[#allocation8 + $0xe48] sm:$0xff]
    %v1088 = vld [vmem:[#allocation8 + $0xe50] sm:$0xff]
    %v1089 = vld [vmem:[#allocation8 + $0xe58] sm:$0xff]
    %v1090 = vld [vmem:[#allocation8 + $0xe60] sm:$0xff]
    %v1091 = vld [vmem:[#allocation8 + $0xe68] sm:$0xff]
    %v1092 = vld [vmem:[#allocation8 + $0xe70] sm:$0xff]
    %v1093 = vld [vmem:[#allocation8 + $0xe78] sm:$0xff]
    %v1094 = vld [vmem:[#allocation8 + $0xe80] sm:$0xff]
    %v1095 = vld [vmem:[#allocation8 + $0xe88] sm:$0xff]
    %v1096 = vld [vmem:[#allocation8 + $0xe90] sm:$0xff]
    %v1097 = vld [vmem:[#allocation8 + $0xe98] sm:$0xff]
    %v1098 = vld [vmem:[#allocation8 + $0xea0] sm:$0xff]
    %v1099 = vld [vmem:[#allocation8 + $0xea8] sm:$0xff]
    %v1100 = vld [vmem:[#allocation8 + $0xeb0] sm:$0xff]
    %v1101 = vld [vmem:[#allocation8 + $0xeb8] sm:$0xff]
    %v1102 = vld [vmem:[#allocation8 + $0xec0] sm:$0xff]
    %v1103 = vld [vmem:[#allocation8 + $0xec8] sm:$0xff]
    %v1104 = vld [vmem:[#allocation8 + $0xed0] sm:$0xff]
    %v1105 = vld [vmem:[#allocation8 + $0xed8] sm:$0xff]
    %v1106 = vld [vmem:[#allocation8 + $0xee0] sm:$0xff]
    %v1107 = vld [vmem:[#allocation8 + $0xee8] sm:$0xff]
    %v1108 = vld [vmem:[#allocation8 + $0xef0] sm:$0xff]
    %v1109 = vld [vmem:[#allocation8 + $0xef8] sm:$0xff]
    %v1110 = vld [vmem:[#allocation8 + $0xf00] sm:$0xff]
    %v1111 = vld [vmem:[#allocation8 + $0xf08] sm:$0xff]
    %v1112 = vld [vmem:[#allocation8 + $0xf10] sm:$0xff]
    %v1113 = vld [vmem:[#allocation8 + $0xf18] sm:$0xff]
    %v1114 = vld [vmem:[#allocation8 + $0xf20] sm:$0xff]
    %v1115 = vld [vmem:[#allocation8 + $0xf28] sm:$0xff]
    %v1116 = vld [vmem:[#allocation8 + $0xf30] sm:$0xff]
    %v1117 = vld [vmem:[#allocation8 + $0xf38] sm:$0xff]
    %v1118 = vld [vmem:[#allocation8 + $0xf40] sm:$0xff]
    %v1119 = vld [vmem:[#allocation8 + $0xf48] sm:$0xff]
    %v1120 = vld [vmem:[#allocation8 + $0xf50] sm:$0xff]
    %v1121 = vld [vmem:[#allocation8 + $0xf58] sm:$0xff]
    %v1122 = vld [vmem:[#allocation8 + $0xf60] sm:$0xff]
    %v1123 = vld [vmem:[#allocation8 + $0xf68] sm:$0xff]
    %v1124 = vld [vmem:[#allocation8 + $0xf70] sm:$0xff]
    %v1125 = vld [vmem:[#allocation8 + $0xf78] sm:$0xff]
    %v1126 = vld [vmem:[#allocation8 + $0xf80] sm:$0xff]
    %v1127 = vld [vmem:[#allocation8 + $0xf88] sm:$0xff]
    %v1128 = vld [vmem:[#allocation8 + $0xf90] sm:$0xff]
    %v1129 = vld [vmem:[#allocation8 + $0xf98] sm:$0xff]
    %v1130 = vld [vmem:[#allocation8 + $0xfa0] sm:$0xff]
    %v1131 = vld [vmem:[#allocation8 + $0xfa8] sm:$0xff]
    %v1132 = vld [vmem:[#allocation8 + $0xfb0] sm:$0xff]
    %v1133 = vld [vmem:[#allocation8 + $0xfb8] sm:$0xff]
    %v1134 = vld [vmem:[#allocation8 + $0xfc0] sm:$0xff]
    %v1135 = vld [vmem:[#allocation8 + $0xfc8] sm:$0xff]
    %v1136 = vld [vmem:[#allocation8 + $0xfd0] sm:$0xff]
    %v1137 = vld [vmem:[#allocation8 + $0xfd8] sm:$0xff]
    %v1138 = vld [vmem:[#allocation8 + $0xfe0] sm:$0xff]
    %v1139 = vld [vmem:[#allocation8 + $0xfe8] sm:$0xff]
    %v1140 = vld [vmem:[#allocation8 + $0xff0] sm:$0xff]
    %v1141 = vld [vmem:[#allocation8 + $0xff8] sm:$0xff]
    %v1142 = vld [vmem:[#allocation8 + $0x1000] sm:$0xff]
    %v1143 = vld [vmem:[#allocation8 + $0x1008] sm:$0xff]
    %v1144 = vld [vmem:[#allocation8 + $0x1010] sm:$0xff]
    %v1145 = vld [vmem:[#allocation8 + $0x1018] sm:$0xff]
    %v1146 = vld [vmem:[#allocation8 + $0x1020] sm:$0xff]
    %v1147 = vld [vmem:[#allocation8 + $0x1028] sm:$0xff]
    %v1148 = vld [vmem:[#allocation8 + $0x1030] sm:$0xff]
    %v1149 = vld [vmem:[#allocation8 + $0x1038] sm:$0xff]
    %v1150 = vld [vmem:[#allocation8 + $0x1040] sm:$0xff]
    %v1151 = vld [vmem:[#allocation8 + $0x1048] sm:$0xff]
    %v1152 = vld [vmem:[#allocation8 + $0x1050] sm:$0xff]
    %v1153 = vld [vmem:[#allocation8 + $0x1058] sm:$0xff]
    %v1154 = vld [vmem:[#allocation8 + $0x1060] sm:$0xff]
    %v1155 = vld [vmem:[#allocation8 + $0x1068] sm:$0xff]
    %v1156 = vld [vmem:[#allocation8 + $0x1070] sm:$0xff]
    %v1157 = vld [vmem:[#allocation8 + $0x1078] sm:$0xff]
    %v1158 = vld [vmem:[#allocation8 + $0x1080] sm:$0xff]
    %v1159 = vld [vmem:[#allocation8 + $0x1088] sm:$0xff]
    %v1160 = vld [vmem:[#allocation8 + $0x1090] sm:$0xff]
    %v1161 = vld [vmem:[#allocation8 + $0x1098] sm:$0xff]
    %v1162 = vld [vmem:[#allocation8 + $0x10a0] sm:$0xff]
    %v1163 = vld [vmem:[#allocation8 + $0x10a8] sm:$0xff]
    %v1164 = vld [vmem:[#allocation8 + $0x10b0] sm:$0xff]
    %v1165 = vld [vmem:[#allocation8 + $0x10b8] sm:$0xff]
    %v1166 = vld [vmem:[#allocation8 + $0x10c0] sm:$0xff]
    %v1167 = vld [vmem:[#allocation8 + $0x10c8] sm:$0xff]
    %v1168 = vld [vmem:[#allocation8 + $0x10d0] sm:$0xff]
    %v1169 = vld [vmem:[#allocation8 + $0x10d8] sm:$0xff]
    %v1170 = vld [vmem:[#allocation8 + $0x10e0] sm:$0xff]
    %v1171 = vld [vmem:[#allocation8 + $0x10e8] sm:$0xff]
    %v1172 = vld [vmem:[#allocation8 + $0x10f0] sm:$0xff]
    %v1173 = vld [vmem:[#allocation8 + $0x10f8] sm:$0xff]
    %v1174 = vld [vmem:[#allocation8 + $0x1100] sm:$0xff]
    %v1175 = vld [vmem:[#allocation8 + $0x1108] sm:$0xff]
    %v1176 = vld [vmem:[#allocation8 + $0x1110] sm:$0xff]
    %v1177 = vld [vmem:[#allocation8 + $0x1118] sm:$0xff]
    %v1178 = vld [vmem:[#allocation8 + $0x1120] sm:$0xff]
    %v1179 = vld [vmem:[#allocation8 + $0x1128] sm:$0xff]
    %v1180 = vld [vmem:[#allocation8 + $0x1130] sm:$0xff]
    %v1181 = vld [vmem:[#allocation8 + $0x1138] sm:$0xff]
    %v1182 = vld [vmem:[#allocation8 + $0x1140] sm:$0xff]
    %v1183 = vld [vmem:[#allocation8 + $0x1148] sm:$0xff]
    %v1184 = vld [vmem:[#allocation8 + $0x1150] sm:$0xff]
    %v1185 = vld [vmem:[#allocation8 + $0x1158] sm:$0xff]
    %v1186 = vld [vmem:[#allocation8 + $0x1160] sm:$0xff]
    %v1187 = vld [vmem:[#allocation8 + $0x1168] sm:$0xff]
    %v1188 = vld [vmem:[#allocation8 + $0x1170] sm:$0xff]
    %v1189 = vld [vmem:[#allocation8 + $0x1178] sm:$0xff]
    %v1190 = vld [vmem:[#allocation8 + $0x1180] sm:$0xff]
    %v1191 = vld [vmem:[#allocation8 + $0x1188] sm:$0xff]
    %v1192 = vld [vmem:[#allocation8 + $0x1190] sm:$0xff]
    %v1193 = vld [vmem:[#allocation8 + $0x1198] sm:$0xff]
    %v1194 = vld [vmem:[#allocation8 + $0x11a0] sm:$0xff]
    %v1195 = vld [vmem:[#allocation8 + $0x11a8] sm:$0xff]
    %v1196 = vld [vmem:[#allocation8 + $0x11b0] sm:$0xff]
    %v1197 = vld [vmem:[#allocation8 + $0x11b8] sm:$0xff]
    %v1198 = vld [vmem:[#allocation8 + $0x11c0] sm:$0xff]
    %v1199 = vld [vmem:[#allocation8 + $0x11c8] sm:$0xff]
    %v1200 = vld [vmem:[#allocation8 + $0x11d0] sm:$0xff]
    %v1201 = vld [vmem:[#allocation8 + $0x11d8] sm:$0xff]
    %v1202 = vld [vmem:[#allocation8 + $0x11e0] sm:$0xff]
    %v1203 = vld [vmem:[#allocation8 + $0x11e8] sm:$0xff]
    %v1204 = vld [vmem:[#allocation8 + $0x11f0] sm:$0xff]
    %v1205 = vld [vmem:[#allocation8 + $0x11f8] sm:$0xff]
    %v1206 = vld [vmem:[#allocation8 + $0x1200] sm:$0xff]
    %v1207 = vld [vmem:[#allocation8 + $0x1208] sm:$0xff]
    %v1208 = vld [vmem:[#allocation8 + $0x1210] sm:$0xff]
    %v1209 = vld [vmem:[#allocation8 + $0x1218] sm:$0xff]
    %v1210 = vld [vmem:[#allocation8 + $0x1220] sm:$0xff]
    %v1211 = vld [vmem:[#allocation8 + $0x1228] sm:$0xff]
    %v1212 = vld [vmem:[#allocation8 + $0x1230] sm:$0xff]
    %v1213 = vld [vmem:[#allocation8 + $0x1238] sm:$0xff]
    %v1214 = vld [vmem:[#allocation8 + $0x1240] sm:$0xff]
    %v1215 = vld [vmem:[#allocation8 + $0x1248] sm:$0xff]
    %v1216 = vld [vmem:[#allocation8 + $0x1250] sm:$0xff]
    %v1217 = vld [vmem:[#allocation8 + $0x1258] sm:$0xff]
    %v1218 = vld [vmem:[#allocation8 + $0x1260] sm:$0xff]
    %v1219 = vld [vmem:[#allocation8 + $0x1268] sm:$0xff]
    %v1220 = vld [vmem:[#allocation8 + $0x1270] sm:$0xff]
    %v1221 = vld [vmem:[#allocation8 + $0x1278] sm:$0xff]
    %v1222 = vld [vmem:[#allocation8 + $0x1280] sm:$0xff]
    %v1223 = vld [vmem:[#allocation8 + $0x1288] sm:$0xff]
    %v1224 = vld [vmem:[#allocation8 + $0x1290] sm:$0xff]
    %v1225 = vld [vmem:[#allocation8 + $0x1298] sm:$0xff]
    %v1226 = vld [vmem:[#allocation8 + $0x12a0] sm:$0xff]
    %v1227 = vld [vmem:[#allocation8 + $0x12a8] sm:$0xff]
    %v1228 = vld [vmem:[#allocation8 + $0x12b0] sm:$0xff]
    %v1229 = vld [vmem:[#allocation8 + $0x12b8] sm:$0xff]
    %v1230 = vld [vmem:[#allocation8 + $0x12c0] sm:$0xff]
    %v1231 = vld [vmem:[#allocation8 + $0x12c8] sm:$0xff]
    %v1232 = vld [vmem:[#allocation8 + $0x12d0] sm:$0xff]
    %v1233 = vld [vmem:[#allocation8 + $0x12d8] sm:$0xff]
    %v1234 = vld [vmem:[#allocation8 + $0x12e0] sm:$0xff]
    %v1235 = vld [vmem:[#allocation8 + $0x12e8] sm:$0xff]
    %v1236 = vld [vmem:[#allocation8 + $0x12f0] sm:$0xff]
    %v1237 = vld [vmem:[#allocation8 + $0x12f8] sm:$0xff]
    %v1238 = vld [vmem:[#allocation8 + $0x1300] sm:$0xff]
    %v1239 = vld [vmem:[#allocation8 + $0x1308] sm:$0xff]
    %v1240 = vld [vmem:[#allocation8 + $0x1310] sm:$0xff]
    %v1241 = vld [vmem:[#allocation8 + $0x1318] sm:$0xff]
    %v1242 = vld [vmem:[#allocation8 + $0x1320] sm:$0xff]
    %v1243 = vld [vmem:[#allocation8 + $0x1328] sm:$0xff]
    %v1244 = vld [vmem:[#allocation8 + $0x1330] sm:$0xff]
    %v1245 = vld [vmem:[#allocation8 + $0x1338] sm:$0xff]
    %v1246 = vld [vmem:[#allocation8 + $0x1340] sm:$0xff]
    %v1247 = vld [vmem:[#allocation8 + $0x1348] sm:$0xff]
    %v1248 = vld [vmem:[#allocation8 + $0x1350] sm:$0xff]
    %v1249 = vld [vmem:[#allocation8 + $0x1358] sm:$0xff]
    %v1250 = vld [vmem:[#allocation8 + $0x1360] sm:$0xff]
    %v1251 = vld [vmem:[#allocation8 + $0x1368] sm:$0xff]
    %v1252 = vld [vmem:[#allocation8 + $0x1370] sm:$0xff]
    %v1253 = vld [vmem:[#allocation8 + $0x1378] sm:$0xff]
    %v1254 = vld [vmem:[#allocation8 + $0x1380] sm:$0xff]
    %v1255 = vld [vmem:[#allocation8 + $0x1388] sm:$0xff]
    %v1256 = vld [vmem:[#allocation8 + $0x1390] sm:$0xff]
    %v1257 = vld [vmem:[#allocation8 + $0x1398] sm:$0xff]
    %v1258 = vld [vmem:[#allocation8 + $0x13a0] sm:$0xff]
    %v1259 = vld [vmem:[#allocation8 + $0x13a8] sm:$0xff]
    %v1260 = vld [vmem:[#allocation8 + $0x13b0] sm:$0xff]
    %v1261 = vld [vmem:[#allocation8 + $0x13b8] sm:$0xff]
    %v1262 = vld [vmem:[#allocation8 + $0x13c0] sm:$0xff]
    %v1263 = vld [vmem:[#allocation8 + $0x13c8] sm:$0xff]
    %v1264 = vld [vmem:[#allocation8 + $0x13d0] sm:$0xff]
    %v1265 = vld [vmem:[#allocation8 + $0x13d8] sm:$0xff]
    %v1266 = vld [vmem:[#allocation8 + $0x13e0] sm:$0xff]
    %v1267 = vld [vmem:[#allocation8 + $0x13e8] sm:$0xff]
    %v1268 = vld [vmem:[#allocation8 + $0x13f0] sm:$0xff]
    %v1269 = vld [vmem:[#allocation8 + $0x13f8] sm:$0xff]
    %v1270 = vld [vmem:[#allocation8 + $0x1400] sm:$0xff]
    %v1271 = vld [vmem:[#allocation8 + $0x1408] sm:$0xff]
    %v1272 = vld [vmem:[#allocation8 + $0x1410] sm:$0xff]
    %v1273 = vld [vmem:[#allocation8 + $0x1418] sm:$0xff]
    %v1274 = vld [vmem:[#allocation8 + $0x1420] sm:$0xff]
    %v1275 = vld [vmem:[#allocation8 + $0x1428] sm:$0xff]
    %v1276 = vld [vmem:[#allocation8 + $0x1430] sm:$0xff]
    %v1277 = vld [vmem:[#allocation8 + $0x1438] sm:$0xff]
    %v1278 = vld [vmem:[#allocation8 + $0x1440] sm:$0xff]
    %v1279 = vld [vmem:[#allocation8 + $0x1448] sm:$0xff]
    %v1280 = vld [vmem:[#allocation8 + $0x1450] sm:$0xff]
    %v1281 = vld [vmem:[#allocation8 + $0x1458] sm:$0xff]
    %v1282 = vld [vmem:[#allocation8 + $0x1460] sm:$0xff]
    %v1283 = vld [vmem:[#allocation8 + $0x1468] sm:$0xff]
    %v1284 = vld [vmem:[#allocation8 + $0x1470] sm:$0xff]
    %v1285 = vld [vmem:[#allocation8 + $0x1478] sm:$0xff]
    %v1286 = vld [vmem:[#allocation8 + $0x1480] sm:$0xff]
    %v1287 = vld [vmem:[#allocation8 + $0x1488] sm:$0xff]
    %v1288 = vld [vmem:[#allocation8 + $0x1490] sm:$0xff]
    %v1289 = vld [vmem:[#allocation8 + $0x1498] sm:$0xff]
    %v1290 = vld [vmem:[#allocation8 + $0x14a0] sm:$0xff]
    %v1291 = vld [vmem:[#allocation8 + $0x14a8] sm:$0xff]
    %v1292 = vld [vmem:[#allocation8 + $0x14b0] sm:$0xff]
    %v1293 = vld [vmem:[#allocation8 + $0x14b8] sm:$0xff]
    %v1294 = vld [vmem:[#allocation8 + $0x14c0] sm:$0xff]
    %v1295 = vld [vmem:[#allocation8 + $0x14c8] sm:$0xff]
    %v1296 = vld [vmem:[#allocation8 + $0x14d0] sm:$0xff]
    %v1297 = vld [vmem:[#allocation8 + $0x14d8] sm:$0xff]
    %v1298 = vld [vmem:[#allocation8 + $0x14e0] sm:$0xff]
    %v1299 = vld [vmem:[#allocation8 + $0x14e8] sm:$0xff]
    %v1300 = vld [vmem:[#allocation8 + $0x14f0] sm:$0xff]
    %v1301 = vld [vmem:[#allocation8 + $0x14f8] sm:$0xff]
    %v1302 = vld [vmem:[#allocation8 + $0x1500] sm:$0xff]
    %v1303 = vld [vmem:[#allocation8 + $0x1508] sm:$0xff]
    %v1304 = vld [vmem:[#allocation8 + $0x1510] sm:$0xff]
    %v1305 = vld [vmem:[#allocation8 + $0x1518] sm:$0xff]
    %v1306 = vld [vmem:[#allocation8 + $0x1520] sm:$0xff]
    %v1307 = vld [vmem:[#allocation8 + $0x1528] sm:$0xff]
    %v1308 = vld [vmem:[#allocation8 + $0x1530] sm:$0xff]
    %v1309 = vld [vmem:[#allocation8 + $0x1538] sm:$0xff]
    %v1310 = vld [vmem:[#allocation8 + $0x1540] sm:$0xff]
    %v1311 = vld [vmem:[#allocation8 + $0x1548] sm:$0xff]
    %v1312 = vld [vmem:[#allocation8 + $0x1550] sm:$0xff]
    %v1313 = vld [vmem:[#allocation8 + $0x1558] sm:$0xff]
    %v1314 = vld [vmem:[#allocation8 + $0x1560] sm:$0xff]
    %v1315 = vld [vmem:[#allocation8 + $0x1568] sm:$0xff]
    %v1316 = vld [vmem:[#allocation8 + $0x1570] sm:$0xff]
    %v1317 = vld [vmem:[#allocation8 + $0x1578] sm:$0xff]
    %v1318 = vld [vmem:[#allocation8 + $0x1580] sm:$0xff]
    %v1319 = vld [vmem:[#allocation8 + $0x1588] sm:$0xff]
    %v1320 = vld [vmem:[#allocation8 + $0x1590] sm:$0xff]
    %v1321 = vld [vmem:[#allocation8 + $0x1598] sm:$0xff]
    %v1322 = vld [vmem:[#allocation8 + $0x15a0] sm:$0xff]
    %v1323 = vld [vmem:[#allocation8 + $0x15a8] sm:$0xff]
    %v1324 = vld [vmem:[#allocation8 + $0x15b0] sm:$0xff]
    %v1325 = vld [vmem:[#allocation8 + $0x15b8] sm:$0xff]
    %v1326 = vld [vmem:[#allocation8 + $0x15c0] sm:$0xff]
    %v1327 = vld [vmem:[#allocation8 + $0x15c8] sm:$0xff]
    %v1328 = vld [vmem:[#allocation8 + $0x15d0] sm:$0xff]
    %v1329 = vld [vmem:[#allocation8 + $0x15d8] sm:$0xff]
    %v1330 = vld [vmem:[#allocation8 + $0x15e0] sm:$0xff]
    %v1331 = vld [vmem:[#allocation8 + $0x15e8] sm:$0xff]
    %v1332 = vld [vmem:[#allocation8 + $0x15f0] sm:$0xff]
    %v1333 = vld [vmem:[#allocation8 + $0x15f8] sm:$0xff]
    %v1334 = vld [vmem:[#allocation8 + $0x1600] sm:$0xff]
    %v1335 = vld [vmem:[#allocation8 + $0x1608] sm:$0xff]
    %v1336 = vld [vmem:[#allocation8 + $0x1610] sm:$0xff]
    %v1337 = vld [vmem:[#allocation8 + $0x1618] sm:$0xff]
    %v1338 = vld [vmem:[#allocation8 + $0x1620] sm:$0xff]
    %v1339 = vld [vmem:[#allocation8 + $0x1628] sm:$0xff]
    %v1340 = vld [vmem:[#allocation8 + $0x1630] sm:$0xff]
    %v1341 = vld [vmem:[#allocation8 + $0x1638] sm:$0xff]
    %v1342 = vld [vmem:[#allocation8 + $0x1640] sm:$0xff]
    %v1343 = vld [vmem:[#allocation8 + $0x1648] sm:$0xff]
    %v1344 = vld [vmem:[#allocation8 + $0x1650] sm:$0xff]
    %v1345 = vld [vmem:[#allocation8 + $0x1658] sm:$0xff]
    %v1346 = vld [vmem:[#allocation8 + $0x1660] sm:$0xff]
    %v1347 = vld [vmem:[#allocation8 + $0x1668] sm:$0xff]
    %v1348 = vld [vmem:[#allocation8 + $0x1670] sm:$0xff]
    %v1349 = vld [vmem:[#allocation8 + $0x1678] sm:$0xff]
    %v1350 = vld [vmem:[#allocation8 + $0x1680] sm:$0xff]
    %v1351 = vld [vmem:[#allocation8 + $0x1688] sm:$0xff]
    %v1352 = vld [vmem:[#allocation8 + $0x1690] sm:$0xff]
    %v1353 = vld [vmem:[#allocation8 + $0x1698] sm:$0xff]
    %v1354 = vld [vmem:[#allocation8 + $0x16a0] sm:$0xff]
    %v1355 = vld [vmem:[#allocation8 + $0x16a8] sm:$0xff]
    %v1356 = vld [vmem:[#allocation8 + $0x16b0] sm:$0xff]
    %v1357 = vld [vmem:[#allocation8 + $0x16b8] sm:$0xff]
    %v1358 = vld [vmem:[#allocation8 + $0x16c0] sm:$0xff]
    %v1359 = vld [vmem:[#allocation8 + $0x16c8] sm:$0xff]
    %v1360 = vld [vmem:[#allocation8 + $0x16d0] sm:$0xff]
    %v1361 = vld [vmem:[#allocation8 + $0x16d8] sm:$0xff]
    %v1362 = vld [vmem:[#allocation8 + $0x16e0] sm:$0xff]
    %v1363 = vld [vmem:[#allocation8 + $0x16e8] sm:$0xff]
    %v1364 = vld [vmem:[#allocation8 + $0x16f0] sm:$0xff]
    %v1365 = vld [vmem:[#allocation8 + $0x16f8] sm:$0xff]
    %v1366 = vld [vmem:[#allocation8 + $0x1700] sm:$0xff]
    %v1367 = vld [vmem:[#allocation8 + $0x1708] sm:$0xff]
    %v1368 = vld [vmem:[#allocation8 + $0x1710] sm:$0xff]
    %v1369 = vld [vmem:[#allocation8 + $0x1718] sm:$0xff]
    %v1370 = vld [vmem:[#allocation8 + $0x1720] sm:$0xff]
    %v1371 = vld [vmem:[#allocation8 + $0x1728] sm:$0xff]
    %v1372 = vld [vmem:[#allocation8 + $0x1730] sm:$0xff]
    %v1373 = vld [vmem:[#allocation8 + $0x1738] sm:$0xff]
    %v1374 = vld [vmem:[#allocation8 + $0x1740] sm:$0xff]
    %v1375 = vld [vmem:[#allocation8 + $0x1748] sm:$0xff]
    %v1376 = vld [vmem:[#allocation8 + $0x1750] sm:$0xff]
    %v1377 = vld [vmem:[#allocation8 + $0x1758] sm:$0xff]
    %v1378 = vld [vmem:[#allocation8 + $0x1760] sm:$0xff]
    %v1379 = vld [vmem:[#allocation8 + $0x1768] sm:$0xff]
    %v1380 = vld [vmem:[#allocation8 + $0x1770] sm:$0xff]
    %v1381 = vld [vmem:[#allocation8 + $0x1778] sm:$0xff]
    %v1382 = vld [vmem:[#allocation8 + $0x1780] sm:$0xff]
    %v1383 = vld [vmem:[#allocation8 + $0x1788] sm:$0xff]
    %v1384 = vld [vmem:[#allocation8 + $0x1790] sm:$0xff]
    %v1385 = vld [vmem:[#allocation8 + $0x1798] sm:$0xff]
    %v1386 = vld [vmem:[#allocation8 + $0x17a0] sm:$0xff]
    %v1387 = vld [vmem:[#allocation8 + $0x17a8] sm:$0xff]
    %v1388 = vld [vmem:[#allocation8 + $0x17b0] sm:$0xff]
    %v1389 = vld [vmem:[#allocation8 + $0x17b8] sm:$0xff]
    %v1390 = vld [vmem:[#allocation8 + $0x17c0] sm:$0xff]
    %v1391 = vld [vmem:[#allocation8 + $0x17c8] sm:$0xff]
    %v1392 = vld [vmem:[#allocation8 + $0x17d0] sm:$0xff]
    %v1393 = vld [vmem:[#allocation8 + $0x17d8] sm:$0xff]
    %v1394 = vld [vmem:[#allocation8 + $0x17e0] sm:$0xff]
    %v1395 = vld [vmem:[#allocation8 + $0x17e8] sm:$0xff]
    %v1396 = vld [vmem:[#allocation8 + $0x17f0] sm:$0xff]
    %v1397 = vld [vmem:[#allocation8 + $0x17f8] sm:$0xff]
    %v1398 = vld [vmem:[#allocation8 + $0x1800] sm:$0xff]
    %v1399 = vld [vmem:[#allocation8 + $0x1808] sm:$0xff]
    %v1400 = vld [vmem:[#allocation8 + $0x1810] sm:$0xff]
    %v1401 = vld [vmem:[#allocation8 + $0x1818] sm:$0xff]
    %v1402 = vld [vmem:[#allocation8 + $0x1820] sm:$0xff]
    %v1403 = vld [vmem:[#allocation8 + $0x1828] sm:$0xff]
    %v1404 = vld [vmem:[#allocation8 + $0x1830] sm:$0xff]
    %v1405 = vld [vmem:[#allocation8 + $0x1838] sm:$0xff]
    %v1406 = vld [vmem:[#allocation8 + $0x1840] sm:$0xff]
    %v1407 = vld [vmem:[#allocation8 + $0x1848] sm:$0xff]
    %v1408 = vld [vmem:[#allocation8 + $0x1850] sm:$0xff]
    %v1409 = vld [vmem:[#allocation8 + $0x1858] sm:$0xff]
    %v1410 = vld [vmem:[#allocation8 + $0x1860] sm:$0xff]
    %v1411 = vld [vmem:[#allocation8 + $0x1868] sm:$0xff]
    %v1412 = vld [vmem:[#allocation8 + $0x1870] sm:$0xff]
    %v1413 = vld [vmem:[#allocation8 + $0x1878] sm:$0xff]
    %v1414 = vld [vmem:[#allocation8 + $0x1880] sm:$0xff]
    %v1415 = vld [vmem:[#allocation8 + $0x1888] sm:$0xff]
    %v1416 = vld [vmem:[#allocation8 + $0x1890] sm:$0xff]
    %v1417 = vld [vmem:[#allocation8 + $0x1898] sm:$0xff]
    %v1418 = vld [vmem:[#allocation8 + $0x18a0] sm:$0xff]
    %v1419 = vld [vmem:[#allocation8 + $0x18a8] sm:$0xff]
    %v1420 = vld [vmem:[#allocation8 + $0x18b0] sm:$0xff]
    %v1421 = vld [vmem:[#allocation8 + $0x18b8] sm:$0xff]
    %v1422 = vld [vmem:[#allocation8 + $0x18c0] sm:$0xff]
    %v1423 = vld [vmem:[#allocation8 + $0x18c8] sm:$0xff]
    %v1424 = vld [vmem:[#allocation8 + $0x18d0] sm:$0xff]
    %v1425 = vld [vmem:[#allocation8 + $0x18d8] sm:$0xff]
    %v1426 = vld [vmem:[#allocation8 + $0x18e0] sm:$0xff]
    %v1427 = vld [vmem:[#allocation8 + $0x18e8] sm:$0xff]
    %v1428 = vld [vmem:[#allocation8 + $0x18f0] sm:$0xff]
    %v1429 = vld [vmem:[#allocation8 + $0x18f8] sm:$0xff]
    %v1430 = vld [vmem:[#allocation8 + $0x1900] sm:$0xff]
    %v1431 = vld [vmem:[#allocation8 + $0x1908] sm:$0xff]
    %v1432 = vld [vmem:[#allocation8 + $0x1910] sm:$0xff]
    %v1433 = vld [vmem:[#allocation8 + $0x1918] sm:$0xff]
    %v1434 = vld [vmem:[#allocation8 + $0x1920] sm:$0xff]
    %v1435 = vld [vmem:[#allocation8 + $0x1928] sm:$0xff]
    %v1436 = vld [vmem:[#allocation8 + $0x1930] sm:$0xff]
    %v1437 = vld [vmem:[#allocation8 + $0x1938] sm:$0xff]
    %v1438 = vld [vmem:[#allocation8 + $0x1940] sm:$0xff]
    %v1439 = vld [vmem:[#allocation8 + $0x1948] sm:$0xff]
    %v1440 = vld [vmem:[#allocation8 + $0x1950] sm:$0xff]
    %v1441 = vld [vmem:[#allocation8 + $0x1958] sm:$0xff]
    %v1442 = vld [vmem:[#allocation8 + $0x1960] sm:$0xff]
    %v1443 = vld [vmem:[#allocation8 + $0x1968] sm:$0xff]
    %v1444 = vld [vmem:[#allocation8 + $0x1970] sm:$0xff]
    %v1445 = vld [vmem:[#allocation8 + $0x1978] sm:$0xff]
    %v1446 = vld [vmem:[#allocation8 + $0x1980] sm:$0xff]
    %v1447 = vld [vmem:[#allocation8 + $0x1988] sm:$0xff]
    %v1448 = vld [vmem:[#allocation8 + $0x1990] sm:$0xff]
    %v1449 = vld [vmem:[#allocation8 + $0x1998] sm:$0xff]
    %v1450 = vld [vmem:[#allocation8 + $0x19a0] sm:$0xff]
    %v1451 = vld [vmem:[#allocation8 + $0x19a8] sm:$0xff]
    %v1452 = vld [vmem:[#allocation8 + $0x19b0] sm:$0xff]
    %v1453 = vld [vmem:[#allocation8 + $0x19b8] sm:$0xff]
    %v1454 = vld [vmem:[#allocation8 + $0x19c0] sm:$0xff]
    %v1455 = vld [vmem:[#allocation8 + $0x19c8] sm:$0xff]
    %v1456 = vld [vmem:[#allocation8 + $0x19d0] sm:$0xff]
    %v1457 = vld [vmem:[#allocation8 + $0x19d8] sm:$0xff]
    %v1458 = vld [vmem:[#allocation8 + $0x19e0] sm:$0xff]
    %v1459 = vld [vmem:[#allocation8 + $0x19e8] sm:$0xff]
    %v1460 = vld [vmem:[#allocation8 + $0x19f0] sm:$0xff]
    %v1461 = vld [vmem:[#allocation8 + $0x19f8] sm:$0xff]
    %v1462 = vld [vmem:[#allocation8 + $0x1a00] sm:$0xff]
    %v1463 = vld [vmem:[#allocation8 + $0x1a08] sm:$0xff]
    %v1464 = vld [vmem:[#allocation8 + $0x1a10] sm:$0xff]
    %v1465 = vld [vmem:[#allocation8 + $0x1a18] sm:$0xff]
    %v1466 = vld [vmem:[#allocation8 + $0x1a20] sm:$0xff]
    %v1467 = vld [vmem:[#allocation8 + $0x1a28] sm:$0xff]
    %v1468 = vld [vmem:[#allocation8 + $0x1a30] sm:$0xff]
    %v1469 = vld [vmem:[#allocation8 + $0x1a38] sm:$0xff]
    %v1470 = vld [vmem:[#allocation8 + $0x1a40] sm:$0xff]
    %v1471 = vld [vmem:[#allocation8 + $0x1a48] sm:$0xff]
    %v1472 = vld [vmem:[#allocation8 + $0x1a50] sm:$0xff]
    %v1473 = vld [vmem:[#allocation8 + $0x1a58] sm:$0xff]
    %v1474 = vld [vmem:[#allocation8 + $0x1a60] sm:$0xff]
    %v1475 = vld [vmem:[#allocation8 + $0x1a68] sm:$0xff]
    %v1476 = vld [vmem:[#allocation8 + $0x1a70] sm:$0xff]
    %v1477 = vld [vmem:[#allocation8 + $0x1a78] sm:$0xff]
    %v1478 = vld [vmem:[#allocation8 + $0x1a80] sm:$0xff]
    %v1479 = vld [vmem:[#allocation8 + $0x1a88] sm:$0xff]
    %v1480 = vld [vmem:[#allocation8 + $0x1a90] sm:$0xff]
    %v1481 = vld [vmem:[#allocation8 + $0x1a98] sm:$0xff]
    %v1482 = vld [vmem:[#allocation8 + $0x1aa0] sm:$0xff]
    %v1483 = vld [vmem:[#allocation8 + $0x1aa8] sm:$0xff]
    %v1484 = vld [vmem:[#allocation8 + $0x1ab0] sm:$0xff]
    %v1485 = vld [vmem:[#allocation8 + $0x1ab8] sm:$0xff]
    %v1486 = vld [vmem:[#allocation8 + $0x1ac0] sm:$0xff]
    %v1487 = vld [vmem:[#allocation8 + $0x1ac8] sm:$0xff]
    %v1488 = vld [vmem:[#allocation8 + $0x1ad0] sm:$0xff]
    %v1489 = vld [vmem:[#allocation8 + $0x1ad8] sm:$0xff]
    %v1490 = vld [vmem:[#allocation8 + $0x1ae0] sm:$0xff]
    %v1491 = vld [vmem:[#allocation8 + $0x1ae8] sm:$0xff]
    %v1492 = vld [vmem:[#allocation8 + $0x1af0] sm:$0xff]
    %v1493 = vld [vmem:[#allocation8 + $0x1af8] sm:$0xff]
    %v1494 = vld [vmem:[#allocation8 + $0x1b00] sm:$0xff]
    %v1495 = vld [vmem:[#allocation8 + $0x1b08] sm:$0xff]
    %v1496 = vld [vmem:[#allocation8 + $0x1b10] sm:$0xff]
    %v1497 = vld [vmem:[#allocation8 + $0x1b18] sm:$0xff]
    %v1498 = vld [vmem:[#allocation8 + $0x1b20] sm:$0xff]
    %v1499 = vld [vmem:[#allocation8 + $0x1b28] sm:$0xff]
    %v1500 = vld [vmem:[#allocation8 + $0x1b30] sm:$0xff]
    %v1501 = vld [vmem:[#allocation8 + $0x1b38] sm:$0xff]
    %v1502 = vld [vmem:[#allocation8 + $0x1b40] sm:$0xff]
    %v1503 = vld [vmem:[#allocation8 + $0x1b48] sm:$0xff]
    %v1504 = vld [vmem:[#allocation8 + $0x1b50] sm:$0xff]
    %v1505 = vld [vmem:[#allocation8 + $0x1b58] sm:$0xff]
    %v1506 = vld [vmem:[#allocation8 + $0x1b60] sm:$0xff]
    %v1507 = vld [vmem:[#allocation8 + $0x1b68] sm:$0xff]
    %v1508 = vld [vmem:[#allocation8 + $0x1b70] sm:$0xff]
    %v1509 = vld [vmem:[#allocation8 + $0x1b78] sm:$0xff]
    %v1510 = vld [vmem:[#allocation8 + $0x1b80] sm:$0xff]
    %v1511 = vld [vmem:[#allocation8 + $0x1b88] sm:$0xff]
    %v1512 = vld [vmem:[#allocation8 + $0x1b90] sm:$0xff]
    %v1513 = vld [vmem:[#allocation8 + $0x1b98] sm:$0xff]
    %v1514 = vld [vmem:[#allocation8 + $0x1ba0] sm:$0xff]
    %v1515 = vld [vmem:[#allocation8 + $0x1ba8] sm:$0xff]
    %v1516 = vld [vmem:[#allocation8 + $0x1bb0] sm:$0xff]
    %v1517 = vld [vmem:[#allocation8 + $0x1bb8] sm:$0xff]
    %v1518 = vld [vmem:[#allocation8 + $0x1bc0] sm:$0xff]
    %v1519 = vld [vmem:[#allocation8 + $0x1bc8] sm:$0xff]
    %v1520 = vld [vmem:[#allocation8 + $0x1bd0] sm:$0xff]
    %v1521 = vld [vmem:[#allocation8 + $0x1bd8] sm:$0xff]
    %v1522 = vld [vmem:[#allocation8 + $0x1be0] sm:$0xff]
    %v1523 = vld [vmem:[#allocation8 + $0x1be8] sm:$0xff]
    %v1524 = vld [vmem:[#allocation8 + $0x1bf0] sm:$0xff]
    %v1525 = vld [vmem:[#allocation8 + $0x1bf8] sm:$0xff]
    %v1526 = vld [vmem:[#allocation8 + $0x1c00] sm:$0xff]
    %v1527 = vld [vmem:[#allocation8 + $0x1c08] sm:$0xff]
    %v1528 = vld [vmem:[#allocation8 + $0x1c10] sm:$0xff]
    %v1529 = vld [vmem:[#allocation8 + $0x1c18] sm:$0xff]
    %v1530 = vld [vmem:[#allocation8 + $0x1c20] sm:$0xff]
    %v1531 = vld [vmem:[#allocation8 + $0x1c28] sm:$0xff]
    %v1532 = vld [vmem:[#allocation8 + $0x1c30] sm:$0xff]
    %v1533 = vld [vmem:[#allocation8 + $0x1c38] sm:$0xff]
    %v1534 = vld [vmem:[#allocation8 + $0x1c40] sm:$0xff]
    %v1535 = vld [vmem:[#allocation8 + $0x1c48] sm:$0xff]
    %v1536 = vld [vmem:[#allocation8 + $0x1c50] sm:$0xff]
    %v1537 = vld [vmem:[#allocation8 + $0x1c58] sm:$0xff]
    %v1538 = vld [vmem:[#allocation8 + $0x1c60] sm:$0xff]
    %v1539 = vld [vmem:[#allocation8 + $0x1c68] sm:$0xff]
    %v1540 = vld [vmem:[#allocation8 + $0x1c70] sm:$0xff]
    %v1541 = vld [vmem:[#allocation8 + $0x1c78] sm:$0xff]
    %v1542 = vld [vmem:[#allocation8 + $0x1c80] sm:$0xff]
    %v1543 = vld [vmem:[#allocation8 + $0x1c88] sm:$0xff]
    %v1544 = vld [vmem:[#allocation8 + $0x1c90] sm:$0xff]
    %v1545 = vld [vmem:[#allocation8 + $0x1c98] sm:$0xff]
    %v1546 = vld [vmem:[#allocation8 + $0x1ca0] sm:$0xff]
    %v1547 = vld [vmem:[#allocation8 + $0x1ca8] sm:$0xff]
    %v1548 = vld [vmem:[#allocation8 + $0x1cb0] sm:$0xff]
    %v1549 = vld [vmem:[#allocation8 + $0x1cb8] sm:$0xff]
    %v1550 = vld [vmem:[#allocation8 + $0x1cc0] sm:$0xff]
    %v1551 = vld [vmem:[#allocation8 + $0x1cc8] sm:$0xff]
    %v1552 = vld [vmem:[#allocation8 + $0x1cd0] sm:$0xff]
    %v1553 = vld [vmem:[#allocation8 + $0x1cd8] sm:$0xff]
    %v1554 = vld [vmem:[#allocation8 + $0x1ce0] sm:$0xff]
    %v1555 = vld [vmem:[#allocation8 + $0x1ce8] sm:$0xff]
    %v1556 = vld [vmem:[#allocation8 + $0x1cf0] sm:$0xff]
    %v1557 = vld [vmem:[#allocation8 + $0x1cf8] sm:$0xff]
    %v1558 = vld [vmem:[#allocation8 + $0x1d00] sm:$0xff]
    %v1559 = vld [vmem:[#allocation8 + $0x1d08] sm:$0xff]
    %v1560 = vld [vmem:[#allocation8 + $0x1d10] sm:$0xff]
    %v1561 = vld [vmem:[#allocation8 + $0x1d18] sm:$0xff]
    %v1562 = vld [vmem:[#allocation8 + $0x1d20] sm:$0xff]
    %v1563 = vld [vmem:[#allocation8 + $0x1d28] sm:$0xff]
    %v1564 = vld [vmem:[#allocation8 + $0x1d30] sm:$0xff]
    %v1565 = vld [vmem:[#allocation8 + $0x1d38] sm:$0xff]
    %v1566 = vld [vmem:[#allocation8 + $0x1d40] sm:$0xff]
    %v1567 = vld [vmem:[#allocation8 + $0x1d48] sm:$0xff]
    %v1568 = vld [vmem:[#allocation8 + $0x1d50] sm:$0xff]
    %v1569 = vld [vmem:[#allocation8 + $0x1d58] sm:$0xff]
    %v1570 = vld [vmem:[#allocation8 + $0x1d60] sm:$0xff]
    %v1571 = vld [vmem:[#allocation8 + $0x1d68] sm:$0xff]
    %v1572 = vld [vmem:[#allocation8 + $0x1d70] sm:$0xff]
    %v1573 = vld [vmem:[#allocation8 + $0x1d78] sm:$0xff]
    %v1574 = vld [vmem:[#allocation8 + $0x1d80] sm:$0xff]
    %v1575 = vld [vmem:[#allocation8 + $0x1d88] sm:$0xff]
    %v1576 = vld [vmem:[#allocation8 + $0x1d90] sm:$0xff]
    %v1577 = vld [vmem:[#allocation8 + $0x1d98] sm:$0xff]
    %v1578 = vld [vmem:[#allocation8 + $0x1da0] sm:$0xff]
    %v1579 = vld [vmem:[#allocation8 + $0x1da8] sm:$0xff]
    %v1580 = vld [vmem:[#allocation8 + $0x1db0] sm:$0xff]
    %v1581 = vld [vmem:[#allocation8 + $0x1db8] sm:$0xff]
    %v1582 = vld [vmem:[#allocation8 + $0x1dc0] sm:$0xff]
    %v1583 = vld [vmem:[#allocation8 + $0x1dc8] sm:$0xff]
    %v1584 = vld [vmem:[#allocation8 + $0x1dd0] sm:$0xff]
    %v1585 = vld [vmem:[#allocation8 + $0x1dd8] sm:$0xff]
    %v1586 = vld [vmem:[#allocation8 + $0x1de0] sm:$0xff]
    %v1587 = vld [vmem:[#allocation8 + $0x1de8] sm:$0xff]
    %v1588 = vld [vmem:[#allocation8 + $0x1df0] sm:$0xff]
    %v1589 = vld [vmem:[#allocation8 + $0x1df8] sm:$0xff]
    %v1590 = vld [vmem:[#allocation8 + $0x1e00] sm:$0xff]
    %v1591 = vld [vmem:[#allocation8 + $0x1e08] sm:$0xff]
    %v1592 = vld [vmem:[#allocation8 + $0x1e10] sm:$0xff]
    %v1593 = vld [vmem:[#allocation8 + $0x1e18] sm:$0xff]
    %v1594 = vld [vmem:[#allocation8 + $0x1e20] sm:$0xff]
    %v1595 = vld [vmem:[#allocation8 + $0x1e28] sm:$0xff]
    %v1596 = vld [vmem:[#allocation8 + $0x1e30] sm:$0xff]
    %v1597 = vld [vmem:[#allocation8 + $0x1e38] sm:$0xff]
    %v1598 = vld [vmem:[#allocation8 + $0x1e40] sm:$0xff]
    %v1599 = vld [vmem:[#allocation8 + $0x1e48] sm:$0xff]
    %v1600 = vld [vmem:[#allocation8 + $0x1e50] sm:$0xff]
    %v1601 = vld [vmem:[#allocation8 + $0x1e58] sm:$0xff]
    %v1602 = vld [vmem:[#allocation8 + $0x1e60] sm:$0xff]
    %v1603 = vld [vmem:[#allocation8 + $0x1e68] sm:$0xff]
    %v1604 = vld [vmem:[#allocation8 + $0x1e70] sm:$0xff]
    %v1605 = vld [vmem:[#allocation8 + $0x1e78] sm:$0xff]
    %v1606 = vld [vmem:[#allocation8 + $0x1e80] sm:$0xff]
    %v1607 = vld [vmem:[#allocation8 + $0x1e88] sm:$0xff]
    %v1608 = vld [vmem:[#allocation8 + $0x1e90] sm:$0xff]
    %v1609 = vld [vmem:[#allocation8 + $0x1e98] sm:$0xff]
    %v1610 = vld [vmem:[#allocation8 + $0x1ea0] sm:$0xff]
    %v1611 = vld [vmem:[#allocation8 + $0x1ea8] sm:$0xff]
    %v1612 = vld [vmem:[#allocation8 + $0x1eb0] sm:$0xff]
    %v1613 = vld [vmem:[#allocation8 + $0x1eb8] sm:$0xff]
    %v1614 = vld [vmem:[#allocation8 + $0x1ec0] sm:$0xff]
    %v1615 = vld [vmem:[#allocation8 + $0x1ec8] sm:$0xff]
    %v1616 = vld [vmem:[#allocation8 + $0x1ed0] sm:$0xff]
    %v1617 = vld [vmem:[#allocation8 + $0x1ed8] sm:$0xff]
    %v1618 = vld [vmem:[#allocation8 + $0x1ee0] sm:$0xff]
    %v1619 = vld [vmem:[#allocation8 + $0x1ee8] sm:$0xff]
    %v1620 = vld [vmem:[#allocation8 + $0x1ef0] sm:$0xff]
    %v1621 = vld [vmem:[#allocation8 + $0x1ef8] sm:$0xff]
    %v1622 = vld [vmem:[#allocation8 + $0x1f00] sm:$0xff]
    %v1623 = vld [vmem:[#allocation8 + $0x1f08] sm:$0xff]
    %v1624 = vld [vmem:[#allocation8 + $0x1f10] sm:$0xff]
    %v1625 = vld [vmem:[#allocation8 + $0x1f18] sm:$0xff]
    %v1626 = vld [vmem:[#allocation8 + $0x1f20] sm:$0xff]
    %v1627 = vld [vmem:[#allocation8 + $0x1f28] sm:$0xff]
    %v1628 = vld [vmem:[#allocation8 + $0x1f30] sm:$0xff]
    %v1629 = vld [vmem:[#allocation8 + $0x1f38] sm:$0xff]
    %v1630 = vld [vmem:[#allocation8 + $0x1f40] sm:$0xff]
    %v1631 = vld [vmem:[#allocation8 + $0x1f48] sm:$0xff]
    %v1632 = vld [vmem:[#allocation8 + $0x1f50] sm:$0xff]
    %v1633 = vld [vmem:[#allocation8 + $0x1f58] sm:$0xff]
    %v1634 = vld [vmem:[#allocation8 + $0x1f60] sm:$0xff]
    %v1635 = vld [vmem:[#allocation8 + $0x1f68] sm:$0xff]
    %v1636 = vld [vmem:[#allocation8 + $0x1f70] sm:$0xff]
    %v1637 = vld [vmem:[#allocation8 + $0x1f78] sm:$0xff]
    %v1638 = vld [vmem:[#allocation8 + $0x1f80] sm:$0xff]
    %v1639 = vld [vmem:[#allocation8 + $0x1f88] sm:$0xff]
    %v1640 = vld [vmem:[#allocation8 + $0x1f90] sm:$0xff]
    %v1641 = vld [vmem:[#allocation8 + $0x1f98] sm:$0xff]
    %v1642 = vld [vmem:[#allocation8 + $0x1fa0] sm:$0xff]
    %v1643 = vld [vmem:[#allocation8 + $0x1fa8] sm:$0xff]
    %v1644 = vld [vmem:[#allocation8 + $0x1fb0] sm:$0xff]
    %v1645 = vld [vmem:[#allocation8 + $0x1fb8] sm:$0xff]
    %v1646 = vld [vmem:[#allocation8 + $0x1fc0] sm:$0xff]
    %v1647 = vld [vmem:[#allocation8 + $0x1fc8] sm:$0xff]
    %v1648 = vld [vmem:[#allocation8 + $0x1fd0] sm:$0xff]
    %v1649 = vld [vmem:[#allocation8 + $0x1fd8] sm:$0xff]
    %v1650 = vld [vmem:[#allocation8 + $0x1fe0] sm:$0xff]
    %v1651 = vld [vmem:[#allocation8 + $0x1fe8] sm:$0xff]
    %v1652 = vld [vmem:[#allocation8 + $0x1ff0] sm:$0xff]
    %v1653 = vld [vmem:[#allocation8 + $0x1ff8] sm:$0xff]
    %v1654 = vld [vmem:[#allocation8 + $0x2000] sm:$0xff]
    %v1655 = vld [vmem:[#allocation8 + $0x2008] sm:$0xff]
    %v1656 = vld [vmem:[#allocation8 + $0x2010] sm:$0xff]
    %v1657 = vld [vmem:[#allocation8 + $0x2018] sm:$0xff]
    %v1658 = vld [vmem:[#allocation8 + $0x2020] sm:$0xff]
    %v1659 = vld [vmem:[#allocation8 + $0x2028] sm:$0xff]
    %v1660 = vld [vmem:[#allocation8 + $0x2030] sm:$0xff]
    %v1661 = vld [vmem:[#allocation8 + $0x2038] sm:$0xff]
    %v1662 = vld [vmem:[#allocation8 + $0x2040] sm:$0xff]
    %v1663 = vld [vmem:[#allocation8 + $0x2048] sm:$0xff]
    %v1664 = vld [vmem:[#allocation8 + $0x2050] sm:$0xff]
    %v1665 = vld [vmem:[#allocation8 + $0x2058] sm:$0xff]
    %v1666 = vld [vmem:[#allocation8 + $0x2060] sm:$0xff]
    %v1667 = vld [vmem:[#allocation8 + $0x2068] sm:$0xff]
    %v1668 = vld [vmem:[#allocation8 + $0x2070] sm:$0xff]
    %v1669 = vld [vmem:[#allocation8 + $0x2078] sm:$0xff]
    %v1670 = vld [vmem:[#allocation8 + $0x2080] sm:$0xff]
    %v1671 = vld [vmem:[#allocation8 + $0x2088] sm:$0xff]
    %v1672 = vld [vmem:[#allocation8 + $0x2090] sm:$0xff]
    %v1673 = vld [vmem:[#allocation8 + $0x2098] sm:$0xff]
    %v1674 = vld [vmem:[#allocation8 + $0x20a0] sm:$0xff]
    %v1675 = vld [vmem:[#allocation8 + $0x20a8] sm:$0xff]
    %v1676 = vld [vmem:[#allocation8 + $0x20b0] sm:$0xff]
    %v1677 = vld [vmem:[#allocation8 + $0x20b8] sm:$0xff]
    %v1678 = vld [vmem:[#allocation8 + $0x20c0] sm:$0xff]
    %v1679 = vld [vmem:[#allocation8 + $0x20c8] sm:$0xff]
    %v1680 = vld [vmem:[#allocation8 + $0x20d0] sm:$0xff]
    %v1681 = vld [vmem:[#allocation8 + $0x20d8] sm:$0xff]
    %v1682 = vld [vmem:[#allocation8 + $0x20e0] sm:$0xff]
    %v1683 = vld [vmem:[#allocation8 + $0x20e8] sm:$0xff]
    %v1684 = vld [vmem:[#allocation8 + $0x20f0] sm:$0xff]
    %v1685 = vld [vmem:[#allocation8 + $0x20f8] sm:$0xff]
    %v1686 = vld [vmem:[#allocation8 + $0x2100] sm:$0xff]
    %v1687 = vld [vmem:[#allocation8 + $0x2108] sm:$0xff]
    %v1688 = vld [vmem:[#allocation8 + $0x2110] sm:$0xff]
    %v1689 = vld [vmem:[#allocation8 + $0x2118] sm:$0xff]
    %v1690 = vld [vmem:[#allocation8 + $0x2120] sm:$0xff]
    %v1691 = vld [vmem:[#allocation8 + $0x2128] sm:$0xff]
    %v1692 = vld [vmem:[#allocation8 + $0x2130] sm:$0xff]
    %v1693 = vld [vmem:[#allocation8 + $0x2138] sm:$0xff]
    %v1694 = vld [vmem:[#allocation8 + $0x2140] sm:$0xff]
    %v1695 = vld [vmem:[#allocation8 + $0x2148] sm:$0xff]
    %v1696 = vld [vmem:[#allocation8 + $0x2150] sm:$0xff]
    %v1697 = vld [vmem:[#allocation8 + $0x2158] sm:$0xff]
    %v1698 = vld [vmem:[#allocation8 + $0x2160] sm:$0xff]
    %v1699 = vld [vmem:[#allocation8 + $0x2168] sm:$0xff]
    %v1700 = vld [vmem:[#allocation8 + $0x2170] sm:$0xff]
    %v1701 = vld [vmem:[#allocation8 + $0x2178] sm:$0xff]
    %v1702 = vld [vmem:[#allocation8 + $0x2180] sm:$0xff]
    %v1703 = vld [vmem:[#allocation8 + $0x2188] sm:$0xff]
    %v1704 = vld [vmem:[#allocation8 + $0x2190] sm:$0xff]
    %v1705 = vld [vmem:[#allocation8 + $0x2198] sm:$0xff]
    %v1706 = vld [vmem:[#allocation8 + $0x21a0] sm:$0xff]
    %v1707 = vld [vmem:[#allocation8 + $0x21a8] sm:$0xff]
    %v1708 = vld [vmem:[#allocation8 + $0x21b0] sm:$0xff]
    %v1709 = vld [vmem:[#allocation8 + $0x21b8] sm:$0xff]
    %v1710 = vld [vmem:[#allocation8 + $0x21c0] sm:$0xff]
    %v1711 = vld [vmem:[#allocation8 + $0x21c8] sm:$0xff]
    %v1712 = vld [vmem:[#allocation8 + $0x21d0] sm:$0xff]
    %v1713 = vld [vmem:[#allocation8 + $0x21d8] sm:$0xff]
    %v1714 = vld [vmem:[#allocation8 + $0x21e0] sm:$0xff]
    %v1715 = vld [vmem:[#allocation8 + $0x21e8] sm:$0xff]
    %v1716 = vld [vmem:[#allocation8 + $0x21f0] sm:$0xff]
    %v1717 = vld [vmem:[#allocation8 + $0x21f8] sm:$0xff]
    %v1718 = vld [vmem:[#allocation8 + $0x2200] sm:$0xff]
    %v1719 = vld [vmem:[#allocation8 + $0x2208] sm:$0xff]
    %v1720 = vld [vmem:[#allocation8 + $0x2210] sm:$0xff]
    %v1721 = vld [vmem:[#allocation8 + $0x2218] sm:$0xff]
    %v1722 = vld [vmem:[#allocation8 + $0x2220] sm:$0xff]
    %v1723 = vld [vmem:[#allocation8 + $0x2228] sm:$0xff]
    %v1724 = vld [vmem:[#allocation8 + $0x2230] sm:$0xff]
    %v1725 = vld [vmem:[#allocation8 + $0x2238] sm:$0xff]
    %v1726 = vld [vmem:[#allocation8 + $0x2240] sm:$0xff]
    %v1727 = vld [vmem:[#allocation8 + $0x2248] sm:$0xff]
    %v1728 = vld [vmem:[#allocation8 + $0x2250] sm:$0xff]
    %v1729 = vld [vmem:[#allocation8 + $0x2258] sm:$0xff]
    %v1730 = vld [vmem:[#allocation8 + $0x2260] sm:$0xff]
    %v1731 = vld [vmem:[#allocation8 + $0x2268] sm:$0xff]
    %v1732 = vld [vmem:[#allocation8 + $0x2270] sm:$0xff]
    %v1733 = vld [vmem:[#allocation8 + $0x2278] sm:$0xff]
    %v1734 = vld [vmem:[#allocation8 + $0x2280] sm:$0xff]
    %v1735 = vld [vmem:[#allocation8 + $0x2288] sm:$0xff]
    %v1736 = vld [vmem:[#allocation8 + $0x2290] sm:$0xff]
    %v1737 = vld [vmem:[#allocation8 + $0x2298] sm:$0xff]
    %v1738 = vld [vmem:[#allocation8 + $0x22a0] sm:$0xff]
    %v1739 = vld [vmem:[#allocation8 + $0x22a8] sm:$0xff]
    %v1740 = vld [vmem:[#allocation8 + $0x22b0] sm:$0xff]
    %v1741 = vld [vmem:[#allocation8 + $0x22b8] sm:$0xff]
    %v1742 = vld [vmem:[#allocation8 + $0x22c0] sm:$0xff]
    %v1743 = vld [vmem:[#allocation8 + $0x22c8] sm:$0xff]
    %v1744 = vld [vmem:[#allocation8 + $0x22d0] sm:$0xff]
    %v1745 = vld [vmem:[#allocation8 + $0x22d8] sm:$0xff]
    %v1746 = vld [vmem:[#allocation8 + $0x22e0] sm:$0xff]
    %v1747 = vld [vmem:[#allocation8 + $0x22e8] sm:$0xff]
    %v1748 = vld [vmem:[#allocation8 + $0x22f0] sm:$0xff]
    %v1749 = vld [vmem:[#allocation8 + $0x22f8] sm:$0xff]
    %v1750 = vld [vmem:[#allocation8 + $0x2300] sm:$0xff]
    %v1751 = vld [vmem:[#allocation8 + $0x2308] sm:$0xff]
    %v1752 = vld [vmem:[#allocation8 + $0x2310] sm:$0xff]
    %v1753 = vld [vmem:[#allocation8 + $0x2318] sm:$0xff]
    %v1754 = vld [vmem:[#allocation8 + $0x2320] sm:$0xff]
    %v1755 = vld [vmem:[#allocation8 + $0x2328] sm:$0xff]
    %v1756 = vld [vmem:[#allocation8 + $0x2330] sm:$0xff]
    %v1757 = vld [vmem:[#allocation8 + $0x2338] sm:$0xff]
    %v1758 = vld [vmem:[#allocation8 + $0x2340] sm:$0xff]
    %v1759 = vld [vmem:[#allocation8 + $0x2348] sm:$0xff]
    %v1760 = vld [vmem:[#allocation8 + $0x2350] sm:$0xff]
    %v1761 = vld [vmem:[#allocation8 + $0x2358] sm:$0xff]
    %v1762 = vld [vmem:[#allocation8 + $0x2360] sm:$0xff]
    %v1763 = vld [vmem:[#allocation8 + $0x2368] sm:$0xff]
    %v1764 = vld [vmem:[#allocation8 + $0x2370] sm:$0xff]
    %v1765 = vld [vmem:[#allocation8 + $0x2378] sm:$0xff]
    %v1766 = vld [vmem:[#allocation8 + $0x2380] sm:$0xff]
    %v1767 = vld [vmem:[#allocation8 + $0x2388] sm:$0xff]
    %v1768 = vld [vmem:[#allocation8 + $0x2390] sm:$0xff]
    %v1769 = vld [vmem:[#allocation8 + $0x2398] sm:$0xff]
    %v1770 = vld [vmem:[#allocation8 + $0x23a0] sm:$0xff]
    %v1771 = vld [vmem:[#allocation8 + $0x23a8] sm:$0xff]
    %v1772 = vld [vmem:[#allocation8 + $0x23b0] sm:$0xff]
    %v1773 = vld [vmem:[#allocation8 + $0x23b8] sm:$0xff]
    %v1774 = vld [vmem:[#allocation8 + $0x23c0] sm:$0xff]
    %v1775 = vld [vmem:[#allocation8 + $0x23c8] sm:$0xff]
    %v1776 = vld [vmem:[#allocation8 + $0x23d0] sm:$0xff]
    %v1777 = vld [vmem:[#allocation8 + $0x23d8] sm:$0xff]
    %v1778 = vld [vmem:[#allocation8 + $0x23e0] sm:$0xff]
    %v1779 = vld [vmem:[#allocation8 + $0x23e8] sm:$0xff]
    %v1780 = vld [vmem:[#allocation8 + $0x23f0] sm:$0xff]
    %v1781 = vld [vmem:[#allocation8 + $0x23f8] sm:$0xff]
    %v1782 = vld [vmem:[#allocation8 + $0x2400] sm:$0xff]
    %v1783 = vld [vmem:[#allocation8 + $0x2408] sm:$0xff]
    %v1784 = vld [vmem:[#allocation8 + $0x2410] sm:$0xff]
    %v1785 = vld [vmem:[#allocation8 + $0x2418] sm:$0xff]
    %v1786 = vld [vmem:[#allocation8 + $0x2420] sm:$0xff]
    %v1787 = vld [vmem:[#allocation8 + $0x2428] sm:$0xff]
    %v1788 = vld [vmem:[#allocation8 + $0x2430] sm:$0xff]
    %v1789 = vld [vmem:[#allocation8 + $0x2438] sm:$0xff]
    %v1790 = vld [vmem:[#allocation8 + $0x2440] sm:$0xff]
    %v1791 = vld [vmem:[#allocation8 + $0x2448] sm:$0xff]
    %v1792 = vld [vmem:[#allocation8 + $0x2450] sm:$0xff]
    %v1793 = vld [vmem:[#allocation8 + $0x2458] sm:$0xff]
    %v1794 = vld [vmem:[#allocation8 + $0x2460] sm:$0xff]
    %v1795 = vld [vmem:[#allocation8 + $0x2468] sm:$0xff]
    %v1796 = vld [vmem:[#allocation8 + $0x2470] sm:$0xff]
    %v1797 = vld [vmem:[#allocation8 + $0x2478] sm:$0xff]
    %v1798 = vld [vmem:[#allocation8 + $0x2480] sm:$0xff]
    %v1799 = vld [vmem:[#allocation8 + $0x2488] sm:$0xff]
    %v1800 = vld [vmem:[#allocation8 + $0x2490] sm:$0xff]
    %v1801 = vld [vmem:[#allocation8 + $0x2498] sm:$0xff]
    %v1802 = vld [vmem:[#allocation8 + $0x24a0] sm:$0xff]
    %v1803 = vld [vmem:[#allocation8 + $0x24a8] sm:$0xff]
    %v1804 = vld [vmem:[#allocation8 + $0x24b0] sm:$0xff]
    %v1805 = vld [vmem:[#allocation8 + $0x24b8] sm:$0xff]
    %v1806 = vld [vmem:[#allocation8 + $0x24c0] sm:$0xff]
    %v1807 = vld [vmem:[#allocation8 + $0x24c8] sm:$0xff]
    %v1808 = vld [vmem:[#allocation8 + $0x24d0] sm:$0xff]
    %v1809 = vld [vmem:[#allocation8 + $0x24d8] sm:$0xff]
    %v1810 = vld [vmem:[#allocation8 + $0x24e0] sm:$0xff]
    %v1811 = vld [vmem:[#allocation8 + $0x24e8] sm:$0xff]
    %v1812 = vld [vmem:[#allocation8 + $0x24f0] sm:$0xff]
    %v1813 = vld [vmem:[#allocation8 + $0x24f8] sm:$0xff]
    %v1814 = vld [vmem:[#allocation8 + $0x2500] sm:$0xff]
    %v1815 = vld [vmem:[#allocation8 + $0x2508] sm:$0xff]
    %v1816 = vld [vmem:[#allocation8 + $0x2510] sm:$0xff]
    %v1817 = vld [vmem:[#allocation8 + $0x2518] sm:$0xff]
    %v1818 = vld [vmem:[#allocation8 + $0x2520] sm:$0xff]
    %v1819 = vld [vmem:[#allocation8 + $0x2528] sm:$0xff]
    %v1820 = vld [vmem:[#allocation8 + $0x2530] sm:$0xff]
    %v1821 = vld [vmem:[#allocation8 + $0x2538] sm:$0xff]
    %v1822 = vld [vmem:[#allocation8 + $0x2540] sm:$0xff]
    %v1823 = vld [vmem:[#allocation8 + $0x2548] sm:$0xff]
    %v1824 = vld [vmem:[#allocation8 + $0x2550] sm:$0xff]
    %v1825 = vld [vmem:[#allocation8 + $0x2558] sm:$0xff]
    %v1826 = vld [vmem:[#allocation8 + $0x2560] sm:$0xff]
    %v1827 = vld [vmem:[#allocation8 + $0x2568] sm:$0xff]
    %v1828 = vld [vmem:[#allocation8 + $0x2570] sm:$0xff]
    %v1829 = vld [vmem:[#allocation8 + $0x2578] sm:$0xff]
    %v1830 = vld [vmem:[#allocation8 + $0x2580] sm:$0xff]
    %v1831 = vld [vmem:[#allocation8 + $0x2588] sm:$0xff]
    %v1832 = vld [vmem:[#allocation8 + $0x2590] sm:$0xff]
    %v1833 = vld [vmem:[#allocation8 + $0x2598] sm:$0xff]
    %v1834 = vld [vmem:[#allocation8 + $0x25a0] sm:$0xff]
    %v1835 = vld [vmem:[#allocation8 + $0x25a8] sm:$0xff]
    %v1836 = vld [vmem:[#allocation8 + $0x25b0] sm:$0xff]
    %v1837 = vld [vmem:[#allocation8 + $0x25b8] sm:$0xff]
    %v1838 = vld [vmem:[#allocation8 + $0x25c0] sm:$0xff]
    %v1839 = vld [vmem:[#allocation8 + $0x25c8] sm:$0xff]
    %v1840 = vld [vmem:[#allocation8 + $0x25d0] sm:$0xff]
    %v1841 = vld [vmem:[#allocation8 + $0x25d8] sm:$0xff]
    %v1842 = vld [vmem:[#allocation8 + $0x25e0] sm:$0xff]
    %v1843 = vld [vmem:[#allocation8 + $0x25e8] sm:$0xff]
    %v1844 = vld [vmem:[#allocation8 + $0x25f0] sm:$0xff]
    %v1845 = vld [vmem:[#allocation8 + $0x25f8] sm:$0xff]
    %v1846 = vld [vmem:[#allocation8 + $0x2600] sm:$0xff]
    %v1847 = vld [vmem:[#allocation8 + $0x2608] sm:$0xff]
    %v1848 = vld [vmem:[#allocation8 + $0x2610] sm:$0xff]
    %v1849 = vld [vmem:[#allocation8 + $0x2618] sm:$0xff]
    %v1850 = vld [vmem:[#allocation8 + $0x2620] sm:$0xff]
    %v1851 = vld [vmem:[#allocation8 + $0x2628] sm:$0xff]
    %v1852 = vld [vmem:[#allocation8 + $0x2630] sm:$0xff]
    %v1853 = vld [vmem:[#allocation8 + $0x2638] sm:$0xff]
    %v1854 = vld [vmem:[#allocation8 + $0x2640] sm:$0xff]
    %v1855 = vld [vmem:[#allocation8 + $0x2648] sm:$0xff]
    %v1856 = vld [vmem:[#allocation8 + $0x2650] sm:$0xff]
    %v1857 = vld [vmem:[#allocation8 + $0x2658] sm:$0xff]
    %v1858 = vld [vmem:[#allocation8 + $0x2660] sm:$0xff]
    %v1859 = vld [vmem:[#allocation8 + $0x2668] sm:$0xff]
    %v1860 = vld [vmem:[#allocation8 + $0x2670] sm:$0xff]
    %v1861 = vld [vmem:[#allocation8 + $0x2678] sm:$0xff]
    %v1862 = vld [vmem:[#allocation8 + $0x2680] sm:$0xff]
    %v1863 = vld [vmem:[#allocation8 + $0x2688] sm:$0xff]
    %v1864 = vld [vmem:[#allocation8 + $0x2690] sm:$0xff]
    %v1865 = vld [vmem:[#allocation8 + $0x2698] sm:$0xff]
    %v1866 = vld [vmem:[#allocation8 + $0x26a0] sm:$0xff]
    %v1867 = vld [vmem:[#allocation8 + $0x26a8] sm:$0xff]
    %v1868 = vld [vmem:[#allocation8 + $0x26b0] sm:$0xff]
    %v1869 = vld [vmem:[#allocation8 + $0x26b8] sm:$0xff]
    %v1870 = vld [vmem:[#allocation8 + $0x26c0] sm:$0xff]
    %v1871 = vld [vmem:[#allocation8 + $0x26c8] sm:$0xff]
    %v1872 = vld [vmem:[#allocation8 + $0x26d0] sm:$0xff]
    %v1873 = vld [vmem:[#allocation8 + $0x26d8] sm:$0xff]
    %v1874 = vld [vmem:[#allocation8 + $0x26e0] sm:$0xff]
    %v1875 = vld [vmem:[#allocation8 + $0x26e8] sm:$0xff]
    %v1876 = vld [vmem:[#allocation8 + $0x26f0] sm:$0xff]
    %v1877 = vld [vmem:[#allocation8 + $0x26f8] sm:$0xff]
    %v1878 = vld [vmem:[#allocation8 + $0x2700] sm:$0xff]
    %v1879 = vld [vmem:[#allocation8 + $0x2708] sm:$0xff]
    %v1880 = vld [vmem:[#allocation8 + $0x2710] sm:$0xff]
    %v1881 = vld [vmem:[#allocation8 + $0x2718] sm:$0xff]
    %v1882 = vld [vmem:[#allocation8 + $0x2720] sm:$0xff]
    %v1883 = vld [vmem:[#allocation8 + $0x2728] sm:$0xff]
    %v1884 = vld [vmem:[#allocation8 + $0x2730] sm:$0xff]
    %v1885 = vld [vmem:[#allocation8 + $0x2738] sm:$0xff]
    %v1886 = vld [vmem:[#allocation8 + $0x2740] sm:$0xff]
    %v1887 = vld [vmem:[#allocation8 + $0x2748] sm:$0xff]
    %v1888 = vld [vmem:[#allocation8 + $0x2750] sm:$0xff]
    %v1889 = vld [vmem:[#allocation8 + $0x2758] sm:$0xff]
    %v1890 = vld [vmem:[#allocation8 + $0x2760] sm:$0xff]
    %v1891 = vld [vmem:[#allocation8 + $0x2768] sm:$0xff]
    %v1892 = vld [vmem:[#allocation8 + $0x2770] sm:$0xff]
    %v1893 = vld [vmem:[#allocation8 + $0x2778] sm:$0xff]
    %v1894 = vld [vmem:[#allocation8 + $0x2780] sm:$0xff]
    %v1895 = vld [vmem:[#allocation8 + $0x2788] sm:$0xff]
    %v1896 = vld [vmem:[#allocation8 + $0x2790] sm:$0xff]
    %v1897 = vld [vmem:[#allocation8 + $0x2798] sm:$0xff]
    %v1898 = vld [vmem:[#allocation8 + $0x27a0] sm:$0xff]
    %v1899 = vld [vmem:[#allocation8 + $0x27a8] sm:$0xff]
    %v1900 = vld [vmem:[#allocation8 + $0x27b0] sm:$0xff]
    %v1901 = vld [vmem:[#allocation8 + $0x27b8] sm:$0xff]
    %v1902 = vld [vmem:[#allocation8 + $0x27c0] sm:$0xff]
    %v1903 = vld [vmem:[#allocation8 + $0x27c8] sm:$0xff]
    %v1904 = vld [vmem:[#allocation8 + $0x27d0] sm:$0xff]
    %v1905 = vld [vmem:[#allocation8 + $0x27d8] sm:$0xff]
    %v1906 = vld [vmem:[#allocation8 + $0x27e0] sm:$0xff]
    %v1907 = vld [vmem:[#allocation8 + $0x27e8] sm:$0xff]
    %v1908 = vld [vmem:[#allocation8 + $0x27f0] sm:$0xff]
    %v1909 = vld [vmem:[#allocation8 + $0x27f8] sm:$0xff]
    %v1910 = vld [vmem:[#allocation8 + $0x2800] sm:$0xff]
    %v1911 = vld [vmem:[#allocation8 + $0x2808] sm:$0xff]
    %v1912 = vld [vmem:[#allocation8 + $0x2810] sm:$0xff]
    %v1913 = vld [vmem:[#allocation8 + $0x2818] sm:$0xff]
    %v1914 = vld [vmem:[#allocation8 + $0x2820] sm:$0xff]
    %v1915 = vld [vmem:[#allocation8 + $0x2828] sm:$0xff]
    %v1916 = vld [vmem:[#allocation8 + $0x2830] sm:$0xff]
    %v1917 = vld [vmem:[#allocation8 + $0x2838] sm:$0xff]
    %v1918 = vld [vmem:[#allocation8 + $0x2840] sm:$0xff]
    %v1919 = vld [vmem:[#allocation8 + $0x2848] sm:$0xff]
    %v1920 = vld [vmem:[#allocation8 + $0x2850] sm:$0xff]
    %v1921 = vld [vmem:[#allocation8 + $0x2858] sm:$0xff]
    %v1922 = vld [vmem:[#allocation8 + $0x2860] sm:$0xff]
    %v1923 = vld [vmem:[#allocation8 + $0x2868] sm:$0xff]
    %v1924 = vld [vmem:[#allocation8 + $0x2870] sm:$0xff]
    %v1925 = vld [vmem:[#allocation8 + $0x2878] sm:$0xff]
    %v1926 = vld [vmem:[#allocation8 + $0x2880] sm:$0xff]
    %v1927 = vld [vmem:[#allocation8 + $0x2888] sm:$0xff]
    %v1928 = vld [vmem:[#allocation8 + $0x2890] sm:$0xff]
    %v1929 = vld [vmem:[#allocation8 + $0x2898] sm:$0xff]
    %v1930 = vld [vmem:[#allocation8 + $0x28a0] sm:$0xff]
    %v1931 = vld [vmem:[#allocation8 + $0x28a8] sm:$0xff]
    %v1932 = vld [vmem:[#allocation8 + $0x28b0] sm:$0xff]
    %v1933 = vld [vmem:[#allocation8 + $0x28b8] sm:$0xff]
    %v1934 = vld [vmem:[#allocation8 + $0x28c0] sm:$0xff]
    %v1935 = vld [vmem:[#allocation8 + $0x28c8] sm:$0xff]
    %v1936 = vld [vmem:[#allocation8 + $0x28d0] sm:$0xff]
    %v1937 = vld [vmem:[#allocation8 + $0x28d8] sm:$0xff]
    %v1938 = vld [vmem:[#allocation8 + $0x28e0] sm:$0xff]
    %v1939 = vld [vmem:[#allocation8 + $0x28e8] sm:$0xff]
    %v1940 = vld [vmem:[#allocation8 + $0x28f0] sm:$0xff]
    %v1941 = vld [vmem:[#allocation8 + $0x28f8] sm:$0xff]
    %v1942 = vld [vmem:[#allocation8 + $0x2900] sm:$0xff]
    %v1943 = vld [vmem:[#allocation8 + $0x2908] sm:$0xff]
    %v1944 = vld [vmem:[#allocation8 + $0x2910] sm:$0xff]
    %v1945 = vld [vmem:[#allocation8 + $0x2918] sm:$0xff]
    %v1946 = vld [vmem:[#allocation8 + $0x2920] sm:$0xff]
    %v1947 = vld [vmem:[#allocation8 + $0x2928] sm:$0xff]
    %v1948 = vld [vmem:[#allocation8 + $0x2930] sm:$0xff]
    %v1949 = vld [vmem:[#allocation8 + $0x2938] sm:$0xff]
    %v1950 = vld [vmem:[#allocation8 + $0x2940] sm:$0xff]
    %v1951 = vld [vmem:[#allocation8 + $0x2948] sm:$0xff]
    %v1952 = vld [vmem:[#allocation8 + $0x2950] sm:$0xff]
    %v1953 = vld [vmem:[#allocation8 + $0x2958] sm:$0xff]
    %v1954 = vld [vmem:[#allocation8 + $0x2960] sm:$0xff]
    %v1955 = vld [vmem:[#allocation8 + $0x2968] sm:$0xff]
    %v1956 = vld [vmem:[#allocation8 + $0x2970] sm:$0xff]
    %v1957 = vld [vmem:[#allocation8 + $0x2978] sm:$0xff]
    %v1958 = vld [vmem:[#allocation8 + $0x2980] sm:$0xff]
    %v1959 = vld [vmem:[#allocation8 + $0x2988] sm:$0xff]
    %v1960 = vld [vmem:[#allocation8 + $0x2990] sm:$0xff]
    %v1961 = vld [vmem:[#allocation8 + $0x2998] sm:$0xff]
    %v1962 = vld [vmem:[#allocation8 + $0x29a0] sm:$0xff]
    %v1963 = vld [vmem:[#allocation8 + $0x29a8] sm:$0xff]
    %v1964 = vld [vmem:[#allocation8 + $0x29b0] sm:$0xff]
    %v1965 = vld [vmem:[#allocation8 + $0x29b8] sm:$0xff]
    %v1966 = vld [vmem:[#allocation8 + $0x29c0] sm:$0xff]
    %v1967 = vld [vmem:[#allocation8 + $0x29c8] sm:$0xff]
    %v1968 = vld [vmem:[#allocation8 + $0x29d0] sm:$0xff]
    %v1969 = vld [vmem:[#allocation8 + $0x29d8] sm:$0xff]
    %v1970 = vld [vmem:[#allocation8 + $0x29e0] sm:$0xff]
    %v1971 = vld [vmem:[#allocation8 + $0x29e8] sm:$0xff]
    %v1972 = vld [vmem:[#allocation8 + $0x29f0] sm:$0xff]
    %v1973 = vld [vmem:[#allocation8 + $0x29f8] sm:$0xff]
    %v1974 = vld [vmem:[#allocation8 + $0x2a00] sm:$0xff]
    %v1975 = vld [vmem:[#allocation8 + $0x2a08] sm:$0xff]
    %v1976 = vld [vmem:[#allocation8 + $0x2a10] sm:$0xff]
    %v1977 = vld [vmem:[#allocation8 + $0x2a18] sm:$0xff]
    %v1978 = vld [vmem:[#allocation8 + $0x2a20] sm:$0xff]
    %v1979 = vld [vmem:[#allocation8 + $0x2a28] sm:$0xff]
    %v1980 = vld [vmem:[#allocation8 + $0x2a30] sm:$0xff]
    %v1981 = vld [vmem:[#allocation8 + $0x2a38] sm:$0xff]
    %v1982 = vld [vmem:[#allocation8 + $0x2a40] sm:$0xff]
    %v1983 = vld [vmem:[#allocation8 + $0x2a48] sm:$0xff]
    %v1984 = vld [vmem:[#allocation8 + $0x2a50] sm:$0xff]
    %v1985 = vld [vmem:[#allocation8 + $0x2a58] sm:$0xff]
    %v1986 = vld [vmem:[#allocation8 + $0x2a60] sm:$0xff]
    %v1987 = vld [vmem:[#allocation8 + $0x2a68] sm:$0xff]
    %v1988 = vld [vmem:[#allocation8 + $0x2a70] sm:$0xff]
    %v1989 = vld [vmem:[#allocation8 + $0x2a78] sm:$0xff]
    %v1990 = vld [vmem:[#allocation8 + $0x2a80] sm:$0xff]
    %v1991 = vld [vmem:[#allocation8 + $0x2a88] sm:$0xff]
    %v1992 = vld [vmem:[#allocation8 + $0x2a90] sm:$0xff]
    %v1993 = vld [vmem:[#allocation8 + $0x2a98] sm:$0xff]
    %v1994 = vld [vmem:[#allocation8 + $0x2aa0] sm:$0xff]
    %v1995 = vld [vmem:[#allocation8 + $0x2aa8] sm:$0xff]
    %v1996 = vld [vmem:[#allocation8 + $0x2ab0] sm:$0xff]
    %v1997 = vld [vmem:[#allocation8 + $0x2ab8] sm:$0xff]
    %v1998 = vld [vmem:[#allocation8 + $0x2ac0] sm:$0xff]
    %v1999 = vld [vmem:[#allocation8 + $0x2ac8] sm:$0xff]
    %v2000 = vld [vmem:[#allocation8 + $0x2ad0] sm:$0xff]
    %v2001 = vld [vmem:[#allocation8 + $0x2ad8] sm:$0xff]
    %v2002 = vld [vmem:[#allocation8 + $0x2ae0] sm:$0xff]
    %v2003 = vld [vmem:[#allocation8 + $0x2ae8] sm:$0xff]
    %v2004 = vld [vmem:[#allocation8 + $0x2af0] sm:$0xff]
    %v2005 = vld [vmem:[#allocation8 + $0x2af8] sm:$0xff]
    %v2006 = vld [vmem:[#allocation8 + $0x2b00] sm:$0xff]
    %v2007 = vld [vmem:[#allocation8 + $0x2b08] sm:$0xff]
    %v2008 = vld [vmem:[#allocation8 + $0x2b10] sm:$0xff]
    %v2009 = vld [vmem:[#allocation8 + $0x2b18] sm:$0xff]
    %v2010 = vld [vmem:[#allocation8 + $0x2b20] sm:$0xff]
    %v2011 = vld [vmem:[#allocation8 + $0x2b28] sm:$0xff]
    %v2012 = vld [vmem:[#allocation8 + $0x2b30] sm:$0xff]
    %v2013 = vld [vmem:[#allocation8 + $0x2b38] sm:$0xff]
    %v2014 = vld [vmem:[#allocation8 + $0x2b40] sm:$0xff]
    %v2015 = vld [vmem:[#allocation8 + $0x2b48] sm:$0xff]
    %v2016 = vld [vmem:[#allocation8 + $0x2b50] sm:$0xff]
    %v2017 = vld [vmem:[#allocation8 + $0x2b58] sm:$0xff]
    %v2018 = vld [vmem:[#allocation8 + $0x2b60] sm:$0xff]
    %v2019 = vld [vmem:[#allocation8 + $0x2b68] sm:$0xff]
    %v2020 = vld [vmem:[#allocation8 + $0x2b70] sm:$0xff]
    %v2021 = vld [vmem:[#allocation8 + $0x2b78] sm:$0xff]
    %v2022 = vld [vmem:[#allocation8 + $0x2b80] sm:$0xff]
    %v2023 = vld [vmem:[#allocation8 + $0x2b88] sm:$0xff]
    %v2024 = vld [vmem:[#allocation8 + $0x2b90] sm:$0xff]
    %v2025 = vld [vmem:[#allocation8 + $0x2b98] sm:$0xff]
    %v2026 = vld [vmem:[#allocation8 + $0x2ba0] sm:$0xff]
    %v2027 = vld [vmem:[#allocation8 + $0x2ba8] sm:$0xff]
    %v2028 = vld [vmem:[#allocation8 + $0x2bb0] sm:$0xff]
    %v2029 = vld [vmem:[#allocation8 + $0x2bb8] sm:$0xff]
    %v2030 = vld [vmem:[#allocation8 + $0x2bc0] sm:$0xff]
    %v2031 = vld [vmem:[#allocation8 + $0x2bc8] sm:$0xff]
    %v2032 = vld [vmem:[#allocation8 + $0x2bd0] sm:$0xff]
    %v2033 = vld [vmem:[#allocation8 + $0x2bd8] sm:$0xff]
    %v2034 = vld [vmem:[#allocation8 + $0x2be0] sm:$0xff]
    %v2035 = vld [vmem:[#allocation8 + $0x2be8] sm:$0xff]
    %v2036 = vld [vmem:[#allocation8 + $0x2bf0] sm:$0xff]
    %v2037 = vld [vmem:[#allocation8 + $0x2bf8] sm:$0xff]
    %v2038 = vld [vmem:[#allocation8 + $0x2c00] sm:$0xff]
    %v2039 = vld [vmem:[#allocation8 + $0x2c08] sm:$0xff]
    %v2040 = vld [vmem:[#allocation8 + $0x2c10] sm:$0xff]
    %v2041 = vld [vmem:[#allocation8 + $0x2c18] sm:$0xff]
    %v2042 = vld [vmem:[#allocation8 + $0x2c20] sm:$0xff]
    %v2043 = vld [vmem:[#allocation8 + $0x2c28] sm:$0xff]
    %v2044 = vld [vmem:[#allocation8 + $0x2c30] sm:$0xff]
    %v2045 = vld [vmem:[#allocation8 + $0x2c38] sm:$0xff]
    %v2046 = vld [vmem:[#allocation8 + $0x2c40] sm:$0xff]
    %v2047 = vld [vmem:[#allocation8 + $0x2c48] sm:$0xff]
    %v2048 = vld [vmem:[#allocation8 + $0x2c50] sm:$0xff]
    %v2049 = vld [vmem:[#allocation8 + $0x2c58] sm:$0xff]
    %v2050 = vld [vmem:[#allocation8 + $0x2c60] sm:$0xff]
    %v2051 = vld [vmem:[#allocation8 + $0x2c68] sm:$0xff]
    %v2052 = vld [vmem:[#allocation8 + $0x2c70] sm:$0xff]
    %v2053 = vld [vmem:[#allocation8 + $0x2c78] sm:$0xff]
    %v2054 = vld [vmem:[#allocation8 + $0x2c80] sm:$0xff]
    %v2055 = vld [vmem:[#allocation8 + $0x2c88] sm:$0xff]
    %v2056 = vld [vmem:[#allocation8 + $0x2c90] sm:$0xff]
    %v2057 = vld [vmem:[#allocation8 + $0x2c98] sm:$0xff]
    %v2058 = vld [vmem:[#allocation8 + $0x2ca0] sm:$0xff]
    %v2059 = vld [vmem:[#allocation8 + $0x2ca8] sm:$0xff]
    %v2060 = vld [vmem:[#allocation8 + $0x2cb0] sm:$0xff]
    %v2061 = vld [vmem:[#allocation8 + $0x2cb8] sm:$0xff]
    %v2062 = vld [vmem:[#allocation8 + $0x2cc0] sm:$0xff]
    %v2063 = vld [vmem:[#allocation8 + $0x2cc8] sm:$0xff]
    %v2064 = vld [vmem:[#allocation8 + $0x2cd0] sm:$0xff]
    %v2065 = vld [vmem:[#allocation8 + $0x2cd8] sm:$0xff]
    %v2066 = vld [vmem:[#allocation8 + $0x2ce0] sm:$0xff]
    %v2067 = vld [vmem:[#allocation8 + $0x2ce8] sm:$0xff]
    %v2068 = vld [vmem:[#allocation8 + $0x2cf0] sm:$0xff]
    %v2069 = vld [vmem:[#allocation8 + $0x2cf8] sm:$0xff]
    %v2070 = vld [vmem:[#allocation8 + $0x2d00] sm:$0xff]
    %v2071 = vld [vmem:[#allocation8 + $0x2d08] sm:$0xff]
    %v2072 = vld [vmem:[#allocation8 + $0x2d10] sm:$0xff]
    %v2073 = vld [vmem:[#allocation8 + $0x2d18] sm:$0xff]
    %v2074 = vld [vmem:[#allocation8 + $0x2d20] sm:$0xff]
    %v2075 = vld [vmem:[#allocation8 + $0x2d28] sm:$0xff]
    %v2076 = vld [vmem:[#allocation8 + $0x2d30] sm:$0xff]
    %v2077 = vld [vmem:[#allocation8 + $0x2d38] sm:$0xff]
    %v2078 = vld [vmem:[#allocation8 + $0x2d40] sm:$0xff]
    %v2079 = vld [vmem:[#allocation8 + $0x2d48] sm:$0xff]
    %v2080 = vld [vmem:[#allocation8 + $0x2d50] sm:$0xff]
    %v2081 = vld [vmem:[#allocation8 + $0x2d58] sm:$0xff]
    %v2082 = vld [vmem:[#allocation8 + $0x2d60] sm:$0xff]
    %v2083 = vld [vmem:[#allocation8 + $0x2d68] sm:$0xff]
    %v2084 = vld [vmem:[#allocation8 + $0x2d70] sm:$0xff]
    %v2085 = vld [vmem:[#allocation8 + $0x2d78] sm:$0xff]
    %v2086 = vld [vmem:[#allocation8 + $0x2d80] sm:$0xff]
    %v2087 = vld [vmem:[#allocation8 + $0x2d88] sm:$0xff]
    %v2088 = vld [vmem:[#allocation8 + $0x2d90] sm:$0xff]
    %v2089 = vld [vmem:[#allocation8 + $0x2d98] sm:$0xff]
    %v2090 = vld [vmem:[#allocation8 + $0x2da0] sm:$0xff]
    %v2091 = vld [vmem:[#allocation8 + $0x2da8] sm:$0xff]
    %v2092 = vld [vmem:[#allocation8 + $0x2db0] sm:$0xff]
    %v2093 = vld [vmem:[#allocation8 + $0x2db8] sm:$0xff]
    %v2094 = vld [vmem:[#allocation8 + $0x2dc0] sm:$0xff]
    %v2095 = vld [vmem:[#allocation8 + $0x2dc8] sm:$0xff]
    %v2096 = vld [vmem:[#allocation8 + $0x2dd0] sm:$0xff]
    %v2097 = vld [vmem:[#allocation8 + $0x2dd8] sm:$0xff]
    %v2098 = vld [vmem:[#allocation8 + $0x2de0] sm:$0xff]
    %v2099 = vld [vmem:[#allocation8 + $0x2de8] sm:$0xff]
    %v2100 = vld [vmem:[#allocation8 + $0x2df0] sm:$0xff]
    %v2101 = vld [vmem:[#allocation8 + $0x2df8] sm:$0xff]
    %v2102 = vld [vmem:[#allocation8 + $0x2e00] sm:$0xff]
    %v2103 = vld [vmem:[#allocation8 + $0x2e08] sm:$0xff]
    %v2104 = vld [vmem:[#allocation8 + $0x2e10] sm:$0xff]
    %v2105 = vld [vmem:[#allocation8 + $0x2e18] sm:$0xff]
    %v2106 = vld [vmem:[#allocation8 + $0x2e20] sm:$0xff]
    %v2107 = vld [vmem:[#allocation8 + $0x2e28] sm:$0xff]
    %v2108 = vld [vmem:[#allocation8 + $0x2e30] sm:$0xff]
    %v2109 = vld [vmem:[#allocation8 + $0x2e38] sm:$0xff]
    %v2110 = vld [vmem:[#allocation8 + $0x2e40] sm:$0xff]
    %v2111 = vld [vmem:[#allocation8 + $0x2e48] sm:$0xff]
    %v2112 = vld [vmem:[#allocation8 + $0x2e50] sm:$0xff]
    %v2113 = vld [vmem:[#allocation8 + $0x2e58] sm:$0xff]
    %v2114 = vld [vmem:[#allocation8 + $0x2e60] sm:$0xff]
    %v2115 = vld [vmem:[#allocation8 + $0x2e68] sm:$0xff]
    %v2116 = vld [vmem:[#allocation8 + $0x2e70] sm:$0xff]
    %v2117 = vld [vmem:[#allocation8 + $0x2e78] sm:$0xff]
    %v2118 = vld [vmem:[#allocation8 + $0x2e80] sm:$0xff]
    %v2119 = vld [vmem:[#allocation8 + $0x2e88] sm:$0xff]
    %v2120 = vld [vmem:[#allocation8 + $0x2e90] sm:$0xff]
    %v2121 = vld [vmem:[#allocation8 + $0x2e98] sm:$0xff]
    %v2122 = vld [vmem:[#allocation8 + $0x2ea0] sm:$0xff]
    %v2123 = vld [vmem:[#allocation8 + $0x2ea8] sm:$0xff]
    %v2124 = vld [vmem:[#allocation8 + $0x2eb0] sm:$0xff]
    %v2125 = vld [vmem:[#allocation8 + $0x2eb8] sm:$0xff]
    %v2126 = vld [vmem:[#allocation8 + $0x2ec0] sm:$0xff]
    %v2127 = vld [vmem:[#allocation8 + $0x2ec8] sm:$0xff]
    %v2128 = vld [vmem:[#allocation8 + $0x2ed0] sm:$0xff]
    %v2129 = vld [vmem:[#allocation8 + $0x2ed8] sm:$0xff]
    %v2130 = vld [vmem:[#allocation8 + $0x2ee0] sm:$0xff]
    %v2131 = vld [vmem:[#allocation8 + $0x2ee8] sm:$0xff]
    %v2132 = vld [vmem:[#allocation8 + $0x2ef0] sm:$0xff]
    %v2133 = vld [vmem:[#allocation8 + $0x2ef8] sm:$0xff]
    %v2134 = vld [vmem:[#allocation8 + $0x2f00] sm:$0xff]
    %v2135 = vld [vmem:[#allocation8 + $0x2f08] sm:$0xff]
    %v2136 = vld [vmem:[#allocation8 + $0x2f10] sm:$0xff]
    %v2137 = vld [vmem:[#allocation8 + $0x2f18] sm:$0xff]
    %v2138 = vld [vmem:[#allocation8 + $0x2f20] sm:$0xff]
    %v2139 = vld [vmem:[#allocation8 + $0x2f28] sm:$0xff]
    %v2140 = vld [vmem:[#allocation8 + $0x2f30] sm:$0xff]
    %v2141 = vld [vmem:[#allocation8 + $0x2f38] sm:$0xff]
    %v2142 = vld [vmem:[#allocation8 + $0x2f40] sm:$0xff]
    %v2143 = vld [vmem:[#allocation8 + $0x2f48] sm:$0xff]
    %v2144 = vld [vmem:[#allocation8 + $0x2f50] sm:$0xff]
    %v2145 = vld [vmem:[#allocation8 + $0x2f58] sm:$0xff]
    %v2146 = vld [vmem:[#allocation8 + $0x2f60] sm:$0xff]
    %v2147 = vld [vmem:[#allocation8 + $0x2f68] sm:$0xff]
    %v2148 = vld [vmem:[#allocation8 + $0x2f70] sm:$0xff]
    %v2149 = vld [vmem:[#allocation8 + $0x2f78] sm:$0xff]
    %v2150 = vld [vmem:[#allocation8 + $0x2f80] sm:$0xff]
    %v2151 = vld [vmem:[#allocation8 + $0x2f88] sm:$0xff]
    %v2152 = vld [vmem:[#allocation8 + $0x2f90] sm:$0xff]
    %v2153 = vld [vmem:[#allocation8 + $0x2f98] sm:$0xff]
    %v2154 = vld [vmem:[#allocation8 + $0x2fa0] sm:$0xff]
    %v2155 = vld [vmem:[#allocation8 + $0x2fa8] sm:$0xff]
    %v2156 = vld [vmem:[#allocation8 + $0x2fb0] sm:$0xff]
    %v2157 = vld [vmem:[#allocation8 + $0x2fb8] sm:$0xff]
    %v2158 = vld [vmem:[#allocation8 + $0x2fc0] sm:$0xff]
    %v2159 = vld [vmem:[#allocation8 + $0x2fc8] sm:$0xff]
    %v2160 = vld [vmem:[#allocation8 + $0x2fd0] sm:$0xff]
    %v2161 = vld [vmem:[#allocation8 + $0x2fd8] sm:$0xff]
    %v2162 = vld [vmem:[#allocation8 + $0x2fe0] sm:$0xff]
    %v2163 = vld [vmem:[#allocation8 + $0x2fe8] sm:$0xff]
    %v2164 = vld [vmem:[#allocation8 + $0x2ff0] sm:$0xff]
    %v2165 = vld [vmem:[#allocation8 + $0x2ff8] sm:$0xff]
    %v2166 = vld [vmem:[#allocation8 + $0x3000] sm:$0xff]
    %v2167 = vld [vmem:[#allocation8 + $0x3008] sm:$0xff]
    %v2168 = vld [vmem:[#allocation8 + $0x3010] sm:$0xff]
    %v2169 = vld [vmem:[#allocation8 + $0x3018] sm:$0xff]
    %v2170 = vld [vmem:[#allocation8 + $0x3020] sm:$0xff]
    %v2171 = vld [vmem:[#allocation8 + $0x3028] sm:$0xff]
    %v2172 = vld [vmem:[#allocation8 + $0x3030] sm:$0xff]
    %v2173 = vld [vmem:[#allocation8 + $0x3038] sm:$0xff]
    %v2174 = vld [vmem:[#allocation8 + $0x3040] sm:$0xff]
    %v2175 = vld [vmem:[#allocation8 + $0x3048] sm:$0xff]
    %v2176 = vld [vmem:[#allocation8 + $0x3050] sm:$0xff]
    %v2177 = vld [vmem:[#allocation8 + $0x3058] sm:$0xff]
    %v2178 = vld [vmem:[#allocation8 + $0x3060] sm:$0xff]
    %v2179 = vld [vmem:[#allocation8 + $0x3068] sm:$0xff]
    %v2180 = vld [vmem:[#allocation8 + $0x3070] sm:$0xff]
    %v2181 = vld [vmem:[#allocation8 + $0x3078] sm:$0xff]
    %v2182 = vld [vmem:[#allocation8 + $0x3080] sm:$0xff]
    %v2183 = vld [vmem:[#allocation8 + $0x3088] sm:$0xff]
    %v2184 = vld [vmem:[#allocation8 + $0x3090] sm:$0xff]
    %v2185 = vld [vmem:[#allocation8 + $0x3098] sm:$0xff]
    %v2186 = vld [vmem:[#allocation8 + $0x30a0] sm:$0xff]
    %v2187 = vld [vmem:[#allocation8 + $0x30a8] sm:$0xff]
    %v2188 = vld [vmem:[#allocation8 + $0x30b0] sm:$0xff]
    %v2189 = vld [vmem:[#allocation8 + $0x30b8] sm:$0xff]
    %v2190 = vld [vmem:[#allocation8 + $0x30c0] sm:$0xff]
    %v2191 = vld [vmem:[#allocation8 + $0x30c8] sm:$0xff]
    %v2192 = vld [vmem:[#allocation8 + $0x30d0] sm:$0xff]
    %v2193 = vld [vmem:[#allocation8 + $0x30d8] sm:$0xff]
    %v2194 = vld [vmem:[#allocation8 + $0x30e0] sm:$0xff]
    %v2195 = vld [vmem:[#allocation8 + $0x30e8] sm:$0xff]
    %v2196 = vld [vmem:[#allocation8 + $0x30f0] sm:$0xff]
    %v2197 = vld [vmem:[#allocation8 + $0x30f8] sm:$0xff]
    %v2198 = vld [vmem:[#allocation8 + $0x3100] sm:$0xff]
    %v2199 = vld [vmem:[#allocation8 + $0x3108] sm:$0xff]
    %v2200 = vld [vmem:[#allocation8 + $0x3110] sm:$0xff]
    %v2201 = vld [vmem:[#allocation8 + $0x3118] sm:$0xff]
    %v2202 = vld [vmem:[#allocation8 + $0x3120] sm:$0xff]
    %v2203 = vld [vmem:[#allocation8 + $0x3128] sm:$0xff]
    %v2204 = vld [vmem:[#allocation8 + $0x3130] sm:$0xff]
    %v2205 = vld [vmem:[#allocation8 + $0x3138] sm:$0xff]
    %v2206 = vld [vmem:[#allocation8 + $0x3140] sm:$0xff]
    %v2207 = vld [vmem:[#allocation8 + $0x3148] sm:$0xff]
    %v2208 = vld [vmem:[#allocation8 + $0x3150] sm:$0xff]
    %v2209 = vld [vmem:[#allocation8 + $0x3158] sm:$0xff]
    %v2210 = vld [vmem:[#allocation8 + $0x3160] sm:$0xff]
    %v2211 = vld [vmem:[#allocation8 + $0x3168] sm:$0xff]
    %v2212 = vld [vmem:[#allocation8 + $0x3170] sm:$0xff]
    %v2213 = vld [vmem:[#allocation8 + $0x3178] sm:$0xff]
    %v2214 = vld [vmem:[#allocation8 + $0x3180] sm:$0xff]
    %v2215 = vld [vmem:[#allocation8 + $0x3188] sm:$0xff]
    %v2216 = vld [vmem:[#allocation8 + $0x3190] sm:$0xff]
    %v2217 = vld [vmem:[#allocation8 + $0x3198] sm:$0xff]
    %v2218 = vld [vmem:[#allocation8 + $0x31a0] sm:$0xff]
    %v2219 = vld [vmem:[#allocation8 + $0x31a8] sm:$0xff]
    %v2220 = vld [vmem:[#allocation8 + $0x31b0] sm:$0xff]
    %v2221 = vld [vmem:[#allocation8 + $0x31b8] sm:$0xff]
    %v2222 = vld [vmem:[#allocation8 + $0x31c0] sm:$0xff]
    %v2223 = vld [vmem:[#allocation8 + $0x31c8] sm:$0xff]
    %v2224 = vld [vmem:[#allocation8 + $0x31d0] sm:$0xff]
    %v2225 = vld [vmem:[#allocation8 + $0x31d8] sm:$0xff]
    %v2226 = vld [vmem:[#allocation8 + $0x31e0] sm:$0xff]
    %v2227 = vld [vmem:[#allocation8 + $0x31e8] sm:$0xff]
    %v2228 = vld [vmem:[#allocation8 + $0x31f0] sm:$0xff]
    %v2229 = vld [vmem:[#allocation8 + $0x31f8] sm:$0xff]
    %v2230 = vld [vmem:[#allocation8 + $0x3200] sm:$0xff]
    %v2231 = vld [vmem:[#allocation8 + $0x3208] sm:$0xff]
    %v2232 = vld [vmem:[#allocation8 + $0x3210] sm:$0xff]
    %v2233 = vld [vmem:[#allocation8 + $0x3218] sm:$0xff]
    %v2234 = vld [vmem:[#allocation8 + $0x3220] sm:$0xff]
    %v2235 = vld [vmem:[#allocation8 + $0x3228] sm:$0xff]
    %v2236 = vld [vmem:[#allocation8 + $0x3230] sm:$0xff]
    %v2237 = vld [vmem:[#allocation8 + $0x3238] sm:$0xff]
    %v2238 = vld [vmem:[#allocation8 + $0x3240] sm:$0xff]
    %v2239 = vld [vmem:[#allocation8 + $0x3248] sm:$0xff]
    %v2240 = vld [vmem:[#allocation8 + $0x3250] sm:$0xff]
    %v2241 = vld [vmem:[#allocation8 + $0x3258] sm:$0xff]
    %v2242 = vld [vmem:[#allocation8 + $0x3260] sm:$0xff]
    %v2243 = vld [vmem:[#allocation8 + $0x3268] sm:$0xff]
    %v2244 = vld [vmem:[#allocation8 + $0x3270] sm:$0xff]
    %v2245 = vld [vmem:[#allocation8 + $0x3278] sm:$0xff]
    %v2246 = vld [vmem:[#allocation8 + $0x3280] sm:$0xff]
    %v2247 = vld [vmem:[#allocation8 + $0x3288] sm:$0xff]
    %v2248 = vld [vmem:[#allocation8 + $0x3290] sm:$0xff]
    %v2249 = vld [vmem:[#allocation8 + $0x3298] sm:$0xff]
    %v2250 = vld [vmem:[#allocation8 + $0x32a0] sm:$0xff]
    %v2251 = vld [vmem:[#allocation8 + $0x32a8] sm:$0xff]
    %v2252 = vld [vmem:[#allocation8 + $0x32b0] sm:$0xff]
    %v2253 = vld [vmem:[#allocation8 + $0x32b8] sm:$0xff]
    %v2254 = vld [vmem:[#allocation8 + $0x32c0] sm:$0xff]
    %v2255 = vld [vmem:[#allocation8 + $0x32c8] sm:$0xff]
    %v2256 = vld [vmem:[#allocation8 + $0x32d0] sm:$0xff]
    %v2257 = vld [vmem:[#allocation8 + $0x32d8] sm:$0xff]
    %v2258 = vld [vmem:[#allocation8 + $0x32e0] sm:$0xff]
    %v2259 = vld [vmem:[#allocation8 + $0x32e8] sm:$0xff]
    %v2260 = vld [vmem:[#allocation8 + $0x32f0] sm:$0xff]
    %v2261 = vld [vmem:[#allocation8 + $0x32f8] sm:$0xff]
    %v2262 = vld [vmem:[#allocation8 + $0x3300] sm:$0xff]
    %v2263 = vld [vmem:[#allocation8 + $0x3308] sm:$0xff]
    %v2264 = vld [vmem:[#allocation8 + $0x3310] sm:$0xff]
    %v2265 = vld [vmem:[#allocation8 + $0x3318] sm:$0xff]
    %v2266 = vld [vmem:[#allocation8 + $0x3320] sm:$0xff]
    %v2267 = vld [vmem:[#allocation8 + $0x3328] sm:$0xff]
    %v2268 = vld [vmem:[#allocation8 + $0x3330] sm:$0xff]
    %v2269 = vld [vmem:[#allocation8 + $0x3338] sm:$0xff]
    %v2270 = vld [vmem:[#allocation8 + $0x3340] sm:$0xff]
    %v2271 = vld [vmem:[#allocation8 + $0x3348] sm:$0xff]
    %v2272 = vld [vmem:[#allocation8 + $0x3350] sm:$0xff]
    %v2273 = vld [vmem:[#allocation8 + $0x3358] sm:$0xff]
    %v2274 = vld [vmem:[#allocation8 + $0x3360] sm:$0xff]
    %v2275 = vld [vmem:[#allocation8 + $0x3368] sm:$0xff]
    %v2276 = vld [vmem:[#allocation8 + $0x3370] sm:$0xff]
    %v2277 = vld [vmem:[#allocation8 + $0x3378] sm:$0xff]
    %v2278 = vld [vmem:[#allocation8 + $0x3380] sm:$0xff]
    %v2279 = vld [vmem:[#allocation8 + $0x3388] sm:$0xff]
    %v2280 = vld [vmem:[#allocation8 + $0x3390] sm:$0xff]
    %v2281 = vld [vmem:[#allocation8 + $0x3398] sm:$0xff]
    %v2282 = vld [vmem:[#allocation8 + $0x33a0] sm:$0xff]
    %v2283 = vld [vmem:[#allocation8 + $0x33a8] sm:$0xff]
    %v2284 = vld [vmem:[#allocation8 + $0x33b0] sm:$0xff]
    %v2285 = vld [vmem:[#allocation8 + $0x33b8] sm:$0xff]
    %v2286 = vld [vmem:[#allocation8 + $0x33c0] sm:$0xff]
    %v2287 = vld [vmem:[#allocation8 + $0x33c8] sm:$0xff]
    %v2288 = vld [vmem:[#allocation8 + $0x33d0] sm:$0xff]
    %v2289 = vld [vmem:[#allocation8 + $0x33d8] sm:$0xff]
    %v2290 = vld [vmem:[#allocation8 + $0x33e0] sm:$0xff]
    %v2291 = vld [vmem:[#allocation8 + $0x33e8] sm:$0xff]
    %v2292 = vld [vmem:[#allocation8 + $0x33f0] sm:$0xff]
    %v2293 = vld [vmem:[#allocation8 + $0x33f8] sm:$0xff]
    %v2294 = vld [vmem:[#allocation8 + $0x3400] sm:$0xff]
    %v2295 = vld [vmem:[#allocation8 + $0x3408] sm:$0xff]
    %v2296 = vld [vmem:[#allocation8 + $0x3410] sm:$0xff]
    %v2297 = vld [vmem:[#allocation8 + $0x3418] sm:$0xff]
    %v2298 = vld [vmem:[#allocation8 + $0x3420] sm:$0xff]
    %v2299 = vld [vmem:[#allocation8 + $0x3428] sm:$0xff]
    %v2300 = vld [vmem:[#allocation8 + $0x3430] sm:$0xff]
    %v2301 = vld [vmem:[#allocation8 + $0x3438] sm:$0xff]
    %v2302 = vld [vmem:[#allocation8 + $0x3440] sm:$0xff]
    %v2303 = vld [vmem:[#allocation8 + $0x3448] sm:$0xff]
    %v2304 = vld [vmem:[#allocation8 + $0x3450] sm:$0xff]
    %v2305 = vld [vmem:[#allocation8 + $0x3458] sm:$0xff]
    %v2306 = vld [vmem:[#allocation8 + $0x3460] sm:$0xff]
    %v2307 = vld [vmem:[#allocation8 + $0x3468] sm:$0xff]
    %v2308 = vld [vmem:[#allocation8 + $0x3470] sm:$0xff]
    %v2309 = vld [vmem:[#allocation8 + $0x3478] sm:$0xff]
    %v2310 = vld [vmem:[#allocation8 + $0x3480] sm:$0xff]
    %v2311 = vld [vmem:[#allocation8 + $0x3488] sm:$0xff]
    %v2312 = vld [vmem:[#allocation8 + $0x3490] sm:$0xff]
    %v2313 = vld [vmem:[#allocation8 + $0x3498] sm:$0xff]
    %v2314 = vld [vmem:[#allocation8 + $0x34a0] sm:$0xff]
    %v2315 = vld [vmem:[#allocation8 + $0x34a8] sm:$0xff]
    %v2316 = vld [vmem:[#allocation8 + $0x34b0] sm:$0xff]
    %v2317 = vld [vmem:[#allocation8 + $0x34b8] sm:$0xff]
    %v2318 = vld [vmem:[#allocation8 + $0x34c0] sm:$0xff]
    %v2319 = vld [vmem:[#allocation8 + $0x34c8] sm:$0xff]
    %v2320 = vld [vmem:[#allocation8 + $0x34d0] sm:$0xff]
    %v2321 = vld [vmem:[#allocation8 + $0x34d8] sm:$0xff]
    %v2322 = vld [vmem:[#allocation8 + $0x34e0] sm:$0xff]
    %v2323 = vld [vmem:[#allocation8 + $0x34e8] sm:$0xff]
    %v2324 = vld [vmem:[#allocation8 + $0x34f0] sm:$0xff]
    %v2325 = vld [vmem:[#allocation8 + $0x34f8] sm:$0xff]
    %v2326 = vld [vmem:[#allocation8 + $0x3500] sm:$0xff]
    %v2327 = vld [vmem:[#allocation8 + $0x3508] sm:$0xff]
    %v2328 = vld [vmem:[#allocation8 + $0x3510] sm:$0xff]
    %v2329 = vld [vmem:[#allocation8 + $0x3518] sm:$0xff]
    %v2330 = vld [vmem:[#allocation8 + $0x3520] sm:$0xff]
    %v2331 = vld [vmem:[#allocation8 + $0x3528] sm:$0xff]
    %v2332 = vld [vmem:[#allocation8 + $0x3530] sm:$0xff]
    %v2333 = vld [vmem:[#allocation8 + $0x3538] sm:$0xff]
    %v2334 = vld [vmem:[#allocation8 + $0x3540] sm:$0xff]
    %v2335 = vld [vmem:[#allocation8 + $0x3548] sm:$0xff]
    %v2336 = vld [vmem:[#allocation8 + $0x3550] sm:$0xff]
    %v2337 = vld [vmem:[#allocation8 + $0x3558] sm:$0xff]
    %v2338 = vld [vmem:[#allocation8 + $0x3560] sm:$0xff]
    %v2339 = vld [vmem:[#allocation8 + $0x3568] sm:$0xff]
    %v2340 = vld [vmem:[#allocation8 + $0x3570] sm:$0xff]
    %v2341 = vld [vmem:[#allocation8 + $0x3578] sm:$0xff]
    %v2342 = vld [vmem:[#allocation8 + $0x3580] sm:$0xff]
    %v2343 = vld [vmem:[#allocation8 + $0x3588] sm:$0xff]
    %v2344 = vld [vmem:[#allocation8 + $0x3590] sm:$0xff]
    %v2345 = vld [vmem:[#allocation8 + $0x3598] sm:$0xff]
    %v2346 = vld [vmem:[#allocation8 + $0x35a0] sm:$0xff]
    %v2347 = vld [vmem:[#allocation8 + $0x35a8] sm:$0xff]
    %v2348 = vld [vmem:[#allocation8 + $0x35b0] sm:$0xff]
    %v2349 = vld [vmem:[#allocation8 + $0x35b8] sm:$0xff]
    %v2350 = vld [vmem:[#allocation8 + $0x35c0] sm:$0xff]
    %v2351 = vld [vmem:[#allocation8 + $0x35c8] sm:$0xff]
    %v2352 = vld [vmem:[#allocation8 + $0x35d0] sm:$0xff]
    %v2353 = vld [vmem:[#allocation8 + $0x35d8] sm:$0xff]
    %v2354 = vld [vmem:[#allocation8 + $0x35e0] sm:$0xff]
    %v2355 = vld [vmem:[#allocation8 + $0x35e8] sm:$0xff]
    %v2356 = vld [vmem:[#allocation8 + $0x35f0] sm:$0xff]
    %v2357 = vld [vmem:[#allocation8 + $0x35f8] sm:$0xff]
    %v2358 = vld [vmem:[#allocation8 + $0x3600] sm:$0xff]
    %v2359 = vld [vmem:[#allocation8 + $0x3608] sm:$0xff]
    %v2360 = vld [vmem:[#allocation8 + $0x3610] sm:$0xff]
    %v2361 = vld [vmem:[#allocation8 + $0x3618] sm:$0xff]
    %v2362 = vld [vmem:[#allocation8 + $0x3620] sm:$0xff]
    %v2363 = vld [vmem:[#allocation8 + $0x3628] sm:$0xff]
    %v2364 = vld [vmem:[#allocation8 + $0x3630] sm:$0xff]
    %v2365 = vld [vmem:[#allocation8 + $0x3638] sm:$0xff]
    %v2366 = vld [vmem:[#allocation8 + $0x3640] sm:$0xff]
    %v2367 = vld [vmem:[#allocation8 + $0x3648] sm:$0xff]
    %v2368 = vld [vmem:[#allocation8 + $0x3650] sm:$0xff]
    %v2369 = vld [vmem:[#allocation8 + $0x3658] sm:$0xff]
    %v2370 = vld [vmem:[#allocation8 + $0x3660] sm:$0xff]
    %v2371 = vld [vmem:[#allocation8 + $0x3668] sm:$0xff]
    %v2372 = vld [vmem:[#allocation8 + $0x3670] sm:$0xff]
    %v2373 = vld [vmem:[#allocation8 + $0x3678] sm:$0xff]
    %v2374 = vld [vmem:[#allocation8 + $0x3680] sm:$0xff]
    %v2375 = vld [vmem:[#allocation8 + $0x3688] sm:$0xff]
    %v2376 = vld [vmem:[#allocation8 + $0x3690] sm:$0xff]
    %v2377 = vld [vmem:[#allocation8 + $0x3698] sm:$0xff]
    %v2378 = vld [vmem:[#allocation8 + $0x36a0] sm:$0xff]
    %v2379 = vld [vmem:[#allocation8 + $0x36a8] sm:$0xff]
    %v2380 = vld [vmem:[#allocation8 + $0x36b0] sm:$0xff]
    %v2381 = vld [vmem:[#allocation8 + $0x36b8] sm:$0xff]
    %v2382 = vld [vmem:[#allocation8 + $0x36c0] sm:$0xff]
    %v2383 = vld [vmem:[#allocation8 + $0x36c8] sm:$0xff]
    %v2384 = vld [vmem:[#allocation8 + $0x36d0] sm:$0xff]
    %v2385 = vld [vmem:[#allocation8 + $0x36d8] sm:$0xff]
    %v2386 = vld [vmem:[#allocation8 + $0x36e0] sm:$0xff]
    %v2387 = vld [vmem:[#allocation8 + $0x36e8] sm:$0xff]
    %v2388 = vld [vmem:[#allocation8 + $0x36f0] sm:$0xff]
    %v2389 = vld [vmem:[#allocation8 + $0x36f8] sm:$0xff]
    %v2390 = vld [vmem:[#allocation8 + $0x3700] sm:$0xff]
    %v2391 = vld [vmem:[#allocation8 + $0x3708] sm:$0xff]
    %v2392 = vld [vmem:[#allocation8 + $0x3710] sm:$0xff]
    %v2393 = vld [vmem:[#allocation8 + $0x3718] sm:$0xff]
    %v2394 = vld [vmem:[#allocation8 + $0x3720] sm:$0xff]
    %v2395 = vld [vmem:[#allocation8 + $0x3728] sm:$0xff]
    %v2396 = vld [vmem:[#allocation8 + $0x3730] sm:$0xff]
    %v2397 = vld [vmem:[#allocation8 + $0x3738] sm:$0xff]
    %v2398 = vld [vmem:[#allocation8 + $0x3740] sm:$0xff]
    %v2399 = vld [vmem:[#allocation8 + $0x3748] sm:$0xff]
    %v2400 = vld [vmem:[#allocation8 + $0x3750] sm:$0xff]
    %v2401 = vld [vmem:[#allocation8 + $0x3758] sm:$0xff]
    %v2402 = vld [vmem:[#allocation8 + $0x3760] sm:$0xff]
    %v2403 = vld [vmem:[#allocation8 + $0x3768] sm:$0xff]
    %v2404 = vld [vmem:[#allocation8 + $0x3770] sm:$0xff]
    %v2405 = vld [vmem:[#allocation8 + $0x3778] sm:$0xff]
    %v2406 = vld [vmem:[#allocation8 + $0x3780] sm:$0xff]
    %v2407 = vld [vmem:[#allocation8 + $0x3788] sm:$0xff]
    %v2408 = vld [vmem:[#allocation8 + $0x3790] sm:$0xff]
    %v2409 = vld [vmem:[#allocation8 + $0x3798] sm:$0xff]
    %v2410 = vld [vmem:[#allocation8 + $0x37a0] sm:$0xff]
    %v2411 = vld [vmem:[#allocation8 + $0x37a8] sm:$0xff]
    %v2412 = vld [vmem:[#allocation8 + $0x37b0] sm:$0xff]
    %v2413 = vld [vmem:[#allocation8 + $0x37b8] sm:$0xff]
    %v2414 = vld [vmem:[#allocation8 + $0x37c0] sm:$0xff]
    %v2415 = vld [vmem:[#allocation8 + $0x37c8] sm:$0xff]
    %v2416 = vld [vmem:[#allocation8 + $0x37d0] sm:$0xff]
    %v2417 = vld [vmem:[#allocation8 + $0x37d8] sm:$0xff]
    %v2418 = vld [vmem:[#allocation8 + $0x37e0] sm:$0xff]
    %v2419 = vld [vmem:[#allocation8 + $0x37e8] sm:$0xff]
    %v2420 = vld [vmem:[#allocation8 + $0x37f0] sm:$0xff]
    %v2421 = vld [vmem:[#allocation8 + $0x37f8] sm:$0xff]
    %v2422 = vld [vmem:[#allocation8 + $0x3800] sm:$0xff]
    %v2423 = vld [vmem:[#allocation8 + $0x3808] sm:$0xff]
    %v2424 = vld [vmem:[#allocation8 + $0x3810] sm:$0xff]
    %v2425 = vld [vmem:[#allocation8 + $0x3818] sm:$0xff]
    %v2426 = vld [vmem:[#allocation8 + $0x3820] sm:$0xff]
    %v2427 = vld [vmem:[#allocation8 + $0x3828] sm:$0xff]
    %v2428 = vld [vmem:[#allocation8 + $0x3830] sm:$0xff]
    %v2429 = vld [vmem:[#allocation8 + $0x3838] sm:$0xff]
    %v2430 = vld [vmem:[#allocation8 + $0x3840] sm:$0xff]
    %v2431 = vld [vmem:[#allocation8 + $0x3848] sm:$0xff]
    %v2432 = vld [vmem:[#allocation8 + $0x3850] sm:$0xff]
    %v2433 = vld [vmem:[#allocation8 + $0x3858] sm:$0xff]
    %v2434 = vld [vmem:[#allocation8 + $0x3860] sm:$0xff]
    %v2435 = vld [vmem:[#allocation8 + $0x3868] sm:$0xff]
    %v2436 = vld [vmem:[#allocation8 + $0x3870] sm:$0xff]
    %v2437 = vld [vmem:[#allocation8 + $0x3878] sm:$0xff]
    %v2438 = vld [vmem:[#allocation8 + $0x3880] sm:$0xff]
    %v2439 = vld [vmem:[#allocation8 + $0x3888] sm:$0xff]
    %v2440 = vld [vmem:[#allocation8 + $0x3890] sm:$0xff]
    %v2441 = vld [vmem:[#allocation8 + $0x3898] sm:$0xff]
    %v2442 = vld [vmem:[#allocation8 + $0x38a0] sm:$0xff]
    %v2443 = vld [vmem:[#allocation8 + $0x38a8] sm:$0xff]
    %v2444 = vld [vmem:[#allocation8 + $0x38b0] sm:$0xff]
    %v2445 = vld [vmem:[#allocation8 + $0x38b8] sm:$0xff]
    %v2446 = vld [vmem:[#allocation8 + $0x38c0] sm:$0xff]
    %v2447 = vld [vmem:[#allocation8 + $0x38c8] sm:$0xff]
    %v2448 = vld [vmem:[#allocation8 + $0x38d0] sm:$0xff]
    %v2449 = vld [vmem:[#allocation8 + $0x38d8] sm:$0xff]
    %v2450 = vld [vmem:[#allocation8 + $0x38e0] sm:$0xff]
    %v2451 = vld [vmem:[#allocation8 + $0x38e8] sm:$0xff]
    %v2452 = vld [vmem:[#allocation8 + $0x38f0] sm:$0xff]
    %v2453 = vld [vmem:[#allocation8 + $0x38f8] sm:$0xff]
    %v2454 = vld [vmem:[#allocation8 + $0x3900] sm:$0xff]
    %v2455 = vld [vmem:[#allocation8 + $0x3908] sm:$0xff]
    %v2456 = vld [vmem:[#allocation8 + $0x3910] sm:$0xff]
    %v2457 = vld [vmem:[#allocation8 + $0x3918] sm:$0xff]
    %v2458 = vld [vmem:[#allocation8 + $0x3920] sm:$0xff]
    %v2459 = vld [vmem:[#allocation8 + $0x3928] sm:$0xff]
    %v2460 = vld [vmem:[#allocation8 + $0x3930] sm:$0xff]
    %v2461 = vld [vmem:[#allocation8 + $0x3938] sm:$0xff]
    %v2462 = vld [vmem:[#allocation8 + $0x3940] sm:$0xff]
    %v2463 = vld [vmem:[#allocation8 + $0x3948] sm:$0xff]
    %v2464 = vld [vmem:[#allocation8 + $0x3950] sm:$0xff]
    %v2465 = vld [vmem:[#allocation8 + $0x3958] sm:$0xff]
    %v2466 = vld [vmem:[#allocation8 + $0x3960] sm:$0xff]
    %v2467 = vld [vmem:[#allocation8 + $0x3968] sm:$0xff]
    %v2468 = vld [vmem:[#allocation8 + $0x3970] sm:$0xff]
    %v2469 = vld [vmem:[#allocation8 + $0x3978] sm:$0xff]
    %v2470 = vld [vmem:[#allocation8 + $0x3980] sm:$0xff]
    %v2471 = vld [vmem:[#allocation8 + $0x3988] sm:$0xff]
    %v2472 = vld [vmem:[#allocation8 + $0x3990] sm:$0xff]
    %v2473 = vld [vmem:[#allocation8 + $0x3998] sm:$0xff]
    %v2474 = vld [vmem:[#allocation8 + $0x39a0] sm:$0xff]
    %v2475 = vld [vmem:[#allocation8 + $0x39a8] sm:$0xff]
    %v2476 = vld [vmem:[#allocation8 + $0x39b0] sm:$0xff]
    %v2477 = vld [vmem:[#allocation8 + $0x39b8] sm:$0xff]
    %v2478 = vld [vmem:[#allocation8 + $0x39c0] sm:$0xff]
    %v2479 = vld [vmem:[#allocation8 + $0x39c8] sm:$0xff]
    %v2480 = vld [vmem:[#allocation8 + $0x39d0] sm:$0xff]
    %v2481 = vld [vmem:[#allocation8 + $0x39d8] sm:$0xff]
    %v2482 = vld [vmem:[#allocation8 + $0x39e0] sm:$0xff]
    %v2483 = vld [vmem:[#allocation8 + $0x39e8] sm:$0xff]
    %v2484 = vld [vmem:[#allocation8 + $0x39f0] sm:$0xff]
    %v2485 = vld [vmem:[#allocation8 + $0x39f8] sm:$0xff]
    %v2486 = vld [vmem:[#allocation8 + $0x3a00] sm:$0xff]
    %v2487 = vld [vmem:[#allocation8 + $0x3a08] sm:$0xff]
    %v2488 = vld [vmem:[#allocation8 + $0x3a10] sm:$0xff]
    %v2489 = vld [vmem:[#allocation8 + $0x3a18] sm:$0xff]
    %v2490 = vld [vmem:[#allocation8 + $0x3a20] sm:$0xff]
    %v2491 = vld [vmem:[#allocation8 + $0x3a28] sm:$0xff]
    %v2492 = vld [vmem:[#allocation8 + $0x3a30] sm:$0xff]
    %v2493 = vld [vmem:[#allocation8 + $0x3a38] sm:$0xff]
    %v2494 = vld [vmem:[#allocation8 + $0x3a40] sm:$0xff]
    %v2495 = vld [vmem:[#allocation8 + $0x3a48] sm:$0xff]
    %v2496 = vld [vmem:[#allocation8 + $0x3a50] sm:$0xff]
    %v2497 = vld [vmem:[#allocation8 + $0x3a58] sm:$0xff]
    %v2498 = vld [vmem:[#allocation8 + $0x3a60] sm:$0xff]
    %v2499 = vld [vmem:[#allocation8 + $0x3a68] sm:$0xff]
    %v2500 = vld [vmem:[#allocation8 + $0x3a70] sm:$0xff]
    %v2501 = vld [vmem:[#allocation8 + $0x3a78] sm:$0xff]
    %v2502 = vld [vmem:[#allocation8 + $0x3a80] sm:$0xff]
    %v2503 = vld [vmem:[#allocation8 + $0x3a88] sm:$0xff]
    %v2504 = vld [vmem:[#allocation8 + $0x3a90] sm:$0xff]
    %v2505 = vld [vmem:[#allocation8 + $0x3a98] sm:$0xff]
    %v2506 = vld [vmem:[#allocation8 + $0x3aa0] sm:$0xff]
    %v2507 = vld [vmem:[#allocation8 + $0x3aa8] sm:$0xff]
    %v2508 = vld [vmem:[#allocation8 + $0x3ab0] sm:$0xff]
    %v2509 = vld [vmem:[#allocation8 + $0x3ab8] sm:$0xff]
    %v2510 = vld [vmem:[#allocation8 + $0x3ac0] sm:$0xff]
    %v2511 = vld [vmem:[#allocation8 + $0x3ac8] sm:$0xff]
    %v2512 = vld [vmem:[#allocation8 + $0x3ad0] sm:$0xff]
    %v2513 = vld [vmem:[#allocation8 + $0x3ad8] sm:$0xff]
    %v2514 = vld [vmem:[#allocation8 + $0x3ae0] sm:$0xff]
    %v2515 = vld [vmem:[#allocation8 + $0x3ae8] sm:$0xff]
    %v2516 = vld [vmem:[#allocation8 + $0x3af0] sm:$0xff]
    %v2517 = vld [vmem:[#allocation8 + $0x3af8] sm:$0xff]
    %v2518 = vld [vmem:[#allocation8 + $0x3b00] sm:$0xff]
    %v2519 = vld [vmem:[#allocation8 + $0x3b08] sm:$0xff]
    %v2520 = vld [vmem:[#allocation8 + $0x3b10] sm:$0xff]
    %v2521 = vld [vmem:[#allocation8 + $0x3b18] sm:$0xff]
    %v2522 = vld [vmem:[#allocation8 + $0x3b20] sm:$0xff]
    %v2523 = vld [vmem:[#allocation8 + $0x3b28] sm:$0xff]
    %v2524 = vld [vmem:[#allocation8 + $0x3b30] sm:$0xff]
    %v2525 = vld [vmem:[#allocation8 + $0x3b38] sm:$0xff]
    %v2526 = vld [vmem:[#allocation8 + $0x3b40] sm:$0xff]
    %v2527 = vld [vmem:[#allocation8 + $0x3b48] sm:$0xff]
    %v2528 = vld [vmem:[#allocation8 + $0x3b50] sm:$0xff]
    %v2529 = vld [vmem:[#allocation8 + $0x3b58] sm:$0xff]
    %v2530 = vld [vmem:[#allocation8 + $0x3b60] sm:$0xff]
    %v2531 = vld [vmem:[#allocation8 + $0x3b68] sm:$0xff]
    %v2532 = vld [vmem:[#allocation8 + $0x3b70] sm:$0xff]
    %v2533 = vld [vmem:[#allocation8 + $0x3b78] sm:$0xff]
    %v2534 = vld [vmem:[#allocation8 + $0x3b80] sm:$0xff]
    %v2535 = vld [vmem:[#allocation8 + $0x3b88] sm:$0xff]
    %v2536 = vld [vmem:[#allocation8 + $0x3b90] sm:$0xff]
    %v2537 = vld [vmem:[#allocation8 + $0x3b98] sm:$0xff]
    %v2538 = vld [vmem:[#allocation8 + $0x3ba0] sm:$0xff]
    %v2539 = vld [vmem:[#allocation8 + $0x3ba8] sm:$0xff]
    %v2540 = vld [vmem:[#allocation8 + $0x3bb0] sm:$0xff]
    %v2541 = vld [vmem:[#allocation8 + $0x3bb8] sm:$0xff]
    %v2542 = vld [vmem:[#allocation8 + $0x3bc0] sm:$0xff]
    %v2543 = vld [vmem:[#allocation8 + $0x3bc8] sm:$0xff]
    %v2544 = vld [vmem:[#allocation8 + $0x3bd0] sm:$0xff]
    %v2545 = vld [vmem:[#allocation8 + $0x3bd8] sm:$0xff]
    %v2546 = vld [vmem:[#allocation8 + $0x3be0] sm:$0xff]
    %v2547 = vld [vmem:[#allocation8 + $0x3be8] sm:$0xff]
    %v2548 = vld [vmem:[#allocation8 + $0x3bf0] sm:$0xff]
    %v2549 = vld [vmem:[#allocation8 + $0x3bf8] sm:$0xff]
    %v2550 = vld [vmem:[#allocation8 + $0x3c00] sm:$0xff]
    %v2551 = vld [vmem:[#allocation8 + $0x3c08] sm:$0xff]
    %v2552 = vld [vmem:[#allocation8 + $0x3c10] sm:$0xff]
    %v2553 = vld [vmem:[#allocation8 + $0x3c18] sm:$0xff]
    %v2554 = vld [vmem:[#allocation8 + $0x3c20] sm:$0xff]
    %v2555 = vld [vmem:[#allocation8 + $0x3c28] sm:$0xff]
    %v2556 = vld [vmem:[#allocation8 + $0x3c30] sm:$0xff]
    %v2557 = vld [vmem:[#allocation8 + $0x3c38] sm:$0xff]
    %v2558 = vld [vmem:[#allocation8 + $0x3c40] sm:$0xff]
    %v2559 = vld [vmem:[#allocation8 + $0x3c48] sm:$0xff]
    %v2560 = vld [vmem:[#allocation8 + $0x3c50] sm:$0xff]
    %v2561 = vld [vmem:[#allocation8 + $0x3c58] sm:$0xff]
    %v2562 = vld [vmem:[#allocation8 + $0x3c60] sm:$0xff]
    %v2563 = vld [vmem:[#allocation8 + $0x3c68] sm:$0xff]
    %v2564 = vld [vmem:[#allocation8 + $0x3c70] sm:$0xff]
    %v2565 = vld [vmem:[#allocation8 + $0x3c78] sm:$0xff]
    %v2566 = vld [vmem:[#allocation8 + $0x3c80] sm:$0xff]
    %v2567 = vld [vmem:[#allocation8 + $0x3c88] sm:$0xff]
    %v2568 = vld [vmem:[#allocation8 + $0x3c90] sm:$0xff]
    %v2569 = vld [vmem:[#allocation8 + $0x3c98] sm:$0xff]
    %v2570 = vld [vmem:[#allocation8 + $0x3ca0] sm:$0xff]
    %v2571 = vld [vmem:[#allocation8 + $0x3ca8] sm:$0xff]
    %v2572 = vld [vmem:[#allocation8 + $0x3cb0] sm:$0xff]
    %v2573 = vld [vmem:[#allocation8 + $0x3cb8] sm:$0xff]
    %v2574 = vld [vmem:[#allocation8 + $0x3cc0] sm:$0xff]
    %v2575 = vld [vmem:[#allocation8 + $0x3cc8] sm:$0xff]
    %v2576 = vld [vmem:[#allocation8 + $0x3cd0] sm:$0xff]
    %v2577 = vld [vmem:[#allocation8 + $0x3cd8] sm:$0xff]
    %v2578 = vld [vmem:[#allocation8 + $0x3ce0] sm:$0xff]
    %v2579 = vld [vmem:[#allocation8 + $0x3ce8] sm:$0xff]
    %v2580 = vld [vmem:[#allocation8 + $0x3cf0] sm:$0xff]
    %v2581 = vld [vmem:[#allocation8 + $0x3cf8] sm:$0xff]
    %v2582 = vld [vmem:[#allocation8 + $0x3d00] sm:$0xff]
    %v2583 = vld [vmem:[#allocation8 + $0x3d08] sm:$0xff]
    %v2584 = vld [vmem:[#allocation8 + $0x3d10] sm:$0xff]
    %v2585 = vld [vmem:[#allocation8 + $0x3d18] sm:$0xff]
    %v2586 = vld [vmem:[#allocation8 + $0x3d20] sm:$0xff]
    %v2587 = vld [vmem:[#allocation8 + $0x3d28] sm:$0xff]
    %v2588 = vld [vmem:[#allocation8 + $0x3d30] sm:$0xff]
    %v2589 = vld [vmem:[#allocation8 + $0x3d38] sm:$0xff]
    %v2590 = vld [vmem:[#allocation8 + $0x3d40] sm:$0xff]
    %v2591 = vld [vmem:[#allocation8 + $0x3d48] sm:$0xff]
    %v2592 = vld [vmem:[#allocation8 + $0x3d50] sm:$0xff]
    %v2593 = vld [vmem:[#allocation8 + $0x3d58] sm:$0xff]
    %v2594 = vld [vmem:[#allocation8 + $0x3d60] sm:$0xff]
    %v2595 = vld [vmem:[#allocation8 + $0x3d68] sm:$0xff]
    %v2596 = vld [vmem:[#allocation8 + $0x3d70] sm:$0xff]
    %v2597 = vld [vmem:[#allocation8 + $0x3d78] sm:$0xff]
    %v2598 = vld [vmem:[#allocation8 + $0x3d80] sm:$0xff]
    %v2599 = vld [vmem:[#allocation8 + $0x3d88] sm:$0xff]
    %v2600 = vld [vmem:[#allocation8 + $0x3d90] sm:$0xff]
    %v2601 = vld [vmem:[#allocation8 + $0x3d98] sm:$0xff]
    %v2602 = vld [vmem:[#allocation8 + $0x3da0] sm:$0xff]
    %v2603 = vld [vmem:[#allocation8 + $0x3da8] sm:$0xff]
    %v2604 = vld [vmem:[#allocation8 + $0x3db0] sm:$0xff]
    %v2605 = vld [vmem:[#allocation8 + $0x3db8] sm:$0xff]
    %v2606 = vld [vmem:[#allocation8 + $0x3dc0] sm:$0xff]
    %v2607 = vld [vmem:[#allocation8 + $0x3dc8] sm:$0xff]
    %v2608 = vld [vmem:[#allocation8 + $0x3dd0] sm:$0xff]
    %v2609 = vld [vmem:[#allocation8 + $0x3dd8] sm:$0xff]
    %v2610 = vld [vmem:[#allocation8 + $0x3de0] sm:$0xff]
    %v2611 = vld [vmem:[#allocation8 + $0x3de8] sm:$0xff]
    %v2612 = vld [vmem:[#allocation8 + $0x3df0] sm:$0xff]
    %v2613 = vld [vmem:[#allocation8 + $0x3df8] sm:$0xff]
    %v2614 = vld [vmem:[#allocation8 + $0x3e00] sm:$0xff]
    %v2615 = vld [vmem:[#allocation8 + $0x3e08] sm:$0xff]
    %v2616 = vld [vmem:[#allocation8 + $0x3e10] sm:$0xff]
    %v2617 = vld [vmem:[#allocation8 + $0x3e18] sm:$0xff]
    %v2618 = vld [vmem:[#allocation8 + $0x3e20] sm:$0xff]
    %v2619 = vld [vmem:[#allocation8 + $0x3e28] sm:$0xff]
    %v2620 = vld [vmem:[#allocation8 + $0x3e30] sm:$0xff]
    %v2621 = vld [vmem:[#allocation8 + $0x3e38] sm:$0xff]
    %v2622 = vld [vmem:[#allocation8 + $0x3e40] sm:$0xff]
    %v2623 = vld [vmem:[#allocation8 + $0x3e48] sm:$0xff]
    %v2624 = vld [vmem:[#allocation8 + $0x3e50] sm:$0xff]
    %v2625 = vld [vmem:[#allocation8 + $0x3e58] sm:$0xff]
    %v2626 = vld [vmem:[#allocation8 + $0x3e60] sm:$0xff]
    %v2627 = vld [vmem:[#allocation8 + $0x3e68] sm:$0xff]
    %v2628 = vld [vmem:[#allocation8 + $0x3e70] sm:$0xff]
    %v2629 = vld [vmem:[#allocation8 + $0x3e78] sm:$0xff]
    %v2630 = vld [vmem:[#allocation8 + $0x3e80] sm:$0xff]
    %v2631 = vld [vmem:[#allocation8 + $0x3e88] sm:$0xff]
    %v2632 = vld [vmem:[#allocation8 + $0x3e90] sm:$0xff]
    %v2633 = vld [vmem:[#allocation8 + $0x3e98] sm:$0xff]
    %v2634 = vld [vmem:[#allocation8 + $0x3ea0] sm:$0xff]
    %v2635 = vld [vmem:[#allocation8 + $0x3ea8] sm:$0xff]
    %v2636 = vld [vmem:[#allocation8 + $0x3eb0] sm:$0xff]
    %v2637 = vld [vmem:[#allocation8 + $0x3eb8] sm:$0xff]
    %v2638 = vld [vmem:[#allocation8 + $0x3ec0] sm:$0xff]
    %v2639 = vld [vmem:[#allocation8 + $0x3ec8] sm:$0xff]
    %v2640 = vld [vmem:[#allocation8 + $0x3ed0] sm:$0xff]
    %v2641 = vld [vmem:[#allocation8 + $0x3ed8] sm:$0xff]
    %v2642 = vld [vmem:[#allocation8 + $0x3ee0] sm:$0xff]
    %v2643 = vld [vmem:[#allocation8 + $0x3ee8] sm:$0xff]
    %v2644 = vld [vmem:[#allocation8 + $0x3ef0] sm:$0xff]
    %v2645 = vld [vmem:[#allocation8 + $0x3ef8] sm:$0xff]
    %v2646 = vld [vmem:[#allocation8 + $0x3f00] sm:$0xff]
    %v2647 = vld [vmem:[#allocation8 + $0x3f08] sm:$0xff]
    %v2648 = vld [vmem:[#allocation8 + $0x3f10] sm:$0xff]
    %v2649 = vld [vmem:[#allocation8 + $0x3f18] sm:$0xff]
    %v2650 = vld [vmem:[#allocation8 + $0x3f20] sm:$0xff]
    %v2651 = vld [vmem:[#allocation8 + $0x3f28] sm:$0xff]
    %v2652 = vld [vmem:[#allocation8 + $0x3f30] sm:$0xff]
    %v2653 = vld [vmem:[#allocation8 + $0x3f38] sm:$0xff]
    %v2654 = vld [vmem:[#allocation8 + $0x3f40] sm:$0xff]
    %v2655 = vld [vmem:[#allocation8 + $0x3f48] sm:$0xff]
    %v2656 = vld [vmem:[#allocation8 + $0x3f50] sm:$0xff]
    %v2657 = vld [vmem:[#allocation8 + $0x3f58] sm:$0xff]
    %v2658 = vld [vmem:[#allocation8 + $0x3f60] sm:$0xff]
    %v2659 = vld [vmem:[#allocation8 + $0x3f68] sm:$0xff]
    %v2660 = vld [vmem:[#allocation8 + $0x3f70] sm:$0xff]
    %v2661 = vld [vmem:[#allocation8 + $0x3f78] sm:$0xff]
    %v2662 = vld [vmem:[#allocation8 + $0x3f80] sm:$0xff]
    %v2663 = vld [vmem:[#allocation8 + $0x3f88] sm:$0xff]
    %v2664 = vld [vmem:[#allocation8 + $0x3f90] sm:$0xff]
    %v2665 = vld [vmem:[#allocation8 + $0x3f98] sm:$0xff]
    %v2666 = vld [vmem:[#allocation8 + $0x3fa0] sm:$0xff]
    %v2667 = vld [vmem:[#allocation8 + $0x3fa8] sm:$0xff]
    %v2668 = vld [vmem:[#allocation8 + $0x3fb0] sm:$0xff]
    %v2669 = vld [vmem:[#allocation8 + $0x3fb8] sm:$0xff]
    %v2670 = vld [vmem:[#allocation8 + $0x3fc0] sm:$0xff]
    %v2671 = vld [vmem:[#allocation8 + $0x3fc8] sm:$0xff]
    %v2672 = vld [vmem:[#allocation8 + $0x3fd0] sm:$0xff]
    %v2673 = vld [vmem:[#allocation8 + $0x3fd8] sm:$0xff]
    %v2674 = vld [vmem:[#allocation8 + $0x3fe0] sm:$0xff]
    %v2675 = vld [vmem:[#allocation8 + $0x3fe8] sm:$0xff]
    %v2676 = vld [vmem:[#allocation8 + $0x3ff0] sm:$0xff]
    %v2677 = vld [vmem:[#allocation8 + $0x3ff8] sm:$0xff]
    %v2680 = vcombine.high %v628, %v628
    %v2682 = vunpack.c.l.s4 1983009808
    %v2683 = vunpack.c.0.s8 %v2682
    %v2684 = vlaneseq
    %v2685 = vshrl.u32 %v2684, 7
    %v2686 = vsub.s32 %v2683, %v2685
    %v2687 = vrot.slane %v628, %v2686
    %v2689 = vunpack.c.l.s4 1983009808
    %v2690 = vunpack.c.0.s8 %v2689
    %v2691 = vlaneseq
    %v2692 = vshrl.u32 %v2691, 7
    %v2693 = vsub.s32 %v2690, %v2692
    %v2694 = vrot.slane %v2680, %v2693
    %v2695 = vcombine.high %v2687, %v2687
    %v2696 = vcombine.high %v2694, %v2694
    %v2697 = vcombine.high %v629, %v629
    %v2699 = vunpack.c.l.s4 1983009808
    %v2700 = vunpack.c.0.s8 %v2699
    %v2701 = vlaneseq
    %v2702 = vshrl.u32 %v2701, 7
    %v2703 = vsub.s32 %v2700, %v2702
    %v2704 = vrot.slane %v629, %v2703
    %v2706 = vunpack.c.l.s4 1983009808
    %v2707 = vunpack.c.0.s8 %v2706
    %v2708 = vlaneseq
    %v2709 = vshrl.u32 %v2708, 7
    %v2710 = vsub.s32 %v2707, %v2709
    %v2711 = vrot.slane %v2697, %v2710
    %v2712 = vcombine.high %v2704, %v2704
    %v2713 = vcombine.high %v2711, %v2711
    %2722 = vmatprep.subr.mxu0 %v871
    %2723 = vmatpush1.msra.mxu0 %v870
    %2724 = vmatprep.subr.mxu0 %v855
    %2725 = vmatpush1.msra.mxu0 %v854
    %2726 = vmatprep.subr.mxu0 %v839
    %2727 = vmatpush1.msra.mxu0 %v838
    %2728 = vmatprep.subr.mxu0 %v823
    %2729 = vmatpush1.msra.mxu0 %v822
    %2730 = vmatprep.subr.mxu0 %v807
    %2731 = vmatpush1.msra.mxu0 %v806
    %2732 = vmatprep.subr.mxu0 %v791
    %2733 = vmatpush1.msra.mxu0 %v790
    %2734 = vmatprep.subr.mxu0 %v775
    %2735 = vmatpush1.msra.mxu0 %v774
    %2736 = vmatprep.subr.mxu0 %v759
    %2737 = vmatpush1.msra.mxu0 %v758
    %2738 = vmatprep.subr.mxu0 %v743
    %2739 = vmatpush1.msra.mxu0 %v742
    %2740 = vmatprep.subr.mxu0 %v727
    %2741 = vmatpush1.msra.mxu0 %v726
    %2742 = vmatprep.subr.mxu0 %v711
    %2743 = vmatpush1.msra.mxu0 %v710
    %2744 = vmatprep.subr.mxu0 %v695
    %2745 = vmatpush1.msra.mxu0 %v694
    %2746 = vmatprep.subr.mxu0 %v679
    %2747 = vmatpush1.msra.mxu0 %v678
    %2748 = vmatprep.subr.mxu0 %v663
    %2749 = vmatpush1.msra.mxu0 %v662
    %2750 = vmatprep.subr.mxu0 %v647
    %2751 = vmatpush1.msra.mxu0 %v646
    %2752 = vmatprep.subr.mxu0 %v631
    %2753 = vmatpush1.msra.mxu0 %v630
    %2754 = vmatprep.subr.mxu0 %v1127
    %2755 = vmatpush2.msra.mxu0 %v1126
    %2756 = vmatprep.subr.mxu0 %v1111
    %2757 = vmatpush2.msra.mxu0 %v1110
    %2758 = vmatprep.subr.mxu0 %v1095
    %2759 = vmatpush2.msra.mxu0 %v1094
    %2760 = vmatprep.subr.mxu0 %v1079
    %2761 = vmatpush2.msra.mxu0 %v1078
    %2762 = vmatprep.subr.mxu0 %v1063
    %2763 = vmatpush2.msra.mxu0 %v1062
    %2764 = vmatprep.subr.mxu0 %v1047
    %2765 = vmatpush2.msra.mxu0 %v1046
    %2766 = vmatprep.subr.mxu0 %v1031
    %2767 = vmatpush2.msra.mxu0 %v1030
    %2768 = vmatprep.subr.mxu0 %v1015
    %2769 = vmatpush2.msra.mxu0 %v1014
    %2770 = vmatprep.subr.mxu0 %v999
    %2771 = vmatpush2.msra.mxu0 %v998
    %2772 = vmatprep.subr.mxu0 %v983
    %2773 = vmatpush2.msra.mxu0 %v982
    %2774 = vmatprep.subr.mxu0 %v967
    %2775 = vmatpush2.msra.mxu0 %v966
    %2776 = vmatprep.subr.mxu0 %v951
    %2777 = vmatpush2.msra.mxu0 %v950
    %2778 = vmatprep.subr.mxu0 %v935
    %2779 = vmatpush2.msra.mxu0 %v934
    %2780 = vmatprep.subr.mxu0 %v919
    %2781 = vmatpush2.msra.mxu0 %v918
    %2782 = vmatprep.subr.mxu0 %v903
    %2783 = vmatpush2.msra.mxu0 %v902
    %2784 = vmatprep.subr.mxu0 %v887
    %2785 = vmatpush2.msra.mxu0 %v886
    %2786 = vmatprep.mubr.f32.mxu0 %v2695
    %2787 = vmatmul.mubr.f32.gmra.mxu0 %v2687
    %v2788 = vpop.f32.mrf.mxu0
    %v2789 = vadd.f32 0.0, %v2788
    %v2790 = vpop.f32.mrf.mxu0
    %v2791 = vadd.f32 0.0, %v2790
    %2792 = vdwg.mxu0
    %2793 = vmatprep.subr.mxu0 %v1383
    %2794 = vmatpush1.msra.mxu0 %v1382
    %2795 = vmatprep.subr.mxu0 %v1367
    %2796 = vmatpush1.msra.mxu0 %v1366
    %2797 = vmatprep.subr.mxu0 %v1351
    %2798 = vmatpush1.msra.mxu0 %v1350
    %2799 = vmatprep.subr.mxu0 %v1335
    %2800 = vmatpush1.msra.mxu0 %v1334
    %2801 = vmatprep.subr.mxu0 %v1319
    %2802 = vmatpush1.msra.mxu0 %v1318
    %2803 = vmatprep.subr.mxu0 %v1303
    %2804 = vmatpush1.msra.mxu0 %v1302
    %2805 = vmatprep.subr.mxu0 %v1287
    %2806 = vmatpush1.msra.mxu0 %v1286
    %2807 = vmatprep.subr.mxu0 %v1271
    %2808 = vmatpush1.msra.mxu0 %v1270
    %2809 = vmatprep.subr.mxu0 %v1255
    %2810 = vmatpush1.msra.mxu0 %v1254
    %2811 = vmatprep.subr.mxu0 %v1239
    %2812 = vmatpush1.msra.mxu0 %v1238
    %2813 = vmatprep.subr.mxu0 %v1223
    %2814 = vmatpush1.msra.mxu0 %v1222
    %2815 = vmatprep.subr.mxu0 %v1207
    %2816 = vmatpush1.msra.mxu0 %v1206
    %2817 = vmatprep.subr.mxu0 %v1191
    %2818 = vmatpush1.msra.mxu0 %v1190
    %2819 = vmatprep.subr.mxu0 %v1175
    %2820 = vmatpush1.msra.mxu0 %v1174
    %2821 = vmatprep.subr.mxu0 %v1159
    %2822 = vmatpush1.msra.mxu0 %v1158
    %2823 = vmatprep.subr.mxu0 %v1143
    %2824 = vmatpush1.msra.mxu0 %v1142
    %2825 = vmatprep.subr.mxu0 %v1639
    %2826 = vmatpush2.msra.mxu0 %v1638
    %2827 = vmatprep.subr.mxu0 %v1623
    %2828 = vmatpush2.msra.mxu0 %v1622
    %2829 = vmatprep.subr.mxu0 %v1607
    %2830 = vmatpush2.msra.mxu0 %v1606
    %2831 = vmatprep.subr.mxu0 %v1591
    %2832 = vmatpush2.msra.mxu0 %v1590
    %2833 = vmatprep.subr.mxu0 %v1575
    %2834 = vmatpush2.msra.mxu0 %v1574
    %2835 = vmatprep.subr.mxu0 %v1559
    %2836 = vmatpush2.msra.mxu0 %v1558
    %2837 = vmatprep.subr.mxu0 %v1543
    %2838 = vmatpush2.msra.mxu0 %v1542
    %2839 = vmatprep.subr.mxu0 %v1527
    %2840 = vmatpush2.msra.mxu0 %v1526
    %2841 = vmatprep.subr.mxu0 %v1511
    %2842 = vmatpush2.msra.mxu0 %v1510
    %2843 = vmatprep.subr.mxu0 %v1495
    %2844 = vmatpush2.msra.mxu0 %v1494
    %2845 = vmatprep.subr.mxu0 %v1479
    %2846 = vmatpush2.msra.mxu0 %v1478
    %2847 = vmatprep.subr.mxu0 %v1463
    %2848 = vmatpush2.msra.mxu0 %v1462
    %2849 = vmatprep.subr.mxu0 %v1447
    %2850 = vmatpush2.msra.mxu0 %v1446
    %2851 = vmatprep.subr.mxu0 %v1431
    %2852 = vmatpush2.msra.mxu0 %v1430
    %2853 = vmatprep.subr.mxu0 %v1415
    %2854 = vmatpush2.msra.mxu0 %v1414
    %2855 = vmatprep.subr.mxu0 %v1399
    %2856 = vmatpush2.msra.mxu0 %v1398
    %2857 = vmatprep.mubr.f32.mxu0 %v2696
    %2858 = vmatmul.mubr.f32.gmra.mxu0 %v2694
    %v2859 = vpop.f32.mrf.mxu0
    %v2860 = vadd.f32 %v2789, %v2859
    %v2861 = vpop.f32.mrf.mxu0
    %v2862 = vadd.f32 %v2791, %v2861
    %2863 = vdwg.mxu0
    %2864 = vmatprep.subr.mxu0 %v1895
    %2865 = vmatpush1.msra.mxu0 %v1894
    %2866 = vmatprep.subr.mxu0 %v1879
    %2867 = vmatpush1.msra.mxu0 %v1878
    %2868 = vmatprep.subr.mxu0 %v1863
    %2869 = vmatpush1.msra.mxu0 %v1862
    %2870 = vmatprep.subr.mxu0 %v1847
    %2871 = vmatpush1.msra.mxu0 %v1846
    %2872 = vmatprep.subr.mxu0 %v1831
    %2873 = vmatpush1.msra.mxu0 %v1830
    %2874 = vmatprep.subr.mxu0 %v1815
    %2875 = vmatpush1.msra.mxu0 %v1814
    %2876 = vmatprep.subr.mxu0 %v1799
    %2877 = vmatpush1.msra.mxu0 %v1798
    %2878 = vmatprep.subr.mxu0 %v1783
    %2879 = vmatpush1.msra.mxu0 %v1782
    %2880 = vmatprep.subr.mxu0 %v1767
    %2881 = vmatpush1.msra.mxu0 %v1766
    %2882 = vmatprep.subr.mxu0 %v1751
    %2883 = vmatpush1.msra.mxu0 %v1750
    %2884 = vmatprep.subr.mxu0 %v1735
    %2885 = vmatpush1.msra.mxu0 %v1734
    %2886 = vmatprep.subr.mxu0 %v1719
    %2887 = vmatpush1.msra.mxu0 %v1718
    %2888 = vmatprep.subr.mxu0 %v1703
    %2889 = vmatpush1.msra.mxu0 %v1702
    %2890 = vmatprep.subr.mxu0 %v1687
    %2891 = vmatpush1.msra.mxu0 %v1686
    %2892 = vmatprep.subr.mxu0 %v1671
    %2893 = vmatpush1.msra.mxu0 %v1670
    %2894 = vmatprep.subr.mxu0 %v1655
    %2895 = vmatpush1.msra.mxu0 %v1654
    %2896 = vmatprep.subr.mxu0 %v2151
    %2897 = vmatpush2.msra.mxu0 %v2150
    %2898 = vmatprep.subr.mxu0 %v2135
    %2899 = vmatpush2.msra.mxu0 %v2134
    %2900 = vmatprep.subr.mxu0 %v2119
    %2901 = vmatpush2.msra.mxu0 %v2118
    %2902 = vmatprep.subr.mxu0 %v2103
    %2903 = vmatpush2.msra.mxu0 %v2102
    %2904 = vmatprep.subr.mxu0 %v2087
    %2905 = vmatpush2.msra.mxu0 %v2086
    %2906 = vmatprep.subr.mxu0 %v2071
    %2907 = vmatpush2.msra.mxu0 %v2070
    %2908 = vmatprep.subr.mxu0 %v2055
    %2909 = vmatpush2.msra.mxu0 %v2054
    %2910 = vmatprep.subr.mxu0 %v2039
    %2911 = vmatpush2.msra.mxu0 %v2038
    %2912 = vmatprep.subr.mxu0 %v2023
    %2913 = vmatpush2.msra.mxu0 %v2022
    %2914 = vmatprep.subr.mxu0 %v2007
    %2915 = vmatpush2.msra.mxu0 %v2006
    %2916 = vmatprep.subr.mxu0 %v1991
    %2917 = vmatpush2.msra.mxu0 %v1990
    %2918 = vmatprep.subr.mxu0 %v1975
    %2919 = vmatpush2.msra.mxu0 %v1974
    %2920 = vmatprep.subr.mxu0 %v1959
    %2921 = vmatpush2.msra.mxu0 %v1958
    %2922 = vmatprep.subr.mxu0 %v1943
    %2923 = vmatpush2.msra.mxu0 %v1942
    %2924 = vmatprep.subr.mxu0 %v1927
    %2925 = vmatpush2.msra.mxu0 %v1926
    %2926 = vmatprep.subr.mxu0 %v1911
    %2927 = vmatpush2.msra.mxu0 %v1910
    %2928 = vmatprep.mubr.f32.mxu0 %v2712
    %2929 = vmatmul.mubr.f32.gmra.mxu0 %v2704
    %v2930 = vpop.f32.mrf.mxu0
    %v2931 = vadd.f32 %v2860, %v2930
    %v2932 = vpop.f32.mrf.mxu0
    %v2933 = vadd.f32 %v2862, %v2932
    %2934 = vdwg.mxu0
    %2935 = vmatprep.subr.mxu0 %v2407
    %2936 = vmatpush1.msra.mxu0 %v2406
    %2937 = vmatprep.subr.mxu0 %v2391
    %2938 = vmatpush1.msra.mxu0 %v2390
    %2939 = vmatprep.subr.mxu0 %v2375
    %2940 = vmatpush1.msra.mxu0 %v2374
    %2941 = vmatprep.subr.mxu0 %v2359
    %2942 = vmatpush1.msra.mxu0 %v2358
    %2943 = vmatprep.subr.mxu0 %v2343
    %2944 = vmatpush1.msra.mxu0 %v2342
    %2945 = vmatprep.subr.mxu0 %v2327
    %2946 = vmatpush1.msra.mxu0 %v2326
    %2947 = vmatprep.subr.mxu0 %v2311
    %2948 = vmatpush1.msra.mxu0 %v2310
    %2949 = vmatprep.subr.mxu0 %v2295
    %2950 = vmatpush1.msra.mxu0 %v2294
    %2951 = vmatprep.subr.mxu0 %v2279
    %2952 = vmatpush1.msra.mxu0 %v2278
    %2953 = vmatprep.subr.mxu0 %v2263
    %2954 = vmatpush1.msra.mxu0 %v2262
    %2955 = vmatprep.subr.mxu0 %v2247
    %2956 = vmatpush1.msra.mxu0 %v2246
    %2957 = vmatprep.subr.mxu0 %v2231
    %2958 = vmatpush1.msra.mxu0 %v2230
    %2959 = vmatprep.subr.mxu0 %v2215
    %2960 = vmatpush1.msra.mxu0 %v2214
    %2961 = vmatprep.subr.mxu0 %v2199
    %2962 = vmatpush1.msra.mxu0 %v2198
    %2963 = vmatprep.subr.mxu0 %v2183
    %2964 = vmatpush1.msra.mxu0 %v2182
    %2965 = vmatprep.subr.mxu0 %v2167
    %2966 = vmatpush1.msra.mxu0 %v2166
    %2967 = vmatprep.subr.mxu0 %v2663
    %2968 = vmatpush2.msra.mxu0 %v2662
    %2969 = vmatprep.subr.mxu0 %v2647
    %2970 = vmatpush2.msra.mxu0 %v2646
    %2971 = vmatprep.subr.mxu0 %v2631
    %2972 = vmatpush2.msra.mxu0 %v2630
    %2973 = vmatprep.subr.mxu0 %v2615
    %2974 = vmatpush2.msra.mxu0 %v2614
    %2975 = vmatprep.subr.mxu0 %v2599
    %2976 = vmatpush2.msra.mxu0 %v2598
    %2977 = vmatprep.subr.mxu0 %v2583
    %2978 = vmatpush2.msra.mxu0 %v2582
    %2979 = vmatprep.subr.mxu0 %v2567
    %2980 = vmatpush2.msra.mxu0 %v2566
    %2981 = vmatprep.subr.mxu0 %v2551
    %2982 = vmatpush2.msra.mxu0 %v2550
    %2983 = vmatprep.subr.mxu0 %v2535
    %2984 = vmatpush2.msra.mxu0 %v2534
    %2985 = vmatprep.subr.mxu0 %v2519
    %2986 = vmatpush2.msra.mxu0 %v2518
    %2987 = vmatprep.subr.mxu0 %v2503
    %2988 = vmatpush2.msra.mxu0 %v2502
    %2989 = vmatprep.subr.mxu0 %v2487
    %2990 = vmatpush2.msra.mxu0 %v2486
    %2991 = vmatprep.subr.mxu0 %v2471
    %2992 = vmatpush2.msra.mxu0 %v2470
    %2993 = vmatprep.subr.mxu0 %v2455
    %2994 = vmatpush2.msra.mxu0 %v2454
    %2995 = vmatprep.subr.mxu0 %v2439
    %2996 = vmatpush2.msra.mxu0 %v2438
    %2997 = vmatprep.subr.mxu0 %v2423
    %2998 = vmatpush2.msra.mxu0 %v2422
    %2999 = vmatprep.mubr.f32.mxu0 %v2713
    %3000 = vmatmul.mubr.f32.gmra.mxu0 %v2711
    %v3001 = vpop.f32.mrf.mxu0
    %v3002 = vadd.f32 %v2931, %v3001
    %v3003 = vpop.f32.mrf.mxu0
    %v3004 = vadd.f32 %v2933, %v3003
    %3005 = vdwg.mxu0
    %3006 = vmatprep.subr.mxu0 %v873
    %3007 = vmatpush1.msra.mxu0 %v872
    %3008 = vmatprep.subr.mxu0 %v857
    %3009 = vmatpush1.msra.mxu0 %v856
    %3010 = vmatprep.subr.mxu0 %v841
    %3011 = vmatpush1.msra.mxu0 %v840
    %3012 = vmatprep.subr.mxu0 %v825
    %3013 = vmatpush1.msra.mxu0 %v824
    %3014 = vmatprep.subr.mxu0 %v809
    %3015 = vmatpush1.msra.mxu0 %v808
    %3016 = vmatprep.subr.mxu0 %v793
    %3017 = vmatpush1.msra.mxu0 %v792
    %3018 = vmatprep.subr.mxu0 %v777
    %3019 = vmatpush1.msra.mxu0 %v776
    %3020 = vmatprep.subr.mxu0 %v761
    %3021 = vmatpush1.msra.mxu0 %v760
    %3022 = vmatprep.subr.mxu0 %v745
    %3023 = vmatpush1.msra.mxu0 %v744
    %3024 = vmatprep.subr.mxu0 %v729
    %3025 = vmatpush1.msra.mxu0 %v728
    %3026 = vmatprep.subr.mxu0 %v713
    %3027 = vmatpush1.msra.mxu0 %v712
    %3028 = vmatprep.subr.mxu0 %v697
    %3029 = vmatpush1.msra.mxu0 %v696
    %3030 = vmatprep.subr.mxu0 %v681
    %3031 = vmatpush1.msra.mxu0 %v680
    %3032 = vmatprep.subr.mxu0 %v665
    %3033 = vmatpush1.msra.mxu0 %v664
    %3034 = vmatprep.subr.mxu0 %v649
    %3035 = vmatpush1.msra.mxu0 %v648
    %3036 = vmatprep.subr.mxu0 %v633
    %3037 = vmatpush1.msra.mxu0 %v632
    %3038 = vmatprep.subr.mxu0 %v1129
    %3039 = vmatpush2.msra.mxu0 %v1128
    %3040 = vmatprep.subr.mxu0 %v1113
    %3041 = vmatpush2.msra.mxu0 %v1112
    %3042 = vmatprep.subr.mxu0 %v1097
    %3043 = vmatpush2.msra.mxu0 %v1096
    %3044 = vmatprep.subr.mxu0 %v1081
    %3045 = vmatpush2.msra.mxu0 %v1080
    %3046 = vmatprep.subr.mxu0 %v1065
    %3047 = vmatpush2.msra.mxu0 %v1064
    %3048 = vmatprep.subr.mxu0 %v1049
    %3049 = vmatpush2.msra.mxu0 %v1048
    %3050 = vmatprep.subr.mxu0 %v1033
    %3051 = vmatpush2.msra.mxu0 %v1032
    %3052 = vmatprep.subr.mxu0 %v1017
    %3053 = vmatpush2.msra.mxu0 %v1016
    %3054 = vmatprep.subr.mxu0 %v1001
    %3055 = vmatpush2.msra.mxu0 %v1000
    %3056 = vmatprep.subr.mxu0 %v985
    %3057 = vmatpush2.msra.mxu0 %v984
    %3058 = vmatprep.subr.mxu0 %v969
    %3059 = vmatpush2.msra.mxu0 %v968
    %3060 = vmatprep.subr.mxu0 %v953
    %3061 = vmatpush2.msra.mxu0 %v952
    %3062 = vmatprep.subr.mxu0 %v937
    %3063 = vmatpush2.msra.mxu0 %v936
    %3064 = vmatprep.subr.mxu0 %v921
    %3065 = vmatpush2.msra.mxu0 %v920
    %3066 = vmatprep.subr.mxu0 %v905
    %3067 = vmatpush2.msra.mxu0 %v904
    %3068 = vmatprep.subr.mxu0 %v889
    %3069 = vmatpush2.msra.mxu0 %v888
    %3070 = vmatprep.mubr.f32.mxu0 %v2695
    %3071 = vmatmul.mubr.f32.gmra.mxu0 %v2687
    %v3072 = vpop.f32.mrf.mxu0
    %v3073 = vadd.f32 0.0, %v3072
    %v3074 = vpop.f32.mrf.mxu0
    %v3075 = vadd.f32 0.0, %v3074
    %3076 = vdwg.mxu0
    %3077 = vmatprep.subr.mxu0 %v1385
    %3078 = vmatpush1.msra.mxu0 %v1384
    %3079 = vmatprep.subr.mxu0 %v1369
    %3080 = vmatpush1.msra.mxu0 %v1368
    %3081 = vmatprep.subr.mxu0 %v1353
    %3082 = vmatpush1.msra.mxu0 %v1352
    %3083 = vmatprep.subr.mxu0 %v1337
    %3084 = vmatpush1.msra.mxu0 %v1336
    %3085 = vmatprep.subr.mxu0 %v1321
    %3086 = vmatpush1.msra.mxu0 %v1320
    %3087 = vmatprep.subr.mxu0 %v1305
    %3088 = vmatpush1.msra.mxu0 %v1304
    %3089 = vmatprep.subr.mxu0 %v1289
    %3090 = vmatpush1.msra.mxu0 %v1288
    %3091 = vmatprep.subr.mxu0 %v1273
    %3092 = vmatpush1.msra.mxu0 %v1272
    %3093 = vmatprep.subr.mxu0 %v1257
    %3094 = vmatpush1.msra.mxu0 %v1256
    %3095 = vmatprep.subr.mxu0 %v1241
    %3096 = vmatpush1.msra.mxu0 %v1240
    %3097 = vmatprep.subr.mxu0 %v1225
    %3098 = vmatpush1.msra.mxu0 %v1224
    %3099 = vmatprep.subr.mxu0 %v1209
    %3100 = vmatpush1.msra.mxu0 %v1208
    %3101 = vmatprep.subr.mxu0 %v1193
    %3102 = vmatpush1.msra.mxu0 %v1192
    %3103 = vmatprep.subr.mxu0 %v1177
    %3104 = vmatpush1.msra.mxu0 %v1176
    %3105 = vmatprep.subr.mxu0 %v1161
    %3106 = vmatpush1.msra.mxu0 %v1160
    %3107 = vmatprep.subr.mxu0 %v1145
    %3108 = vmatpush1.msra.mxu0 %v1144
    %3109 = vmatprep.subr.mxu0 %v1641
    %3110 = vmatpush2.msra.mxu0 %v1640
    %3111 = vmatprep.subr.mxu0 %v1625
    %3112 = vmatpush2.msra.mxu0 %v1624
    %3113 = vmatprep.subr.mxu0 %v1609
    %3114 = vmatpush2.msra.mxu0 %v1608
    %3115 = vmatprep.subr.mxu0 %v1593
    %3116 = vmatpush2.msra.mxu0 %v1592
    %3117 = vmatprep.subr.mxu0 %v1577
    %3118 = vmatpush2.msra.mxu0 %v1576
    %3119 = vmatprep.subr.mxu0 %v1561
    %3120 = vmatpush2.msra.mxu0 %v1560
    %3121 = vmatprep.subr.mxu0 %v1545
    %3122 = vmatpush2.msra.mxu0 %v1544
    %3123 = vmatprep.subr.mxu0 %v1529
    %3124 = vmatpush2.msra.mxu0 %v1528
    %3125 = vmatprep.subr.mxu0 %v1513
    %3126 = vmatpush2.msra.mxu0 %v1512
    %3127 = vmatprep.subr.mxu0 %v1497
    %3128 = vmatpush2.msra.mxu0 %v1496
    %3129 = vmatprep.subr.mxu0 %v1481
    %3130 = vmatpush2.msra.mxu0 %v1480
    %3131 = vmatprep.subr.mxu0 %v1465
    %3132 = vmatpush2.msra.mxu0 %v1464
    %3133 = vmatprep.subr.mxu0 %v1449
    %3134 = vmatpush2.msra.mxu0 %v1448
    %3135 = vmatprep.subr.mxu0 %v1433
    %3136 = vmatpush2.msra.mxu0 %v1432
    %3137 = vmatprep.subr.mxu0 %v1417
    %3138 = vmatpush2.msra.mxu0 %v1416
    %3139 = vmatprep.subr.mxu0 %v1401
    %3140 = vmatpush2.msra.mxu0 %v1400
    %3141 = vmatprep.mubr.f32.mxu0 %v2696
    %3142 = vmatmul.mubr.f32.gmra.mxu0 %v2694
    %v3143 = vpop.f32.mrf.mxu0
    %v3144 = vadd.f32 %v3073, %v3143
    %v3145 = vpop.f32.mrf.mxu0
    %v3146 = vadd.f32 %v3075, %v3145
    %3147 = vdwg.mxu0
    %3148 = vmatprep.subr.mxu0 %v1897
    %3149 = vmatpush1.msra.mxu0 %v1896
    %3150 = vmatprep.subr.mxu0 %v1881
    %3151 = vmatpush1.msra.mxu0 %v1880
    %3152 = vmatprep.subr.mxu0 %v1865
    %3153 = vmatpush1.msra.mxu0 %v1864
    %3154 = vmatprep.subr.mxu0 %v1849
    %3155 = vmatpush1.msra.mxu0 %v1848
    %3156 = vmatprep.subr.mxu0 %v1833
    %3157 = vmatpush1.msra.mxu0 %v1832
    %3158 = vmatprep.subr.mxu0 %v1817
    %3159 = vmatpush1.msra.mxu0 %v1816
    %3160 = vmatprep.subr.mxu0 %v1801
    %3161 = vmatpush1.msra.mxu0 %v1800
    %3162 = vmatprep.subr.mxu0 %v1785
    %3163 = vmatpush1.msra.mxu0 %v1784
    %3164 = vmatprep.subr.mxu0 %v1769
    %3165 = vmatpush1.msra.mxu0 %v1768
    %3166 = vmatprep.subr.mxu0 %v1753
    %3167 = vmatpush1.msra.mxu0 %v1752
    %3168 = vmatprep.subr.mxu0 %v1737
    %3169 = vmatpush1.msra.mxu0 %v1736
    %3170 = vmatprep.subr.mxu0 %v1721
    %3171 = vmatpush1.msra.mxu0 %v1720
    %3172 = vmatprep.subr.mxu0 %v1705
    %3173 = vmatpush1.msra.mxu0 %v1704
    %3174 = vmatprep.subr.mxu0 %v1689
    %3175 = vmatpush1.msra.mxu0 %v1688
    %3176 = vmatprep.subr.mxu0 %v1673
    %3177 = vmatpush1.msra.mxu0 %v1672
    %3178 = vmatprep.subr.mxu0 %v1657
    %3179 = vmatpush1.msra.mxu0 %v1656
    %3180 = vmatprep.subr.mxu0 %v2153
    %3181 = vmatpush2.msra.mxu0 %v2152
    %3182 = vmatprep.subr.mxu0 %v2137
    %3183 = vmatpush2.msra.mxu0 %v2136
    %3184 = vmatprep.subr.mxu0 %v2121
    %3185 = vmatpush2.msra.mxu0 %v2120
    %3186 = vmatprep.subr.mxu0 %v2105
    %3187 = vmatpush2.msra.mxu0 %v2104
    %3188 = vmatprep.subr.mxu0 %v2089
    %3189 = vmatpush2.msra.mxu0 %v2088
    %3190 = vmatprep.subr.mxu0 %v2073
    %3191 = vmatpush2.msra.mxu0 %v2072
    %3192 = vmatprep.subr.mxu0 %v2057
    %3193 = vmatpush2.msra.mxu0 %v2056
    %3194 = vmatprep.subr.mxu0 %v2041
    %3195 = vmatpush2.msra.mxu0 %v2040
    %3196 = vmatprep.subr.mxu0 %v2025
    %3197 = vmatpush2.msra.mxu0 %v2024
    %3198 = vmatprep.subr.mxu0 %v2009
    %3199 = vmatpush2.msra.mxu0 %v2008
    %3200 = vmatprep.subr.mxu0 %v1993
    %3201 = vmatpush2.msra.mxu0 %v1992
    %3202 = vmatprep.subr.mxu0 %v1977
    %3203 = vmatpush2.msra.mxu0 %v1976
    %3204 = vmatprep.subr.mxu0 %v1961
    %3205 = vmatpush2.msra.mxu0 %v1960
    %3206 = vmatprep.subr.mxu0 %v1945
    %3207 = vmatpush2.msra.mxu0 %v1944
    %3208 = vmatprep.subr.mxu0 %v1929
    %3209 = vmatpush2.msra.mxu0 %v1928
    %3210 = vmatprep.subr.mxu0 %v1913
    %3211 = vmatpush2.msra.mxu0 %v1912
    %3212 = vmatprep.mubr.f32.mxu0 %v2712
    %3213 = vmatmul.mubr.f32.gmra.mxu0 %v2704
    %v3214 = vpop.f32.mrf.mxu0
    %v3215 = vadd.f32 %v3144, %v3214
    %v3216 = vpop.f32.mrf.mxu0
    %v3217 = vadd.f32 %v3146, %v3216
    %3218 = vdwg.mxu0
    %3219 = vmatprep.subr.mxu0 %v2409
    %3220 = vmatpush1.msra.mxu0 %v2408
    %3221 = vmatprep.subr.mxu0 %v2393
    %3222 = vmatpush1.msra.mxu0 %v2392
    %3223 = vmatprep.subr.mxu0 %v2377
    %3224 = vmatpush1.msra.mxu0 %v2376
    %3225 = vmatprep.subr.mxu0 %v2361
    %3226 = vmatpush1.msra.mxu0 %v2360
    %3227 = vmatprep.subr.mxu0 %v2345
    %3228 = vmatpush1.msra.mxu0 %v2344
    %3229 = vmatprep.subr.mxu0 %v2329
    %3230 = vmatpush1.msra.mxu0 %v2328
    %3231 = vmatprep.subr.mxu0 %v2313
    %3232 = vmatpush1.msra.mxu0 %v2312
    %3233 = vmatprep.subr.mxu0 %v2297
    %3234 = vmatpush1.msra.mxu0 %v2296
    %3235 = vmatprep.subr.mxu0 %v2281
    %3236 = vmatpush1.msra.mxu0 %v2280
    %3237 = vmatprep.subr.mxu0 %v2265
    %3238 = vmatpush1.msra.mxu0 %v2264
    %3239 = vmatprep.subr.mxu0 %v2249
    %3240 = vmatpush1.msra.mxu0 %v2248
    %3241 = vmatprep.subr.mxu0 %v2233
    %3242 = vmatpush1.msra.mxu0 %v2232
    %3243 = vmatprep.subr.mxu0 %v2217
    %3244 = vmatpush1.msra.mxu0 %v2216
    %3245 = vmatprep.subr.mxu0 %v2201
    %3246 = vmatpush1.msra.mxu0 %v2200
    %3247 = vmatprep.subr.mxu0 %v2185
    %3248 = vmatpush1.msra.mxu0 %v2184
    %3249 = vmatprep.subr.mxu0 %v2169
    %3250 = vmatpush1.msra.mxu0 %v2168
    %3251 = vmatprep.subr.mxu0 %v2665
    %3252 = vmatpush2.msra.mxu0 %v2664
    %3253 = vmatprep.subr.mxu0 %v2649
    %3254 = vmatpush2.msra.mxu0 %v2648
    %3255 = vmatprep.subr.mxu0 %v2633
    %3256 = vmatpush2.msra.mxu0 %v2632
    %3257 = vmatprep.subr.mxu0 %v2617
    %3258 = vmatpush2.msra.mxu0 %v2616
    %3259 = vmatprep.subr.mxu0 %v2601
    %3260 = vmatpush2.msra.mxu0 %v2600
    %3261 = vmatprep.subr.mxu0 %v2585
    %3262 = vmatpush2.msra.mxu0 %v2584
    %3263 = vmatprep.subr.mxu0 %v2569
    %3264 = vmatpush2.msra.mxu0 %v2568
    %3265 = vmatprep.subr.mxu0 %v2553
    %3266 = vmatpush2.msra.mxu0 %v2552
    %3267 = vmatprep.subr.mxu0 %v2537
    %3268 = vmatpush2.msra.mxu0 %v2536
    %3269 = vmatprep.subr.mxu0 %v2521
    %3270 = vmatpush2.msra.mxu0 %v2520
    %3271 = vmatprep.subr.mxu0 %v2505
    %3272 = vmatpush2.msra.mxu0 %v2504
    %3273 = vmatprep.subr.mxu0 %v2489
    %3274 = vmatpush2.msra.mxu0 %v2488
    %3275 = vmatprep.subr.mxu0 %v2473
    %3276 = vmatpush2.msra.mxu0 %v2472
    %3277 = vmatprep.subr.mxu0 %v2457
    %3278 = vmatpush2.msra.mxu0 %v2456
    %3279 = vmatprep.subr.mxu0 %v2441
    %3280 = vmatpush2.msra.mxu0 %v2440
    %3281 = vmatprep.subr.mxu0 %v2425
    %3282 = vmatpush2.msra.mxu0 %v2424
    %3283 = vmatprep.mubr.f32.mxu0 %v2713
    %3284 = vmatmul.mubr.f32.gmra.mxu0 %v2711
    %v3285 = vpop.f32.mrf.mxu0
    %v3286 = vadd.f32 %v3215, %v3285
    %v3287 = vpop.f32.mrf.mxu0
    %v3288 = vadd.f32 %v3217, %v3287
    %3289 = vdwg.mxu0
    %3290 = vmatprep.subr.mxu0 %v875
    %3291 = vmatpush1.msra.mxu0 %v874
    %3292 = vmatprep.subr.mxu0 %v859
    %3293 = vmatpush1.msra.mxu0 %v858
    %3294 = vmatprep.subr.mxu0 %v843
    %3295 = vmatpush1.msra.mxu0 %v842
    %3296 = vmatprep.subr.mxu0 %v827
    %3297 = vmatpush1.msra.mxu0 %v826
    %3298 = vmatprep.subr.mxu0 %v811
    %3299 = vmatpush1.msra.mxu0 %v810
    %3300 = vmatprep.subr.mxu0 %v795
    %3301 = vmatpush1.msra.mxu0 %v794
    %3302 = vmatprep.subr.mxu0 %v779
    %3303 = vmatpush1.msra.mxu0 %v778
    %3304 = vmatprep.subr.mxu0 %v763
    %3305 = vmatpush1.msra.mxu0 %v762
    %3306 = vmatprep.subr.mxu0 %v747
    %3307 = vmatpush1.msra.mxu0 %v746
    %3308 = vmatprep.subr.mxu0 %v731
    %3309 = vmatpush1.msra.mxu0 %v730
    %3310 = vmatprep.subr.mxu0 %v715
    %3311 = vmatpush1.msra.mxu0 %v714
    %3312 = vmatprep.subr.mxu0 %v699
    %3313 = vmatpush1.msra.mxu0 %v698
    %3314 = vmatprep.subr.mxu0 %v683
    %3315 = vmatpush1.msra.mxu0 %v682
    %3316 = vmatprep.subr.mxu0 %v667
    %3317 = vmatpush1.msra.mxu0 %v666
    %3318 = vmatprep.subr.mxu0 %v651
    %3319 = vmatpush1.msra.mxu0 %v650
    %3320 = vmatprep.subr.mxu0 %v635
    %3321 = vmatpush1.msra.mxu0 %v634
    %3322 = vmatprep.subr.mxu0 %v1131
    %3323 = vmatpush2.msra.mxu0 %v1130
    %3324 = vmatprep.subr.mxu0 %v1115
    %3325 = vmatpush2.msra.mxu0 %v1114
    %3326 = vmatprep.subr.mxu0 %v1099
    %3327 = vmatpush2.msra.mxu0 %v1098
    %3328 = vmatprep.subr.mxu0 %v1083
    %3329 = vmatpush2.msra.mxu0 %v1082
    %3330 = vmatprep.subr.mxu0 %v1067
    %3331 = vmatpush2.msra.mxu0 %v1066
    %3332 = vmatprep.subr.mxu0 %v1051
    %3333 = vmatpush2.msra.mxu0 %v1050
    %3334 = vmatprep.subr.mxu0 %v1035
    %3335 = vmatpush2.msra.mxu0 %v1034
    %3336 = vmatprep.subr.mxu0 %v1019
    %3337 = vmatpush2.msra.mxu0 %v1018
    %3338 = vmatprep.subr.mxu0 %v1003
    %3339 = vmatpush2.msra.mxu0 %v1002
    %3340 = vmatprep.subr.mxu0 %v987
    %3341 = vmatpush2.msra.mxu0 %v986
    %3342 = vmatprep.subr.mxu0 %v971
    %3343 = vmatpush2.msra.mxu0 %v970
    %3344 = vmatprep.subr.mxu0 %v955
    %3345 = vmatpush2.msra.mxu0 %v954
    %3346 = vmatprep.subr.mxu0 %v939
    %3347 = vmatpush2.msra.mxu0 %v938
    %3348 = vmatprep.subr.mxu0 %v923
    %3349 = vmatpush2.msra.mxu0 %v922
    %3350 = vmatprep.subr.mxu0 %v907
    %3351 = vmatpush2.msra.mxu0 %v906
    %3352 = vmatprep.subr.mxu0 %v891
    %3353 = vmatpush2.msra.mxu0 %v890
    %3354 = vmatprep.mubr.f32.mxu0 %v2695
    %3355 = vmatmul.mubr.f32.gmra.mxu0 %v2687
    %v3356 = vpop.f32.mrf.mxu0
    %v3357 = vadd.f32 0.0, %v3356
    %v3358 = vpop.f32.mrf.mxu0
    %v3359 = vadd.f32 0.0, %v3358
    %3360 = vdwg.mxu0
    %3361 = vmatprep.subr.mxu0 %v1387
    %3362 = vmatpush1.msra.mxu0 %v1386
    %3363 = vmatprep.subr.mxu0 %v1371
    %3364 = vmatpush1.msra.mxu0 %v1370
    %3365 = vmatprep.subr.mxu0 %v1355
    %3366 = vmatpush1.msra.mxu0 %v1354
    %3367 = vmatprep.subr.mxu0 %v1339
    %3368 = vmatpush1.msra.mxu0 %v1338
    %3369 = vmatprep.subr.mxu0 %v1323
    %3370 = vmatpush1.msra.mxu0 %v1322
    %3371 = vmatprep.subr.mxu0 %v1307
    %3372 = vmatpush1.msra.mxu0 %v1306
    %3373 = vmatprep.subr.mxu0 %v1291
    %3374 = vmatpush1.msra.mxu0 %v1290
    %3375 = vmatprep.subr.mxu0 %v1275
    %3376 = vmatpush1.msra.mxu0 %v1274
    %3377 = vmatprep.subr.mxu0 %v1259
    %3378 = vmatpush1.msra.mxu0 %v1258
    %3379 = vmatprep.subr.mxu0 %v1243
    %3380 = vmatpush1.msra.mxu0 %v1242
    %3381 = vmatprep.subr.mxu0 %v1227
    %3382 = vmatpush1.msra.mxu0 %v1226
    %3383 = vmatprep.subr.mxu0 %v1211
    %3384 = vmatpush1.msra.mxu0 %v1210
    %3385 = vmatprep.subr.mxu0 %v1195
    %3386 = vmatpush1.msra.mxu0 %v1194
    %3387 = vmatprep.subr.mxu0 %v1179
    %3388 = vmatpush1.msra.mxu0 %v1178
    %3389 = vmatprep.subr.mxu0 %v1163
    %3390 = vmatpush1.msra.mxu0 %v1162
    %3391 = vmatprep.subr.mxu0 %v1147
    %3392 = vmatpush1.msra.mxu0 %v1146
    %3393 = vmatprep.subr.mxu0 %v1643
    %3394 = vmatpush2.msra.mxu0 %v1642
    %3395 = vmatprep.subr.mxu0 %v1627
    %3396 = vmatpush2.msra.mxu0 %v1626
    %3397 = vmatprep.subr.mxu0 %v1611
    %3398 = vmatpush2.msra.mxu0 %v1610
    %3399 = vmatprep.subr.mxu0 %v1595
    %3400 = vmatpush2.msra.mxu0 %v1594
    %3401 = vmatprep.subr.mxu0 %v1579
    %3402 = vmatpush2.msra.mxu0 %v1578
    %3403 = vmatprep.subr.mxu0 %v1563
    %3404 = vmatpush2.msra.mxu0 %v1562
    %3405 = vmatprep.subr.mxu0 %v1547
    %3406 = vmatpush2.msra.mxu0 %v1546
    %3407 = vmatprep.subr.mxu0 %v1531
    %3408 = vmatpush2.msra.mxu0 %v1530
    %3409 = vmatprep.subr.mxu0 %v1515
    %3410 = vmatpush2.msra.mxu0 %v1514
    %3411 = vmatprep.subr.mxu0 %v1499
    %3412 = vmatpush2.msra.mxu0 %v1498
    %3413 = vmatprep.subr.mxu0 %v1483
    %3414 = vmatpush2.msra.mxu0 %v1482
    %3415 = vmatprep.subr.mxu0 %v1467
    %3416 = vmatpush2.msra.mxu0 %v1466
    %3417 = vmatprep.subr.mxu0 %v1451
    %3418 = vmatpush2.msra.mxu0 %v1450
    %3419 = vmatprep.subr.mxu0 %v1435
    %3420 = vmatpush2.msra.mxu0 %v1434
    %3421 = vmatprep.subr.mxu0 %v1419
    %3422 = vmatpush2.msra.mxu0 %v1418
    %3423 = vmatprep.subr.mxu0 %v1403
    %3424 = vmatpush2.msra.mxu0 %v1402
    %3425 = vmatprep.mubr.f32.mxu0 %v2696
    %3426 = vmatmul.mubr.f32.gmra.mxu0 %v2694
    %v3427 = vpop.f32.mrf.mxu0
    %v3428 = vadd.f32 %v3357, %v3427
    %v3429 = vpop.f32.mrf.mxu0
    %v3430 = vadd.f32 %v3359, %v3429
    %3431 = vdwg.mxu0
    %3432 = vmatprep.subr.mxu0 %v1899
    %3433 = vmatpush1.msra.mxu0 %v1898
    %3434 = vmatprep.subr.mxu0 %v1883
    %3435 = vmatpush1.msra.mxu0 %v1882
    %3436 = vmatprep.subr.mxu0 %v1867
    %3437 = vmatpush1.msra.mxu0 %v1866
    %3438 = vmatprep.subr.mxu0 %v1851
    %3439 = vmatpush1.msra.mxu0 %v1850
    %3440 = vmatprep.subr.mxu0 %v1835
    %3441 = vmatpush1.msra.mxu0 %v1834
    %3442 = vmatprep.subr.mxu0 %v1819
    %3443 = vmatpush1.msra.mxu0 %v1818
    %3444 = vmatprep.subr.mxu0 %v1803
    %3445 = vmatpush1.msra.mxu0 %v1802
    %3446 = vmatprep.subr.mxu0 %v1787
    %3447 = vmatpush1.msra.mxu0 %v1786
    %3448 = vmatprep.subr.mxu0 %v1771
    %3449 = vmatpush1.msra.mxu0 %v1770
    %3450 = vmatprep.subr.mxu0 %v1755
    %3451 = vmatpush1.msra.mxu0 %v1754
    %3452 = vmatprep.subr.mxu0 %v1739
    %3453 = vmatpush1.msra.mxu0 %v1738
    %3454 = vmatprep.subr.mxu0 %v1723
    %3455 = vmatpush1.msra.mxu0 %v1722
    %3456 = vmatprep.subr.mxu0 %v1707
    %3457 = vmatpush1.msra.mxu0 %v1706
    %3458 = vmatprep.subr.mxu0 %v1691
    %3459 = vmatpush1.msra.mxu0 %v1690
    %3460 = vmatprep.subr.mxu0 %v1675
    %3461 = vmatpush1.msra.mxu0 %v1674
    %3462 = vmatprep.subr.mxu0 %v1659
    %3463 = vmatpush1.msra.mxu0 %v1658
    %3464 = vmatprep.subr.mxu0 %v2155
    %3465 = vmatpush2.msra.mxu0 %v2154
    %3466 = vmatprep.subr.mxu0 %v2139
    %3467 = vmatpush2.msra.mxu0 %v2138
    %3468 = vmatprep.subr.mxu0 %v2123
    %3469 = vmatpush2.msra.mxu0 %v2122
    %3470 = vmatprep.subr.mxu0 %v2107
    %3471 = vmatpush2.msra.mxu0 %v2106
    %3472 = vmatprep.subr.mxu0 %v2091
    %3473 = vmatpush2.msra.mxu0 %v2090
    %3474 = vmatprep.subr.mxu0 %v2075
    %3475 = vmatpush2.msra.mxu0 %v2074
    %3476 = vmatprep.subr.mxu0 %v2059
    %3477 = vmatpush2.msra.mxu0 %v2058
    %3478 = vmatprep.subr.mxu0 %v2043
    %3479 = vmatpush2.msra.mxu0 %v2042
    %3480 = vmatprep.subr.mxu0 %v2027
    %3481 = vmatpush2.msra.mxu0 %v2026
    %3482 = vmatprep.subr.mxu0 %v2011
    %3483 = vmatpush2.msra.mxu0 %v2010
    %3484 = vmatprep.subr.mxu0 %v1995
    %3485 = vmatpush2.msra.mxu0 %v1994
    %3486 = vmatprep.subr.mxu0 %v1979
    %3487 = vmatpush2.msra.mxu0 %v1978
    %3488 = vmatprep.subr.mxu0 %v1963
    %3489 = vmatpush2.msra.mxu0 %v1962
    %3490 = vmatprep.subr.mxu0 %v1947
    %3491 = vmatpush2.msra.mxu0 %v1946
    %3492 = vmatprep.subr.mxu0 %v1931
    %3493 = vmatpush2.msra.mxu0 %v1930
    %3494 = vmatprep.subr.mxu0 %v1915
    %3495 = vmatpush2.msra.mxu0 %v1914
    %3496 = vmatprep.mubr.f32.mxu0 %v2712
    %3497 = vmatmul.mubr.f32.gmra.mxu0 %v2704
    %v3498 = vpop.f32.mrf.mxu0
    %v3499 = vadd.f32 %v3428, %v3498
    %v3500 = vpop.f32.mrf.mxu0
    %v3501 = vadd.f32 %v3430, %v3500
    %3502 = vdwg.mxu0
    %3503 = vmatprep.subr.mxu0 %v2411
    %3504 = vmatpush1.msra.mxu0 %v2410
    %3505 = vmatprep.subr.mxu0 %v2395
    %3506 = vmatpush1.msra.mxu0 %v2394
    %3507 = vmatprep.subr.mxu0 %v2379
    %3508 = vmatpush1.msra.mxu0 %v2378
    %3509 = vmatprep.subr.mxu0 %v2363
    %3510 = vmatpush1.msra.mxu0 %v2362
    %3511 = vmatprep.subr.mxu0 %v2347
    %3512 = vmatpush1.msra.mxu0 %v2346
    %3513 = vmatprep.subr.mxu0 %v2331
    %3514 = vmatpush1.msra.mxu0 %v2330
    %3515 = vmatprep.subr.mxu0 %v2315
    %3516 = vmatpush1.msra.mxu0 %v2314
    %3517 = vmatprep.subr.mxu0 %v2299
    %3518 = vmatpush1.msra.mxu0 %v2298
    %3519 = vmatprep.subr.mxu0 %v2283
    %3520 = vmatpush1.msra.mxu0 %v2282
    %3521 = vmatprep.subr.mxu0 %v2267
    %3522 = vmatpush1.msra.mxu0 %v2266
    %3523 = vmatprep.subr.mxu0 %v2251
    %3524 = vmatpush1.msra.mxu0 %v2250
    %3525 = vmatprep.subr.mxu0 %v2235
    %3526 = vmatpush1.msra.mxu0 %v2234
    %3527 = vmatprep.subr.mxu0 %v2219
    %3528 = vmatpush1.msra.mxu0 %v2218
    %3529 = vmatprep.subr.mxu0 %v2203
    %3530 = vmatpush1.msra.mxu0 %v2202
    %3531 = vmatprep.subr.mxu0 %v2187
    %3532 = vmatpush1.msra.mxu0 %v2186
    %3533 = vmatprep.subr.mxu0 %v2171
    %3534 = vmatpush1.msra.mxu0 %v2170
    %3535 = vmatprep.subr.mxu0 %v2667
    %3536 = vmatpush2.msra.mxu0 %v2666
    %3537 = vmatprep.subr.mxu0 %v2651
    %3538 = vmatpush2.msra.mxu0 %v2650
    %3539 = vmatprep.subr.mxu0 %v2635
    %3540 = vmatpush2.msra.mxu0 %v2634
    %3541 = vmatprep.subr.mxu0 %v2619
    %3542 = vmatpush2.msra.mxu0 %v2618
    %3543 = vmatprep.subr.mxu0 %v2603
    %3544 = vmatpush2.msra.mxu0 %v2602
    %3545 = vmatprep.subr.mxu0 %v2587
    %3546 = vmatpush2.msra.mxu0 %v2586
    %3547 = vmatprep.subr.mxu0 %v2571
    %3548 = vmatpush2.msra.mxu0 %v2570
    %3549 = vmatprep.subr.mxu0 %v2555
    %3550 = vmatpush2.msra.mxu0 %v2554
    %3551 = vmatprep.subr.mxu0 %v2539
    %3552 = vmatpush2.msra.mxu0 %v2538
    %3553 = vmatprep.subr.mxu0 %v2523
    %3554 = vmatpush2.msra.mxu0 %v2522
    %3555 = vmatprep.subr.mxu0 %v2507
    %3556 = vmatpush2.msra.mxu0 %v2506
    %3557 = vmatprep.subr.mxu0 %v2491
    %3558 = vmatpush2.msra.mxu0 %v2490
    %3559 = vmatprep.subr.mxu0 %v2475
    %3560 = vmatpush2.msra.mxu0 %v2474
    %3561 = vmatprep.subr.mxu0 %v2459
    %3562 = vmatpush2.msra.mxu0 %v2458
    %3563 = vmatprep.subr.mxu0 %v2443
    %3564 = vmatpush2.msra.mxu0 %v2442
    %3565 = vmatprep.subr.mxu0 %v2427
    %3566 = vmatpush2.msra.mxu0 %v2426
    %3567 = vmatprep.mubr.f32.mxu0 %v2713
    %3568 = vmatmul.mubr.f32.gmra.mxu0 %v2711
    %v3569 = vpop.f32.mrf.mxu0
    %v3570 = vadd.f32 %v3499, %v3569
    %v3571 = vpop.f32.mrf.mxu0
    %v3572 = vadd.f32 %v3501, %v3571
    %3573 = vdwg.mxu0
    %3574 = vmatprep.subr.mxu0 %v877
    %3575 = vmatpush1.msra.mxu0 %v876
    %3576 = vmatprep.subr.mxu0 %v861
    %3577 = vmatpush1.msra.mxu0 %v860
    %3578 = vmatprep.subr.mxu0 %v845
    %3579 = vmatpush1.msra.mxu0 %v844
    %3580 = vmatprep.subr.mxu0 %v829
    %3581 = vmatpush1.msra.mxu0 %v828
    %3582 = vmatprep.subr.mxu0 %v813
    %3583 = vmatpush1.msra.mxu0 %v812
    %3584 = vmatprep.subr.mxu0 %v797
    %3585 = vmatpush1.msra.mxu0 %v796
    %3586 = vmatprep.subr.mxu0 %v781
    %3587 = vmatpush1.msra.mxu0 %v780
    %3588 = vmatprep.subr.mxu0 %v765
    %3589 = vmatpush1.msra.mxu0 %v764
    %3590 = vmatprep.subr.mxu0 %v749
    %3591 = vmatpush1.msra.mxu0 %v748
    %3592 = vmatprep.subr.mxu0 %v733
    %3593 = vmatpush1.msra.mxu0 %v732
    %3594 = vmatprep.subr.mxu0 %v717
    %3595 = vmatpush1.msra.mxu0 %v716
    %3596 = vmatprep.subr.mxu0 %v701
    %3597 = vmatpush1.msra.mxu0 %v700
    %3598 = vmatprep.subr.mxu0 %v685
    %3599 = vmatpush1.msra.mxu0 %v684
    %3600 = vmatprep.subr.mxu0 %v669
    %3601 = vmatpush1.msra.mxu0 %v668
    %3602 = vmatprep.subr.mxu0 %v653
    %3603 = vmatpush1.msra.mxu0 %v652
    %3604 = vmatprep.subr.mxu0 %v637
    %3605 = vmatpush1.msra.mxu0 %v636
    %3606 = vmatprep.subr.mxu0 %v1133
    %3607 = vmatpush2.msra.mxu0 %v1132
    %3608 = vmatprep.subr.mxu0 %v1117
    %3609 = vmatpush2.msra.mxu0 %v1116
    %3610 = vmatprep.subr.mxu0 %v1101
    %3611 = vmatpush2.msra.mxu0 %v1100
    %3612 = vmatprep.subr.mxu0 %v1085
    %3613 = vmatpush2.msra.mxu0 %v1084
    %3614 = vmatprep.subr.mxu0 %v1069
    %3615 = vmatpush2.msra.mxu0 %v1068
    %3616 = vmatprep.subr.mxu0 %v1053
    %3617 = vmatpush2.msra.mxu0 %v1052
    %3618 = vmatprep.subr.mxu0 %v1037
    %3619 = vmatpush2.msra.mxu0 %v1036
    %3620 = vmatprep.subr.mxu0 %v1021
    %3621 = vmatpush2.msra.mxu0 %v1020
    %3622 = vmatprep.subr.mxu0 %v1005
    %3623 = vmatpush2.msra.mxu0 %v1004
    %3624 = vmatprep.subr.mxu0 %v989
    %3625 = vmatpush2.msra.mxu0 %v988
    %3626 = vmatprep.subr.mxu0 %v973
    %3627 = vmatpush2.msra.mxu0 %v972
    %3628 = vmatprep.subr.mxu0 %v957
    %3629 = vmatpush2.msra.mxu0 %v956
    %3630 = vmatprep.subr.mxu0 %v941
    %3631 = vmatpush2.msra.mxu0 %v940
    %3632 = vmatprep.subr.mxu0 %v925
    %3633 = vmatpush2.msra.mxu0 %v924
    %3634 = vmatprep.subr.mxu0 %v909
    %3635 = vmatpush2.msra.mxu0 %v908
    %3636 = vmatprep.subr.mxu0 %v893
    %3637 = vmatpush2.msra.mxu0 %v892
    %3638 = vmatprep.mubr.f32.mxu0 %v2695
    %3639 = vmatmul.mubr.f32.gmra.mxu0 %v2687
    %v3640 = vpop.f32.mrf.mxu0
    %v3641 = vadd.f32 0.0, %v3640
    %v3642 = vpop.f32.mrf.mxu0
    %v3643 = vadd.f32 0.0, %v3642
    %3644 = vdwg.mxu0
    %3645 = vmatprep.subr.mxu0 %v1389
    %3646 = vmatpush1.msra.mxu0 %v1388
    %3647 = vmatprep.subr.mxu0 %v1373
    %3648 = vmatpush1.msra.mxu0 %v1372
    %3649 = vmatprep.subr.mxu0 %v1357
    %3650 = vmatpush1.msra.mxu0 %v1356
    %3651 = vmatprep.subr.mxu0 %v1341
    %3652 = vmatpush1.msra.mxu0 %v1340
    %3653 = vmatprep.subr.mxu0 %v1325
    %3654 = vmatpush1.msra.mxu0 %v1324
    %3655 = vmatprep.subr.mxu0 %v1309
    %3656 = vmatpush1.msra.mxu0 %v1308
    %3657 = vmatprep.subr.mxu0 %v1293
    %3658 = vmatpush1.msra.mxu0 %v1292
    %3659 = vmatprep.subr.mxu0 %v1277
    %3660 = vmatpush1.msra.mxu0 %v1276
    %3661 = vmatprep.subr.mxu0 %v1261
    %3662 = vmatpush1.msra.mxu0 %v1260
    %3663 = vmatprep.subr.mxu0 %v1245
    %3664 = vmatpush1.msra.mxu0 %v1244
    %3665 = vmatprep.subr.mxu0 %v1229
    %3666 = vmatpush1.msra.mxu0 %v1228
    %3667 = vmatprep.subr.mxu0 %v1213
    %3668 = vmatpush1.msra.mxu0 %v1212
    %3669 = vmatprep.subr.mxu0 %v1197
    %3670 = vmatpush1.msra.mxu0 %v1196
    %3671 = vmatprep.subr.mxu0 %v1181
    %3672 = vmatpush1.msra.mxu0 %v1180
    %3673 = vmatprep.subr.mxu0 %v1165
    %3674 = vmatpush1.msra.mxu0 %v1164
    %3675 = vmatprep.subr.mxu0 %v1149
    %3676 = vmatpush1.msra.mxu0 %v1148
    %3677 = vmatprep.subr.mxu0 %v1645
    %3678 = vmatpush2.msra.mxu0 %v1644
    %3679 = vmatprep.subr.mxu0 %v1629
    %3680 = vmatpush2.msra.mxu0 %v1628
    %3681 = vmatprep.subr.mxu0 %v1613
    %3682 = vmatpush2.msra.mxu0 %v1612
    %3683 = vmatprep.subr.mxu0 %v1597
    %3684 = vmatpush2.msra.mxu0 %v1596
    %3685 = vmatprep.subr.mxu0 %v1581
    %3686 = vmatpush2.msra.mxu0 %v1580
    %3687 = vmatprep.subr.mxu0 %v1565
    %3688 = vmatpush2.msra.mxu0 %v1564
    %3689 = vmatprep.subr.mxu0 %v1549
    %3690 = vmatpush2.msra.mxu0 %v1548
    %3691 = vmatprep.subr.mxu0 %v1533
    %3692 = vmatpush2.msra.mxu0 %v1532
    %3693 = vmatprep.subr.mxu0 %v1517
    %3694 = vmatpush2.msra.mxu0 %v1516
    %3695 = vmatprep.subr.mxu0 %v1501
    %3696 = vmatpush2.msra.mxu0 %v1500
    %3697 = vmatprep.subr.mxu0 %v1485
    %3698 = vmatpush2.msra.mxu0 %v1484
    %3699 = vmatprep.subr.mxu0 %v1469
    %3700 = vmatpush2.msra.mxu0 %v1468
    %3701 = vmatprep.subr.mxu0 %v1453
    %3702 = vmatpush2.msra.mxu0 %v1452
    %3703 = vmatprep.subr.mxu0 %v1437
    %3704 = vmatpush2.msra.mxu0 %v1436
    %3705 = vmatprep.subr.mxu0 %v1421
    %3706 = vmatpush2.msra.mxu0 %v1420
    %3707 = vmatprep.subr.mxu0 %v1405
    %3708 = vmatpush2.msra.mxu0 %v1404
    %3709 = vmatprep.mubr.f32.mxu0 %v2696
    %3710 = vmatmul.mubr.f32.gmra.mxu0 %v2694
    %v3711 = vpop.f32.mrf.mxu0
    %v3712 = vadd.f32 %v3641, %v3711
    %v3713 = vpop.f32.mrf.mxu0
    %v3714 = vadd.f32 %v3643, %v3713
    %3715 = vdwg.mxu0
    %3716 = vmatprep.subr.mxu0 %v1901
    %3717 = vmatpush1.msra.mxu0 %v1900
    %3718 = vmatprep.subr.mxu0 %v1885
    %3719 = vmatpush1.msra.mxu0 %v1884
    %3720 = vmatprep.subr.mxu0 %v1869
    %3721 = vmatpush1.msra.mxu0 %v1868
    %3722 = vmatprep.subr.mxu0 %v1853
    %3723 = vmatpush1.msra.mxu0 %v1852
    %3724 = vmatprep.subr.mxu0 %v1837
    %3725 = vmatpush1.msra.mxu0 %v1836
    %3726 = vmatprep.subr.mxu0 %v1821
    %3727 = vmatpush1.msra.mxu0 %v1820
    %3728 = vmatprep.subr.mxu0 %v1805
    %3729 = vmatpush1.msra.mxu0 %v1804
    %3730 = vmatprep.subr.mxu0 %v1789
    %3731 = vmatpush1.msra.mxu0 %v1788
    %3732 = vmatprep.subr.mxu0 %v1773
    %3733 = vmatpush1.msra.mxu0 %v1772
    %3734 = vmatprep.subr.mxu0 %v1757
    %3735 = vmatpush1.msra.mxu0 %v1756
    %3736 = vmatprep.subr.mxu0 %v1741
    %3737 = vmatpush1.msra.mxu0 %v1740
    %3738 = vmatprep.subr.mxu0 %v1725
    %3739 = vmatpush1.msra.mxu0 %v1724
    %3740 = vmatprep.subr.mxu0 %v1709
    %3741 = vmatpush1.msra.mxu0 %v1708
    %3742 = vmatprep.subr.mxu0 %v1693
    %3743 = vmatpush1.msra.mxu0 %v1692
    %3744 = vmatprep.subr.mxu0 %v1677
    %3745 = vmatpush1.msra.mxu0 %v1676
    %3746 = vmatprep.subr.mxu0 %v1661
    %3747 = vmatpush1.msra.mxu0 %v1660
    %3748 = vmatprep.subr.mxu0 %v2157
    %3749 = vmatpush2.msra.mxu0 %v2156
    %3750 = vmatprep.subr.mxu0 %v2141
    %3751 = vmatpush2.msra.mxu0 %v2140
    %3752 = vmatprep.subr.mxu0 %v2125
    %3753 = vmatpush2.msra.mxu0 %v2124
    %3754 = vmatprep.subr.mxu0 %v2109
    %3755 = vmatpush2.msra.mxu0 %v2108
    %3756 = vmatprep.subr.mxu0 %v2093
    %3757 = vmatpush2.msra.mxu0 %v2092
    %3758 = vmatprep.subr.mxu0 %v2077
    %3759 = vmatpush2.msra.mxu0 %v2076
    %3760 = vmatprep.subr.mxu0 %v2061
    %3761 = vmatpush2.msra.mxu0 %v2060
    %3762 = vmatprep.subr.mxu0 %v2045
    %3763 = vmatpush2.msra.mxu0 %v2044
    %3764 = vmatprep.subr.mxu0 %v2029
    %3765 = vmatpush2.msra.mxu0 %v2028
    %3766 = vmatprep.subr.mxu0 %v2013
    %3767 = vmatpush2.msra.mxu0 %v2012
    %3768 = vmatprep.subr.mxu0 %v1997
    %3769 = vmatpush2.msra.mxu0 %v1996
    %3770 = vmatprep.subr.mxu0 %v1981
    %3771 = vmatpush2.msra.mxu0 %v1980
    %3772 = vmatprep.subr.mxu0 %v1965
    %3773 = vmatpush2.msra.mxu0 %v1964
    %3774 = vmatprep.subr.mxu0 %v1949
    %3775 = vmatpush2.msra.mxu0 %v1948
    %3776 = vmatprep.subr.mxu0 %v1933
    %3777 = vmatpush2.msra.mxu0 %v1932
    %3778 = vmatprep.subr.mxu0 %v1917
    %3779 = vmatpush2.msra.mxu0 %v1916
    %3780 = vmatprep.mubr.f32.mxu0 %v2712
    %3781 = vmatmul.mubr.f32.gmra.mxu0 %v2704
    %v3782 = vpop.f32.mrf.mxu0
    %v3783 = vadd.f32 %v3712, %v3782
    %v3784 = vpop.f32.mrf.mxu0
    %v3785 = vadd.f32 %v3714, %v3784
    %3786 = vdwg.mxu0
    %3787 = vmatprep.subr.mxu0 %v2413
    %3788 = vmatpush1.msra.mxu0 %v2412
    %3789 = vmatprep.subr.mxu0 %v2397
    %3790 = vmatpush1.msra.mxu0 %v2396
    %3791 = vmatprep.subr.mxu0 %v2381
    %3792 = vmatpush1.msra.mxu0 %v2380
    %3793 = vmatprep.subr.mxu0 %v2365
    %3794 = vmatpush1.msra.mxu0 %v2364
    %3795 = vmatprep.subr.mxu0 %v2349
    %3796 = vmatpush1.msra.mxu0 %v2348
    %3797 = vmatprep.subr.mxu0 %v2333
    %3798 = vmatpush1.msra.mxu0 %v2332
    %3799 = vmatprep.subr.mxu0 %v2317
    %3800 = vmatpush1.msra.mxu0 %v2316
    %3801 = vmatprep.subr.mxu0 %v2301
    %3802 = vmatpush1.msra.mxu0 %v2300
    %3803 = vmatprep.subr.mxu0 %v2285
    %3804 = vmatpush1.msra.mxu0 %v2284
    %3805 = vmatprep.subr.mxu0 %v2269
    %3806 = vmatpush1.msra.mxu0 %v2268
    %3807 = vmatprep.subr.mxu0 %v2253
    %3808 = vmatpush1.msra.mxu0 %v2252
    %3809 = vmatprep.subr.mxu0 %v2237
    %3810 = vmatpush1.msra.mxu0 %v2236
    %3811 = vmatprep.subr.mxu0 %v2221
    %3812 = vmatpush1.msra.mxu0 %v2220
    %3813 = vmatprep.subr.mxu0 %v2205
    %3814 = vmatpush1.msra.mxu0 %v2204
    %3815 = vmatprep.subr.mxu0 %v2189
    %3816 = vmatpush1.msra.mxu0 %v2188
    %3817 = vmatprep.subr.mxu0 %v2173
    %3818 = vmatpush1.msra.mxu0 %v2172
    %3819 = vmatprep.subr.mxu0 %v2669
    %3820 = vmatpush2.msra.mxu0 %v2668
    %3821 = vmatprep.subr.mxu0 %v2653
    %3822 = vmatpush2.msra.mxu0 %v2652
    %3823 = vmatprep.subr.mxu0 %v2637
    %3824 = vmatpush2.msra.mxu0 %v2636
    %3825 = vmatprep.subr.mxu0 %v2621
    %3826 = vmatpush2.msra.mxu0 %v2620
    %3827 = vmatprep.subr.mxu0 %v2605
    %3828 = vmatpush2.msra.mxu0 %v2604
    %3829 = vmatprep.subr.mxu0 %v2589
    %3830 = vmatpush2.msra.mxu0 %v2588
    %3831 = vmatprep.subr.mxu0 %v2573
    %3832 = vmatpush2.msra.mxu0 %v2572
    %3833 = vmatprep.subr.mxu0 %v2557
    %3834 = vmatpush2.msra.mxu0 %v2556
    %3835 = vmatprep.subr.mxu0 %v2541
    %3836 = vmatpush2.msra.mxu0 %v2540
    %3837 = vmatprep.subr.mxu0 %v2525
    %3838 = vmatpush2.msra.mxu0 %v2524
    %3839 = vmatprep.subr.mxu0 %v2509
    %3840 = vmatpush2.msra.mxu0 %v2508
    %3841 = vmatprep.subr.mxu0 %v2493
    %3842 = vmatpush2.msra.mxu0 %v2492
    %3843 = vmatprep.subr.mxu0 %v2477
    %3844 = vmatpush2.msra.mxu0 %v2476
    %3845 = vmatprep.subr.mxu0 %v2461
    %3846 = vmatpush2.msra.mxu0 %v2460
    %3847 = vmatprep.subr.mxu0 %v2445
    %3848 = vmatpush2.msra.mxu0 %v2444
    %3849 = vmatprep.subr.mxu0 %v2429
    %3850 = vmatpush2.msra.mxu0 %v2428
    %3851 = vmatprep.mubr.f32.mxu0 %v2713
    %3852 = vmatmul.mubr.f32.gmra.mxu0 %v2711
    %v3853 = vpop.f32.mrf.mxu0
    %v3854 = vadd.f32 %v3783, %v3853
    %v3855 = vpop.f32.mrf.mxu0
    %v3856 = vadd.f32 %v3785, %v3855
    %3857 = vdwg.mxu0
    %3858 = vmatprep.subr.mxu0 %v879
    %3859 = vmatpush1.msra.mxu0 %v878
    %3860 = vmatprep.subr.mxu0 %v863
    %3861 = vmatpush1.msra.mxu0 %v862
    %3862 = vmatprep.subr.mxu0 %v847
    %3863 = vmatpush1.msra.mxu0 %v846
    %3864 = vmatprep.subr.mxu0 %v831
    %3865 = vmatpush1.msra.mxu0 %v830
    %3866 = vmatprep.subr.mxu0 %v815
    %3867 = vmatpush1.msra.mxu0 %v814
    %3868 = vmatprep.subr.mxu0 %v799
    %3869 = vmatpush1.msra.mxu0 %v798
    %3870 = vmatprep.subr.mxu0 %v783
    %3871 = vmatpush1.msra.mxu0 %v782
    %3872 = vmatprep.subr.mxu0 %v767
    %3873 = vmatpush1.msra.mxu0 %v766
    %3874 = vmatprep.subr.mxu0 %v751
    %3875 = vmatpush1.msra.mxu0 %v750
    %3876 = vmatprep.subr.mxu0 %v735
    %3877 = vmatpush1.msra.mxu0 %v734
    %3878 = vmatprep.subr.mxu0 %v719
    %3879 = vmatpush1.msra.mxu0 %v718
    %3880 = vmatprep.subr.mxu0 %v703
    %3881 = vmatpush1.msra.mxu0 %v702
    %3882 = vmatprep.subr.mxu0 %v687
    %3883 = vmatpush1.msra.mxu0 %v686
    %3884 = vmatprep.subr.mxu0 %v671
    %3885 = vmatpush1.msra.mxu0 %v670
    %3886 = vmatprep.subr.mxu0 %v655
    %3887 = vmatpush1.msra.mxu0 %v654
    %3888 = vmatprep.subr.mxu0 %v639
    %3889 = vmatpush1.msra.mxu0 %v638
    %3890 = vmatprep.subr.mxu0 %v1135
    %3891 = vmatpush2.msra.mxu0 %v1134
    %3892 = vmatprep.subr.mxu0 %v1119
    %3893 = vmatpush2.msra.mxu0 %v1118
    %3894 = vmatprep.subr.mxu0 %v1103
    %3895 = vmatpush2.msra.mxu0 %v1102
    %3896 = vmatprep.subr.mxu0 %v1087
    %3897 = vmatpush2.msra.mxu0 %v1086
    %3898 = vmatprep.subr.mxu0 %v1071
    %3899 = vmatpush2.msra.mxu0 %v1070
    %3900 = vmatprep.subr.mxu0 %v1055
    %3901 = vmatpush2.msra.mxu0 %v1054
    %3902 = vmatprep.subr.mxu0 %v1039
    %3903 = vmatpush2.msra.mxu0 %v1038
    %3904 = vmatprep.subr.mxu0 %v1023
    %3905 = vmatpush2.msra.mxu0 %v1022
    %3906 = vmatprep.subr.mxu0 %v1007
    %3907 = vmatpush2.msra.mxu0 %v1006
    %3908 = vmatprep.subr.mxu0 %v991
    %3909 = vmatpush2.msra.mxu0 %v990
    %3910 = vmatprep.subr.mxu0 %v975
    %3911 = vmatpush2.msra.mxu0 %v974
    %3912 = vmatprep.subr.mxu0 %v959
    %3913 = vmatpush2.msra.mxu0 %v958
    %3914 = vmatprep.subr.mxu0 %v943
    %3915 = vmatpush2.msra.mxu0 %v942
    %3916 = vmatprep.subr.mxu0 %v927
    %3917 = vmatpush2.msra.mxu0 %v926
    %3918 = vmatprep.subr.mxu0 %v911
    %3919 = vmatpush2.msra.mxu0 %v910
    %3920 = vmatprep.subr.mxu0 %v895
    %3921 = vmatpush2.msra.mxu0 %v894
    %3922 = vmatprep.mubr.f32.mxu0 %v2695
    %3923 = vmatmul.mubr.f32.gmra.mxu0 %v2687
    %v3924 = vpop.f32.mrf.mxu0
    %v3925 = vadd.f32 0.0, %v3924
    %v3926 = vpop.f32.mrf.mxu0
    %v3927 = vadd.f32 0.0, %v3926
    %3928 = vdwg.mxu0
    %3929 = vmatprep.subr.mxu0 %v1391
    %3930 = vmatpush1.msra.mxu0 %v1390
    %3931 = vmatprep.subr.mxu0 %v1375
    %3932 = vmatpush1.msra.mxu0 %v1374
    %3933 = vmatprep.subr.mxu0 %v1359
    %3934 = vmatpush1.msra.mxu0 %v1358
    %3935 = vmatprep.subr.mxu0 %v1343
    %3936 = vmatpush1.msra.mxu0 %v1342
    %3937 = vmatprep.subr.mxu0 %v1327
    %3938 = vmatpush1.msra.mxu0 %v1326
    %3939 = vmatprep.subr.mxu0 %v1311
    %3940 = vmatpush1.msra.mxu0 %v1310
    %3941 = vmatprep.subr.mxu0 %v1295
    %3942 = vmatpush1.msra.mxu0 %v1294
    %3943 = vmatprep.subr.mxu0 %v1279
    %3944 = vmatpush1.msra.mxu0 %v1278
    %3945 = vmatprep.subr.mxu0 %v1263
    %3946 = vmatpush1.msra.mxu0 %v1262
    %3947 = vmatprep.subr.mxu0 %v1247
    %3948 = vmatpush1.msra.mxu0 %v1246
    %3949 = vmatprep.subr.mxu0 %v1231
    %3950 = vmatpush1.msra.mxu0 %v1230
    %3951 = vmatprep.subr.mxu0 %v1215
    %3952 = vmatpush1.msra.mxu0 %v1214
    %3953 = vmatprep.subr.mxu0 %v1199
    %3954 = vmatpush1.msra.mxu0 %v1198
    %3955 = vmatprep.subr.mxu0 %v1183
    %3956 = vmatpush1.msra.mxu0 %v1182
    %3957 = vmatprep.subr.mxu0 %v1167
    %3958 = vmatpush1.msra.mxu0 %v1166
    %3959 = vmatprep.subr.mxu0 %v1151
    %3960 = vmatpush1.msra.mxu0 %v1150
    %3961 = vmatprep.subr.mxu0 %v1647
    %3962 = vmatpush2.msra.mxu0 %v1646
    %3963 = vmatprep.subr.mxu0 %v1631
    %3964 = vmatpush2.msra.mxu0 %v1630
    %3965 = vmatprep.subr.mxu0 %v1615
    %3966 = vmatpush2.msra.mxu0 %v1614
    %3967 = vmatprep.subr.mxu0 %v1599
    %3968 = vmatpush2.msra.mxu0 %v1598
    %3969 = vmatprep.subr.mxu0 %v1583
    %3970 = vmatpush2.msra.mxu0 %v1582
    %3971 = vmatprep.subr.mxu0 %v1567
    %3972 = vmatpush2.msra.mxu0 %v1566
    %3973 = vmatprep.subr.mxu0 %v1551
    %3974 = vmatpush2.msra.mxu0 %v1550
    %3975 = vmatprep.subr.mxu0 %v1535
    %3976 = vmatpush2.msra.mxu0 %v1534
    %3977 = vmatprep.subr.mxu0 %v1519
    %3978 = vmatpush2.msra.mxu0 %v1518
    %3979 = vmatprep.subr.mxu0 %v1503
    %3980 = vmatpush2.msra.mxu0 %v1502
    %3981 = vmatprep.subr.mxu0 %v1487
    %3982 = vmatpush2.msra.mxu0 %v1486
    %3983 = vmatprep.subr.mxu0 %v1471
    %3984 = vmatpush2.msra.mxu0 %v1470
    %3985 = vmatprep.subr.mxu0 %v1455
    %3986 = vmatpush2.msra.mxu0 %v1454
    %3987 = vmatprep.subr.mxu0 %v1439
    %3988 = vmatpush2.msra.mxu0 %v1438
    %3989 = vmatprep.subr.mxu0 %v1423
    %3990 = vmatpush2.msra.mxu0 %v1422
    %3991 = vmatprep.subr.mxu0 %v1407
    %3992 = vmatpush2.msra.mxu0 %v1406
    %3993 = vmatprep.mubr.f32.mxu0 %v2696
    %3994 = vmatmul.mubr.f32.gmra.mxu0 %v2694
    %v3995 = vpop.f32.mrf.mxu0
    %v3996 = vadd.f32 %v3925, %v3995
    %v3997 = vpop.f32.mrf.mxu0
    %v3998 = vadd.f32 %v3927, %v3997
    %3999 = vdwg.mxu0
    %4000 = vmatprep.subr.mxu0 %v1903
    %4001 = vmatpush1.msra.mxu0 %v1902
    %4002 = vmatprep.subr.mxu0 %v1887
    %4003 = vmatpush1.msra.mxu0 %v1886
    %4004 = vmatprep.subr.mxu0 %v1871
    %4005 = vmatpush1.msra.mxu0 %v1870
    %4006 = vmatprep.subr.mxu0 %v1855
    %4007 = vmatpush1.msra.mxu0 %v1854
    %4008 = vmatprep.subr.mxu0 %v1839
    %4009 = vmatpush1.msra.mxu0 %v1838
    %4010 = vmatprep.subr.mxu0 %v1823
    %4011 = vmatpush1.msra.mxu0 %v1822
    %4012 = vmatprep.subr.mxu0 %v1807
    %4013 = vmatpush1.msra.mxu0 %v1806
    %4014 = vmatprep.subr.mxu0 %v1791
    %4015 = vmatpush1.msra.mxu0 %v1790
    %4016 = vmatprep.subr.mxu0 %v1775
    %4017 = vmatpush1.msra.mxu0 %v1774
    %4018 = vmatprep.subr.mxu0 %v1759
    %4019 = vmatpush1.msra.mxu0 %v1758
    %4020 = vmatprep.subr.mxu0 %v1743
    %4021 = vmatpush1.msra.mxu0 %v1742
    %4022 = vmatprep.subr.mxu0 %v1727
    %4023 = vmatpush1.msra.mxu0 %v1726
    %4024 = vmatprep.subr.mxu0 %v1711
    %4025 = vmatpush1.msra.mxu0 %v1710
    %4026 = vmatprep.subr.mxu0 %v1695
    %4027 = vmatpush1.msra.mxu0 %v1694
    %4028 = vmatprep.subr.mxu0 %v1679
    %4029 = vmatpush1.msra.mxu0 %v1678
    %4030 = vmatprep.subr.mxu0 %v1663
    %4031 = vmatpush1.msra.mxu0 %v1662
    %4032 = vmatprep.subr.mxu0 %v2159
    %4033 = vmatpush2.msra.mxu0 %v2158
    %4034 = vmatprep.subr.mxu0 %v2143
    %4035 = vmatpush2.msra.mxu0 %v2142
    %4036 = vmatprep.subr.mxu0 %v2127
    %4037 = vmatpush2.msra.mxu0 %v2126
    %4038 = vmatprep.subr.mxu0 %v2111
    %4039 = vmatpush2.msra.mxu0 %v2110
    %4040 = vmatprep.subr.mxu0 %v2095
    %4041 = vmatpush2.msra.mxu0 %v2094
    %4042 = vmatprep.subr.mxu0 %v2079
    %4043 = vmatpush2.msra.mxu0 %v2078
    %4044 = vmatprep.subr.mxu0 %v2063
    %4045 = vmatpush2.msra.mxu0 %v2062
    %4046 = vmatprep.subr.mxu0 %v2047
    %4047 = vmatpush2.msra.mxu0 %v2046
    %4048 = vmatprep.subr.mxu0 %v2031
    %4049 = vmatpush2.msra.mxu0 %v2030
    %4050 = vmatprep.subr.mxu0 %v2015
    %4051 = vmatpush2.msra.mxu0 %v2014
    %4052 = vmatprep.subr.mxu0 %v1999
    %4053 = vmatpush2.msra.mxu0 %v1998
    %4054 = vmatprep.subr.mxu0 %v1983
    %4055 = vmatpush2.msra.mxu0 %v1982
    %4056 = vmatprep.subr.mxu0 %v1967
    %4057 = vmatpush2.msra.mxu0 %v1966
    %4058 = vmatprep.subr.mxu0 %v1951
    %4059 = vmatpush2.msra.mxu0 %v1950
    %4060 = vmatprep.subr.mxu0 %v1935
    %4061 = vmatpush2.msra.mxu0 %v1934
    %4062 = vmatprep.subr.mxu0 %v1919
    %4063 = vmatpush2.msra.mxu0 %v1918
    %4064 = vmatprep.mubr.f32.mxu0 %v2712
    %4065 = vmatmul.mubr.f32.gmra.mxu0 %v2704
    %v4066 = vpop.f32.mrf.mxu0
    %v4067 = vadd.f32 %v3996, %v4066
    %v4068 = vpop.f32.mrf.mxu0
    %v4069 = vadd.f32 %v3998, %v4068
    %4070 = vdwg.mxu0
    %4071 = vmatprep.subr.mxu0 %v2415
    %4072 = vmatpush1.msra.mxu0 %v2414
    %4073 = vmatprep.subr.mxu0 %v2399
    %4074 = vmatpush1.msra.mxu0 %v2398
    %4075 = vmatprep.subr.mxu0 %v2383
    %4076 = vmatpush1.msra.mxu0 %v2382
    %4077 = vmatprep.subr.mxu0 %v2367
    %4078 = vmatpush1.msra.mxu0 %v2366
    %4079 = vmatprep.subr.mxu0 %v2351
    %4080 = vmatpush1.msra.mxu0 %v2350
    %4081 = vmatprep.subr.mxu0 %v2335
    %4082 = vmatpush1.msra.mxu0 %v2334
    %4083 = vmatprep.subr.mxu0 %v2319
    %4084 = vmatpush1.msra.mxu0 %v2318
    %4085 = vmatprep.subr.mxu0 %v2303
    %4086 = vmatpush1.msra.mxu0 %v2302
    %4087 = vmatprep.subr.mxu0 %v2287
    %4088 = vmatpush1.msra.mxu0 %v2286
    %4089 = vmatprep.subr.mxu0 %v2271
    %4090 = vmatpush1.msra.mxu0 %v2270
    %4091 = vmatprep.subr.mxu0 %v2255
    %4092 = vmatpush1.msra.mxu0 %v2254
    %4093 = vmatprep.subr.mxu0 %v2239
    %4094 = vmatpush1.msra.mxu0 %v2238
    %4095 = vmatprep.subr.mxu0 %v2223
    %4096 = vmatpush1.msra.mxu0 %v2222
    %4097 = vmatprep.subr.mxu0 %v2207
    %4098 = vmatpush1.msra.mxu0 %v2206
    %4099 = vmatprep.subr.mxu0 %v2191
    %4100 = vmatpush1.msra.mxu0 %v2190
    %4101 = vmatprep.subr.mxu0 %v2175
    %4102 = vmatpush1.msra.mxu0 %v2174
    %4103 = vmatprep.subr.mxu0 %v2671
    %4104 = vmatpush2.msra.mxu0 %v2670
    %4105 = vmatprep.subr.mxu0 %v2655
    %4106 = vmatpush2.msra.mxu0 %v2654
    %4107 = vmatprep.subr.mxu0 %v2639
    %4108 = vmatpush2.msra.mxu0 %v2638
    %4109 = vmatprep.subr.mxu0 %v2623
    %4110 = vmatpush2.msra.mxu0 %v2622
    %4111 = vmatprep.subr.mxu0 %v2607
    %4112 = vmatpush2.msra.mxu0 %v2606
    %4113 = vmatprep.subr.mxu0 %v2591
    %4114 = vmatpush2.msra.mxu0 %v2590
    %4115 = vmatprep.subr.mxu0 %v2575
    %4116 = vmatpush2.msra.mxu0 %v2574
    %4117 = vmatprep.subr.mxu0 %v2559
    %4118 = vmatpush2.msra.mxu0 %v2558
    %4119 = vmatprep.subr.mxu0 %v2543
    %4120 = vmatpush2.msra.mxu0 %v2542
    %4121 = vmatprep.subr.mxu0 %v2527
    %4122 = vmatpush2.msra.mxu0 %v2526
    %4123 = vmatprep.subr.mxu0 %v2511
    %4124 = vmatpush2.msra.mxu0 %v2510
    %4125 = vmatprep.subr.mxu0 %v2495
    %4126 = vmatpush2.msra.mxu0 %v2494
    %4127 = vmatprep.subr.mxu0 %v2479
    %4128 = vmatpush2.msra.mxu0 %v2478
    %4129 = vmatprep.subr.mxu0 %v2463
    %4130 = vmatpush2.msra.mxu0 %v2462
    %4131 = vmatprep.subr.mxu0 %v2447
    %4132 = vmatpush2.msra.mxu0 %v2446
    %4133 = vmatprep.subr.mxu0 %v2431
    %4134 = vmatpush2.msra.mxu0 %v2430
    %4135 = vmatprep.mubr.f32.mxu0 %v2713
    %4136 = vmatmul.mubr.f32.gmra.mxu0 %v2711
    %v4137 = vpop.f32.mrf.mxu0
    %v4138 = vadd.f32 %v4067, %v4137
    %v4139 = vpop.f32.mrf.mxu0
    %v4140 = vadd.f32 %v4069, %v4139
    %4141 = vdwg.mxu0
    %4142 = vmatprep.subr.mxu0 %v881
    %4143 = vmatpush1.msra.mxu0 %v880
    %4144 = vmatprep.subr.mxu0 %v865
    %4145 = vmatpush1.msra.mxu0 %v864
    %4146 = vmatprep.subr.mxu0 %v849
    %4147 = vmatpush1.msra.mxu0 %v848
    %4148 = vmatprep.subr.mxu0 %v833
    %4149 = vmatpush1.msra.mxu0 %v832
    %4150 = vmatprep.subr.mxu0 %v817
    %4151 = vmatpush1.msra.mxu0 %v816
    %4152 = vmatprep.subr.mxu0 %v801
    %4153 = vmatpush1.msra.mxu0 %v800
    %4154 = vmatprep.subr.mxu0 %v785
    %4155 = vmatpush1.msra.mxu0 %v784
    %4156 = vmatprep.subr.mxu0 %v769
    %4157 = vmatpush1.msra.mxu0 %v768
    %4158 = vmatprep.subr.mxu0 %v753
    %4159 = vmatpush1.msra.mxu0 %v752
    %4160 = vmatprep.subr.mxu0 %v737
    %4161 = vmatpush1.msra.mxu0 %v736
    %4162 = vmatprep.subr.mxu0 %v721
    %4163 = vmatpush1.msra.mxu0 %v720
    %4164 = vmatprep.subr.mxu0 %v705
    %4165 = vmatpush1.msra.mxu0 %v704
    %4166 = vmatprep.subr.mxu0 %v689
    %4167 = vmatpush1.msra.mxu0 %v688
    %4168 = vmatprep.subr.mxu0 %v673
    %4169 = vmatpush1.msra.mxu0 %v672
    %4170 = vmatprep.subr.mxu0 %v657
    %4171 = vmatpush1.msra.mxu0 %v656
    %4172 = vmatprep.subr.mxu0 %v641
    %4173 = vmatpush1.msra.mxu0 %v640
    %4174 = vmatprep.subr.mxu0 %v1137
    %4175 = vmatpush2.msra.mxu0 %v1136
    %4176 = vmatprep.subr.mxu0 %v1121
    %4177 = vmatpush2.msra.mxu0 %v1120
    %4178 = vmatprep.subr.mxu0 %v1105
    %4179 = vmatpush2.msra.mxu0 %v1104
    %4180 = vmatprep.subr.mxu0 %v1089
    %4181 = vmatpush2.msra.mxu0 %v1088
    %4182 = vmatprep.subr.mxu0 %v1073
    %4183 = vmatpush2.msra.mxu0 %v1072
    %4184 = vmatprep.subr.mxu0 %v1057
    %4185 = vmatpush2.msra.mxu0 %v1056
    %4186 = vmatprep.subr.mxu0 %v1041
    %4187 = vmatpush2.msra.mxu0 %v1040
    %4188 = vmatprep.subr.mxu0 %v1025
    %4189 = vmatpush2.msra.mxu0 %v1024
    %4190 = vmatprep.subr.mxu0 %v1009
    %4191 = vmatpush2.msra.mxu0 %v1008
    %4192 = vmatprep.subr.mxu0 %v993
    %4193 = vmatpush2.msra.mxu0 %v992
    %4194 = vmatprep.subr.mxu0 %v977
    %4195 = vmatpush2.msra.mxu0 %v976
    %4196 = vmatprep.subr.mxu0 %v961
    %4197 = vmatpush2.msra.mxu0 %v960
    %4198 = vmatprep.subr.mxu0 %v945
    %4199 = vmatpush2.msra.mxu0 %v944
    %4200 = vmatprep.subr.mxu0 %v929
    %4201 = vmatpush2.msra.mxu0 %v928
    %4202 = vmatprep.subr.mxu0 %v913
    %4203 = vmatpush2.msra.mxu0 %v912
    %4204 = vmatprep.subr.mxu0 %v897
    %4205 = vmatpush2.msra.mxu0 %v896
    %4206 = vmatprep.mubr.f32.mxu0 %v2695
    %4207 = vmatmul.mubr.f32.gmra.mxu0 %v2687
    %v4208 = vpop.f32.mrf.mxu0
    %v4209 = vadd.f32 0.0, %v4208
    %v4210 = vpop.f32.mrf.mxu0
    %v4211 = vadd.f32 0.0, %v4210
    %4212 = vdwg.mxu0
    %4213 = vmatprep.subr.mxu0 %v1393
    %4214 = vmatpush1.msra.mxu0 %v1392
    %4215 = vmatprep.subr.mxu0 %v1377
    %4216 = vmatpush1.msra.mxu0 %v1376
    %4217 = vmatprep.subr.mxu0 %v1361
    %4218 = vmatpush1.msra.mxu0 %v1360
    %4219 = vmatprep.subr.mxu0 %v1345
    %4220 = vmatpush1.msra.mxu0 %v1344
    %4221 = vmatprep.subr.mxu0 %v1329
    %4222 = vmatpush1.msra.mxu0 %v1328
    %4223 = vmatprep.subr.mxu0 %v1313
    %4224 = vmatpush1.msra.mxu0 %v1312
    %4225 = vmatprep.subr.mxu0 %v1297
    %4226 = vmatpush1.msra.mxu0 %v1296
    %4227 = vmatprep.subr.mxu0 %v1281
    %4228 = vmatpush1.msra.mxu0 %v1280
    %4229 = vmatprep.subr.mxu0 %v1265
    %4230 = vmatpush1.msra.mxu0 %v1264
    %4231 = vmatprep.subr.mxu0 %v1249
    %4232 = vmatpush1.msra.mxu0 %v1248
    %4233 = vmatprep.subr.mxu0 %v1233
    %4234 = vmatpush1.msra.mxu0 %v1232
    %4235 = vmatprep.subr.mxu0 %v1217
    %4236 = vmatpush1.msra.mxu0 %v1216
    %4237 = vmatprep.subr.mxu0 %v1201
    %4238 = vmatpush1.msra.mxu0 %v1200
    %4239 = vmatprep.subr.mxu0 %v1185
    %4240 = vmatpush1.msra.mxu0 %v1184
    %4241 = vmatprep.subr.mxu0 %v1169
    %4242 = vmatpush1.msra.mxu0 %v1168
    %4243 = vmatprep.subr.mxu0 %v1153
    %4244 = vmatpush1.msra.mxu0 %v1152
    %4245 = vmatprep.subr.mxu0 %v1649
    %4246 = vmatpush2.msra.mxu0 %v1648
    %4247 = vmatprep.subr.mxu0 %v1633
    %4248 = vmatpush2.msra.mxu0 %v1632
    %4249 = vmatprep.subr.mxu0 %v1617
    %4250 = vmatpush2.msra.mxu0 %v1616
    %4251 = vmatprep.subr.mxu0 %v1601
    %4252 = vmatpush2.msra.mxu0 %v1600
    %4253 = vmatprep.subr.mxu0 %v1585
    %4254 = vmatpush2.msra.mxu0 %v1584
    %4255 = vmatprep.subr.mxu0 %v1569
    %4256 = vmatpush2.msra.mxu0 %v1568
    %4257 = vmatprep.subr.mxu0 %v1553
    %4258 = vmatpush2.msra.mxu0 %v1552
    %4259 = vmatprep.subr.mxu0 %v1537
    %4260 = vmatpush2.msra.mxu0 %v1536
    %4261 = vmatprep.subr.mxu0 %v1521
    %4262 = vmatpush2.msra.mxu0 %v1520
    %4263 = vmatprep.subr.mxu0 %v1505
    %4264 = vmatpush2.msra.mxu0 %v1504
    %4265 = vmatprep.subr.mxu0 %v1489
    %4266 = vmatpush2.msra.mxu0 %v1488
    %4267 = vmatprep.subr.mxu0 %v1473
    %4268 = vmatpush2.msra.mxu0 %v1472
    %4269 = vmatprep.subr.mxu0 %v1457
    %4270 = vmatpush2.msra.mxu0 %v1456
    %4271 = vmatprep.subr.mxu0 %v1441
    %4272 = vmatpush2.msra.mxu0 %v1440
    %4273 = vmatprep.subr.mxu0 %v1425
    %4274 = vmatpush2.msra.mxu0 %v1424
    %4275 = vmatprep.subr.mxu0 %v1409
    %4276 = vmatpush2.msra.mxu0 %v1408
    %4277 = vmatprep.mubr.f32.mxu0 %v2696
    %4278 = vmatmul.mubr.f32.gmra.mxu0 %v2694
    %v4279 = vpop.f32.mrf.mxu0
    %v4280 = vadd.f32 %v4209, %v4279
    %v4281 = vpop.f32.mrf.mxu0
    %v4282 = vadd.f32 %v4211, %v4281
    %4283 = vdwg.mxu0
    %4284 = vmatprep.subr.mxu0 %v1905
    %4285 = vmatpush1.msra.mxu0 %v1904
    %4286 = vmatprep.subr.mxu0 %v1889
    %4287 = vmatpush1.msra.mxu0 %v1888
    %4288 = vmatprep.subr.mxu0 %v1873
    %4289 = vmatpush1.msra.mxu0 %v1872
    %4290 = vmatprep.subr.mxu0 %v1857
    %4291 = vmatpush1.msra.mxu0 %v1856
    %4292 = vmatprep.subr.mxu0 %v1841
    %4293 = vmatpush1.msra.mxu0 %v1840
    %4294 = vmatprep.subr.mxu0 %v1825
    %4295 = vmatpush1.msra.mxu0 %v1824
    %4296 = vmatprep.subr.mxu0 %v1809
    %4297 = vmatpush1.msra.mxu0 %v1808
    %4298 = vmatprep.subr.mxu0 %v1793
    %4299 = vmatpush1.msra.mxu0 %v1792
    %4300 = vmatprep.subr.mxu0 %v1777
    %4301 = vmatpush1.msra.mxu0 %v1776
    %4302 = vmatprep.subr.mxu0 %v1761
    %4303 = vmatpush1.msra.mxu0 %v1760
    %4304 = vmatprep.subr.mxu0 %v1745
    %4305 = vmatpush1.msra.mxu0 %v1744
    %4306 = vmatprep.subr.mxu0 %v1729
    %4307 = vmatpush1.msra.mxu0 %v1728
    %4308 = vmatprep.subr.mxu0 %v1713
    %4309 = vmatpush1.msra.mxu0 %v1712
    %4310 = vmatprep.subr.mxu0 %v1697
    %4311 = vmatpush1.msra.mxu0 %v1696
    %4312 = vmatprep.subr.mxu0 %v1681
    %4313 = vmatpush1.msra.mxu0 %v1680
    %4314 = vmatprep.subr.mxu0 %v1665
    %4315 = vmatpush1.msra.mxu0 %v1664
    %4316 = vmatprep.subr.mxu0 %v2161
    %4317 = vmatpush2.msra.mxu0 %v2160
    %4318 = vmatprep.subr.mxu0 %v2145
    %4319 = vmatpush2.msra.mxu0 %v2144
    %4320 = vmatprep.subr.mxu0 %v2129
    %4321 = vmatpush2.msra.mxu0 %v2128
    %4322 = vmatprep.subr.mxu0 %v2113
    %4323 = vmatpush2.msra.mxu0 %v2112
    %4324 = vmatprep.subr.mxu0 %v2097
    %4325 = vmatpush2.msra.mxu0 %v2096
    %4326 = vmatprep.subr.mxu0 %v2081
    %4327 = vmatpush2.msra.mxu0 %v2080
    %4328 = vmatprep.subr.mxu0 %v2065
    %4329 = vmatpush2.msra.mxu0 %v2064
    %4330 = vmatprep.subr.mxu0 %v2049
    %4331 = vmatpush2.msra.mxu0 %v2048
    %4332 = vmatprep.subr.mxu0 %v2033
    %4333 = vmatpush2.msra.mxu0 %v2032
    %4334 = vmatprep.subr.mxu0 %v2017
    %4335 = vmatpush2.msra.mxu0 %v2016
    %4336 = vmatprep.subr.mxu0 %v2001
    %4337 = vmatpush2.msra.mxu0 %v2000
    %4338 = vmatprep.subr.mxu0 %v1985
    %4339 = vmatpush2.msra.mxu0 %v1984
    %4340 = vmatprep.subr.mxu0 %v1969
    %4341 = vmatpush2.msra.mxu0 %v1968
    %4342 = vmatprep.subr.mxu0 %v1953
    %4343 = vmatpush2.msra.mxu0 %v1952
    %4344 = vmatprep.subr.mxu0 %v1937
    %4345 = vmatpush2.msra.mxu0 %v1936
    %4346 = vmatprep.subr.mxu0 %v1921
    %4347 = vmatpush2.msra.mxu0 %v1920
    %4348 = vmatprep.mubr.f32.mxu0 %v2712
    %4349 = vmatmul.mubr.f32.gmra.mxu0 %v2704
    %v4350 = vpop.f32.mrf.mxu0
    %v4351 = vadd.f32 %v4280, %v4350
    %v4352 = vpop.f32.mrf.mxu0
    %v4353 = vadd.f32 %v4282, %v4352
    %4354 = vdwg.mxu0
    %4355 = vmatprep.subr.mxu0 %v2417
    %4356 = vmatpush1.msra.mxu0 %v2416
    %4357 = vmatprep.subr.mxu0 %v2401
    %4358 = vmatpush1.msra.mxu0 %v2400
    %4359 = vmatprep.subr.mxu0 %v2385
    %4360 = vmatpush1.msra.mxu0 %v2384
    %4361 = vmatprep.subr.mxu0 %v2369
    %4362 = vmatpush1.msra.mxu0 %v2368
    %4363 = vmatprep.subr.mxu0 %v2353
    %4364 = vmatpush1.msra.mxu0 %v2352
    %4365 = vmatprep.subr.mxu0 %v2337
    %4366 = vmatpush1.msra.mxu0 %v2336
    %4367 = vmatprep.subr.mxu0 %v2321
    %4368 = vmatpush1.msra.mxu0 %v2320
    %4369 = vmatprep.subr.mxu0 %v2305
    %4370 = vmatpush1.msra.mxu0 %v2304
    %4371 = vmatprep.subr.mxu0 %v2289
    %4372 = vmatpush1.msra.mxu0 %v2288
    %4373 = vmatprep.subr.mxu0 %v2273
    %4374 = vmatpush1.msra.mxu0 %v2272
    %4375 = vmatprep.subr.mxu0 %v2257
    %4376 = vmatpush1.msra.mxu0 %v2256
    %4377 = vmatprep.subr.mxu0 %v2241
    %4378 = vmatpush1.msra.mxu0 %v2240
    %4379 = vmatprep.subr.mxu0 %v2225
    %4380 = vmatpush1.msra.mxu0 %v2224
    %4381 = vmatprep.subr.mxu0 %v2209
    %4382 = vmatpush1.msra.mxu0 %v2208
    %4383 = vmatprep.subr.mxu0 %v2193
    %4384 = vmatpush1.msra.mxu0 %v2192
    %4385 = vmatprep.subr.mxu0 %v2177
    %4386 = vmatpush1.msra.mxu0 %v2176
    %4387 = vmatprep.subr.mxu0 %v2673
    %4388 = vmatpush2.msra.mxu0 %v2672
    %4389 = vmatprep.subr.mxu0 %v2657
    %4390 = vmatpush2.msra.mxu0 %v2656
    %4391 = vmatprep.subr.mxu0 %v2641
    %4392 = vmatpush2.msra.mxu0 %v2640
    %4393 = vmatprep.subr.mxu0 %v2625
    %4394 = vmatpush2.msra.mxu0 %v2624
    %4395 = vmatprep.subr.mxu0 %v2609
    %4396 = vmatpush2.msra.mxu0 %v2608
    %4397 = vmatprep.subr.mxu0 %v2593
    %4398 = vmatpush2.msra.mxu0 %v2592
    %4399 = vmatprep.subr.mxu0 %v2577
    %4400 = vmatpush2.msra.mxu0 %v2576
    %4401 = vmatprep.subr.mxu0 %v2561
    %4402 = vmatpush2.msra.mxu0 %v2560
    %4403 = vmatprep.subr.mxu0 %v2545
    %4404 = vmatpush2.msra.mxu0 %v2544
    %4405 = vmatprep.subr.mxu0 %v2529
    %4406 = vmatpush2.msra.mxu0 %v2528
    %4407 = vmatprep.subr.mxu0 %v2513
    %4408 = vmatpush2.msra.mxu0 %v2512
    %4409 = vmatprep.subr.mxu0 %v2497
    %4410 = vmatpush2.msra.mxu0 %v2496
    %4411 = vmatprep.subr.mxu0 %v2481
    %4412 = vmatpush2.msra.mxu0 %v2480
    %4413 = vmatprep.subr.mxu0 %v2465
    %4414 = vmatpush2.msra.mxu0 %v2464
    %4415 = vmatprep.subr.mxu0 %v2449
    %4416 = vmatpush2.msra.mxu0 %v2448
    %4417 = vmatprep.subr.mxu0 %v2433
    %4418 = vmatpush2.msra.mxu0 %v2432
    %4419 = vmatprep.mubr.f32.mxu0 %v2713
    %4420 = vmatmul.mubr.f32.gmra.mxu0 %v2711
    %v4421 = vpop.f32.mrf.mxu0
    %v4422 = vadd.f32 %v4351, %v4421
    %v4423 = vpop.f32.mrf.mxu0
    %v4424 = vadd.f32 %v4353, %v4423
    %4425 = vdwg.mxu0
    %4426 = vmatprep.subr.mxu0 %v883
    %4427 = vmatpush1.msra.mxu0 %v882
    %4428 = vmatprep.subr.mxu0 %v867
    %4429 = vmatpush1.msra.mxu0 %v866
    %4430 = vmatprep.subr.mxu0 %v851
    %4431 = vmatpush1.msra.mxu0 %v850
    %4432 = vmatprep.subr.mxu0 %v835
    %4433 = vmatpush1.msra.mxu0 %v834
    %4434 = vmatprep.subr.mxu0 %v819
    %4435 = vmatpush1.msra.mxu0 %v818
    %4436 = vmatprep.subr.mxu0 %v803
    %4437 = vmatpush1.msra.mxu0 %v802
    %4438 = vmatprep.subr.mxu0 %v787
    %4439 = vmatpush1.msra.mxu0 %v786
    %4440 = vmatprep.subr.mxu0 %v771
    %4441 = vmatpush1.msra.mxu0 %v770
    %4442 = vmatprep.subr.mxu0 %v755
    %4443 = vmatpush1.msra.mxu0 %v754
    %4444 = vmatprep.subr.mxu0 %v739
    %4445 = vmatpush1.msra.mxu0 %v738
    %4446 = vmatprep.subr.mxu0 %v723
    %4447 = vmatpush1.msra.mxu0 %v722
    %4448 = vmatprep.subr.mxu0 %v707
    %4449 = vmatpush1.msra.mxu0 %v706
    %4450 = vmatprep.subr.mxu0 %v691
    %4451 = vmatpush1.msra.mxu0 %v690
    %4452 = vmatprep.subr.mxu0 %v675
    %4453 = vmatpush1.msra.mxu0 %v674
    %4454 = vmatprep.subr.mxu0 %v659
    %4455 = vmatpush1.msra.mxu0 %v658
    %4456 = vmatprep.subr.mxu0 %v643
    %4457 = vmatpush1.msra.mxu0 %v642
    %4458 = vmatprep.subr.mxu0 %v1139
    %4459 = vmatpush2.msra.mxu0 %v1138
    %4460 = vmatprep.subr.mxu0 %v1123
    %4461 = vmatpush2.msra.mxu0 %v1122
    %4462 = vmatprep.subr.mxu0 %v1107
    %4463 = vmatpush2.msra.mxu0 %v1106
    %4464 = vmatprep.subr.mxu0 %v1091
    %4465 = vmatpush2.msra.mxu0 %v1090
    %4466 = vmatprep.subr.mxu0 %v1075
    %4467 = vmatpush2.msra.mxu0 %v1074
    %4468 = vmatprep.subr.mxu0 %v1059
    %4469 = vmatpush2.msra.mxu0 %v1058
    %4470 = vmatprep.subr.mxu0 %v1043
    %4471 = vmatpush2.msra.mxu0 %v1042
    %4472 = vmatprep.subr.mxu0 %v1027
    %4473 = vmatpush2.msra.mxu0 %v1026
    %4474 = vmatprep.subr.mxu0 %v1011
    %4475 = vmatpush2.msra.mxu0 %v1010
    %4476 = vmatprep.subr.mxu0 %v995
    %4477 = vmatpush2.msra.mxu0 %v994
    %4478 = vmatprep.subr.mxu0 %v979
    %4479 = vmatpush2.msra.mxu0 %v978
    %4480 = vmatprep.subr.mxu0 %v963
    %4481 = vmatpush2.msra.mxu0 %v962
    %4482 = vmatprep.subr.mxu0 %v947
    %4483 = vmatpush2.msra.mxu0 %v946
    %4484 = vmatprep.subr.mxu0 %v931
    %4485 = vmatpush2.msra.mxu0 %v930
    %4486 = vmatprep.subr.mxu0 %v915
    %4487 = vmatpush2.msra.mxu0 %v914
    %4488 = vmatprep.subr.mxu0 %v899
    %4489 = vmatpush2.msra.mxu0 %v898
    %4490 = vmatprep.mubr.f32.mxu0 %v2695
    %4491 = vmatmul.mubr.f32.gmra.mxu0 %v2687
    %v4492 = vpop.f32.mrf.mxu0
    %v4493 = vadd.f32 0.0, %v4492
    %v4494 = vpop.f32.mrf.mxu0
    %v4495 = vadd.f32 0.0, %v4494
    %4496 = vdwg.mxu0
    %4497 = vmatprep.subr.mxu0 %v1395
    %4498 = vmatpush1.msra.mxu0 %v1394
    %4499 = vmatprep.subr.mxu0 %v1379
    %4500 = vmatpush1.msra.mxu0 %v1378
    %4501 = vmatprep.subr.mxu0 %v1363
    %4502 = vmatpush1.msra.mxu0 %v1362
    %4503 = vmatprep.subr.mxu0 %v1347
    %4504 = vmatpush1.msra.mxu0 %v1346
    %4505 = vmatprep.subr.mxu0 %v1331
    %4506 = vmatpush1.msra.mxu0 %v1330
    %4507 = vmatprep.subr.mxu0 %v1315
    %4508 = vmatpush1.msra.mxu0 %v1314
    %4509 = vmatprep.subr.mxu0 %v1299
    %4510 = vmatpush1.msra.mxu0 %v1298
    %4511 = vmatprep.subr.mxu0 %v1283
    %4512 = vmatpush1.msra.mxu0 %v1282
    %4513 = vmatprep.subr.mxu0 %v1267
    %4514 = vmatpush1.msra.mxu0 %v1266
    %4515 = vmatprep.subr.mxu0 %v1251
    %4516 = vmatpush1.msra.mxu0 %v1250
    %4517 = vmatprep.subr.mxu0 %v1235
    %4518 = vmatpush1.msra.mxu0 %v1234
    %4519 = vmatprep.subr.mxu0 %v1219
    %4520 = vmatpush1.msra.mxu0 %v1218
    %4521 = vmatprep.subr.mxu0 %v1203
    %4522 = vmatpush1.msra.mxu0 %v1202
    %4523 = vmatprep.subr.mxu0 %v1187
    %4524 = vmatpush1.msra.mxu0 %v1186
    %4525 = vmatprep.subr.mxu0 %v1171
    %4526 = vmatpush1.msra.mxu0 %v1170
    %4527 = vmatprep.subr.mxu0 %v1155
    %4528 = vmatpush1.msra.mxu0 %v1154
    %4529 = vmatprep.subr.mxu0 %v1651
    %4530 = vmatpush2.msra.mxu0 %v1650
    %4531 = vmatprep.subr.mxu0 %v1635
    %4532 = vmatpush2.msra.mxu0 %v1634
    %4533 = vmatprep.subr.mxu0 %v1619
    %4534 = vmatpush2.msra.mxu0 %v1618
    %4535 = vmatprep.subr.mxu0 %v1603
    %4536 = vmatpush2.msra.mxu0 %v1602
    %4537 = vmatprep.subr.mxu0 %v1587
    %4538 = vmatpush2.msra.mxu0 %v1586
    %4539 = vmatprep.subr.mxu0 %v1571
    %4540 = vmatpush2.msra.mxu0 %v1570
    %4541 = vmatprep.subr.mxu0 %v1555
    %4542 = vmatpush2.msra.mxu0 %v1554
    %4543 = vmatprep.subr.mxu0 %v1539
    %4544 = vmatpush2.msra.mxu0 %v1538
    %4545 = vmatprep.subr.mxu0 %v1523
    %4546 = vmatpush2.msra.mxu0 %v1522
    %4547 = vmatprep.subr.mxu0 %v1507
    %4548 = vmatpush2.msra.mxu0 %v1506
    %4549 = vmatprep.subr.mxu0 %v1491
    %4550 = vmatpush2.msra.mxu0 %v1490
    %4551 = vmatprep.subr.mxu0 %v1475
    %4552 = vmatpush2.msra.mxu0 %v1474
    %4553 = vmatprep.subr.mxu0 %v1459
    %4554 = vmatpush2.msra.mxu0 %v1458
    %4555 = vmatprep.subr.mxu0 %v1443
    %4556 = vmatpush2.msra.mxu0 %v1442
    %4557 = vmatprep.subr.mxu0 %v1427
    %4558 = vmatpush2.msra.mxu0 %v1426
    %4559 = vmatprep.subr.mxu0 %v1411
    %4560 = vmatpush2.msra.mxu0 %v1410
    %4561 = vmatprep.mubr.f32.mxu0 %v2696
    %4562 = vmatmul.mubr.f32.gmra.mxu0 %v2694
    %v4563 = vpop.f32.mrf.mxu0
    %v4564 = vadd.f32 %v4493, %v4563
    %v4565 = vpop.f32.mrf.mxu0
    %v4566 = vadd.f32 %v4495, %v4565
    %4567 = vdwg.mxu0
    %4568 = vmatprep.subr.mxu0 %v1907
    %4569 = vmatpush1.msra.mxu0 %v1906
    %4570 = vmatprep.subr.mxu0 %v1891
    %4571 = vmatpush1.msra.mxu0 %v1890
    %4572 = vmatprep.subr.mxu0 %v1875
    %4573 = vmatpush1.msra.mxu0 %v1874
    %4574 = vmatprep.subr.mxu0 %v1859
    %4575 = vmatpush1.msra.mxu0 %v1858
    %4576 = vmatprep.subr.mxu0 %v1843
    %4577 = vmatpush1.msra.mxu0 %v1842
    %4578 = vmatprep.subr.mxu0 %v1827
    %4579 = vmatpush1.msra.mxu0 %v1826
    %4580 = vmatprep.subr.mxu0 %v1811
    %4581 = vmatpush1.msra.mxu0 %v1810
    %4582 = vmatprep.subr.mxu0 %v1795
    %4583 = vmatpush1.msra.mxu0 %v1794
    %4584 = vmatprep.subr.mxu0 %v1779
    %4585 = vmatpush1.msra.mxu0 %v1778
    %4586 = vmatprep.subr.mxu0 %v1763
    %4587 = vmatpush1.msra.mxu0 %v1762
    %4588 = vmatprep.subr.mxu0 %v1747
    %4589 = vmatpush1.msra.mxu0 %v1746
    %4590 = vmatprep.subr.mxu0 %v1731
    %4591 = vmatpush1.msra.mxu0 %v1730
    %4592 = vmatprep.subr.mxu0 %v1715
    %4593 = vmatpush1.msra.mxu0 %v1714
    %4594 = vmatprep.subr.mxu0 %v1699
    %4595 = vmatpush1.msra.mxu0 %v1698
    %4596 = vmatprep.subr.mxu0 %v1683
    %4597 = vmatpush1.msra.mxu0 %v1682
    %4598 = vmatprep.subr.mxu0 %v1667
    %4599 = vmatpush1.msra.mxu0 %v1666
    %4600 = vmatprep.subr.mxu0 %v2163
    %4601 = vmatpush2.msra.mxu0 %v2162
    %4602 = vmatprep.subr.mxu0 %v2147
    %4603 = vmatpush2.msra.mxu0 %v2146
    %4604 = vmatprep.subr.mxu0 %v2131
    %4605 = vmatpush2.msra.mxu0 %v2130
    %4606 = vmatprep.subr.mxu0 %v2115
    %4607 = vmatpush2.msra.mxu0 %v2114
    %4608 = vmatprep.subr.mxu0 %v2099
    %4609 = vmatpush2.msra.mxu0 %v2098
    %4610 = vmatprep.subr.mxu0 %v2083
    %4611 = vmatpush2.msra.mxu0 %v2082
    %4612 = vmatprep.subr.mxu0 %v2067
    %4613 = vmatpush2.msra.mxu0 %v2066
    %4614 = vmatprep.subr.mxu0 %v2051
    %4615 = vmatpush2.msra.mxu0 %v2050
    %4616 = vmatprep.subr.mxu0 %v2035
    %4617 = vmatpush2.msra.mxu0 %v2034
    %4618 = vmatprep.subr.mxu0 %v2019
    %4619 = vmatpush2.msra.mxu0 %v2018
    %4620 = vmatprep.subr.mxu0 %v2003
    %4621 = vmatpush2.msra.mxu0 %v2002
    %4622 = vmatprep.subr.mxu0 %v1987
    %4623 = vmatpush2.msra.mxu0 %v1986
    %4624 = vmatprep.subr.mxu0 %v1971
    %4625 = vmatpush2.msra.mxu0 %v1970
    %4626 = vmatprep.subr.mxu0 %v1955
    %4627 = vmatpush2.msra.mxu0 %v1954
    %4628 = vmatprep.subr.mxu0 %v1939
    %4629 = vmatpush2.msra.mxu0 %v1938
    %4630 = vmatprep.subr.mxu0 %v1923
    %4631 = vmatpush2.msra.mxu0 %v1922
    %4632 = vmatprep.mubr.f32.mxu0 %v2712
    %4633 = vmatmul.mubr.f32.gmra.mxu0 %v2704
    %v4634 = vpop.f32.mrf.mxu0
    %v4635 = vadd.f32 %v4564, %v4634
    %v4636 = vpop.f32.mrf.mxu0
    %v4637 = vadd.f32 %v4566, %v4636
    %4638 = vdwg.mxu0
    %4639 = vmatprep.subr.mxu0 %v2419
    %4640 = vmatpush1.msra.mxu0 %v2418
    %4641 = vmatprep.subr.mxu0 %v2403
    %4642 = vmatpush1.msra.mxu0 %v2402
    %4643 = vmatprep.subr.mxu0 %v2387
    %4644 = vmatpush1.msra.mxu0 %v2386
    %4645 = vmatprep.subr.mxu0 %v2371
    %4646 = vmatpush1.msra.mxu0 %v2370
    %4647 = vmatprep.subr.mxu0 %v2355
    %4648 = vmatpush1.msra.mxu0 %v2354
    %4649 = vmatprep.subr.mxu0 %v2339
    %4650 = vmatpush1.msra.mxu0 %v2338
    %4651 = vmatprep.subr.mxu0 %v2323
    %4652 = vmatpush1.msra.mxu0 %v2322
    %4653 = vmatprep.subr.mxu0 %v2307
    %4654 = vmatpush1.msra.mxu0 %v2306
    %4655 = vmatprep.subr.mxu0 %v2291
    %4656 = vmatpush1.msra.mxu0 %v2290
    %4657 = vmatprep.subr.mxu0 %v2275
    %4658 = vmatpush1.msra.mxu0 %v2274
    %4659 = vmatprep.subr.mxu0 %v2259
    %4660 = vmatpush1.msra.mxu0 %v2258
    %4661 = vmatprep.subr.mxu0 %v2243
    %4662 = vmatpush1.msra.mxu0 %v2242
    %4663 = vmatprep.subr.mxu0 %v2227
    %4664 = vmatpush1.msra.mxu0 %v2226
    %4665 = vmatprep.subr.mxu0 %v2211
    %4666 = vmatpush1.msra.mxu0 %v2210
    %4667 = vmatprep.subr.mxu0 %v2195
    %4668 = vmatpush1.msra.mxu0 %v2194
    %4669 = vmatprep.subr.mxu0 %v2179
    %4670 = vmatpush1.msra.mxu0 %v2178
    %4671 = vmatprep.subr.mxu0 %v2675
    %4672 = vmatpush2.msra.mxu0 %v2674
    %4673 = vmatprep.subr.mxu0 %v2659
    %4674 = vmatpush2.msra.mxu0 %v2658
    %4675 = vmatprep.subr.mxu0 %v2643
    %4676 = vmatpush2.msra.mxu0 %v2642
    %4677 = vmatprep.subr.mxu0 %v2627
    %4678 = vmatpush2.msra.mxu0 %v2626
    %4679 = vmatprep.subr.mxu0 %v2611
    %4680 = vmatpush2.msra.mxu0 %v2610
    %4681 = vmatprep.subr.mxu0 %v2595
    %4682 = vmatpush2.msra.mxu0 %v2594
    %4683 = vmatprep.subr.mxu0 %v2579
    %4684 = vmatpush2.msra.mxu0 %v2578
    %4685 = vmatprep.subr.mxu0 %v2563
    %4686 = vmatpush2.msra.mxu0 %v2562
    %4687 = vmatprep.subr.mxu0 %v2547
    %4688 = vmatpush2.msra.mxu0 %v2546
    %4689 = vmatprep.subr.mxu0 %v2531
    %4690 = vmatpush2.msra.mxu0 %v2530
    %4691 = vmatprep.subr.mxu0 %v2515
    %4692 = vmatpush2.msra.mxu0 %v2514
    %4693 = vmatprep.subr.mxu0 %v2499
    %4694 = vmatpush2.msra.mxu0 %v2498
    %4695 = vmatprep.subr.mxu0 %v2483
    %4696 = vmatpush2.msra.mxu0 %v2482
    %4697 = vmatprep.subr.mxu0 %v2467
    %4698 = vmatpush2.msra.mxu0 %v2466
    %4699 = vmatprep.subr.mxu0 %v2451
    %4700 = vmatpush2.msra.mxu0 %v2450
    %4701 = vmatprep.subr.mxu0 %v2435
    %4702 = vmatpush2.msra.mxu0 %v2434
    %4703 = vmatprep.mubr.f32.mxu0 %v2713
    %4704 = vmatmul.mubr.f32.gmra.mxu0 %v2711
    %v4705 = vpop.f32.mrf.mxu0
    %v4706 = vadd.f32 %v4635, %v4705
    %v4707 = vpop.f32.mrf.mxu0
    %v4708 = vadd.f32 %v4637, %v4707
    %4709 = vdwg.mxu0
    %4710 = vmatprep.subr.mxu0 %v885
    %4711 = vmatpush1.msra.mxu0 %v884
    %4712 = vmatprep.subr.mxu0 %v869
    %4713 = vmatpush1.msra.mxu0 %v868
    %4714 = vmatprep.subr.mxu0 %v853
    %4715 = vmatpush1.msra.mxu0 %v852
    %4716 = vmatprep.subr.mxu0 %v837
    %4717 = vmatpush1.msra.mxu0 %v836
    %4718 = vmatprep.subr.mxu0 %v821
    %4719 = vmatpush1.msra.mxu0 %v820
    %4720 = vmatprep.subr.mxu0 %v805
    %4721 = vmatpush1.msra.mxu0 %v804
    %4722 = vmatprep.subr.mxu0 %v789
    %4723 = vmatpush1.msra.mxu0 %v788
    %4724 = vmatprep.subr.mxu0 %v773
    %4725 = vmatpush1.msra.mxu0 %v772
    %4726 = vmatprep.subr.mxu0 %v757
    %4727 = vmatpush1.msra.mxu0 %v756
    %4728 = vmatprep.subr.mxu0 %v741
    %4729 = vmatpush1.msra.mxu0 %v740
    %4730 = vmatprep.subr.mxu0 %v725
    %4731 = vmatpush1.msra.mxu0 %v724
    %4732 = vmatprep.subr.mxu0 %v709
    %4733 = vmatpush1.msra.mxu0 %v708
    %4734 = vmatprep.subr.mxu0 %v693
    %4735 = vmatpush1.msra.mxu0 %v692
    %4736 = vmatprep.subr.mxu0 %v677
    %4737 = vmatpush1.msra.mxu0 %v676
    %4738 = vmatprep.subr.mxu0 %v661
    %4739 = vmatpush1.msra.mxu0 %v660
    %4740 = vmatprep.subr.mxu0 %v645
    %4741 = vmatpush1.msra.mxu0 %v644
    %4742 = vmatprep.subr.mxu0 %v1141
    %4743 = vmatpush2.msra.mxu0 %v1140
    %4744 = vmatprep.subr.mxu0 %v1125
    %4745 = vmatpush2.msra.mxu0 %v1124
    %4746 = vmatprep.subr.mxu0 %v1109
    %4747 = vmatpush2.msra.mxu0 %v1108
    %4748 = vmatprep.subr.mxu0 %v1093
    %4749 = vmatpush2.msra.mxu0 %v1092
    %4750 = vmatprep.subr.mxu0 %v1077
    %4751 = vmatpush2.msra.mxu0 %v1076
    %4752 = vmatprep.subr.mxu0 %v1061
    %4753 = vmatpush2.msra.mxu0 %v1060
    %4754 = vmatprep.subr.mxu0 %v1045
    %4755 = vmatpush2.msra.mxu0 %v1044
    %4756 = vmatprep.subr.mxu0 %v1029
    %4757 = vmatpush2.msra.mxu0 %v1028
    %4758 = vmatprep.subr.mxu0 %v1013
    %4759 = vmatpush2.msra.mxu0 %v1012
    %4760 = vmatprep.subr.mxu0 %v997
    %4761 = vmatpush2.msra.mxu0 %v996
    %4762 = vmatprep.subr.mxu0 %v981
    %4763 = vmatpush2.msra.mxu0 %v980
    %4764 = vmatprep.subr.mxu0 %v965
    %4765 = vmatpush2.msra.mxu0 %v964
    %4766 = vmatprep.subr.mxu0 %v949
    %4767 = vmatpush2.msra.mxu0 %v948
    %4768 = vmatprep.subr.mxu0 %v933
    %4769 = vmatpush2.msra.mxu0 %v932
    %4770 = vmatprep.subr.mxu0 %v917
    %4771 = vmatpush2.msra.mxu0 %v916
    %4772 = vmatprep.subr.mxu0 %v901
    %4773 = vmatpush2.msra.mxu0 %v900
    %4774 = vmatprep.mubr.f32.mxu0 %v2695
    %4775 = vmatmul.mubr.f32.gmra.mxu0 %v2687
    %v4776 = vpop.f32.mrf.mxu0
    %v4777 = vadd.f32 0.0, %v4776
    %v4778 = vpop.f32.mrf.mxu0
    %v4779 = vadd.f32 0.0, %v4778
    %4780 = vdwg.mxu0
    %4781 = vmatprep.subr.mxu0 %v1397
    %4782 = vmatpush1.msra.mxu0 %v1396
    %4783 = vmatprep.subr.mxu0 %v1381
    %4784 = vmatpush1.msra.mxu0 %v1380
    %4785 = vmatprep.subr.mxu0 %v1365
    %4786 = vmatpush1.msra.mxu0 %v1364
    %4787 = vmatprep.subr.mxu0 %v1349
    %4788 = vmatpush1.msra.mxu0 %v1348
    %4789 = vmatprep.subr.mxu0 %v1333
    %4790 = vmatpush1.msra.mxu0 %v1332
    %4791 = vmatprep.subr.mxu0 %v1317
    %4792 = vmatpush1.msra.mxu0 %v1316
    %4793 = vmatprep.subr.mxu0 %v1301
    %4794 = vmatpush1.msra.mxu0 %v1300
    %4795 = vmatprep.subr.mxu0 %v1285
    %4796 = vmatpush1.msra.mxu0 %v1284
    %4797 = vmatprep.subr.mxu0 %v1269
    %4798 = vmatpush1.msra.mxu0 %v1268
    %4799 = vmatprep.subr.mxu0 %v1253
    %4800 = vmatpush1.msra.mxu0 %v1252
    %4801 = vmatprep.subr.mxu0 %v1237
    %4802 = vmatpush1.msra.mxu0 %v1236
    %4803 = vmatprep.subr.mxu0 %v1221
    %4804 = vmatpush1.msra.mxu0 %v1220
    %4805 = vmatprep.subr.mxu0 %v1205
    %4806 = vmatpush1.msra.mxu0 %v1204
    %4807 = vmatprep.subr.mxu0 %v1189
    %4808 = vmatpush1.msra.mxu0 %v1188
    %4809 = vmatprep.subr.mxu0 %v1173
    %4810 = vmatpush1.msra.mxu0 %v1172
    %4811 = vmatprep.subr.mxu0 %v1157
    %4812 = vmatpush1.msra.mxu0 %v1156
    %4813 = vmatprep.subr.mxu0 %v1653
    %4814 = vmatpush2.msra.mxu0 %v1652
    %4815 = vmatprep.subr.mxu0 %v1637
    %4816 = vmatpush2.msra.mxu0 %v1636
    %4817 = vmatprep.subr.mxu0 %v1621
    %4818 = vmatpush2.msra.mxu0 %v1620
    %4819 = vmatprep.subr.mxu0 %v1605
    %4820 = vmatpush2.msra.mxu0 %v1604
    %4821 = vmatprep.subr.mxu0 %v1589
    %4822 = vmatpush2.msra.mxu0 %v1588
    %4823 = vmatprep.subr.mxu0 %v1573
    %4824 = vmatpush2.msra.mxu0 %v1572
    %4825 = vmatprep.subr.mxu0 %v1557
    %4826 = vmatpush2.msra.mxu0 %v1556
    %4827 = vmatprep.subr.mxu0 %v1541
    %4828 = vmatpush2.msra.mxu0 %v1540
    %4829 = vmatprep.subr.mxu0 %v1525
    %4830 = vmatpush2.msra.mxu0 %v1524
    %4831 = vmatprep.subr.mxu0 %v1509
    %4832 = vmatpush2.msra.mxu0 %v1508
    %4833 = vmatprep.subr.mxu0 %v1493
    %4834 = vmatpush2.msra.mxu0 %v1492
    %4835 = vmatprep.subr.mxu0 %v1477
    %4836 = vmatpush2.msra.mxu0 %v1476
    %4837 = vmatprep.subr.mxu0 %v1461
    %4838 = vmatpush2.msra.mxu0 %v1460
    %4839 = vmatprep.subr.mxu0 %v1445
    %4840 = vmatpush2.msra.mxu0 %v1444
    %4841 = vmatprep.subr.mxu0 %v1429
    %4842 = vmatpush2.msra.mxu0 %v1428
    %4843 = vmatprep.subr.mxu0 %v1413
    %4844 = vmatpush2.msra.mxu0 %v1412
    %4845 = vmatprep.mubr.f32.mxu0 %v2696
    %4846 = vmatmul.mubr.f32.gmra.mxu0 %v2694
    %v4847 = vpop.f32.mrf.mxu0
    %v4848 = vadd.f32 %v4777, %v4847
    %v4849 = vpop.f32.mrf.mxu0
    %v4850 = vadd.f32 %v4779, %v4849
    %4851 = vdwg.mxu0
    %4852 = vmatprep.subr.mxu0 %v1909
    %4853 = vmatpush1.msra.mxu0 %v1908
    %4854 = vmatprep.subr.mxu0 %v1893
    %4855 = vmatpush1.msra.mxu0 %v1892
    %4856 = vmatprep.subr.mxu0 %v1877
    %4857 = vmatpush1.msra.mxu0 %v1876
    %4858 = vmatprep.subr.mxu0 %v1861
    %4859 = vmatpush1.msra.mxu0 %v1860
    %4860 = vmatprep.subr.mxu0 %v1845
    %4861 = vmatpush1.msra.mxu0 %v1844
    %4862 = vmatprep.subr.mxu0 %v1829
    %4863 = vmatpush1.msra.mxu0 %v1828
    %4864 = vmatprep.subr.mxu0 %v1813
    %4865 = vmatpush1.msra.mxu0 %v1812
    %4866 = vmatprep.subr.mxu0 %v1797
    %4867 = vmatpush1.msra.mxu0 %v1796
    %4868 = vmatprep.subr.mxu0 %v1781
    %4869 = vmatpush1.msra.mxu0 %v1780
    %4870 = vmatprep.subr.mxu0 %v1765
    %4871 = vmatpush1.msra.mxu0 %v1764
    %4872 = vmatprep.subr.mxu0 %v1749
    %4873 = vmatpush1.msra.mxu0 %v1748
    %4874 = vmatprep.subr.mxu0 %v1733
    %4875 = vmatpush1.msra.mxu0 %v1732
    %4876 = vmatprep.subr.mxu0 %v1717
    %4877 = vmatpush1.msra.mxu0 %v1716
    %4878 = vmatprep.subr.mxu0 %v1701
    %4879 = vmatpush1.msra.mxu0 %v1700
    %4880 = vmatprep.subr.mxu0 %v1685
    %4881 = vmatpush1.msra.mxu0 %v1684
    %4882 = vmatprep.subr.mxu0 %v1669
    %4883 = vmatpush1.msra.mxu0 %v1668
    %4884 = vmatprep.subr.mxu0 %v2165
    %4885 = vmatpush2.msra.mxu0 %v2164
    %4886 = vmatprep.subr.mxu0 %v2149
    %4887 = vmatpush2.msra.mxu0 %v2148
    %4888 = vmatprep.subr.mxu0 %v2133
    %4889 = vmatpush2.msra.mxu0 %v2132
    %4890 = vmatprep.subr.mxu0 %v2117
    %4891 = vmatpush2.msra.mxu0 %v2116
    %4892 = vmatprep.subr.mxu0 %v2101
    %4893 = vmatpush2.msra.mxu0 %v2100
    %4894 = vmatprep.subr.mxu0 %v2085
    %4895 = vmatpush2.msra.mxu0 %v2084
    %4896 = vmatprep.subr.mxu0 %v2069
    %4897 = vmatpush2.msra.mxu0 %v2068
    %4898 = vmatprep.subr.mxu0 %v2053
    %4899 = vmatpush2.msra.mxu0 %v2052
    %4900 = vmatprep.subr.mxu0 %v2037
    %4901 = vmatpush2.msra.mxu0 %v2036
    %4902 = vmatprep.subr.mxu0 %v2021
    %4903 = vmatpush2.msra.mxu0 %v2020
    %4904 = vmatprep.subr.mxu0 %v2005
    %4905 = vmatpush2.msra.mxu0 %v2004
    %4906 = vmatprep.subr.mxu0 %v1989
    %4907 = vmatpush2.msra.mxu0 %v1988
    %4908 = vmatprep.subr.mxu0 %v1973
    %4909 = vmatpush2.msra.mxu0 %v1972
    %4910 = vmatprep.subr.mxu0 %v1957
    %4911 = vmatpush2.msra.mxu0 %v1956
    %4912 = vmatprep.subr.mxu0 %v1941
    %4913 = vmatpush2.msra.mxu0 %v1940
    %4914 = vmatprep.subr.mxu0 %v1925
    %4915 = vmatpush2.msra.mxu0 %v1924
    %4916 = vmatprep.mubr.f32.mxu0 %v2712
    %4917 = vmatmul.mubr.f32.gmra.mxu0 %v2704
    %v4918 = vpop.f32.mrf.mxu0
    %v4919 = vadd.f32 %v4848, %v4918
    %v4920 = vpop.f32.mrf.mxu0
    %v4921 = vadd.f32 %v4850, %v4920
    %4922 = vdwg.mxu0
    %4923 = vmatprep.subr.mxu0 %v2421
    %4924 = vmatpush1.msra.mxu0 %v2420
    %4925 = vmatprep.subr.mxu0 %v2405
    %4926 = vmatpush1.msra.mxu0 %v2404
    %4927 = vmatprep.subr.mxu0 %v2389
    %4928 = vmatpush1.msra.mxu0 %v2388
    %4929 = vmatprep.subr.mxu0 %v2373
    %4930 = vmatpush1.msra.mxu0 %v2372
    %4931 = vmatprep.subr.mxu0 %v2357
    %4932 = vmatpush1.msra.mxu0 %v2356
    %4933 = vmatprep.subr.mxu0 %v2341
    %4934 = vmatpush1.msra.mxu0 %v2340
    %4935 = vmatprep.subr.mxu0 %v2325
    %4936 = vmatpush1.msra.mxu0 %v2324
    %4937 = vmatprep.subr.mxu0 %v2309
    %4938 = vmatpush1.msra.mxu0 %v2308
    %4939 = vmatprep.subr.mxu0 %v2293
    %4940 = vmatpush1.msra.mxu0 %v2292
    %4941 = vmatprep.subr.mxu0 %v2277
    %4942 = vmatpush1.msra.mxu0 %v2276
    %4943 = vmatprep.subr.mxu0 %v2261
    %4944 = vmatpush1.msra.mxu0 %v2260
    %4945 = vmatprep.subr.mxu0 %v2245
    %4946 = vmatpush1.msra.mxu0 %v2244
    %4947 = vmatprep.subr.mxu0 %v2229
    %4948 = vmatpush1.msra.mxu0 %v2228
    %4949 = vmatprep.subr.mxu0 %v2213
    %4950 = vmatpush1.msra.mxu0 %v2212
    %4951 = vmatprep.subr.mxu0 %v2197
    %4952 = vmatpush1.msra.mxu0 %v2196
    %4953 = vmatprep.subr.mxu0 %v2181
    %4954 = vmatpush1.msra.mxu0 %v2180
    %4955 = vmatprep.subr.mxu0 %v2677
    %4956 = vmatpush2.msra.mxu0 %v2676
    %4957 = vmatprep.subr.mxu0 %v2661
    %4958 = vmatpush2.msra.mxu0 %v2660
    %4959 = vmatprep.subr.mxu0 %v2645
    %4960 = vmatpush2.msra.mxu0 %v2644
    %4961 = vmatprep.subr.mxu0 %v2629
    %4962 = vmatpush2.msra.mxu0 %v2628
    %4963 = vmatprep.subr.mxu0 %v2613
    %4964 = vmatpush2.msra.mxu0 %v2612
    %4965 = vmatprep.subr.mxu0 %v2597
    %4966 = vmatpush2.msra.mxu0 %v2596
    %4967 = vmatprep.subr.mxu0 %v2581
    %4968 = vmatpush2.msra.mxu0 %v2580
    %4969 = vmatprep.subr.mxu0 %v2565
    %4970 = vmatpush2.msra.mxu0 %v2564
    %4971 = vmatprep.subr.mxu0 %v2549
    %4972 = vmatpush2.msra.mxu0 %v2548
    %4973 = vmatprep.subr.mxu0 %v2533
    %4974 = vmatpush2.msra.mxu0 %v2532
    %4975 = vmatprep.subr.mxu0 %v2517
    %4976 = vmatpush2.msra.mxu0 %v2516
    %4977 = vmatprep.subr.mxu0 %v2501
    %4978 = vmatpush2.msra.mxu0 %v2500
    %4979 = vmatprep.subr.mxu0 %v2485
    %4980 = vmatpush2.msra.mxu0 %v2484
    %4981 = vmatprep.subr.mxu0 %v2469
    %4982 = vmatpush2.msra.mxu0 %v2468
    %4983 = vmatprep.subr.mxu0 %v2453
    %4984 = vmatpush2.msra.mxu0 %v2452
    %4985 = vmatprep.subr.mxu0 %v2437
    %4986 = vmatpush2.msra.mxu0 %v2436
    %4987 = vmatprep.mubr.f32.mxu0 %v2713
    %4988 = vmatmul.mubr.f32.gmra.mxu0 %v2711
    %v4989 = vpop.f32.mrf.mxu0
    %v4990 = vadd.f32 %v4919, %v4989
    %v4991 = vpop.f32.mrf.mxu0
    %v4992 = vadd.f32 %v4921, %v4991
    %4993 = vdwg.mxu0
    %v4996 = vunpack.c.l.s4 1983009808
    %v4997 = vunpack.c.0.s8 %v4996
    %v4998 = vlaneseq
    %v4999 = vshrl.u32 %v4998, 7
    %v5000 = vsub.s32 %v4997, %v4999
    %v5001 = vrot.slane %v115, %v5000
    %v5002 = vcombine.high %v5001, %v5001
    %5005 = vmatprep.subr.mxu0 %v357
    %5006 = vmatpush1.msra.mxu0 %v356
    %5007 = vmatprep.subr.mxu0 %v341
    %5008 = vmatpush1.msra.mxu0 %v340
    %5009 = vmatprep.subr.mxu0 %v325
    %5010 = vmatpush1.msra.mxu0 %v324
    %5011 = vmatprep.subr.mxu0 %v309
    %5012 = vmatpush1.msra.mxu0 %v308
    %5013 = vmatprep.subr.mxu0 %v293
    %5014 = vmatpush1.msra.mxu0 %v292
    %5015 = vmatprep.subr.mxu0 %v277
    %5016 = vmatpush1.msra.mxu0 %v276
    %5017 = vmatprep.subr.mxu0 %v261
    %5018 = vmatpush1.msra.mxu0 %v260
    %5019 = vmatprep.subr.mxu0 %v245
    %5020 = vmatpush1.msra.mxu0 %v244
    %5021 = vmatprep.subr.mxu0 %v229
    %5022 = vmatpush1.msra.mxu0 %v228
    %5023 = vmatprep.subr.mxu0 %v213
    %5024 = vmatpush1.msra.mxu0 %v212
    %5025 = vmatprep.subr.mxu0 %v197
    %5026 = vmatpush1.msra.mxu0 %v196
    %5027 = vmatprep.subr.mxu0 %v181
    %5028 = vmatpush1.msra.mxu0 %v180
    %5029 = vmatprep.subr.mxu0 %v165
    %5030 = vmatpush1.msra.mxu0 %v164
    %5031 = vmatprep.subr.mxu0 %v149
    %5032 = vmatpush1.msra.mxu0 %v148
    %5033 = vmatprep.subr.mxu0 %v133
    %5034 = vmatpush1.msra.mxu0 %v132
    %5035 = vmatprep.subr.mxu0 %v117
    %5036 = vmatpush1.msra.mxu0 %v116
    %5037 = vmatprep.subr.mxu0 %v613
    %5038 = vmatpush2.msra.mxu0 %v612
    %5039 = vmatprep.subr.mxu0 %v597
    %5040 = vmatpush2.msra.mxu0 %v596
    %5041 = vmatprep.subr.mxu0 %v581
    %5042 = vmatpush2.msra.mxu0 %v580
    %5043 = vmatprep.subr.mxu0 %v565
    %5044 = vmatpush2.msra.mxu0 %v564
    %5045 = vmatprep.subr.mxu0 %v549
    %5046 = vmatpush2.msra.mxu0 %v548
    %5047 = vmatprep.subr.mxu0 %v533
    %5048 = vmatpush2.msra.mxu0 %v532
    %5049 = vmatprep.subr.mxu0 %v517
    %5050 = vmatpush2.msra.mxu0 %v516
    %5051 = vmatprep.subr.mxu0 %v501
    %5052 = vmatpush2.msra.mxu0 %v500
    %5053 = vmatprep.subr.mxu0 %v485
    %5054 = vmatpush2.msra.mxu0 %v484
    %5055 = vmatprep.subr.mxu0 %v469
    %5056 = vmatpush2.msra.mxu0 %v468
    %5057 = vmatprep.subr.mxu0 %v453
    %5058 = vmatpush2.msra.mxu0 %v452
    %5059 = vmatprep.subr.mxu0 %v437
    %5060 = vmatpush2.msra.mxu0 %v436
    %5061 = vmatprep.subr.mxu0 %v421
    %5062 = vmatpush2.msra.mxu0 %v420
    %5063 = vmatprep.subr.mxu0 %v405
    %5064 = vmatpush2.msra.mxu0 %v404
    %5065 = vmatprep.subr.mxu0 %v389
    %5066 = vmatpush2.msra.mxu0 %v388
    %5067 = vmatprep.subr.mxu0 %v373
    %5068 = vmatpush2.msra.mxu0 %v372
    %5069 = vmatprep.mubr.f32.mxu0 %v5002
    %5070 = vmatmul.mubr.f32.gmra.mxu0 %v5001
    %v5071 = vpop.f32.mrf.mxu0
    %v5072 = vadd.f32 %v3002, %v5071
    %v5073 = vpop.f32.mrf.mxu0
    %v5074 = vadd.f32 %v3004, %v5073
    %5075 = vdwg.mxu0
    %5076 = vmatprep.subr.mxu0 %v359
    %5077 = vmatpush1.msra.mxu0 %v358
    %5078 = vmatprep.subr.mxu0 %v343
    %5079 = vmatpush1.msra.mxu0 %v342
    %5080 = vmatprep.subr.mxu0 %v327
    %5081 = vmatpush1.msra.mxu0 %v326
    %5082 = vmatprep.subr.mxu0 %v311
    %5083 = vmatpush1.msra.mxu0 %v310
    %5084 = vmatprep.subr.mxu0 %v295
    %5085 = vmatpush1.msra.mxu0 %v294
    %5086 = vmatprep.subr.mxu0 %v279
    %5087 = vmatpush1.msra.mxu0 %v278
    %5088 = vmatprep.subr.mxu0 %v263
    %5089 = vmatpush1.msra.mxu0 %v262
    %5090 = vmatprep.subr.mxu0 %v247
    %5091 = vmatpush1.msra.mxu0 %v246
    %5092 = vmatprep.subr.mxu0 %v231
    %5093 = vmatpush1.msra.mxu0 %v230
    %5094 = vmatprep.subr.mxu0 %v215
    %5095 = vmatpush1.msra.mxu0 %v214
    %5096 = vmatprep.subr.mxu0 %v199
    %5097 = vmatpush1.msra.mxu0 %v198
    %5098 = vmatprep.subr.mxu0 %v183
    %5099 = vmatpush1.msra.mxu0 %v182
    %5100 = vmatprep.subr.mxu0 %v167
    %5101 = vmatpush1.msra.mxu0 %v166
    %5102 = vmatprep.subr.mxu0 %v151
    %5103 = vmatpush1.msra.mxu0 %v150
    %5104 = vmatprep.subr.mxu0 %v135
    %5105 = vmatpush1.msra.mxu0 %v134
    %5106 = vmatprep.subr.mxu0 %v119
    %5107 = vmatpush1.msra.mxu0 %v118
    %5108 = vmatprep.subr.mxu0 %v615
    %5109 = vmatpush2.msra.mxu0 %v614
    %5110 = vmatprep.subr.mxu0 %v599
    %5111 = vmatpush2.msra.mxu0 %v598
    %5112 = vmatprep.subr.mxu0 %v583
    %5113 = vmatpush2.msra.mxu0 %v582
    %5114 = vmatprep.subr.mxu0 %v567
    %5115 = vmatpush2.msra.mxu0 %v566
    %5116 = vmatprep.subr.mxu0 %v551
    %5117 = vmatpush2.msra.mxu0 %v550
    %5118 = vmatprep.subr.mxu0 %v535
    %5119 = vmatpush2.msra.mxu0 %v534
    %5120 = vmatprep.subr.mxu0 %v519
    %5121 = vmatpush2.msra.mxu0 %v518
    %5122 = vmatprep.subr.mxu0 %v503
    %5123 = vmatpush2.msra.mxu0 %v502
    %5124 = vmatprep.subr.mxu0 %v487
    %5125 = vmatpush2.msra.mxu0 %v486
    %5126 = vmatprep.subr.mxu0 %v471
    %5127 = vmatpush2.msra.mxu0 %v470
    %5128 = vmatprep.subr.mxu0 %v455
    %5129 = vmatpush2.msra.mxu0 %v454
    %5130 = vmatprep.subr.mxu0 %v439
    %5131 = vmatpush2.msra.mxu0 %v438
    %5132 = vmatprep.subr.mxu0 %v423
    %5133 = vmatpush2.msra.mxu0 %v422
    %5134 = vmatprep.subr.mxu0 %v407
    %5135 = vmatpush2.msra.mxu0 %v406
    %5136 = vmatprep.subr.mxu0 %v391
    %5137 = vmatpush2.msra.mxu0 %v390
    %5138 = vmatprep.subr.mxu0 %v375
    %5139 = vmatpush2.msra.mxu0 %v374
    %5140 = vmatprep.mubr.f32.mxu0 %v5002
    %5141 = vmatmul.mubr.f32.gmra.mxu0 %v5001
    %v5142 = vpop.f32.mrf.mxu0
    %v5143 = vadd.f32 %v3286, %v5142
    %v5144 = vpop.f32.mrf.mxu0
    %v5145 = vadd.f32 %v3288, %v5144
    %5146 = vdwg.mxu0
    %5147 = vmatprep.subr.mxu0 %v361
    %5148 = vmatpush1.msra.mxu0 %v360
    %5149 = vmatprep.subr.mxu0 %v345
    %5150 = vmatpush1.msra.mxu0 %v344
    %5151 = vmatprep.subr.mxu0 %v329
    %5152 = vmatpush1.msra.mxu0 %v328
    %5153 = vmatprep.subr.mxu0 %v313
    %5154 = vmatpush1.msra.mxu0 %v312
    %5155 = vmatprep.subr.mxu0 %v297
    %5156 = vmatpush1.msra.mxu0 %v296
    %5157 = vmatprep.subr.mxu0 %v281
    %5158 = vmatpush1.msra.mxu0 %v280
    %5159 = vmatprep.subr.mxu0 %v265
    %5160 = vmatpush1.msra.mxu0 %v264
    %5161 = vmatprep.subr.mxu0 %v249
    %5162 = vmatpush1.msra.mxu0 %v248
    %5163 = vmatprep.subr.mxu0 %v233
    %5164 = vmatpush1.msra.mxu0 %v232
    %5165 = vmatprep.subr.mxu0 %v217
    %5166 = vmatpush1.msra.mxu0 %v216
    %5167 = vmatprep.subr.mxu0 %v201
    %5168 = vmatpush1.msra.mxu0 %v200
    %5169 = vmatprep.subr.mxu0 %v185
    %5170 = vmatpush1.msra.mxu0 %v184
    %5171 = vmatprep.subr.mxu0 %v169
    %5172 = vmatpush1.msra.mxu0 %v168
    %5173 = vmatprep.subr.mxu0 %v153
    %5174 = vmatpush1.msra.mxu0 %v152
    %5175 = vmatprep.subr.mxu0 %v137
    %5176 = vmatpush1.msra.mxu0 %v136
    %5177 = vmatprep.subr.mxu0 %v121
    %5178 = vmatpush1.msra.mxu0 %v120
    %5179 = vmatprep.subr.mxu0 %v617
    %5180 = vmatpush2.msra.mxu0 %v616
    %5181 = vmatprep.subr.mxu0 %v601
    %5182 = vmatpush2.msra.mxu0 %v600
    %5183 = vmatprep.subr.mxu0 %v585
    %5184 = vmatpush2.msra.mxu0 %v584
    %5185 = vmatprep.subr.mxu0 %v569
    %5186 = vmatpush2.msra.mxu0 %v568
    %5187 = vmatprep.subr.mxu0 %v553
    %5188 = vmatpush2.msra.mxu0 %v552
    %5189 = vmatprep.subr.mxu0 %v537
    %5190 = vmatpush2.msra.mxu0 %v536
    %5191 = vmatprep.subr.mxu0 %v521
    %5192 = vmatpush2.msra.mxu0 %v520
    %5193 = vmatprep.subr.mxu0 %v505
    %5194 = vmatpush2.msra.mxu0 %v504
    %5195 = vmatprep.subr.mxu0 %v489
    %5196 = vmatpush2.msra.mxu0 %v488
    %5197 = vmatprep.subr.mxu0 %v473
    %5198 = vmatpush2.msra.mxu0 %v472
    %5199 = vmatprep.subr.mxu0 %v457
    %5200 = vmatpush2.msra.mxu0 %v456
    %5201 = vmatprep.subr.mxu0 %v441
    %5202 = vmatpush2.msra.mxu0 %v440
    %5203 = vmatprep.subr.mxu0 %v425
    %5204 = vmatpush2.msra.mxu0 %v424
    %5205 = vmatprep.subr.mxu0 %v409
    %5206 = vmatpush2.msra.mxu0 %v408
    %5207 = vmatprep.subr.mxu0 %v393
    %5208 = vmatpush2.msra.mxu0 %v392
    %5209 = vmatprep.subr.mxu0 %v377
    %5210 = vmatpush2.msra.mxu0 %v376
    %5211 = vmatprep.mubr.f32.mxu0 %v5002
    %5212 = vmatmul.mubr.f32.gmra.mxu0 %v5001
    %v5213 = vpop.f32.mrf.mxu0
    %v5214 = vadd.f32 %v3570, %v5213
    %v5215 = vpop.f32.mrf.mxu0
    %v5216 = vadd.f32 %v3572, %v5215
    %5217 = vdwg.mxu0
    %5218 = vmatprep.subr.mxu0 %v363
    %5219 = vmatpush1.msra.mxu0 %v362
    %5220 = vmatprep.subr.mxu0 %v347
    %5221 = vmatpush1.msra.mxu0 %v346
    %5222 = vmatprep.subr.mxu0 %v331
    %5223 = vmatpush1.msra.mxu0 %v330
    %5224 = vmatprep.subr.mxu0 %v315
    %5225 = vmatpush1.msra.mxu0 %v314
    %5226 = vmatprep.subr.mxu0 %v299
    %5227 = vmatpush1.msra.mxu0 %v298
    %5228 = vmatprep.subr.mxu0 %v283
    %5229 = vmatpush1.msra.mxu0 %v282
    %5230 = vmatprep.subr.mxu0 %v267
    %5231 = vmatpush1.msra.mxu0 %v266
    %5232 = vmatprep.subr.mxu0 %v251
    %5233 = vmatpush1.msra.mxu0 %v250
    %5234 = vmatprep.subr.mxu0 %v235
    %5235 = vmatpush1.msra.mxu0 %v234
    %5236 = vmatprep.subr.mxu0 %v219
    %5237 = vmatpush1.msra.mxu0 %v218
    %5238 = vmatprep.subr.mxu0 %v203
    %5239 = vmatpush1.msra.mxu0 %v202
    %5240 = vmatprep.subr.mxu0 %v187
    %5241 = vmatpush1.msra.mxu0 %v186
    %5242 = vmatprep.subr.mxu0 %v171
    %5243 = vmatpush1.msra.mxu0 %v170
    %5244 = vmatprep.subr.mxu0 %v155
    %5245 = vmatpush1.msra.mxu0 %v154
    %5246 = vmatprep.subr.mxu0 %v139
    %5247 = vmatpush1.msra.mxu0 %v138
    %5248 = vmatprep.subr.mxu0 %v123
    %5249 = vmatpush1.msra.mxu0 %v122
    %5250 = vmatprep.subr.mxu0 %v619
    %5251 = vmatpush2.msra.mxu0 %v618
    %5252 = vmatprep.subr.mxu0 %v603
    %5253 = vmatpush2.msra.mxu0 %v602
    %5254 = vmatprep.subr.mxu0 %v587
    %5255 = vmatpush2.msra.mxu0 %v586
    %5256 = vmatprep.subr.mxu0 %v571
    %5257 = vmatpush2.msra.mxu0 %v570
    %5258 = vmatprep.subr.mxu0 %v555
    %5259 = vmatpush2.msra.mxu0 %v554
    %5260 = vmatprep.subr.mxu0 %v539
    %5261 = vmatpush2.msra.mxu0 %v538
    %5262 = vmatprep.subr.mxu0 %v523
    %5263 = vmatpush2.msra.mxu0 %v522
    %5264 = vmatprep.subr.mxu0 %v507
    %5265 = vmatpush2.msra.mxu0 %v506
    %5266 = vmatprep.subr.mxu0 %v491
    %5267 = vmatpush2.msra.mxu0 %v490
    %5268 = vmatprep.subr.mxu0 %v475
    %5269 = vmatpush2.msra.mxu0 %v474
    %5270 = vmatprep.subr.mxu0 %v459
    %5271 = vmatpush2.msra.mxu0 %v458
    %5272 = vmatprep.subr.mxu0 %v443
    %5273 = vmatpush2.msra.mxu0 %v442
    %5274 = vmatprep.subr.mxu0 %v427
    %5275 = vmatpush2.msra.mxu0 %v426
    %5276 = vmatprep.subr.mxu0 %v411
    %5277 = vmatpush2.msra.mxu0 %v410
    %5278 = vmatprep.subr.mxu0 %v395
    %5279 = vmatpush2.msra.mxu0 %v394
    %5280 = vmatprep.subr.mxu0 %v379
    %5281 = vmatpush2.msra.mxu0 %v378
    %5282 = vmatprep.mubr.f32.mxu0 %v5002
    %5283 = vmatmul.mubr.f32.gmra.mxu0 %v5001
    %v5284 = vpop.f32.mrf.mxu0
    %v5285 = vadd.f32 %v3854, %v5284
    %v5286 = vpop.f32.mrf.mxu0
    %v5287 = vadd.f32 %v3856, %v5286
    %5288 = vdwg.mxu0
    %5289 = vmatprep.subr.mxu0 %v365
    %5290 = vmatpush1.msra.mxu0 %v364
    %5291 = vmatprep.subr.mxu0 %v349
    %5292 = vmatpush1.msra.mxu0 %v348
    %5293 = vmatprep.subr.mxu0 %v333
    %5294 = vmatpush1.msra.mxu0 %v332
    %5295 = vmatprep.subr.mxu0 %v317
    %5296 = vmatpush1.msra.mxu0 %v316
    %5297 = vmatprep.subr.mxu0 %v301
    %5298 = vmatpush1.msra.mxu0 %v300
    %5299 = vmatprep.subr.mxu0 %v285
    %5300 = vmatpush1.msra.mxu0 %v284
    %5301 = vmatprep.subr.mxu0 %v269
    %5302 = vmatpush1.msra.mxu0 %v268
    %5303 = vmatprep.subr.mxu0 %v253
    %5304 = vmatpush1.msra.mxu0 %v252
    %5305 = vmatprep.subr.mxu0 %v237
    %5306 = vmatpush1.msra.mxu0 %v236
    %5307 = vmatprep.subr.mxu0 %v221
    %5308 = vmatpush1.msra.mxu0 %v220
    %5309 = vmatprep.subr.mxu0 %v205
    %5310 = vmatpush1.msra.mxu0 %v204
    %5311 = vmatprep.subr.mxu0 %v189
    %5312 = vmatpush1.msra.mxu0 %v188
    %5313 = vmatprep.subr.mxu0 %v173
    %5314 = vmatpush1.msra.mxu0 %v172
    %5315 = vmatprep.subr.mxu0 %v157
    %5316 = vmatpush1.msra.mxu0 %v156
    %5317 = vmatprep.subr.mxu0 %v141
    %5318 = vmatpush1.msra.mxu0 %v140
    %5319 = vmatprep.subr.mxu0 %v125
    %5320 = vmatpush1.msra.mxu0 %v124
    %5321 = vmatprep.subr.mxu0 %v621
    %5322 = vmatpush2.msra.mxu0 %v620
    %5323 = vmatprep.subr.mxu0 %v605
    %5324 = vmatpush2.msra.mxu0 %v604
    %5325 = vmatprep.subr.mxu0 %v589
    %5326 = vmatpush2.msra.mxu0 %v588
    %5327 = vmatprep.subr.mxu0 %v573
    %5328 = vmatpush2.msra.mxu0 %v572
    %5329 = vmatprep.subr.mxu0 %v557
    %5330 = vmatpush2.msra.mxu0 %v556
    %5331 = vmatprep.subr.mxu0 %v541
    %5332 = vmatpush2.msra.mxu0 %v540
    %5333 = vmatprep.subr.mxu0 %v525
    %5334 = vmatpush2.msra.mxu0 %v524
    %5335 = vmatprep.subr.mxu0 %v509
    %5336 = vmatpush2.msra.mxu0 %v508
    %5337 = vmatprep.subr.mxu0 %v493
    %5338 = vmatpush2.msra.mxu0 %v492
    %5339 = vmatprep.subr.mxu0 %v477
    %5340 = vmatpush2.msra.mxu0 %v476
    %5341 = vmatprep.subr.mxu0 %v461
    %5342 = vmatpush2.msra.mxu0 %v460
    %5343 = vmatprep.subr.mxu0 %v445
    %5344 = vmatpush2.msra.mxu0 %v444
    %5345 = vmatprep.subr.mxu0 %v429
    %5346 = vmatpush2.msra.mxu0 %v428
    %5347 = vmatprep.subr.mxu0 %v413
    %5348 = vmatpush2.msra.mxu0 %v412
    %5349 = vmatprep.subr.mxu0 %v397
    %5350 = vmatpush2.msra.mxu0 %v396
    %5351 = vmatprep.subr.mxu0 %v381
    %5352 = vmatpush2.msra.mxu0 %v380
    %5353 = vmatprep.mubr.f32.mxu0 %v5002
    %5354 = vmatmul.mubr.f32.gmra.mxu0 %v5001
    %v5355 = vpop.f32.mrf.mxu0
    %v5356 = vadd.f32 %v4138, %v5355
    %v5357 = vpop.f32.mrf.mxu0
    %v5358 = vadd.f32 %v4140, %v5357
    %5359 = vdwg.mxu0
    %5360 = vmatprep.subr.mxu0 %v367
    %5361 = vmatpush1.msra.mxu0 %v366
    %5362 = vmatprep.subr.mxu0 %v351
    %5363 = vmatpush1.msra.mxu0 %v350
    %5364 = vmatprep.subr.mxu0 %v335
    %5365 = vmatpush1.msra.mxu0 %v334
    %5366 = vmatprep.subr.mxu0 %v319
    %5367 = vmatpush1.msra.mxu0 %v318
    %5368 = vmatprep.subr.mxu0 %v303
    %5369 = vmatpush1.msra.mxu0 %v302
    %5370 = vmatprep.subr.mxu0 %v287
    %5371 = vmatpush1.msra.mxu0 %v286
    %5372 = vmatprep.subr.mxu0 %v271
    %5373 = vmatpush1.msra.mxu0 %v270
    %5374 = vmatprep.subr.mxu0 %v255
    %5375 = vmatpush1.msra.mxu0 %v254
    %5376 = vmatprep.subr.mxu0 %v239
    %5377 = vmatpush1.msra.mxu0 %v238
    %5378 = vmatprep.subr.mxu0 %v223
    %5379 = vmatpush1.msra.mxu0 %v222
    %5380 = vmatprep.subr.mxu0 %v207
    %5381 = vmatpush1.msra.mxu0 %v206
    %5382 = vmatprep.subr.mxu0 %v191
    %5383 = vmatpush1.msra.mxu0 %v190
    %5384 = vmatprep.subr.mxu0 %v175
    %5385 = vmatpush1.msra.mxu0 %v174
    %5386 = vmatprep.subr.mxu0 %v159
    %5387 = vmatpush1.msra.mxu0 %v158
    %5388 = vmatprep.subr.mxu0 %v143
    %5389 = vmatpush1.msra.mxu0 %v142
    %5390 = vmatprep.subr.mxu0 %v127
    %5391 = vmatpush1.msra.mxu0 %v126
    %5392 = vmatprep.subr.mxu0 %v623
    %5393 = vmatpush2.msra.mxu0 %v622
    %5394 = vmatprep.subr.mxu0 %v607
    %5395 = vmatpush2.msra.mxu0 %v606
    %5396 = vmatprep.subr.mxu0 %v591
    %5397 = vmatpush2.msra.mxu0 %v590
    %5398 = vmatprep.subr.mxu0 %v575
    %5399 = vmatpush2.msra.mxu0 %v574
    %5400 = vmatprep.subr.mxu0 %v559
    %5401 = vmatpush2.msra.mxu0 %v558
    %5402 = vmatprep.subr.mxu0 %v543
    %5403 = vmatpush2.msra.mxu0 %v542
    %5404 = vmatprep.subr.mxu0 %v527
    %5405 = vmatpush2.msra.mxu0 %v526
    %5406 = vmatprep.subr.mxu0 %v511
    %5407 = vmatpush2.msra.mxu0 %v510
    %5408 = vmatprep.subr.mxu0 %v495
    %5409 = vmatpush2.msra.mxu0 %v494
    %5410 = vmatprep.subr.mxu0 %v479
    %5411 = vmatpush2.msra.mxu0 %v478
    %5412 = vmatprep.subr.mxu0 %v463
    %5413 = vmatpush2.msra.mxu0 %v462
    %5414 = vmatprep.subr.mxu0 %v447
    %5415 = vmatpush2.msra.mxu0 %v446
    %5416 = vmatprep.subr.mxu0 %v431
    %5417 = vmatpush2.msra.mxu0 %v430
    %5418 = vmatprep.subr.mxu0 %v415
    %5419 = vmatpush2.msra.mxu0 %v414
    %5420 = vmatprep.subr.mxu0 %v399
    %5421 = vmatpush2.msra.mxu0 %v398
    %5422 = vmatprep.subr.mxu0 %v383
    %5423 = vmatpush2.msra.mxu0 %v382
    %5424 = vmatprep.mubr.f32.mxu0 %v5002
    %5425 = vmatmul.mubr.f32.gmra.mxu0 %v5001
    %v5426 = vpop.f32.mrf.mxu0
    %v5427 = vadd.f32 %v4422, %v5426
    %v5428 = vpop.f32.mrf.mxu0
    %v5429 = vadd.f32 %v4424, %v5428
    %5430 = vdwg.mxu0
    %5431 = vmatprep.subr.mxu0 %v369
    %5432 = vmatpush1.msra.mxu0 %v368
    %5433 = vmatprep.subr.mxu0 %v353
    %5434 = vmatpush1.msra.mxu0 %v352
    %5435 = vmatprep.subr.mxu0 %v337
    %5436 = vmatpush1.msra.mxu0 %v336
    %5437 = vmatprep.subr.mxu0 %v321
    %5438 = vmatpush1.msra.mxu0 %v320
    %5439 = vmatprep.subr.mxu0 %v305
    %5440 = vmatpush1.msra.mxu0 %v304
    %5441 = vmatprep.subr.mxu0 %v289
    %5442 = vmatpush1.msra.mxu0 %v288
    %5443 = vmatprep.subr.mxu0 %v273
    %5444 = vmatpush1.msra.mxu0 %v272
    %5445 = vmatprep.subr.mxu0 %v257
    %5446 = vmatpush1.msra.mxu0 %v256
    %5447 = vmatprep.subr.mxu0 %v241
    %5448 = vmatpush1.msra.mxu0 %v240
    %5449 = vmatprep.subr.mxu0 %v225
    %5450 = vmatpush1.msra.mxu0 %v224
    %5451 = vmatprep.subr.mxu0 %v209
    %5452 = vmatpush1.msra.mxu0 %v208
    %5453 = vmatprep.subr.mxu0 %v193
    %5454 = vmatpush1.msra.mxu0 %v192
    %5455 = vmatprep.subr.mxu0 %v177
    %5456 = vmatpush1.msra.mxu0 %v176
    %5457 = vmatprep.subr.mxu0 %v161
    %5458 = vmatpush1.msra.mxu0 %v160
    %5459 = vmatprep.subr.mxu0 %v145
    %5460 = vmatpush1.msra.mxu0 %v144
    %5461 = vmatprep.subr.mxu0 %v129
    %5462 = vmatpush1.msra.mxu0 %v128
    %5463 = vmatprep.subr.mxu0 %v625
    %5464 = vmatpush2.msra.mxu0 %v624
    %5465 = vmatprep.subr.mxu0 %v609
    %5466 = vmatpush2.msra.mxu0 %v608
    %5467 = vmatprep.subr.mxu0 %v593
    %5468 = vmatpush2.msra.mxu0 %v592
    %5469 = vmatprep.subr.mxu0 %v577
    %5470 = vmatpush2.msra.mxu0 %v576
    %5471 = vmatprep.subr.mxu0 %v561
    %5472 = vmatpush2.msra.mxu0 %v560
    %5473 = vmatprep.subr.mxu0 %v545
    %5474 = vmatpush2.msra.mxu0 %v544
    %5475 = vmatprep.subr.mxu0 %v529
    %5476 = vmatpush2.msra.mxu0 %v528
    %5477 = vmatprep.subr.mxu0 %v513
    %5478 = vmatpush2.msra.mxu0 %v512
    %5479 = vmatprep.subr.mxu0 %v497
    %5480 = vmatpush2.msra.mxu0 %v496
    %5481 = vmatprep.subr.mxu0 %v481
    %5482 = vmatpush2.msra.mxu0 %v480
    %5483 = vmatprep.subr.mxu0 %v465
    %5484 = vmatpush2.msra.mxu0 %v464
    %5485 = vmatprep.subr.mxu0 %v449
    %5486 = vmatpush2.msra.mxu0 %v448
    %5487 = vmatprep.subr.mxu0 %v433
    %5488 = vmatpush2.msra.mxu0 %v432
    %5489 = vmatprep.subr.mxu0 %v417
    %5490 = vmatpush2.msra.mxu0 %v416
    %5491 = vmatprep.subr.mxu0 %v401
    %5492 = vmatpush2.msra.mxu0 %v400
    %5493 = vmatprep.subr.mxu0 %v385
    %5494 = vmatpush2.msra.mxu0 %v384
    %5495 = vmatprep.mubr.f32.mxu0 %v5002
    %5496 = vmatmul.mubr.f32.gmra.mxu0 %v5001
    %v5497 = vpop.f32.mrf.mxu0
    %v5498 = vadd.f32 %v4706, %v5497
    %v5499 = vpop.f32.mrf.mxu0
    %v5500 = vadd.f32 %v4708, %v5499
    %5501 = vdwg.mxu0
    %5502 = vmatprep.subr.mxu0 %v371
    %5503 = vmatpush1.msra.mxu0 %v370
    %5504 = vmatprep.subr.mxu0 %v355
    %5505 = vmatpush1.msra.mxu0 %v354
    %5506 = vmatprep.subr.mxu0 %v339
    %5507 = vmatpush1.msra.mxu0 %v338
    %5508 = vmatprep.subr.mxu0 %v323
    %5509 = vmatpush1.msra.mxu0 %v322
    %5510 = vmatprep.subr.mxu0 %v307
    %5511 = vmatpush1.msra.mxu0 %v306
    %5512 = vmatprep.subr.mxu0 %v291
    %5513 = vmatpush1.msra.mxu0 %v290
    %5514 = vmatprep.subr.mxu0 %v275
    %5515 = vmatpush1.msra.mxu0 %v274
    %5516 = vmatprep.subr.mxu0 %v259
    %5517 = vmatpush1.msra.mxu0 %v258
    %5518 = vmatprep.subr.mxu0 %v243
    %5519 = vmatpush1.msra.mxu0 %v242
    %5520 = vmatprep.subr.mxu0 %v227
    %5521 = vmatpush1.msra.mxu0 %v226
    %5522 = vmatprep.subr.mxu0 %v211
    %5523 = vmatpush1.msra.mxu0 %v210
    %5524 = vmatprep.subr.mxu0 %v195
    %5525 = vmatpush1.msra.mxu0 %v194
    %5526 = vmatprep.subr.mxu0 %v179
    %5527 = vmatpush1.msra.mxu0 %v178
    %5528 = vmatprep.subr.mxu0 %v163
    %5529 = vmatpush1.msra.mxu0 %v162
    %5530 = vmatprep.subr.mxu0 %v147
    %5531 = vmatpush1.msra.mxu0 %v146
    %5532 = vmatprep.subr.mxu0 %v131
    %5533 = vmatpush1.msra.mxu0 %v130
    %5534 = vmatprep.subr.mxu0 %v627
    %5535 = vmatpush2.msra.mxu0 %v626
    %5536 = vmatprep.subr.mxu0 %v611
    %5537 = vmatpush2.msra.mxu0 %v610
    %5538 = vmatprep.subr.mxu0 %v595
    %5539 = vmatpush2.msra.mxu0 %v594
    %5540 = vmatprep.subr.mxu0 %v579
    %5541 = vmatpush2.msra.mxu0 %v578
    %5542 = vmatprep.subr.mxu0 %v563
    %5543 = vmatpush2.msra.mxu0 %v562
    %5544 = vmatprep.subr.mxu0 %v547
    %5545 = vmatpush2.msra.mxu0 %v546
    %5546 = vmatprep.subr.mxu0 %v531
    %5547 = vmatpush2.msra.mxu0 %v530
    %5548 = vmatprep.subr.mxu0 %v515
    %5549 = vmatpush2.msra.mxu0 %v514
    %5550 = vmatprep.subr.mxu0 %v499
    %5551 = vmatpush2.msra.mxu0 %v498
    %5552 = vmatprep.subr.mxu0 %v483
    %5553 = vmatpush2.msra.mxu0 %v482
    %5554 = vmatprep.subr.mxu0 %v467
    %5555 = vmatpush2.msra.mxu0 %v466
    %5556 = vmatprep.subr.mxu0 %v451
    %5557 = vmatpush2.msra.mxu0 %v450
    %5558 = vmatprep.subr.mxu0 %v435
    %5559 = vmatpush2.msra.mxu0 %v434
    %5560 = vmatprep.subr.mxu0 %v419
    %5561 = vmatpush2.msra.mxu0 %v418
    %5562 = vmatprep.subr.mxu0 %v403
    %5563 = vmatpush2.msra.mxu0 %v402
    %5564 = vmatprep.subr.mxu0 %v387
    %5565 = vmatpush2.msra.mxu0 %v386
    %5566 = vmatprep.mubr.f32.mxu0 %v5002
    %5567 = vmatmul.mubr.f32.gmra.mxu0 %v5001
    %v5568 = vpop.f32.mrf.mxu0
    %v5569 = vadd.f32 %v4990, %v5568
    %v5570 = vpop.f32.mrf.mxu0
    %v5571 = vadd.f32 %v4992, %v5570
    %5572 = vdwg.mxu0
    %v5573 = vld [vmem:[%s4] sm:$0xff]
    %v5574 = vld [vmem:[%s4 + $0x8] sm:$0xff]
    %v5575 = vld [vmem:[%s4 + $0x10] sm:$0xff]
    %v5576 = vld [vmem:[%s4 + $0x18] sm:$0xff]
    %v5577 = vld [vmem:[%s4 + $0x20] sm:$0xff]
    %v5578 = vld [vmem:[%s4 + $0x28] sm:$0xff]
    %v5579 = vld [vmem:[%s4 + $0x30] sm:$0xff]
    %v5580 = vld [vmem:[%s4 + $0x38] sm:$0xff]
    %v5581 = vld [vmem:[%s4 + $0x40] sm:$0xff]
    %v5582 = vld [vmem:[%s4 + $0x48] sm:$0xff]
    %v5583 = vld [vmem:[%s4 + $0x50] sm:$0xff]
    %v5584 = vld [vmem:[%s4 + $0x58] sm:$0xff]
    %v5585 = vld [vmem:[%s4 + $0x60] sm:$0xff]
    %v5586 = vld [vmem:[%s4 + $0x68] sm:$0xff]
    %v5587 = vld [vmem:[%s4 + $0x70] sm:$0xff]
    %v5588 = vld [vmem:[%s4 + $0x78] sm:$0xff]
    %v5589 = vld [vmem:[%s4 + $0x80] sm:$0xff]
    %v5590 = vld [vmem:[%s4 + $0x88] sm:$0xff]
    %v5591 = vld [vmem:[%s4 + $0x90] sm:$0xff]
    %v5592 = vld [vmem:[%s4 + $0x98] sm:$0xff]
    %v5593 = vld [vmem:[%s4 + $0xa0] sm:$0xff]
    %v5594 = vld [vmem:[%s4 + $0xa8] sm:$0xff]
    %v5595 = vld [vmem:[%s4 + $0xb0] sm:$0xff]
    %v5596 = vld [vmem:[%s4 + $0xb8] sm:$0xff]
    %v5597 = vld [vmem:[%s4 + $0xc0] sm:$0xff]
    %v5598 = vld [vmem:[%s4 + $0xc8] sm:$0xff]
    %v5599 = vld [vmem:[%s4 + $0xd0] sm:$0xff]
    %v5600 = vld [vmem:[%s4 + $0xd8] sm:$0xff]
    %v5601 = vld [vmem:[%s4 + $0xe0] sm:$0xff]
    %v5602 = vld [vmem:[%s4 + $0xe8] sm:$0xff]
    %v5603 = vld [vmem:[%s4 + $0xf0] sm:$0xff]
    %v5604 = vld [vmem:[%s4 + $0xf8] sm:$0xff]
    %v5605 = vld [vmem:[%s4 + $0x100] sm:$0xff]
    %v5606 = vld [vmem:[%s4 + $0x108] sm:$0xff]
    %v5607 = vld [vmem:[%s4 + $0x110] sm:$0xff]
    %v5608 = vld [vmem:[%s4 + $0x118] sm:$0xff]
    %v5609 = vld [vmem:[%s4 + $0x120] sm:$0xff]
    %v5610 = vld [vmem:[%s4 + $0x128] sm:$0xff]
    %v5611 = vld [vmem:[%s4 + $0x130] sm:$0xff]
    %v5612 = vld [vmem:[%s4 + $0x138] sm:$0xff]
    %v5613 = vld [vmem:[%s4 + $0x140] sm:$0xff]
    %v5614 = vld [vmem:[%s4 + $0x148] sm:$0xff]
    %v5615 = vld [vmem:[%s4 + $0x150] sm:$0xff]
    %v5616 = vld [vmem:[%s4 + $0x158] sm:$0xff]
    %v5617 = vld [vmem:[%s4 + $0x160] sm:$0xff]
    %v5618 = vld [vmem:[%s4 + $0x168] sm:$0xff]
    %v5619 = vld [vmem:[%s4 + $0x170] sm:$0xff]
    %v5620 = vld [vmem:[%s4 + $0x178] sm:$0xff]
    %v5621 = vld [vmem:[%s4 + $0x180] sm:$0xff]
    %v5622 = vld [vmem:[%s4 + $0x188] sm:$0xff]
    %v5623 = vld [vmem:[%s4 + $0x190] sm:$0xff]
    %v5624 = vld [vmem:[%s4 + $0x198] sm:$0xff]
    %v5625 = vld [vmem:[%s4 + $0x1a0] sm:$0xff]
    %v5626 = vld [vmem:[%s4 + $0x1a8] sm:$0xff]
    %v5627 = vld [vmem:[%s4 + $0x1b0] sm:$0xff]
    %v5628 = vld [vmem:[%s4 + $0x1b8] sm:$0xff]
    %v5629 = vld [vmem:[%s4 + $0x1c0] sm:$0xff]
    %v5630 = vld [vmem:[%s4 + $0x1c8] sm:$0xff]
    %v5631 = vld [vmem:[%s4 + $0x1d0] sm:$0xff]
    %v5632 = vld [vmem:[%s4 + $0x1d8] sm:$0xff]
    %v5633 = vld [vmem:[%s4 + $0x1e0] sm:$0xff]
    %v5634 = vld [vmem:[%s4 + $0x1e8] sm:$0xff]
    %v5635 = vld [vmem:[%s4 + $0x1f0] sm:$0xff]
    %v5636 = vld [vmem:[%s4 + $0x1f8] sm:$0xff]
    %v5637 = vld [vmem:[%s4 + $0x200] sm:$0xff]
    %v5638 = vld [vmem:[%s4 + $0x208] sm:$0xff]
    %v5639 = vld [vmem:[%s4 + $0x210] sm:$0xff]
    %v5640 = vld [vmem:[%s4 + $0x218] sm:$0xff]
    %v5641 = vld [vmem:[%s4 + $0x220] sm:$0xff]
    %v5642 = vld [vmem:[%s4 + $0x228] sm:$0xff]
    %v5643 = vld [vmem:[%s4 + $0x230] sm:$0xff]
    %v5644 = vld [vmem:[%s4 + $0x238] sm:$0xff]
    %v5645 = vld [vmem:[%s4 + $0x240] sm:$0xff]
    %v5646 = vld [vmem:[%s4 + $0x248] sm:$0xff]
    %v5647 = vld [vmem:[%s4 + $0x250] sm:$0xff]
    %v5648 = vld [vmem:[%s4 + $0x258] sm:$0xff]
    %v5649 = vld [vmem:[%s4 + $0x260] sm:$0xff]
    %v5650 = vld [vmem:[%s4 + $0x268] sm:$0xff]
    %v5651 = vld [vmem:[%s4 + $0x270] sm:$0xff]
    %v5652 = vld [vmem:[%s4 + $0x278] sm:$0xff]
    %v5653 = vld [vmem:[%s4 + $0x280] sm:$0xff]
    %v5654 = vld [vmem:[%s4 + $0x288] sm:$0xff]
    %v5655 = vld [vmem:[%s4 + $0x290] sm:$0xff]
    %v5656 = vld [vmem:[%s4 + $0x298] sm:$0xff]
    %v5657 = vld [vmem:[%s4 + $0x2a0] sm:$0xff]
    %v5658 = vld [vmem:[%s4 + $0x2a8] sm:$0xff]
    %v5659 = vld [vmem:[%s4 + $0x2b0] sm:$0xff]
    %v5660 = vld [vmem:[%s4 + $0x2b8] sm:$0xff]
    %v5661 = vld [vmem:[%s4 + $0x2c0] sm:$0xff]
    %v5662 = vld [vmem:[%s4 + $0x2c8] sm:$0xff]
    %v5663 = vld [vmem:[%s4 + $0x2d0] sm:$0xff]
    %v5664 = vld [vmem:[%s4 + $0x2d8] sm:$0xff]
    %v5665 = vld [vmem:[%s4 + $0x2e0] sm:$0xff]
    %v5666 = vld [vmem:[%s4 + $0x2e8] sm:$0xff]
    %v5667 = vld [vmem:[%s4 + $0x2f0] sm:$0xff]
    %v5668 = vld [vmem:[%s4 + $0x2f8] sm:$0xff]
    %v5669 = vld [vmem:[%s4 + $0x300] sm:$0xff]
    %v5670 = vld [vmem:[%s4 + $0x308] sm:$0xff]
    %v5671 = vld [vmem:[%s4 + $0x310] sm:$0xff]
    %v5672 = vld [vmem:[%s4 + $0x318] sm:$0xff]
    %v5673 = vld [vmem:[%s4 + $0x320] sm:$0xff]
    %v5674 = vld [vmem:[%s4 + $0x328] sm:$0xff]
    %v5675 = vld [vmem:[%s4 + $0x330] sm:$0xff]
    %v5676 = vld [vmem:[%s4 + $0x338] sm:$0xff]
    %v5677 = vld [vmem:[%s4 + $0x340] sm:$0xff]
    %v5678 = vld [vmem:[%s4 + $0x348] sm:$0xff]
    %v5679 = vld [vmem:[%s4 + $0x350] sm:$0xff]
    %v5680 = vld [vmem:[%s4 + $0x358] sm:$0xff]
    %v5681 = vld [vmem:[%s4 + $0x360] sm:$0xff]
    %v5682 = vld [vmem:[%s4 + $0x368] sm:$0xff]
    %v5683 = vld [vmem:[%s4 + $0x370] sm:$0xff]
    %v5684 = vld [vmem:[%s4 + $0x378] sm:$0xff]
    %v5685 = vld [vmem:[%s4 + $0x380] sm:$0xff]
    %v5686 = vld [vmem:[%s4 + $0x388] sm:$0xff]
    %v5687 = vld [vmem:[%s4 + $0x390] sm:$0xff]
    %v5688 = vld [vmem:[%s4 + $0x398] sm:$0xff]
    %v5689 = vld [vmem:[%s4 + $0x3a0] sm:$0xff]
    %v5690 = vld [vmem:[%s4 + $0x3a8] sm:$0xff]
    %v5691 = vld [vmem:[%s4 + $0x3b0] sm:$0xff]
    %v5692 = vld [vmem:[%s4 + $0x3b8] sm:$0xff]
    %v5693 = vld [vmem:[%s4 + $0x3c0] sm:$0xff]
    %v5694 = vld [vmem:[%s4 + $0x3c8] sm:$0xff]
    %v5695 = vld [vmem:[%s4 + $0x3d0] sm:$0xff]
    %v5696 = vld [vmem:[%s4 + $0x3d8] sm:$0xff]
    %v5697 = vld [vmem:[%s4 + $0x3e0] sm:$0xff]
    %v5698 = vld [vmem:[%s4 + $0x3e8] sm:$0xff]
    %v5699 = vld [vmem:[%s4 + $0x3f0] sm:$0xff]
    %v5700 = vld [vmem:[%s4 + $0x3f8] sm:$0xff]
    %v5701 = vld [vmem:[%s4 + $0x400] sm:$0xff]
    %v5702 = vld [vmem:[%s4 + $0x408] sm:$0xff]
    %v5703 = vld [vmem:[%s4 + $0x410] sm:$0xff]
    %v5704 = vld [vmem:[%s4 + $0x418] sm:$0xff]
    %v5705 = vld [vmem:[%s4 + $0x420] sm:$0xff]
    %v5706 = vld [vmem:[%s4 + $0x428] sm:$0xff]
    %v5707 = vld [vmem:[%s4 + $0x430] sm:$0xff]
    %v5708 = vld [vmem:[%s4 + $0x438] sm:$0xff]
    %v5709 = vld [vmem:[%s4 + $0x440] sm:$0xff]
    %v5710 = vld [vmem:[%s4 + $0x448] sm:$0xff]
    %v5711 = vld [vmem:[%s4 + $0x450] sm:$0xff]
    %v5712 = vld [vmem:[%s4 + $0x458] sm:$0xff]
    %v5713 = vld [vmem:[%s4 + $0x460] sm:$0xff]
    %v5714 = vld [vmem:[%s4 + $0x468] sm:$0xff]
    %v5715 = vld [vmem:[%s4 + $0x470] sm:$0xff]
    %v5716 = vld [vmem:[%s4 + $0x478] sm:$0xff]
    %v5717 = vld [vmem:[%s4 + $0x480] sm:$0xff]
    %v5718 = vld [vmem:[%s4 + $0x488] sm:$0xff]
    %v5719 = vld [vmem:[%s4 + $0x490] sm:$0xff]
    %v5720 = vld [vmem:[%s4 + $0x498] sm:$0xff]
    %v5721 = vld [vmem:[%s4 + $0x4a0] sm:$0xff]
    %v5722 = vld [vmem:[%s4 + $0x4a8] sm:$0xff]
    %v5723 = vld [vmem:[%s4 + $0x4b0] sm:$0xff]
    %v5724 = vld [vmem:[%s4 + $0x4b8] sm:$0xff]
    %v5725 = vld [vmem:[%s4 + $0x4c0] sm:$0xff]
    %v5726 = vld [vmem:[%s4 + $0x4c8] sm:$0xff]
    %v5727 = vld [vmem:[%s4 + $0x4d0] sm:$0xff]
    %v5728 = vld [vmem:[%s4 + $0x4d8] sm:$0xff]
    %v5729 = vld [vmem:[%s4 + $0x4e0] sm:$0xff]
    %v5730 = vld [vmem:[%s4 + $0x4e8] sm:$0xff]
    %v5731 = vld [vmem:[%s4 + $0x4f0] sm:$0xff]
    %v5732 = vld [vmem:[%s4 + $0x4f8] sm:$0xff]
    %v5733 = vld [vmem:[%s4 + $0x500] sm:$0xff]
    %v5734 = vld [vmem:[%s4 + $0x508] sm:$0xff]
    %v5735 = vld [vmem:[%s4 + $0x510] sm:$0xff]
    %v5736 = vld [vmem:[%s4 + $0x518] sm:$0xff]
    %v5737 = vld [vmem:[%s4 + $0x520] sm:$0xff]
    %v5738 = vld [vmem:[%s4 + $0x528] sm:$0xff]
    %v5739 = vld [vmem:[%s4 + $0x530] sm:$0xff]
    %v5740 = vld [vmem:[%s4 + $0x538] sm:$0xff]
    %v5741 = vld [vmem:[%s4 + $0x540] sm:$0xff]
    %v5742 = vld [vmem:[%s4 + $0x548] sm:$0xff]
    %v5743 = vld [vmem:[%s4 + $0x550] sm:$0xff]
    %v5744 = vld [vmem:[%s4 + $0x558] sm:$0xff]
    %v5745 = vld [vmem:[%s4 + $0x560] sm:$0xff]
    %v5746 = vld [vmem:[%s4 + $0x568] sm:$0xff]
    %v5747 = vld [vmem:[%s4 + $0x570] sm:$0xff]
    %v5748 = vld [vmem:[%s4 + $0x578] sm:$0xff]
    %v5749 = vld [vmem:[%s4 + $0x580] sm:$0xff]
    %v5750 = vld [vmem:[%s4 + $0x588] sm:$0xff]
    %v5751 = vld [vmem:[%s4 + $0x590] sm:$0xff]
    %v5752 = vld [vmem:[%s4 + $0x598] sm:$0xff]
    %v5753 = vld [vmem:[%s4 + $0x5a0] sm:$0xff]
    %v5754 = vld [vmem:[%s4 + $0x5a8] sm:$0xff]
    %v5755 = vld [vmem:[%s4 + $0x5b0] sm:$0xff]
    %v5756 = vld [vmem:[%s4 + $0x5b8] sm:$0xff]
    %v5757 = vld [vmem:[%s4 + $0x5c0] sm:$0xff]
    %v5758 = vld [vmem:[%s4 + $0x5c8] sm:$0xff]
    %v5759 = vld [vmem:[%s4 + $0x5d0] sm:$0xff]
    %v5760 = vld [vmem:[%s4 + $0x5d8] sm:$0xff]
    %v5761 = vld [vmem:[%s4 + $0x5e0] sm:$0xff]
    %v5762 = vld [vmem:[%s4 + $0x5e8] sm:$0xff]
    %v5763 = vld [vmem:[%s4 + $0x5f0] sm:$0xff]
    %v5764 = vld [vmem:[%s4 + $0x5f8] sm:$0xff]
    %v5765 = vld [vmem:[%s4 + $0x600] sm:$0xff]
    %v5766 = vld [vmem:[%s4 + $0x608] sm:$0xff]
    %v5767 = vld [vmem:[%s4 + $0x610] sm:$0xff]
    %v5768 = vld [vmem:[%s4 + $0x618] sm:$0xff]
    %v5769 = vld [vmem:[%s4 + $0x620] sm:$0xff]
    %v5770 = vld [vmem:[%s4 + $0x628] sm:$0xff]
    %v5771 = vld [vmem:[%s4 + $0x630] sm:$0xff]
    %v5772 = vld [vmem:[%s4 + $0x638] sm:$0xff]
    %v5773 = vld [vmem:[%s4 + $0x640] sm:$0xff]
    %v5774 = vld [vmem:[%s4 + $0x648] sm:$0xff]
    %v5775 = vld [vmem:[%s4 + $0x650] sm:$0xff]
    %v5776 = vld [vmem:[%s4 + $0x658] sm:$0xff]
    %v5777 = vld [vmem:[%s4 + $0x660] sm:$0xff]
    %v5778 = vld [vmem:[%s4 + $0x668] sm:$0xff]
    %v5779 = vld [vmem:[%s4 + $0x670] sm:$0xff]
    %v5780 = vld [vmem:[%s4 + $0x678] sm:$0xff]
    %v5781 = vld [vmem:[%s4 + $0x680] sm:$0xff]
    %v5782 = vld [vmem:[%s4 + $0x688] sm:$0xff]
    %v5783 = vld [vmem:[%s4 + $0x690] sm:$0xff]
    %v5784 = vld [vmem:[%s4 + $0x698] sm:$0xff]
    %v5785 = vld [vmem:[%s4 + $0x6a0] sm:$0xff]
    %v5786 = vld [vmem:[%s4 + $0x6a8] sm:$0xff]
    %v5787 = vld [vmem:[%s4 + $0x6b0] sm:$0xff]
    %v5788 = vld [vmem:[%s4 + $0x6b8] sm:$0xff]
    %v5789 = vld [vmem:[%s4 + $0x6c0] sm:$0xff]
    %v5790 = vld [vmem:[%s4 + $0x6c8] sm:$0xff]
    %v5791 = vld [vmem:[%s4 + $0x6d0] sm:$0xff]
    %v5792 = vld [vmem:[%s4 + $0x6d8] sm:$0xff]
    %v5793 = vld [vmem:[%s4 + $0x6e0] sm:$0xff]
    %v5794 = vld [vmem:[%s4 + $0x6e8] sm:$0xff]
    %v5795 = vld [vmem:[%s4 + $0x6f0] sm:$0xff]
    %v5796 = vld [vmem:[%s4 + $0x6f8] sm:$0xff]
    %v5797 = vld [vmem:[%s4 + $0x700] sm:$0xff]
    %v5798 = vld [vmem:[%s4 + $0x708] sm:$0xff]
    %v5799 = vld [vmem:[%s4 + $0x710] sm:$0xff]
    %v5800 = vld [vmem:[%s4 + $0x718] sm:$0xff]
    %v5801 = vld [vmem:[%s4 + $0x720] sm:$0xff]
    %v5802 = vld [vmem:[%s4 + $0x728] sm:$0xff]
    %v5803 = vld [vmem:[%s4 + $0x730] sm:$0xff]
    %v5804 = vld [vmem:[%s4 + $0x738] sm:$0xff]
    %v5805 = vld [vmem:[%s4 + $0x740] sm:$0xff]
    %v5806 = vld [vmem:[%s4 + $0x748] sm:$0xff]
    %v5807 = vld [vmem:[%s4 + $0x750] sm:$0xff]
    %v5808 = vld [vmem:[%s4 + $0x758] sm:$0xff]
    %v5809 = vld [vmem:[%s4 + $0x760] sm:$0xff]
    %v5810 = vld [vmem:[%s4 + $0x768] sm:$0xff]
    %v5811 = vld [vmem:[%s4 + $0x770] sm:$0xff]
    %v5812 = vld [vmem:[%s4 + $0x778] sm:$0xff]
    %v5813 = vld [vmem:[%s4 + $0x780] sm:$0xff]
    %v5814 = vld [vmem:[%s4 + $0x788] sm:$0xff]
    %v5815 = vld [vmem:[%s4 + $0x790] sm:$0xff]
    %v5816 = vld [vmem:[%s4 + $0x798] sm:$0xff]
    %v5817 = vld [vmem:[%s4 + $0x7a0] sm:$0xff]
    %v5818 = vld [vmem:[%s4 + $0x7a8] sm:$0xff]
    %v5819 = vld [vmem:[%s4 + $0x7b0] sm:$0xff]
    %v5820 = vld [vmem:[%s4 + $0x7b8] sm:$0xff]
    %v5821 = vld [vmem:[%s4 + $0x7c0] sm:$0xff]
    %v5822 = vld [vmem:[%s4 + $0x7c8] sm:$0xff]
    %v5823 = vld [vmem:[%s4 + $0x7d0] sm:$0xff]
    %v5824 = vld [vmem:[%s4 + $0x7d8] sm:$0xff]
    %v5825 = vld [vmem:[%s4 + $0x7e0] sm:$0xff]
    %v5826 = vld [vmem:[%s4 + $0x7e8] sm:$0xff]
    %v5827 = vld [vmem:[%s4 + $0x7f0] sm:$0xff]
    %v5828 = vld [vmem:[%s4 + $0x7f8] sm:$0xff]
    %vm5829 = vcmask 1041408
    %v5830 = vsel %vm5829, %v5072, 0.0
    %v5831 = vrot.slane %v5830, 4
    %v5832 = vadd.f32 %v5830, %v5831
    %v5833 = vrot.slane %v5832, 2
    %v5834 = vadd.f32 %v5832, %v5833
    %v5835 = vrot.slane %v5834, 1
    %v5836 = vadd.f32 %v5834, %v5835
    %v5837 = vsel %vm5829, %v5074, 0.0
    %v5838 = vrot.slane %v5837, 4
    %v5839 = vadd.f32 %v5837, %v5838
    %v5840 = vrot.slane %v5839, 2
    %v5841 = vadd.f32 %v5839, %v5840
    %v5842 = vrot.slane %v5841, 1
    %v5843 = vadd.f32 %v5841, %v5842
    %v5844 = vsel %vm5829, %v5143, 0.0
    %v5845 = vrot.slane %v5844, 4
    %v5846 = vadd.f32 %v5844, %v5845
    %v5847 = vrot.slane %v5846, 2
    %v5848 = vadd.f32 %v5846, %v5847
    %v5849 = vrot.slane %v5848, 1
    %v5850 = vadd.f32 %v5848, %v5849
    %v5851 = vsel %vm5829, %v5145, 0.0
    %v5852 = vrot.slane %v5851, 4
    %v5853 = vadd.f32 %v5851, %v5852
    %v5854 = vrot.slane %v5853, 2
    %v5855 = vadd.f32 %v5853, %v5854
    %v5856 = vrot.slane %v5855, 1
    %v5857 = vadd.f32 %v5855, %v5856
    %v5858 = vsel %vm5829, %v5214, 0.0
    %v5859 = vrot.slane %v5858, 4
    %v5860 = vadd.f32 %v5858, %v5859
    %v5861 = vrot.slane %v5860, 2
    %v5862 = vadd.f32 %v5860, %v5861
    %v5863 = vrot.slane %v5862, 1
    %v5864 = vadd.f32 %v5862, %v5863
    %v5865 = vsel %vm5829, %v5216, 0.0
    %v5866 = vrot.slane %v5865, 4
    %v5867 = vadd.f32 %v5865, %v5866
    %v5868 = vrot.slane %v5867, 2
    %v5869 = vadd.f32 %v5867, %v5868
    %v5870 = vrot.slane %v5869, 1
    %v5871 = vadd.f32 %v5869, %v5870
    %v5872 = vsel %vm5829, %v5285, 0.0
    %v5873 = vrot.slane %v5872, 4
    %v5874 = vadd.f32 %v5872, %v5873
    %v5875 = vrot.slane %v5874, 2
    %v5876 = vadd.f32 %v5874, %v5875
    %v5877 = vrot.slane %v5876, 1
    %v5878 = vadd.f32 %v5876, %v5877
    %v5879 = vsel %vm5829, %v5287, 0.0
    %v5880 = vrot.slane %v5879, 4
    %v5881 = vadd.f32 %v5879, %v5880
    %v5882 = vrot.slane %v5881, 2
    %v5883 = vadd.f32 %v5881, %v5882
    %v5884 = vrot.slane %v5883, 1
    %v5885 = vadd.f32 %v5883, %v5884
    %v5886 = vsel %vm5829, %v5356, 0.0
    %v5887 = vrot.slane %v5886, 4
    %v5888 = vadd.f32 %v5886, %v5887
    %v5889 = vrot.slane %v5888, 2
    %v5890 = vadd.f32 %v5888, %v5889
    %v5891 = vrot.slane %v5890, 1
    %v5892 = vadd.f32 %v5890, %v5891
    %v5893 = vsel %vm5829, %v5358, 0.0
    %v5894 = vrot.slane %v5893, 4
    %v5895 = vadd.f32 %v5893, %v5894
    %v5896 = vrot.slane %v5895, 2
    %v5897 = vadd.f32 %v5895, %v5896
    %v5898 = vrot.slane %v5897, 1
    %v5899 = vadd.f32 %v5897, %v5898
    %v5900 = vsel %vm5829, %v5427, 0.0
    %v5901 = vrot.slane %v5900, 4
    %v5902 = vadd.f32 %v5900, %v5901
    %v5903 = vrot.slane %v5902, 2
    %v5904 = vadd.f32 %v5902, %v5903
    %v5905 = vrot.slane %v5904, 1
    %v5906 = vadd.f32 %v5904, %v5905
    %v5907 = vsel %vm5829, %v5429, 0.0
    %v5908 = vrot.slane %v5907, 4
    %v5909 = vadd.f32 %v5907, %v5908
    %v5910 = vrot.slane %v5909, 2
    %v5911 = vadd.f32 %v5909, %v5910
    %v5912 = vrot.slane %v5911, 1
    %v5913 = vadd.f32 %v5911, %v5912
    %v5914 = vsel %vm5829, %v5498, 0.0
    %v5915 = vrot.slane %v5914, 4
    %v5916 = vadd.f32 %v5914, %v5915
    %v5917 = vrot.slane %v5916, 2
    %v5918 = vadd.f32 %v5916, %v5917
    %v5919 = vrot.slane %v5918, 1
    %v5920 = vadd.f32 %v5918, %v5919
    %v5921 = vsel %vm5829, %v5500, 0.0
    %v5922 = vrot.slane %v5921, 4
    %v5923 = vadd.f32 %v5921, %v5922
    %v5924 = vrot.slane %v5923, 2
    %v5925 = vadd.f32 %v5923, %v5924
    %v5926 = vrot.slane %v5925, 1
    %v5927 = vadd.f32 %v5925, %v5926
    %v5928 = vsel %vm5829, %v5569, 0.0
    %v5929 = vrot.slane %v5928, 4
    %v5930 = vadd.f32 %v5928, %v5929
    %v5931 = vrot.slane %v5930, 2
    %v5932 = vadd.f32 %v5930, %v5931
    %v5933 = vrot.slane %v5932, 1
    %v5934 = vadd.f32 %v5932, %v5933
    %v5935 = vsel %vm5829, %v5571, 0.0
    %v5936 = vrot.slane %v5935, 4
    %v5937 = vadd.f32 %v5935, %v5936
    %v5938 = vrot.slane %v5937, 2
    %v5939 = vadd.f32 %v5937, %v5938
    %v5940 = vrot.slane %v5939, 1
    %v5941 = vadd.f32 %v5939, %v5940
    %v5942 = vmul.f32 %v5072, %v5072
    %v5943 = vmul.f32 %v5074, %v5074
    %v5944 = vmul.f32 %v5143, %v5143
    %v5945 = vmul.f32 %v5145, %v5145
    %v5946 = vmul.f32 %v5214, %v5214
    %v5947 = vmul.f32 %v5216, %v5216
    %v5948 = vmul.f32 %v5285, %v5285
    %v5949 = vmul.f32 %v5287, %v5287
    %v5950 = vmul.f32 %v5356, %v5356
    %v5951 = vmul.f32 %v5358, %v5358
    %v5952 = vmul.f32 %v5427, %v5427
    %v5953 = vmul.f32 %v5429, %v5429
    %v5954 = vmul.f32 %v5498, %v5498
    %v5955 = vmul.f32 %v5500, %v5500
    %v5956 = vmul.f32 %v5569, %v5569
    %v5957 = vmul.f32 %v5571, %v5571
    %v5958 = vsel %vm5829, %v5942, 0.0
    %v5959 = vrot.slane %v5958, 4
    %v5960 = vadd.f32 %v5958, %v5959
    %v5961 = vrot.slane %v5960, 2
    %v5962 = vadd.f32 %v5960, %v5961
    %v5963 = vrot.slane %v5962, 1
    %v5964 = vadd.f32 %v5962, %v5963
    %v5965 = vsel %vm5829, %v5943, 0.0
    %v5966 = vrot.slane %v5965, 4
    %v5967 = vadd.f32 %v5965, %v5966
    %v5968 = vrot.slane %v5967, 2
    %v5969 = vadd.f32 %v5967, %v5968
    %v5970 = vrot.slane %v5969, 1
    %v5971 = vadd.f32 %v5969, %v5970
    %v5972 = vsel %vm5829, %v5944, 0.0
    %v5973 = vrot.slane %v5972, 4
    %v5974 = vadd.f32 %v5972, %v5973
    %v5975 = vrot.slane %v5974, 2
    %v5976 = vadd.f32 %v5974, %v5975
    %v5977 = vrot.slane %v5976, 1
    %v5978 = vadd.f32 %v5976, %v5977
    %v5979 = vsel %vm5829, %v5945, 0.0
    %v5980 = vrot.slane %v5979, 4
    %v5981 = vadd.f32 %v5979, %v5980
    %v5982 = vrot.slane %v5981, 2
    %v5983 = vadd.f32 %v5981, %v5982
    %v5984 = vrot.slane %v5983, 1
    %v5985 = vadd.f32 %v5983, %v5984
    %v5986 = vsel %vm5829, %v5946, 0.0
    %v5987 = vrot.slane %v5986, 4
    %v5988 = vadd.f32 %v5986, %v5987
    %v5989 = vrot.slane %v5988, 2
    %v5990 = vadd.f32 %v5988, %v5989
    %v5991 = vrot.slane %v5990, 1
    %v5992 = vadd.f32 %v5990, %v5991
    %v5993 = vsel %vm5829, %v5947, 0.0
    %v5994 = vrot.slane %v5993, 4
    %v5995 = vadd.f32 %v5993, %v5994
    %v5996 = vrot.slane %v5995, 2
    %v5997 = vadd.f32 %v5995, %v5996
    %v5998 = vrot.slane %v5997, 1
    %v5999 = vadd.f32 %v5997, %v5998
    %v6000 = vsel %vm5829, %v5948, 0.0
    %v6001 = vrot.slane %v6000, 4
    %v6002 = vadd.f32 %v6000, %v6001
    %v6003 = vrot.slane %v6002, 2
    %v6004 = vadd.f32 %v6002, %v6003
    %v6005 = vrot.slane %v6004, 1
    %v6006 = vadd.f32 %v6004, %v6005
    %v6007 = vsel %vm5829, %v5949, 0.0
    %v6008 = vrot.slane %v6007, 4
    %v6009 = vadd.f32 %v6007, %v6008
    %v6010 = vrot.slane %v6009, 2
    %v6011 = vadd.f32 %v6009, %v6010
    %v6012 = vrot.slane %v6011, 1
    %v6013 = vadd.f32 %v6011, %v6012
    %v6014 = vsel %vm5829, %v5950, 0.0
    %v6015 = vrot.slane %v6014, 4
    %v6016 = vadd.f32 %v6014, %v6015
    %v6017 = vrot.slane %v6016, 2
    %v6018 = vadd.f32 %v6016, %v6017
    %v6019 = vrot.slane %v6018, 1
    %v6020 = vadd.f32 %v6018, %v6019
    %v6021 = vsel %vm5829, %v5951, 0.0
    %v6022 = vrot.slane %v6021, 4
    %v6023 = vadd.f32 %v6021, %v6022
    %v6024 = vrot.slane %v6023, 2
    %v6025 = vadd.f32 %v6023, %v6024
    %v6026 = vrot.slane %v6025, 1
    %v6027 = vadd.f32 %v6025, %v6026
    %v6028 = vsel %vm5829, %v5952, 0.0
    %v6029 = vrot.slane %v6028, 4
    %v6030 = vadd.f32 %v6028, %v6029
    %v6031 = vrot.slane %v6030, 2
    %v6032 = vadd.f32 %v6030, %v6031
    %v6033 = vrot.slane %v6032, 1
    %v6034 = vadd.f32 %v6032, %v6033
    %v6035 = vsel %vm5829, %v5953, 0.0
    %v6036 = vrot.slane %v6035, 4
    %v6037 = vadd.f32 %v6035, %v6036
    %v6038 = vrot.slane %v6037, 2
    %v6039 = vadd.f32 %v6037, %v6038
    %v6040 = vrot.slane %v6039, 1
    %v6041 = vadd.f32 %v6039, %v6040
    %v6042 = vsel %vm5829, %v5954, 0.0
    %v6043 = vrot.slane %v6042, 4
    %v6044 = vadd.f32 %v6042, %v6043
    %v6045 = vrot.slane %v6044, 2
    %v6046 = vadd.f32 %v6044, %v6045
    %v6047 = vrot.slane %v6046, 1
    %v6048 = vadd.f32 %v6046, %v6047
    %v6049 = vsel %vm5829, %v5955, 0.0
    %v6050 = vrot.slane %v6049, 4
    %v6051 = vadd.f32 %v6049, %v6050
    %v6052 = vrot.slane %v6051, 2
    %v6053 = vadd.f32 %v6051, %v6052
    %v6054 = vrot.slane %v6053, 1
    %v6055 = vadd.f32 %v6053, %v6054
    %v6056 = vsel %vm5829, %v5956, 0.0
    %v6057 = vrot.slane %v6056, 4
    %v6058 = vadd.f32 %v6056, %v6057
    %v6059 = vrot.slane %v6058, 2
    %v6060 = vadd.f32 %v6058, %v6059
    %v6061 = vrot.slane %v6060, 1
    %v6062 = vadd.f32 %v6060, %v6061
    %v6063 = vsel %vm5829, %v5957, 0.0
    %v6064 = vrot.slane %v6063, 4
    %v6065 = vadd.f32 %v6063, %v6064
    %v6066 = vrot.slane %v6065, 2
    %v6067 = vadd.f32 %v6065, %v6066
    %v6068 = vrot.slane %v6067, 1
    %v6069 = vadd.f32 %v6067, %v6068
    %6070 = vmatprep.subr.mxu0 0.0
    %6071 = vmatpush1.msra.mxu0 %v5588
    %6072 = vmatprep.subr.mxu0 0.0
    %6073 = vmatpush1.msra.mxu0 %v5587
    %6074 = vmatprep.subr.mxu0 0.0
    %6075 = vmatpush1.msra.mxu0 %v5586
    %6076 = vmatprep.subr.mxu0 0.0
    %6077 = vmatpush1.msra.mxu0 %v5585
    %6078 = vmatprep.subr.mxu0 0.0
    %6079 = vmatpush1.msra.mxu0 %v5584
    %6080 = vmatprep.subr.mxu0 0.0
    %6081 = vmatpush1.msra.mxu0 %v5583
    %6082 = vmatprep.subr.mxu0 0.0
    %6083 = vmatpush1.msra.mxu0 %v5582
    %6084 = vmatprep.subr.mxu0 0.0
    %6085 = vmatpush1.msra.mxu0 %v5581
    %6086 = vmatprep.subr.mxu0 0.0
    %6087 = vmatpush1.msra.mxu0 %v5580
    %6088 = vmatprep.subr.mxu0 0.0
    %6089 = vmatpush1.msra.mxu0 %v5579
    %6090 = vmatprep.subr.mxu0 0.0
    %6091 = vmatpush1.msra.mxu0 %v5578
    %6092 = vmatprep.subr.mxu0 0.0
    %6093 = vmatpush1.msra.mxu0 %v5577
    %6094 = vmatprep.subr.mxu0 0.0
    %6095 = vmatpush1.msra.mxu0 %v5576
    %6096 = vmatprep.subr.mxu0 0.0
    %6097 = vmatpush1.msra.mxu0 %v5575
    %6098 = vmatprep.subr.mxu0 0.0
    %6099 = vmatpush1.msra.mxu0 %v5574
    %6100 = vmatprep.subr.mxu0 0.0
    %6101 = vmatpush1.msra.mxu0 %v5573
    %6102 = vmatprep.subr.mxu0 0.0
    %6103 = vmatpush2.msra.mxu0 %v5604
    %6104 = vmatprep.subr.mxu0 0.0
    %6105 = vmatpush2.msra.mxu0 %v5603
    %6106 = vmatprep.subr.mxu0 0.0
    %6107 = vmatpush2.msra.mxu0 %v5602
    %6108 = vmatprep.subr.mxu0 0.0
    %6109 = vmatpush2.msra.mxu0 %v5601
    %6110 = vmatprep.subr.mxu0 0.0
    %6111 = vmatpush2.msra.mxu0 %v5600
    %6112 = vmatprep.subr.mxu0 0.0
    %6113 = vmatpush2.msra.mxu0 %v5599
    %6114 = vmatprep.subr.mxu0 0.0
    %6115 = vmatpush2.msra.mxu0 %v5598
    %6116 = vmatprep.subr.mxu0 0.0
    %6117 = vmatpush2.msra.mxu0 %v5597
    %6118 = vmatprep.subr.mxu0 0.0
    %6119 = vmatpush2.msra.mxu0 %v5596
    %6120 = vmatprep.subr.mxu0 0.0
    %6121 = vmatpush2.msra.mxu0 %v5595
    %6122 = vmatprep.subr.mxu0 0.0
    %6123 = vmatpush2.msra.mxu0 %v5594
    %6124 = vmatprep.subr.mxu0 0.0
    %6125 = vmatpush2.msra.mxu0 %v5593
    %6126 = vmatprep.subr.mxu0 0.0
    %6127 = vmatpush2.msra.mxu0 %v5592
    %6128 = vmatprep.subr.mxu0 0.0
    %6129 = vmatpush2.msra.mxu0 %v5591
    %6130 = vmatprep.subr.mxu0 0.0
    %6131 = vmatpush2.msra.mxu0 %v5590
    %6132 = vmatprep.subr.mxu0 0.0
    %6133 = vmatpush2.msra.mxu0 %v5589
    %6134 = vmatprep.mubr.f32.mxu0 %v5843
    %6135 = vmatmul.mubr.f32.gmra.mxu0 %v5836
    %v6136 = vpop.f32.mrf.mxu0
    %v6137 = vadd.f32 0.0, %v6136
    %v6138 = vpop.f32.mrf.mxu0
    %6139 = vdwg.mxu0
    %6140 = vmatprep.subr.mxu0 0.0
    %6141 = vmatpush1.msra.mxu0 %v5620
    %6142 = vmatprep.subr.mxu0 0.0
    %6143 = vmatpush1.msra.mxu0 %v5619
    %6144 = vmatprep.subr.mxu0 0.0
    %6145 = vmatpush1.msra.mxu0 %v5618
    %6146 = vmatprep.subr.mxu0 0.0
    %6147 = vmatpush1.msra.mxu0 %v5617
    %6148 = vmatprep.subr.mxu0 0.0
    %6149 = vmatpush1.msra.mxu0 %v5616
    %6150 = vmatprep.subr.mxu0 0.0
    %6151 = vmatpush1.msra.mxu0 %v5615
    %6152 = vmatprep.subr.mxu0 0.0
    %6153 = vmatpush1.msra.mxu0 %v5614
    %6154 = vmatprep.subr.mxu0 0.0
    %6155 = vmatpush1.msra.mxu0 %v5613
    %6156 = vmatprep.subr.mxu0 0.0
    %6157 = vmatpush1.msra.mxu0 %v5612
    %6158 = vmatprep.subr.mxu0 0.0
    %6159 = vmatpush1.msra.mxu0 %v5611
    %6160 = vmatprep.subr.mxu0 0.0
    %6161 = vmatpush1.msra.mxu0 %v5610
    %6162 = vmatprep.subr.mxu0 0.0
    %6163 = vmatpush1.msra.mxu0 %v5609
    %6164 = vmatprep.subr.mxu0 0.0
    %6165 = vmatpush1.msra.mxu0 %v5608
    %6166 = vmatprep.subr.mxu0 0.0
    %6167 = vmatpush1.msra.mxu0 %v5607
    %6168 = vmatprep.subr.mxu0 0.0
    %6169 = vmatpush1.msra.mxu0 %v5606
    %6170 = vmatprep.subr.mxu0 0.0
    %6171 = vmatpush1.msra.mxu0 %v5605
    %6172 = vmatprep.subr.mxu0 0.0
    %6173 = vmatpush2.msra.mxu0 %v5636
    %6174 = vmatprep.subr.mxu0 0.0
    %6175 = vmatpush2.msra.mxu0 %v5635
    %6176 = vmatprep.subr.mxu0 0.0
    %6177 = vmatpush2.msra.mxu0 %v5634
    %6178 = vmatprep.subr.mxu0 0.0
    %6179 = vmatpush2.msra.mxu0 %v5633
    %6180 = vmatprep.subr.mxu0 0.0
    %6181 = vmatpush2.msra.mxu0 %v5632
    %6182 = vmatprep.subr.mxu0 0.0
    %6183 = vmatpush2.msra.mxu0 %v5631
    %6184 = vmatprep.subr.mxu0 0.0
    %6185 = vmatpush2.msra.mxu0 %v5630
    %6186 = vmatprep.subr.mxu0 0.0
    %6187 = vmatpush2.msra.mxu0 %v5629
    %6188 = vmatprep.subr.mxu0 0.0
    %6189 = vmatpush2.msra.mxu0 %v5628
    %6190 = vmatprep.subr.mxu0 0.0
    %6191 = vmatpush2.msra.mxu0 %v5627
    %6192 = vmatprep.subr.mxu0 0.0
    %6193 = vmatpush2.msra.mxu0 %v5626
    %6194 = vmatprep.subr.mxu0 0.0
    %6195 = vmatpush2.msra.mxu0 %v5625
    %6196 = vmatprep.subr.mxu0 0.0
    %6197 = vmatpush2.msra.mxu0 %v5624
    %6198 = vmatprep.subr.mxu0 0.0
    %6199 = vmatpush2.msra.mxu0 %v5623
    %6200 = vmatprep.subr.mxu0 0.0
    %6201 = vmatpush2.msra.mxu0 %v5622
    %6202 = vmatprep.subr.mxu0 0.0
    %6203 = vmatpush2.msra.mxu0 %v5621
    %6204 = vmatprep.mubr.f32.mxu0 %v5857
    %6205 = vmatmul.mubr.f32.gmra.mxu0 %v5850
    %v6206 = vpop.f32.mrf.mxu0
    %v6207 = vadd.f32 %v6137, %v6206
    %v6208 = vpop.f32.mrf.mxu0
    %6209 = vdwg.mxu0
    %6210 = vmatprep.subr.mxu0 0.0
    %6211 = vmatpush1.msra.mxu0 %v5652
    %6212 = vmatprep.subr.mxu0 0.0
    %6213 = vmatpush1.msra.mxu0 %v5651
    %6214 = vmatprep.subr.mxu0 0.0
    %6215 = vmatpush1.msra.mxu0 %v5650
    %6216 = vmatprep.subr.mxu0 0.0
    %6217 = vmatpush1.msra.mxu0 %v5649
    %6218 = vmatprep.subr.mxu0 0.0
    %6219 = vmatpush1.msra.mxu0 %v5648
    %6220 = vmatprep.subr.mxu0 0.0
    %6221 = vmatpush1.msra.mxu0 %v5647
    %6222 = vmatprep.subr.mxu0 0.0
    %6223 = vmatpush1.msra.mxu0 %v5646
    %6224 = vmatprep.subr.mxu0 0.0
    %6225 = vmatpush1.msra.mxu0 %v5645
    %6226 = vmatprep.subr.mxu0 0.0
    %6227 = vmatpush1.msra.mxu0 %v5644
    %6228 = vmatprep.subr.mxu0 0.0
    %6229 = vmatpush1.msra.mxu0 %v5643
    %6230 = vmatprep.subr.mxu0 0.0
    %6231 = vmatpush1.msra.mxu0 %v5642
    %6232 = vmatprep.subr.mxu0 0.0
    %6233 = vmatpush1.msra.mxu0 %v5641
    %6234 = vmatprep.subr.mxu0 0.0
    %6235 = vmatpush1.msra.mxu0 %v5640
    %6236 = vmatprep.subr.mxu0 0.0
    %6237 = vmatpush1.msra.mxu0 %v5639
    %6238 = vmatprep.subr.mxu0 0.0
    %6239 = vmatpush1.msra.mxu0 %v5638
    %6240 = vmatprep.subr.mxu0 0.0
    %6241 = vmatpush1.msra.mxu0 %v5637
    %6242 = vmatprep.subr.mxu0 0.0
    %6243 = vmatpush2.msra.mxu0 %v5668
    %6244 = vmatprep.subr.mxu0 0.0
    %6245 = vmatpush2.msra.mxu0 %v5667
    %6246 = vmatprep.subr.mxu0 0.0
    %6247 = vmatpush2.msra.mxu0 %v5666
    %6248 = vmatprep.subr.mxu0 0.0
    %6249 = vmatpush2.msra.mxu0 %v5665
    %6250 = vmatprep.subr.mxu0 0.0
    %6251 = vmatpush2.msra.mxu0 %v5664
    %6252 = vmatprep.subr.mxu0 0.0
    %6253 = vmatpush2.msra.mxu0 %v5663
    %6254 = vmatprep.subr.mxu0 0.0
    %6255 = vmatpush2.msra.mxu0 %v5662
    %6256 = vmatprep.subr.mxu0 0.0
    %6257 = vmatpush2.msra.mxu0 %v5661
    %6258 = vmatprep.subr.mxu0 0.0
    %6259 = vmatpush2.msra.mxu0 %v5660
    %6260 = vmatprep.subr.mxu0 0.0
    %6261 = vmatpush2.msra.mxu0 %v5659
    %6262 = vmatprep.subr.mxu0 0.0
    %6263 = vmatpush2.msra.mxu0 %v5658
    %6264 = vmatprep.subr.mxu0 0.0
    %6265 = vmatpush2.msra.mxu0 %v5657
    %6266 = vmatprep.subr.mxu0 0.0
    %6267 = vmatpush2.msra.mxu0 %v5656
    %6268 = vmatprep.subr.mxu0 0.0
    %6269 = vmatpush2.msra.mxu0 %v5655
    %6270 = vmatprep.subr.mxu0 0.0
    %6271 = vmatpush2.msra.mxu0 %v5654
    %6272 = vmatprep.subr.mxu0 0.0
    %6273 = vmatpush2.msra.mxu0 %v5653
    %6274 = vmatprep.mubr.f32.mxu0 %v5871
    %6275 = vmatmul.mubr.f32.gmra.mxu0 %v5864
    %v6276 = vpop.f32.mrf.mxu0
    %v6277 = vadd.f32 %v6207, %v6276
    %v6278 = vpop.f32.mrf.mxu0
    %6279 = vdwg.mxu0
    %6280 = vmatprep.subr.mxu0 0.0
    %6281 = vmatpush1.msra.mxu0 %v5684
    %6282 = vmatprep.subr.mxu0 0.0
    %6283 = vmatpush1.msra.mxu0 %v5683
    %6284 = vmatprep.subr.mxu0 0.0
    %6285 = vmatpush1.msra.mxu0 %v5682
    %6286 = vmatprep.subr.mxu0 0.0
    %6287 = vmatpush1.msra.mxu0 %v5681
    %6288 = vmatprep.subr.mxu0 0.0
    %6289 = vmatpush1.msra.mxu0 %v5680
    %6290 = vmatprep.subr.mxu0 0.0
    %6291 = vmatpush1.msra.mxu0 %v5679
    %6292 = vmatprep.subr.mxu0 0.0
    %6293 = vmatpush1.msra.mxu0 %v5678
    %6294 = vmatprep.subr.mxu0 0.0
    %6295 = vmatpush1.msra.mxu0 %v5677
    %6296 = vmatprep.subr.mxu0 0.0
    %6297 = vmatpush1.msra.mxu0 %v5676
    %6298 = vmatprep.subr.mxu0 0.0
    %6299 = vmatpush1.msra.mxu0 %v5675
    %6300 = vmatprep.subr.mxu0 0.0
    %6301 = vmatpush1.msra.mxu0 %v5674
    %6302 = vmatprep.subr.mxu0 0.0
    %6303 = vmatpush1.msra.mxu0 %v5673
    %6304 = vmatprep.subr.mxu0 0.0
    %6305 = vmatpush1.msra.mxu0 %v5672
    %6306 = vmatprep.subr.mxu0 0.0
    %6307 = vmatpush1.msra.mxu0 %v5671
    %6308 = vmatprep.subr.mxu0 0.0
    %6309 = vmatpush1.msra.mxu0 %v5670
    %6310 = vmatprep.subr.mxu0 0.0
    %6311 = vmatpush1.msra.mxu0 %v5669
    %6312 = vmatprep.subr.mxu0 0.0
    %6313 = vmatpush2.msra.mxu0 %v5700
    %6314 = vmatprep.subr.mxu0 0.0
    %6315 = vmatpush2.msra.mxu0 %v5699
    %6316 = vmatprep.subr.mxu0 0.0
    %6317 = vmatpush2.msra.mxu0 %v5698
    %6318 = vmatprep.subr.mxu0 0.0
    %6319 = vmatpush2.msra.mxu0 %v5697
    %6320 = vmatprep.subr.mxu0 0.0
    %6321 = vmatpush2.msra.mxu0 %v5696
    %6322 = vmatprep.subr.mxu0 0.0
    %6323 = vmatpush2.msra.mxu0 %v5695
    %6324 = vmatprep.subr.mxu0 0.0
    %6325 = vmatpush2.msra.mxu0 %v5694
    %6326 = vmatprep.subr.mxu0 0.0
    %6327 = vmatpush2.msra.mxu0 %v5693
    %6328 = vmatprep.subr.mxu0 0.0
    %6329 = vmatpush2.msra.mxu0 %v5692
    %6330 = vmatprep.subr.mxu0 0.0
    %6331 = vmatpush2.msra.mxu0 %v5691
    %6332 = vmatprep.subr.mxu0 0.0
    %6333 = vmatpush2.msra.mxu0 %v5690
    %6334 = vmatprep.subr.mxu0 0.0
    %6335 = vmatpush2.msra.mxu0 %v5689
    %6336 = vmatprep.subr.mxu0 0.0
    %6337 = vmatpush2.msra.mxu0 %v5688
    %6338 = vmatprep.subr.mxu0 0.0
    %6339 = vmatpush2.msra.mxu0 %v5687
    %6340 = vmatprep.subr.mxu0 0.0
    %6341 = vmatpush2.msra.mxu0 %v5686
    %6342 = vmatprep.subr.mxu0 0.0
    %6343 = vmatpush2.msra.mxu0 %v5685
    %6344 = vmatprep.mubr.f32.mxu0 %v5885
    %6345 = vmatmul.mubr.f32.gmra.mxu0 %v5878
    %v6346 = vpop.f32.mrf.mxu0
    %v6347 = vadd.f32 %v6277, %v6346
    %v6348 = vpop.f32.mrf.mxu0
    %6349 = vdwg.mxu0
    %6350 = vmatprep.subr.mxu0 0.0
    %6351 = vmatpush1.msra.mxu0 %v5716
    %6352 = vmatprep.subr.mxu0 0.0
    %6353 = vmatpush1.msra.mxu0 %v5715
    %6354 = vmatprep.subr.mxu0 0.0
    %6355 = vmatpush1.msra.mxu0 %v5714
    %6356 = vmatprep.subr.mxu0 0.0
    %6357 = vmatpush1.msra.mxu0 %v5713
    %6358 = vmatprep.subr.mxu0 0.0
    %6359 = vmatpush1.msra.mxu0 %v5712
    %6360 = vmatprep.subr.mxu0 0.0
    %6361 = vmatpush1.msra.mxu0 %v5711
    %6362 = vmatprep.subr.mxu0 0.0
    %6363 = vmatpush1.msra.mxu0 %v5710
    %6364 = vmatprep.subr.mxu0 0.0
    %6365 = vmatpush1.msra.mxu0 %v5709
    %6366 = vmatprep.subr.mxu0 0.0
    %6367 = vmatpush1.msra.mxu0 %v5708
    %6368 = vmatprep.subr.mxu0 0.0
    %6369 = vmatpush1.msra.mxu0 %v5707
    %6370 = vmatprep.subr.mxu0 0.0
    %6371 = vmatpush1.msra.mxu0 %v5706
    %6372 = vmatprep.subr.mxu0 0.0
    %6373 = vmatpush1.msra.mxu0 %v5705
    %6374 = vmatprep.subr.mxu0 0.0
    %6375 = vmatpush1.msra.mxu0 %v5704
    %6376 = vmatprep.subr.mxu0 0.0
    %6377 = vmatpush1.msra.mxu0 %v5703
    %6378 = vmatprep.subr.mxu0 0.0
    %6379 = vmatpush1.msra.mxu0 %v5702
    %6380 = vmatprep.subr.mxu0 0.0
    %6381 = vmatpush1.msra.mxu0 %v5701
    %6382 = vmatprep.subr.mxu0 0.0
    %6383 = vmatpush2.msra.mxu0 %v5732
    %6384 = vmatprep.subr.mxu0 0.0
    %6385 = vmatpush2.msra.mxu0 %v5731
    %6386 = vmatprep.subr.mxu0 0.0
    %6387 = vmatpush2.msra.mxu0 %v5730
    %6388 = vmatprep.subr.mxu0 0.0
    %6389 = vmatpush2.msra.mxu0 %v5729
    %6390 = vmatprep.subr.mxu0 0.0
    %6391 = vmatpush2.msra.mxu0 %v5728
    %6392 = vmatprep.subr.mxu0 0.0
    %6393 = vmatpush2.msra.mxu0 %v5727
    %6394 = vmatprep.subr.mxu0 0.0
    %6395 = vmatpush2.msra.mxu0 %v5726
    %6396 = vmatprep.subr.mxu0 0.0
    %6397 = vmatpush2.msra.mxu0 %v5725
    %6398 = vmatprep.subr.mxu0 0.0
    %6399 = vmatpush2.msra.mxu0 %v5724
    %6400 = vmatprep.subr.mxu0 0.0
    %6401 = vmatpush2.msra.mxu0 %v5723
    %6402 = vmatprep.subr.mxu0 0.0
    %6403 = vmatpush2.msra.mxu0 %v5722
    %6404 = vmatprep.subr.mxu0 0.0
    %6405 = vmatpush2.msra.mxu0 %v5721
    %6406 = vmatprep.subr.mxu0 0.0
    %6407 = vmatpush2.msra.mxu0 %v5720
    %6408 = vmatprep.subr.mxu0 0.0
    %6409 = vmatpush2.msra.mxu0 %v5719
    %6410 = vmatprep.subr.mxu0 0.0
    %6411 = vmatpush2.msra.mxu0 %v5718
    %6412 = vmatprep.subr.mxu0 0.0
    %6413 = vmatpush2.msra.mxu0 %v5717
    %6414 = vmatprep.mubr.f32.mxu0 %v5899
    %6415 = vmatmul.mubr.f32.gmra.mxu0 %v5892
    %v6416 = vpop.f32.mrf.mxu0
    %v6417 = vadd.f32 %v6347, %v6416
    %v6418 = vpop.f32.mrf.mxu0
    %6419 = vdwg.mxu0
    %6420 = vmatprep.subr.mxu0 0.0
    %6421 = vmatpush1.msra.mxu0 %v5748
    %6422 = vmatprep.subr.mxu0 0.0
    %6423 = vmatpush1.msra.mxu0 %v5747
    %6424 = vmatprep.subr.mxu0 0.0
    %6425 = vmatpush1.msra.mxu0 %v5746
    %6426 = vmatprep.subr.mxu0 0.0
    %6427 = vmatpush1.msra.mxu0 %v5745
    %6428 = vmatprep.subr.mxu0 0.0
    %6429 = vmatpush1.msra.mxu0 %v5744
    %6430 = vmatprep.subr.mxu0 0.0
    %6431 = vmatpush1.msra.mxu0 %v5743
    %6432 = vmatprep.subr.mxu0 0.0
    %6433 = vmatpush1.msra.mxu0 %v5742
    %6434 = vmatprep.subr.mxu0 0.0
    %6435 = vmatpush1.msra.mxu0 %v5741
    %6436 = vmatprep.subr.mxu0 0.0
    %6437 = vmatpush1.msra.mxu0 %v5740
    %6438 = vmatprep.subr.mxu0 0.0
    %6439 = vmatpush1.msra.mxu0 %v5739
    %6440 = vmatprep.subr.mxu0 0.0
    %6441 = vmatpush1.msra.mxu0 %v5738
    %6442 = vmatprep.subr.mxu0 0.0
    %6443 = vmatpush1.msra.mxu0 %v5737
    %6444 = vmatprep.subr.mxu0 0.0
    %6445 = vmatpush1.msra.mxu0 %v5736
    %6446 = vmatprep.subr.mxu0 0.0
    %6447 = vmatpush1.msra.mxu0 %v5735
    %6448 = vmatprep.subr.mxu0 0.0
    %6449 = vmatpush1.msra.mxu0 %v5734
    %6450 = vmatprep.subr.mxu0 0.0
    %6451 = vmatpush1.msra.mxu0 %v5733
    %6452 = vmatprep.subr.mxu0 0.0
    %6453 = vmatpush2.msra.mxu0 %v5764
    %6454 = vmatprep.subr.mxu0 0.0
    %6455 = vmatpush2.msra.mxu0 %v5763
    %6456 = vmatprep.subr.mxu0 0.0
    %6457 = vmatpush2.msra.mxu0 %v5762
    %6458 = vmatprep.subr.mxu0 0.0
    %6459 = vmatpush2.msra.mxu0 %v5761
    %6460 = vmatprep.subr.mxu0 0.0
    %6461 = vmatpush2.msra.mxu0 %v5760
    %6462 = vmatprep.subr.mxu0 0.0
    %6463 = vmatpush2.msra.mxu0 %v5759
    %6464 = vmatprep.subr.mxu0 0.0
    %6465 = vmatpush2.msra.mxu0 %v5758
    %6466 = vmatprep.subr.mxu0 0.0
    %6467 = vmatpush2.msra.mxu0 %v5757
    %6468 = vmatprep.subr.mxu0 0.0
    %6469 = vmatpush2.msra.mxu0 %v5756
    %6470 = vmatprep.subr.mxu0 0.0
    %6471 = vmatpush2.msra.mxu0 %v5755
    %6472 = vmatprep.subr.mxu0 0.0
    %6473 = vmatpush2.msra.mxu0 %v5754
    %6474 = vmatprep.subr.mxu0 0.0
    %6475 = vmatpush2.msra.mxu0 %v5753
    %6476 = vmatprep.subr.mxu0 0.0
    %6477 = vmatpush2.msra.mxu0 %v5752
    %6478 = vmatprep.subr.mxu0 0.0
    %6479 = vmatpush2.msra.mxu0 %v5751
    %6480 = vmatprep.subr.mxu0 0.0
    %6481 = vmatpush2.msra.mxu0 %v5750
    %6482 = vmatprep.subr.mxu0 0.0
    %6483 = vmatpush2.msra.mxu0 %v5749
    %6484 = vmatprep.mubr.f32.mxu0 %v5913
    %6485 = vmatmul.mubr.f32.gmra.mxu0 %v5906
    %v6486 = vpop.f32.mrf.mxu0
    %v6487 = vadd.f32 %v6417, %v6486
    %v6488 = vpop.f32.mrf.mxu0
    %6489 = vdwg.mxu0
    %6490 = vmatprep.subr.mxu0 0.0
    %6491 = vmatpush1.msra.mxu0 %v5780
    %6492 = vmatprep.subr.mxu0 0.0
    %6493 = vmatpush1.msra.mxu0 %v5779
    %6494 = vmatprep.subr.mxu0 0.0
    %6495 = vmatpush1.msra.mxu0 %v5778
    %6496 = vmatprep.subr.mxu0 0.0
    %6497 = vmatpush1.msra.mxu0 %v5777
    %6498 = vmatprep.subr.mxu0 0.0
    %6499 = vmatpush1.msra.mxu0 %v5776
    %6500 = vmatprep.subr.mxu0 0.0
    %6501 = vmatpush1.msra.mxu0 %v5775
    %6502 = vmatprep.subr.mxu0 0.0
    %6503 = vmatpush1.msra.mxu0 %v5774
    %6504 = vmatprep.subr.mxu0 0.0
    %6505 = vmatpush1.msra.mxu0 %v5773
    %6506 = vmatprep.subr.mxu0 0.0
    %6507 = vmatpush1.msra.mxu0 %v5772
    %6508 = vmatprep.subr.mxu0 0.0
    %6509 = vmatpush1.msra.mxu0 %v5771
    %6510 = vmatprep.subr.mxu0 0.0
    %6511 = vmatpush1.msra.mxu0 %v5770
    %6512 = vmatprep.subr.mxu0 0.0
    %6513 = vmatpush1.msra.mxu0 %v5769
    %6514 = vmatprep.subr.mxu0 0.0
    %6515 = vmatpush1.msra.mxu0 %v5768
    %6516 = vmatprep.subr.mxu0 0.0
    %6517 = vmatpush1.msra.mxu0 %v5767
    %6518 = vmatprep.subr.mxu0 0.0
    %6519 = vmatpush1.msra.mxu0 %v5766
    %6520 = vmatprep.subr.mxu0 0.0
    %6521 = vmatpush1.msra.mxu0 %v5765
    %6522 = vmatprep.subr.mxu0 0.0
    %6523 = vmatpush2.msra.mxu0 %v5796
    %6524 = vmatprep.subr.mxu0 0.0
    %6525 = vmatpush2.msra.mxu0 %v5795
    %6526 = vmatprep.subr.mxu0 0.0
    %6527 = vmatpush2.msra.mxu0 %v5794
    %6528 = vmatprep.subr.mxu0 0.0
    %6529 = vmatpush2.msra.mxu0 %v5793
    %6530 = vmatprep.subr.mxu0 0.0
    %6531 = vmatpush2.msra.mxu0 %v5792
    %6532 = vmatprep.subr.mxu0 0.0
    %6533 = vmatpush2.msra.mxu0 %v5791
    %6534 = vmatprep.subr.mxu0 0.0
    %6535 = vmatpush2.msra.mxu0 %v5790
    %6536 = vmatprep.subr.mxu0 0.0
    %6537 = vmatpush2.msra.mxu0 %v5789
    %6538 = vmatprep.subr.mxu0 0.0
    %6539 = vmatpush2.msra.mxu0 %v5788
    %6540 = vmatprep.subr.mxu0 0.0
    %6541 = vmatpush2.msra.mxu0 %v5787
    %6542 = vmatprep.subr.mxu0 0.0
    %6543 = vmatpush2.msra.mxu0 %v5786
    %6544 = vmatprep.subr.mxu0 0.0
    %6545 = vmatpush2.msra.mxu0 %v5785
    %6546 = vmatprep.subr.mxu0 0.0
    %6547 = vmatpush2.msra.mxu0 %v5784
    %6548 = vmatprep.subr.mxu0 0.0
    %6549 = vmatpush2.msra.mxu0 %v5783
    %6550 = vmatprep.subr.mxu0 0.0
    %6551 = vmatpush2.msra.mxu0 %v5782
    %6552 = vmatprep.subr.mxu0 0.0
    %6553 = vmatpush2.msra.mxu0 %v5781
    %6554 = vmatprep.mubr.f32.mxu0 %v5927
    %6555 = vmatmul.mubr.f32.gmra.mxu0 %v5920
    %v6556 = vpop.f32.mrf.mxu0
    %v6557 = vadd.f32 %v6487, %v6556
    %v6558 = vpop.f32.mrf.mxu0
    %6559 = vdwg.mxu0
    %6560 = vmatprep.subr.mxu0 0.0
    %6561 = vmatpush1.msra.mxu0 %v5812
    %6562 = vmatprep.subr.mxu0 0.0
    %6563 = vmatpush1.msra.mxu0 %v5811
    %6564 = vmatprep.subr.mxu0 0.0
    %6565 = vmatpush1.msra.mxu0 %v5810
    %6566 = vmatprep.subr.mxu0 0.0
    %6567 = vmatpush1.msra.mxu0 %v5809
    %6568 = vmatprep.subr.mxu0 0.0
    %6569 = vmatpush1.msra.mxu0 %v5808
    %6570 = vmatprep.subr.mxu0 0.0
    %6571 = vmatpush1.msra.mxu0 %v5807
    %6572 = vmatprep.subr.mxu0 0.0
    %6573 = vmatpush1.msra.mxu0 %v5806
    %6574 = vmatprep.subr.mxu0 0.0
    %6575 = vmatpush1.msra.mxu0 %v5805
    %6576 = vmatprep.subr.mxu0 0.0
    %6577 = vmatpush1.msra.mxu0 %v5804
    %6578 = vmatprep.subr.mxu0 0.0
    %6579 = vmatpush1.msra.mxu0 %v5803
    %6580 = vmatprep.subr.mxu0 0.0
    %6581 = vmatpush1.msra.mxu0 %v5802
    %6582 = vmatprep.subr.mxu0 0.0
    %6583 = vmatpush1.msra.mxu0 %v5801
    %6584 = vmatprep.subr.mxu0 0.0
    %6585 = vmatpush1.msra.mxu0 %v5800
    %6586 = vmatprep.subr.mxu0 0.0
    %6587 = vmatpush1.msra.mxu0 %v5799
    %6588 = vmatprep.subr.mxu0 0.0
    %6589 = vmatpush1.msra.mxu0 %v5798
    %6590 = vmatprep.subr.mxu0 0.0
    %6591 = vmatpush1.msra.mxu0 %v5797
    %6592 = vmatprep.subr.mxu0 0.0
    %6593 = vmatpush2.msra.mxu0 %v5828
    %6594 = vmatprep.subr.mxu0 0.0
    %6595 = vmatpush2.msra.mxu0 %v5827
    %6596 = vmatprep.subr.mxu0 0.0
    %6597 = vmatpush2.msra.mxu0 %v5826
    %6598 = vmatprep.subr.mxu0 0.0
    %6599 = vmatpush2.msra.mxu0 %v5825
    %6600 = vmatprep.subr.mxu0 0.0
    %6601 = vmatpush2.msra.mxu0 %v5824
    %6602 = vmatprep.subr.mxu0 0.0
    %6603 = vmatpush2.msra.mxu0 %v5823
    %6604 = vmatprep.subr.mxu0 0.0
    %6605 = vmatpush2.msra.mxu0 %v5822
    %6606 = vmatprep.subr.mxu0 0.0
    %6607 = vmatpush2.msra.mxu0 %v5821
    %6608 = vmatprep.subr.mxu0 0.0
    %6609 = vmatpush2.msra.mxu0 %v5820
    %6610 = vmatprep.subr.mxu0 0.0
    %6611 = vmatpush2.msra.mxu0 %v5819
    %6612 = vmatprep.subr.mxu0 0.0
    %6613 = vmatpush2.msra.mxu0 %v5818
    %6614 = vmatprep.subr.mxu0 0.0
    %6615 = vmatpush2.msra.mxu0 %v5817
    %6616 = vmatprep.subr.mxu0 0.0
    %6617 = vmatpush2.msra.mxu0 %v5816
    %6618 = vmatprep.subr.mxu0 0.0
    %6619 = vmatpush2.msra.mxu0 %v5815
    %6620 = vmatprep.subr.mxu0 0.0
    %6621 = vmatpush2.msra.mxu0 %v5814
    %6622 = vmatprep.subr.mxu0 0.0
    %6623 = vmatpush2.msra.mxu0 %v5813
    %6624 = vmatprep.mubr.f32.mxu0 %v5941
    %6625 = vmatmul.mubr.f32.gmra.mxu0 %v5934
    %v6626 = vpop.f32.mrf.mxu0
    %v6627 = vadd.f32 %v6557, %v6626
    %v6628 = vpop.f32.mrf.mxu0
    %6629 = vdwg.mxu0
    %6630 = vmatprep.subr.mxu0 0.0
    %6631 = vmatpush1.msra.mxu0 %v5588
    %6632 = vmatprep.subr.mxu0 0.0
    %6633 = vmatpush1.msra.mxu0 %v5587
    %6634 = vmatprep.subr.mxu0 0.0
    %6635 = vmatpush1.msra.mxu0 %v5586
    %6636 = vmatprep.subr.mxu0 0.0
    %6637 = vmatpush1.msra.mxu0 %v5585
    %6638 = vmatprep.subr.mxu0 0.0
    %6639 = vmatpush1.msra.mxu0 %v5584
    %6640 = vmatprep.subr.mxu0 0.0
    %6641 = vmatpush1.msra.mxu0 %v5583
    %6642 = vmatprep.subr.mxu0 0.0
    %6643 = vmatpush1.msra.mxu0 %v5582
    %6644 = vmatprep.subr.mxu0 0.0
    %6645 = vmatpush1.msra.mxu0 %v5581
    %6646 = vmatprep.subr.mxu0 0.0
    %6647 = vmatpush1.msra.mxu0 %v5580
    %6648 = vmatprep.subr.mxu0 0.0
    %6649 = vmatpush1.msra.mxu0 %v5579
    %6650 = vmatprep.subr.mxu0 0.0
    %6651 = vmatpush1.msra.mxu0 %v5578
    %6652 = vmatprep.subr.mxu0 0.0
    %6653 = vmatpush1.msra.mxu0 %v5577
    %6654 = vmatprep.subr.mxu0 0.0
    %6655 = vmatpush1.msra.mxu0 %v5576
    %6656 = vmatprep.subr.mxu0 0.0
    %6657 = vmatpush1.msra.mxu0 %v5575
    %6658 = vmatprep.subr.mxu0 0.0
    %6659 = vmatpush1.msra.mxu0 %v5574
    %6660 = vmatprep.subr.mxu0 0.0
    %6661 = vmatpush1.msra.mxu0 %v5573
    %6662 = vmatprep.subr.mxu0 0.0
    %6663 = vmatpush2.msra.mxu0 %v5604
    %6664 = vmatprep.subr.mxu0 0.0
    %6665 = vmatpush2.msra.mxu0 %v5603
    %6666 = vmatprep.subr.mxu0 0.0
    %6667 = vmatpush2.msra.mxu0 %v5602
    %6668 = vmatprep.subr.mxu0 0.0
    %6669 = vmatpush2.msra.mxu0 %v5601
    %6670 = vmatprep.subr.mxu0 0.0
    %6671 = vmatpush2.msra.mxu0 %v5600
    %6672 = vmatprep.subr.mxu0 0.0
    %6673 = vmatpush2.msra.mxu0 %v5599
    %6674 = vmatprep.subr.mxu0 0.0
    %6675 = vmatpush2.msra.mxu0 %v5598
    %6676 = vmatprep.subr.mxu0 0.0
    %6677 = vmatpush2.msra.mxu0 %v5597
    %6678 = vmatprep.subr.mxu0 0.0
    %6679 = vmatpush2.msra.mxu0 %v5596
    %6680 = vmatprep.subr.mxu0 0.0
    %6681 = vmatpush2.msra.mxu0 %v5595
    %6682 = vmatprep.subr.mxu0 0.0
    %6683 = vmatpush2.msra.mxu0 %v5594
    %6684 = vmatprep.subr.mxu0 0.0
    %6685 = vmatpush2.msra.mxu0 %v5593
    %6686 = vmatprep.subr.mxu0 0.0
    %6687 = vmatpush2.msra.mxu0 %v5592
    %6688 = vmatprep.subr.mxu0 0.0
    %6689 = vmatpush2.msra.mxu0 %v5591
    %6690 = vmatprep.subr.mxu0 0.0
    %6691 = vmatpush2.msra.mxu0 %v5590
    %6692 = vmatprep.subr.mxu0 0.0
    %6693 = vmatpush2.msra.mxu0 %v5589
    %6694 = vmatprep.mubr.f32.mxu0 %v5971
    %6695 = vmatmul.mubr.f32.gmra.mxu0 %v5964
    %v6696 = vpop.f32.mrf.mxu0
    %v6697 = vadd.f32 0.0, %v6696
    %v6698 = vpop.f32.mrf.mxu0
    %6699 = vdwg.mxu0
    %6700 = vmatprep.subr.mxu0 0.0
    %6701 = vmatpush1.msra.mxu0 %v5620
    %6702 = vmatprep.subr.mxu0 0.0
    %6703 = vmatpush1.msra.mxu0 %v5619
    %6704 = vmatprep.subr.mxu0 0.0
    %6705 = vmatpush1.msra.mxu0 %v5618
    %6706 = vmatprep.subr.mxu0 0.0
    %6707 = vmatpush1.msra.mxu0 %v5617
    %6708 = vmatprep.subr.mxu0 0.0
    %6709 = vmatpush1.msra.mxu0 %v5616
    %6710 = vmatprep.subr.mxu0 0.0
    %6711 = vmatpush1.msra.mxu0 %v5615
    %6712 = vmatprep.subr.mxu0 0.0
    %6713 = vmatpush1.msra.mxu0 %v5614
    %6714 = vmatprep.subr.mxu0 0.0
    %6715 = vmatpush1.msra.mxu0 %v5613
    %6716 = vmatprep.subr.mxu0 0.0
    %6717 = vmatpush1.msra.mxu0 %v5612
    %6718 = vmatprep.subr.mxu0 0.0
    %6719 = vmatpush1.msra.mxu0 %v5611
    %6720 = vmatprep.subr.mxu0 0.0
    %6721 = vmatpush1.msra.mxu0 %v5610
    %6722 = vmatprep.subr.mxu0 0.0
    %6723 = vmatpush1.msra.mxu0 %v5609
    %6724 = vmatprep.subr.mxu0 0.0
    %6725 = vmatpush1.msra.mxu0 %v5608
    %6726 = vmatprep.subr.mxu0 0.0
    %6727 = vmatpush1.msra.mxu0 %v5607
    %6728 = vmatprep.subr.mxu0 0.0
    %6729 = vmatpush1.msra.mxu0 %v5606
    %6730 = vmatprep.subr.mxu0 0.0
    %6731 = vmatpush1.msra.mxu0 %v5605
    %6732 = vmatprep.subr.mxu0 0.0
    %6733 = vmatpush2.msra.mxu0 %v5636
    %6734 = vmatprep.subr.mxu0 0.0
    %6735 = vmatpush2.msra.mxu0 %v5635
    %6736 = vmatprep.subr.mxu0 0.0
    %6737 = vmatpush2.msra.mxu0 %v5634
    %6738 = vmatprep.subr.mxu0 0.0
    %6739 = vmatpush2.msra.mxu0 %v5633
    %6740 = vmatprep.subr.mxu0 0.0
    %6741 = vmatpush2.msra.mxu0 %v5632
    %6742 = vmatprep.subr.mxu0 0.0
    %6743 = vmatpush2.msra.mxu0 %v5631
    %6744 = vmatprep.subr.mxu0 0.0
    %6745 = vmatpush2.msra.mxu0 %v5630
    %6746 = vmatprep.subr.mxu0 0.0
    %6747 = vmatpush2.msra.mxu0 %v5629
    %6748 = vmatprep.subr.mxu0 0.0
    %6749 = vmatpush2.msra.mxu0 %v5628
    %6750 = vmatprep.subr.mxu0 0.0
    %6751 = vmatpush2.msra.mxu0 %v5627
    %6752 = vmatprep.subr.mxu0 0.0
    %6753 = vmatpush2.msra.mxu0 %v5626
    %6754 = vmatprep.subr.mxu0 0.0
    %6755 = vmatpush2.msra.mxu0 %v5625
    %6756 = vmatprep.subr.mxu0 0.0
    %6757 = vmatpush2.msra.mxu0 %v5624
    %6758 = vmatprep.subr.mxu0 0.0
    %6759 = vmatpush2.msra.mxu0 %v5623
    %6760 = vmatprep.subr.mxu0 0.0
    %6761 = vmatpush2.msra.mxu0 %v5622
    %6762 = vmatprep.subr.mxu0 0.0
    %6763 = vmatpush2.msra.mxu0 %v5621
    %6764 = vmatprep.mubr.f32.mxu0 %v5985
    %6765 = vmatmul.mubr.f32.gmra.mxu0 %v5978
    %v6766 = vpop.f32.mrf.mxu0
    %v6767 = vadd.f32 %v6697, %v6766
    %v6768 = vpop.f32.mrf.mxu0
    %6769 = vdwg.mxu0
    %6770 = vmatprep.subr.mxu0 0.0
    %6771 = vmatpush1.msra.mxu0 %v5652
    %6772 = vmatprep.subr.mxu0 0.0
    %6773 = vmatpush1.msra.mxu0 %v5651
    %6774 = vmatprep.subr.mxu0 0.0
    %6775 = vmatpush1.msra.mxu0 %v5650
    %6776 = vmatprep.subr.mxu0 0.0
    %6777 = vmatpush1.msra.mxu0 %v5649
    %6778 = vmatprep.subr.mxu0 0.0
    %6779 = vmatpush1.msra.mxu0 %v5648
    %6780 = vmatprep.subr.mxu0 0.0
    %6781 = vmatpush1.msra.mxu0 %v5647
    %6782 = vmatprep.subr.mxu0 0.0
    %6783 = vmatpush1.msra.mxu0 %v5646
    %6784 = vmatprep.subr.mxu0 0.0
    %6785 = vmatpush1.msra.mxu0 %v5645
    %6786 = vmatprep.subr.mxu0 0.0
    %6787 = vmatpush1.msra.mxu0 %v5644
    %6788 = vmatprep.subr.mxu0 0.0
    %6789 = vmatpush1.msra.mxu0 %v5643
    %6790 = vmatprep.subr.mxu0 0.0
    %6791 = vmatpush1.msra.mxu0 %v5642
    %6792 = vmatprep.subr.mxu0 0.0
    %6793 = vmatpush1.msra.mxu0 %v5641
    %6794 = vmatprep.subr.mxu0 0.0
    %6795 = vmatpush1.msra.mxu0 %v5640
    %6796 = vmatprep.subr.mxu0 0.0
    %6797 = vmatpush1.msra.mxu0 %v5639
    %6798 = vmatprep.subr.mxu0 0.0
    %6799 = vmatpush1.msra.mxu0 %v5638
    %6800 = vmatprep.subr.mxu0 0.0
    %6801 = vmatpush1.msra.mxu0 %v5637
    %6802 = vmatprep.subr.mxu0 0.0
    %6803 = vmatpush2.msra.mxu0 %v5668
    %6804 = vmatprep.subr.mxu0 0.0
    %6805 = vmatpush2.msra.mxu0 %v5667
    %6806 = vmatprep.subr.mxu0 0.0
    %6807 = vmatpush2.msra.mxu0 %v5666
    %6808 = vmatprep.subr.mxu0 0.0
    %6809 = vmatpush2.msra.mxu0 %v5665
    %6810 = vmatprep.subr.mxu0 0.0
    %6811 = vmatpush2.msra.mxu0 %v5664
    %6812 = vmatprep.subr.mxu0 0.0
    %6813 = vmatpush2.msra.mxu0 %v5663
    %6814 = vmatprep.subr.mxu0 0.0
    %6815 = vmatpush2.msra.mxu0 %v5662
    %6816 = vmatprep.subr.mxu0 0.0
    %6817 = vmatpush2.msra.mxu0 %v5661
    %6818 = vmatprep.subr.mxu0 0.0
    %6819 = vmatpush2.msra.mxu0 %v5660
    %6820 = vmatprep.subr.mxu0 0.0
    %6821 = vmatpush2.msra.mxu0 %v5659
    %6822 = vmatprep.subr.mxu0 0.0
    %6823 = vmatpush2.msra.mxu0 %v5658
    %6824 = vmatprep.subr.mxu0 0.0
    %6825 = vmatpush2.msra.mxu0 %v5657
    %6826 = vmatprep.subr.mxu0 0.0
    %6827 = vmatpush2.msra.mxu0 %v5656
    %6828 = vmatprep.subr.mxu0 0.0
    %6829 = vmatpush2.msra.mxu0 %v5655
    %6830 = vmatprep.subr.mxu0 0.0
    %6831 = vmatpush2.msra.mxu0 %v5654
    %6832 = vmatprep.subr.mxu0 0.0
    %6833 = vmatpush2.msra.mxu0 %v5653
    %6834 = vmatprep.mubr.f32.mxu0 %v5999
    %6835 = vmatmul.mubr.f32.gmra.mxu0 %v5992
    %v6836 = vpop.f32.mrf.mxu0
    %v6837 = vadd.f32 %v6767, %v6836
    %v6838 = vpop.f32.mrf.mxu0
    %6839 = vdwg.mxu0
    %6840 = vmatprep.subr.mxu0 0.0
    %6841 = vmatpush1.msra.mxu0 %v5684
    %6842 = vmatprep.subr.mxu0 0.0
    %6843 = vmatpush1.msra.mxu0 %v5683
    %6844 = vmatprep.subr.mxu0 0.0
    %6845 = vmatpush1.msra.mxu0 %v5682
    %6846 = vmatprep.subr.mxu0 0.0
    %6847 = vmatpush1.msra.mxu0 %v5681
    %6848 = vmatprep.subr.mxu0 0.0
    %6849 = vmatpush1.msra.mxu0 %v5680
    %6850 = vmatprep.subr.mxu0 0.0
    %6851 = vmatpush1.msra.mxu0 %v5679
    %6852 = vmatprep.subr.mxu0 0.0
    %6853 = vmatpush1.msra.mxu0 %v5678
    %6854 = vmatprep.subr.mxu0 0.0
    %6855 = vmatpush1.msra.mxu0 %v5677
    %6856 = vmatprep.subr.mxu0 0.0
    %6857 = vmatpush1.msra.mxu0 %v5676
    %6858 = vmatprep.subr.mxu0 0.0
    %6859 = vmatpush1.msra.mxu0 %v5675
    %6860 = vmatprep.subr.mxu0 0.0
    %6861 = vmatpush1.msra.mxu0 %v5674
    %6862 = vmatprep.subr.mxu0 0.0
    %6863 = vmatpush1.msra.mxu0 %v5673
    %6864 = vmatprep.subr.mxu0 0.0
    %6865 = vmatpush1.msra.mxu0 %v5672
    %6866 = vmatprep.subr.mxu0 0.0
    %6867 = vmatpush1.msra.mxu0 %v5671
    %6868 = vmatprep.subr.mxu0 0.0
    %6869 = vmatpush1.msra.mxu0 %v5670
    %6870 = vmatprep.subr.mxu0 0.0
    %6871 = vmatpush1.msra.mxu0 %v5669
    %6872 = vmatprep.subr.mxu0 0.0
    %6873 = vmatpush2.msra.mxu0 %v5700
    %6874 = vmatprep.subr.mxu0 0.0
    %6875 = vmatpush2.msra.mxu0 %v5699
    %6876 = vmatprep.subr.mxu0 0.0
    %6877 = vmatpush2.msra.mxu0 %v5698
    %6878 = vmatprep.subr.mxu0 0.0
    %6879 = vmatpush2.msra.mxu0 %v5697
    %6880 = vmatprep.subr.mxu0 0.0
    %6881 = vmatpush2.msra.mxu0 %v5696
    %6882 = vmatprep.subr.mxu0 0.0
    %6883 = vmatpush2.msra.mxu0 %v5695
    %6884 = vmatprep.subr.mxu0 0.0
    %6885 = vmatpush2.msra.mxu0 %v5694
    %6886 = vmatprep.subr.mxu0 0.0
    %6887 = vmatpush2.msra.mxu0 %v5693
    %6888 = vmatprep.subr.mxu0 0.0
    %6889 = vmatpush2.msra.mxu0 %v5692
    %6890 = vmatprep.subr.mxu0 0.0
    %6891 = vmatpush2.msra.mxu0 %v5691
    %6892 = vmatprep.subr.mxu0 0.0
    %6893 = vmatpush2.msra.mxu0 %v5690
    %6894 = vmatprep.subr.mxu0 0.0
    %6895 = vmatpush2.msra.mxu0 %v5689
    %6896 = vmatprep.subr.mxu0 0.0
    %6897 = vmatpush2.msra.mxu0 %v5688
    %6898 = vmatprep.subr.mxu0 0.0
    %6899 = vmatpush2.msra.mxu0 %v5687
    %6900 = vmatprep.subr.mxu0 0.0
    %6901 = vmatpush2.msra.mxu0 %v5686
    %6902 = vmatprep.subr.mxu0 0.0
    %6903 = vmatpush2.msra.mxu0 %v5685
    %6904 = vmatprep.mubr.f32.mxu0 %v6013
    %6905 = vmatmul.mubr.f32.gmra.mxu0 %v6006
    %v6906 = vpop.f32.mrf.mxu0
    %v6907 = vadd.f32 %v6837, %v6906
    %v6908 = vpop.f32.mrf.mxu0
    %6909 = vdwg.mxu0
    %6910 = vmatprep.subr.mxu0 0.0
    %6911 = vmatpush1.msra.mxu0 %v5716
    %6912 = vmatprep.subr.mxu0 0.0
    %6913 = vmatpush1.msra.mxu0 %v5715
    %6914 = vmatprep.subr.mxu0 0.0
    %6915 = vmatpush1.msra.mxu0 %v5714
    %6916 = vmatprep.subr.mxu0 0.0
    %6917 = vmatpush1.msra.mxu0 %v5713
    %6918 = vmatprep.subr.mxu0 0.0
    %6919 = vmatpush1.msra.mxu0 %v5712
    %6920 = vmatprep.subr.mxu0 0.0
    %6921 = vmatpush1.msra.mxu0 %v5711
    %6922 = vmatprep.subr.mxu0 0.0
    %6923 = vmatpush1.msra.mxu0 %v5710
    %6924 = vmatprep.subr.mxu0 0.0
    %6925 = vmatpush1.msra.mxu0 %v5709
    %6926 = vmatprep.subr.mxu0 0.0
    %6927 = vmatpush1.msra.mxu0 %v5708
    %6928 = vmatprep.subr.mxu0 0.0
    %6929 = vmatpush1.msra.mxu0 %v5707
    %6930 = vmatprep.subr.mxu0 0.0
    %6931 = vmatpush1.msra.mxu0 %v5706
    %6932 = vmatprep.subr.mxu0 0.0
    %6933 = vmatpush1.msra.mxu0 %v5705
    %6934 = vmatprep.subr.mxu0 0.0
    %6935 = vmatpush1.msra.mxu0 %v5704
    %6936 = vmatprep.subr.mxu0 0.0
    %6937 = vmatpush1.msra.mxu0 %v5703
    %6938 = vmatprep.subr.mxu0 0.0
    %6939 = vmatpush1.msra.mxu0 %v5702
    %6940 = vmatprep.subr.mxu0 0.0
    %6941 = vmatpush1.msra.mxu0 %v5701
    %6942 = vmatprep.subr.mxu0 0.0
    %6943 = vmatpush2.msra.mxu0 %v5732
    %6944 = vmatprep.subr.mxu0 0.0
    %6945 = vmatpush2.msra.mxu0 %v5731
    %6946 = vmatprep.subr.mxu0 0.0
    %6947 = vmatpush2.msra.mxu0 %v5730
    %6948 = vmatprep.subr.mxu0 0.0
    %6949 = vmatpush2.msra.mxu0 %v5729
    %6950 = vmatprep.subr.mxu0 0.0
    %6951 = vmatpush2.msra.mxu0 %v5728
    %6952 = vmatprep.subr.mxu0 0.0
    %6953 = vmatpush2.msra.mxu0 %v5727
    %6954 = vmatprep.subr.mxu0 0.0
    %6955 = vmatpush2.msra.mxu0 %v5726
    %6956 = vmatprep.subr.mxu0 0.0
    %6957 = vmatpush2.msra.mxu0 %v5725
    %6958 = vmatprep.subr.mxu0 0.0
    %6959 = vmatpush2.msra.mxu0 %v5724
    %6960 = vmatprep.subr.mxu0 0.0
    %6961 = vmatpush2.msra.mxu0 %v5723
    %6962 = vmatprep.subr.mxu0 0.0
    %6963 = vmatpush2.msra.mxu0 %v5722
    %6964 = vmatprep.subr.mxu0 0.0
    %6965 = vmatpush2.msra.mxu0 %v5721
    %6966 = vmatprep.subr.mxu0 0.0
    %6967 = vmatpush2.msra.mxu0 %v5720
    %6968 = vmatprep.subr.mxu0 0.0
    %6969 = vmatpush2.msra.mxu0 %v5719
    %6970 = vmatprep.subr.mxu0 0.0
    %6971 = vmatpush2.msra.mxu0 %v5718
    %6972 = vmatprep.subr.mxu0 0.0
    %6973 = vmatpush2.msra.mxu0 %v5717
    %6974 = vmatprep.mubr.f32.mxu0 %v6027
    %6975 = vmatmul.mubr.f32.gmra.mxu0 %v6020
    %v6976 = vpop.f32.mrf.mxu0
    %v6977 = vadd.f32 %v6907, %v6976
    %v6978 = vpop.f32.mrf.mxu0
    %6979 = vdwg.mxu0
    %6980 = vmatprep.subr.mxu0 0.0
    %6981 = vmatpush1.msra.mxu0 %v5748
    %6982 = vmatprep.subr.mxu0 0.0
    %6983 = vmatpush1.msra.mxu0 %v5747
    %6984 = vmatprep.subr.mxu0 0.0
    %6985 = vmatpush1.msra.mxu0 %v5746
    %6986 = vmatprep.subr.mxu0 0.0
    %6987 = vmatpush1.msra.mxu0 %v5745
    %6988 = vmatprep.subr.mxu0 0.0
    %6989 = vmatpush1.msra.mxu0 %v5744
    %6990 = vmatprep.subr.mxu0 0.0
    %6991 = vmatpush1.msra.mxu0 %v5743
    %6992 = vmatprep.subr.mxu0 0.0
    %6993 = vmatpush1.msra.mxu0 %v5742
    %6994 = vmatprep.subr.mxu0 0.0
    %6995 = vmatpush1.msra.mxu0 %v5741
    %6996 = vmatprep.subr.mxu0 0.0
    %6997 = vmatpush1.msra.mxu0 %v5740
    %6998 = vmatprep.subr.mxu0 0.0
    %6999 = vmatpush1.msra.mxu0 %v5739
    %7000 = vmatprep.subr.mxu0 0.0
    %7001 = vmatpush1.msra.mxu0 %v5738
    %7002 = vmatprep.subr.mxu0 0.0
    %7003 = vmatpush1.msra.mxu0 %v5737
    %7004 = vmatprep.subr.mxu0 0.0
    %7005 = vmatpush1.msra.mxu0 %v5736
    %7006 = vmatprep.subr.mxu0 0.0
    %7007 = vmatpush1.msra.mxu0 %v5735
    %7008 = vmatprep.subr.mxu0 0.0
    %7009 = vmatpush1.msra.mxu0 %v5734
    %7010 = vmatprep.subr.mxu0 0.0
    %7011 = vmatpush1.msra.mxu0 %v5733
    %7012 = vmatprep.subr.mxu0 0.0
    %7013 = vmatpush2.msra.mxu0 %v5764
    %7014 = vmatprep.subr.mxu0 0.0
    %7015 = vmatpush2.msra.mxu0 %v5763
    %7016 = vmatprep.subr.mxu0 0.0
    %7017 = vmatpush2.msra.mxu0 %v5762
    %7018 = vmatprep.subr.mxu0 0.0
    %7019 = vmatpush2.msra.mxu0 %v5761
    %7020 = vmatprep.subr.mxu0 0.0
    %7021 = vmatpush2.msra.mxu0 %v5760
    %7022 = vmatprep.subr.mxu0 0.0
    %7023 = vmatpush2.msra.mxu0 %v5759
    %7024 = vmatprep.subr.mxu0 0.0
    %7025 = vmatpush2.msra.mxu0 %v5758
    %7026 = vmatprep.subr.mxu0 0.0
    %7027 = vmatpush2.msra.mxu0 %v5757
    %7028 = vmatprep.subr.mxu0 0.0
    %7029 = vmatpush2.msra.mxu0 %v5756
    %7030 = vmatprep.subr.mxu0 0.0
    %7031 = vmatpush2.msra.mxu0 %v5755
    %7032 = vmatprep.subr.mxu0 0.0
    %7033 = vmatpush2.msra.mxu0 %v5754
    %7034 = vmatprep.subr.mxu0 0.0
    %7035 = vmatpush2.msra.mxu0 %v5753
    %7036 = vmatprep.subr.mxu0 0.0
    %7037 = vmatpush2.msra.mxu0 %v5752
    %7038 = vmatprep.subr.mxu0 0.0
    %7039 = vmatpush2.msra.mxu0 %v5751
    %7040 = vmatprep.subr.mxu0 0.0
    %7041 = vmatpush2.msra.mxu0 %v5750
    %7042 = vmatprep.subr.mxu0 0.0
    %7043 = vmatpush2.msra.mxu0 %v5749
    %7044 = vmatprep.mubr.f32.mxu0 %v6041
    %7045 = vmatmul.mubr.f32.gmra.mxu0 %v6034
    %v7046 = vpop.f32.mrf.mxu0
    %v7047 = vadd.f32 %v6977, %v7046
    %v7048 = vpop.f32.mrf.mxu0
    %7049 = vdwg.mxu0
    %7050 = vmatprep.subr.mxu0 0.0
    %7051 = vmatpush1.msra.mxu0 %v5780
    %7052 = vmatprep.subr.mxu0 0.0
    %7053 = vmatpush1.msra.mxu0 %v5779
    %7054 = vmatprep.subr.mxu0 0.0
    %7055 = vmatpush1.msra.mxu0 %v5778
    %7056 = vmatprep.subr.mxu0 0.0
    %7057 = vmatpush1.msra.mxu0 %v5777
    %7058 = vmatprep.subr.mxu0 0.0
    %7059 = vmatpush1.msra.mxu0 %v5776
    %7060 = vmatprep.subr.mxu0 0.0
    %7061 = vmatpush1.msra.mxu0 %v5775
    %7062 = vmatprep.subr.mxu0 0.0
    %7063 = vmatpush1.msra.mxu0 %v5774
    %7064 = vmatprep.subr.mxu0 0.0
    %7065 = vmatpush1.msra.mxu0 %v5773
    %7066 = vmatprep.subr.mxu0 0.0
    %7067 = vmatpush1.msra.mxu0 %v5772
    %7068 = vmatprep.subr.mxu0 0.0
    %7069 = vmatpush1.msra.mxu0 %v5771
    %7070 = vmatprep.subr.mxu0 0.0
    %7071 = vmatpush1.msra.mxu0 %v5770
    %7072 = vmatprep.subr.mxu0 0.0
    %7073 = vmatpush1.msra.mxu0 %v5769
    %7074 = vmatprep.subr.mxu0 0.0
    %7075 = vmatpush1.msra.mxu0 %v5768
    %7076 = vmatprep.subr.mxu0 0.0
    %7077 = vmatpush1.msra.mxu0 %v5767
    %7078 = vmatprep.subr.mxu0 0.0
    %7079 = vmatpush1.msra.mxu0 %v5766
    %7080 = vmatprep.subr.mxu0 0.0
    %7081 = vmatpush1.msra.mxu0 %v5765
    %7082 = vmatprep.subr.mxu0 0.0
    %7083 = vmatpush2.msra.mxu0 %v5796
    %7084 = vmatprep.subr.mxu0 0.0
    %7085 = vmatpush2.msra.mxu0 %v5795
    %7086 = vmatprep.subr.mxu0 0.0
    %7087 = vmatpush2.msra.mxu0 %v5794
    %7088 = vmatprep.subr.mxu0 0.0
    %7089 = vmatpush2.msra.mxu0 %v5793
    %7090 = vmatprep.subr.mxu0 0.0
    %7091 = vmatpush2.msra.mxu0 %v5792
    %7092 = vmatprep.subr.mxu0 0.0
    %7093 = vmatpush2.msra.mxu0 %v5791
    %7094 = vmatprep.subr.mxu0 0.0
    %7095 = vmatpush2.msra.mxu0 %v5790
    %7096 = vmatprep.subr.mxu0 0.0
    %7097 = vmatpush2.msra.mxu0 %v5789
    %7098 = vmatprep.subr.mxu0 0.0
    %7099 = vmatpush2.msra.mxu0 %v5788
    %7100 = vmatprep.subr.mxu0 0.0
    %7101 = vmatpush2.msra.mxu0 %v5787
    %7102 = vmatprep.subr.mxu0 0.0
    %7103 = vmatpush2.msra.mxu0 %v5786
    %7104 = vmatprep.subr.mxu0 0.0
    %7105 = vmatpush2.msra.mxu0 %v5785
    %7106 = vmatprep.subr.mxu0 0.0
    %7107 = vmatpush2.msra.mxu0 %v5784
    %7108 = vmatprep.subr.mxu0 0.0
    %7109 = vmatpush2.msra.mxu0 %v5783
    %7110 = vmatprep.subr.mxu0 0.0
    %7111 = vmatpush2.msra.mxu0 %v5782
    %7112 = vmatprep.subr.mxu0 0.0
    %7113 = vmatpush2.msra.mxu0 %v5781
    %7114 = vmatprep.mubr.f32.mxu0 %v6055
    %7115 = vmatmul.mubr.f32.gmra.mxu0 %v6048
    %v7116 = vpop.f32.mrf.mxu0
    %v7117 = vadd.f32 %v7047, %v7116
    %v7118 = vpop.f32.mrf.mxu0
    %7119 = vdwg.mxu0
    %7120 = vmatprep.subr.mxu0 0.0
    %7121 = vmatpush1.msra.mxu0 %v5812
    %7122 = vmatprep.subr.mxu0 0.0
    %7123 = vmatpush1.msra.mxu0 %v5811
    %7124 = vmatprep.subr.mxu0 0.0
    %7125 = vmatpush1.msra.mxu0 %v5810
    %7126 = vmatprep.subr.mxu0 0.0
    %7127 = vmatpush1.msra.mxu0 %v5809
    %7128 = vmatprep.subr.mxu0 0.0
    %7129 = vmatpush1.msra.mxu0 %v5808
    %7130 = vmatprep.subr.mxu0 0.0
    %7131 = vmatpush1.msra.mxu0 %v5807
    %7132 = vmatprep.subr.mxu0 0.0
    %7133 = vmatpush1.msra.mxu0 %v5806
    %7134 = vmatprep.subr.mxu0 0.0
    %7135 = vmatpush1.msra.mxu0 %v5805
    %7136 = vmatprep.subr.mxu0 0.0
    %7137 = vmatpush1.msra.mxu0 %v5804
    %7138 = vmatprep.subr.mxu0 0.0
    %7139 = vmatpush1.msra.mxu0 %v5803
    %7140 = vmatprep.subr.mxu0 0.0
    %7141 = vmatpush1.msra.mxu0 %v5802
    %7142 = vmatprep.subr.mxu0 0.0
    %7143 = vmatpush1.msra.mxu0 %v5801
    %7144 = vmatprep.subr.mxu0 0.0
    %7145 = vmatpush1.msra.mxu0 %v5800
    %7146 = vmatprep.subr.mxu0 0.0
    %7147 = vmatpush1.msra.mxu0 %v5799
    %7148 = vmatprep.subr.mxu0 0.0
    %7149 = vmatpush1.msra.mxu0 %v5798
    %7150 = vmatprep.subr.mxu0 0.0
    %7151 = vmatpush1.msra.mxu0 %v5797
    %7152 = vmatprep.subr.mxu0 0.0
    %7153 = vmatpush2.msra.mxu0 %v5828
    %7154 = vmatprep.subr.mxu0 0.0
    %7155 = vmatpush2.msra.mxu0 %v5827
    %7156 = vmatprep.subr.mxu0 0.0
    %7157 = vmatpush2.msra.mxu0 %v5826
    %7158 = vmatprep.subr.mxu0 0.0
    %7159 = vmatpush2.msra.mxu0 %v5825
    %7160 = vmatprep.subr.mxu0 0.0
    %7161 = vmatpush2.msra.mxu0 %v5824
    %7162 = vmatprep.subr.mxu0 0.0
    %7163 = vmatpush2.msra.mxu0 %v5823
    %7164 = vmatprep.subr.mxu0 0.0
    %7165 = vmatpush2.msra.mxu0 %v5822
    %7166 = vmatprep.subr.mxu0 0.0
    %7167 = vmatpush2.msra.mxu0 %v5821
    %7168 = vmatprep.subr.mxu0 0.0
    %7169 = vmatpush2.msra.mxu0 %v5820
    %7170 = vmatprep.subr.mxu0 0.0
    %7171 = vmatpush2.msra.mxu0 %v5819
    %7172 = vmatprep.subr.mxu0 0.0
    %7173 = vmatpush2.msra.mxu0 %v5818
    %7174 = vmatprep.subr.mxu0 0.0
    %7175 = vmatpush2.msra.mxu0 %v5817
    %7176 = vmatprep.subr.mxu0 0.0
    %7177 = vmatpush2.msra.mxu0 %v5816
    %7178 = vmatprep.subr.mxu0 0.0
    %7179 = vmatpush2.msra.mxu0 %v5815
    %7180 = vmatprep.subr.mxu0 0.0
    %7181 = vmatpush2.msra.mxu0 %v5814
    %7182 = vmatprep.subr.mxu0 0.0
    %7183 = vmatpush2.msra.mxu0 %v5813
    %7184 = vmatprep.mubr.f32.mxu0 %v6069
    %7185 = vmatmul.mubr.f32.gmra.mxu0 %v6062
    %v7186 = vpop.f32.mrf.mxu0
    %v7187 = vadd.f32 %v7117, %v7186
    %v7188 = vpop.f32.mrf.mxu0
    %7189 = vdwg.mxu0
    %v7190 = vmul.f32 %v6627, 0.001953125
    %v7191 = vmul.f32 %v7187, 0.001953125
    %v7192 = vmul.f32 %v7190, %v7190
    %v7193 = vsub.f32 %v7191, %v7192
    %v7194 = vld [vmem:[#allocation11] sm:$0x1]
    %v7195 = vadd.f32 %v7193, 1e-05
    %v7196 = vrsqrt.pop %v7195
    %v7197 = vmul.f32 %v7194, %v7196
    %v7198 = vld [vmem:[#allocation13] sm:$0x1]
    %v7199 = vmul.f32 %v7190, %v7197
    %v7200 = vsub.f32 %v7198, %v7199
    %v7201 = vld [vmem:[#allocation10] sm:$0xff]
    %v7202 = vld [vmem:[#allocation10 + $0x8] sm:$0xff]
    %v7203 = vld [vmem:[#allocation10 + $0x10] sm:$0xff]
    %v7204 = vld [vmem:[#allocation10 + $0x18] sm:$0xff]
    %v7205 = vld [vmem:[#allocation10 + $0x20] sm:$0xff]
    %v7206 = vld [vmem:[#allocation10 + $0x28] sm:$0xff]
    %v7207 = vld [vmem:[#allocation10 + $0x30] sm:$0xff]
    %v7208 = vld [vmem:[#allocation10 + $0x38] sm:$0xff]
    %v7209 = vld [vmem:[#allocation10 + $0x40] sm:$0xff]
    %v7210 = vld [vmem:[#allocation10 + $0x48] sm:$0xff]
    %v7211 = vld [vmem:[#allocation10 + $0x50] sm:$0xff]
    %v7212 = vld [vmem:[#allocation10 + $0x58] sm:$0xff]
    %v7213 = vld [vmem:[#allocation10 + $0x60] sm:$0xff]
    %v7214 = vld [vmem:[#allocation10 + $0x68] sm:$0xff]
    %v7215 = vld [vmem:[#allocation10 + $0x70] sm:$0xff]
    %v7216 = vld [vmem:[#allocation10 + $0x78] sm:$0xff]
    %vm7217 = vcmask 64512
    %v7219 = vsel %vm7217, %v7197, 0
    %7221 = vmatprep.subr.mxu0 0.0
    %7222 = vmatpush1.msra.mxu0 0.0
    %7223 = vmatprep.subr.mxu0 0.0
    %7224 = vmatpush1.msra.mxu0 0.0
    %7225 = vmatprep.subr.mxu0 0.0
    %7226 = vmatpush1.msra.mxu0 0.0
    %7227 = vmatprep.subr.mxu0 0.0
    %7228 = vmatpush1.msra.mxu0 0.0
    %7229 = vmatprep.subr.mxu0 0.0
    %7230 = vmatpush1.msra.mxu0 0.0
    %7231 = vmatprep.subr.mxu0 0.0
    %7232 = vmatpush1.msra.mxu0 0.0
    %7233 = vmatprep.subr.mxu0 0.0
    %7234 = vmatpush1.msra.mxu0 0.0
    %7235 = vmatprep.subr.mxu0 0.0
    %7236 = vmatpush1.msra.mxu0 0.0
    %7237 = vmatprep.subr.mxu0 0.0
    %7238 = vmatpush1.msra.mxu0 0.0
    %7239 = vmatprep.subr.mxu0 0.0
    %7240 = vmatpush1.msra.mxu0 0.0
    %7241 = vmatprep.subr.mxu0 0.0
    %7242 = vmatpush1.msra.mxu0 0.0
    %7243 = vmatprep.subr.mxu0 0.0
    %7244 = vmatpush1.msra.mxu0 0.0
    %7245 = vmatprep.subr.mxu0 0.0
    %7246 = vmatpush1.msra.mxu0 0.0
    %7247 = vmatprep.subr.mxu0 0.0
    %7248 = vmatpush1.msra.mxu0 0.0
    %7249 = vmatprep.subr.mxu0 0.0
    %7250 = vmatpush1.msra.mxu0 0.0
    %7251 = vmatprep.subr.mxu0 %v7202
    %7252 = vmatpush1.msra.mxu0 %v7201
    %7253 = vmatprep.subr.mxu0 0.0
    %7254 = vmatpush2.msra.mxu0 0.0
    %7255 = vmatprep.subr.mxu0 0.0
    %7256 = vmatpush2.msra.mxu0 0.0
    %7257 = vmatprep.subr.mxu0 0.0
    %7258 = vmatpush2.msra.mxu0 0.0
    %7259 = vmatprep.subr.mxu0 0.0
    %7260 = vmatpush2.msra.mxu0 0.0
    %7261 = vmatprep.subr.mxu0 0.0
    %7262 = vmatpush2.msra.mxu0 0.0
    %7263 = vmatprep.subr.mxu0 0.0
    %7264 = vmatpush2.msra.mxu0 0.0
    %7265 = vmatprep.subr.mxu0 0.0
    %7266 = vmatpush2.msra.mxu0 0.0
    %7267 = vmatprep.subr.mxu0 0.0
    %7268 = vmatpush2.msra.mxu0 0.0
    %7269 = vmatprep.subr.mxu0 0.0
    %7270 = vmatpush2.msra.mxu0 0.0
    %7271 = vmatprep.subr.mxu0 0.0
    %7272 = vmatpush2.msra.mxu0 0.0
    %7273 = vmatprep.subr.mxu0 0.0
    %7274 = vmatpush2.msra.mxu0 0.0
    %7275 = vmatprep.subr.mxu0 0.0
    %7276 = vmatpush2.msra.mxu0 0.0
    %7277 = vmatprep.subr.mxu0 0.0
    %7278 = vmatpush2.msra.mxu0 0.0
    %7279 = vmatprep.subr.mxu0 0.0
    %7280 = vmatpush2.msra.mxu0 0.0
    %7281 = vmatprep.subr.mxu0 0.0
    %7282 = vmatpush2.msra.mxu0 0.0
    %7283 = vmatprep.subr.mxu0 0.0
    %7284 = vmatpush2.msra.mxu0 0.0
    %7285 = vmatprep.mubr.f32.mxu0 0.0
    %7286 = vmatmul.mubr.f32.gmra.mxu0 %v7219
    %v7287 = vpop.f32.mrf.mxu0
    %v7288 = vadd.f32 0.0, %v7287
    %v7289 = vpop.f32.mrf.mxu0
    %v7290 = vadd.f32 0.0, %v7289
    %7291 = vdwg.mxu0
    %7292 = vmatprep.subr.mxu0 0.0
    %7293 = vmatpush1.msra.mxu0 0.0
    %7294 = vmatprep.subr.mxu0 0.0
    %7295 = vmatpush1.msra.mxu0 0.0
    %7296 = vmatprep.subr.mxu0 0.0
    %7297 = vmatpush1.msra.mxu0 0.0
    %7298 = vmatprep.subr.mxu0 0.0
    %7299 = vmatpush1.msra.mxu0 0.0
    %7300 = vmatprep.subr.mxu0 0.0
    %7301 = vmatpush1.msra.mxu0 0.0
    %7302 = vmatprep.subr.mxu0 0.0
    %7303 = vmatpush1.msra.mxu0 0.0
    %7304 = vmatprep.subr.mxu0 0.0
    %7305 = vmatpush1.msra.mxu0 0.0
    %7306 = vmatprep.subr.mxu0 0.0
    %7307 = vmatpush1.msra.mxu0 0.0
    %7308 = vmatprep.subr.mxu0 0.0
    %7309 = vmatpush1.msra.mxu0 0.0
    %7310 = vmatprep.subr.mxu0 0.0
    %7311 = vmatpush1.msra.mxu0 0.0
    %7312 = vmatprep.subr.mxu0 0.0
    %7313 = vmatpush1.msra.mxu0 0.0
    %7314 = vmatprep.subr.mxu0 0.0
    %7315 = vmatpush1.msra.mxu0 0.0
    %7316 = vmatprep.subr.mxu0 0.0
    %7317 = vmatpush1.msra.mxu0 0.0
    %7318 = vmatprep.subr.mxu0 0.0
    %7319 = vmatpush1.msra.mxu0 0.0
    %7320 = vmatprep.subr.mxu0 0.0
    %7321 = vmatpush1.msra.mxu0 0.0
    %7322 = vmatprep.subr.mxu0 %v7204
    %7323 = vmatpush1.msra.mxu0 %v7203
    %7324 = vmatprep.subr.mxu0 0.0
    %7325 = vmatpush2.msra.mxu0 0.0
    %7326 = vmatprep.subr.mxu0 0.0
    %7327 = vmatpush2.msra.mxu0 0.0
    %7328 = vmatprep.subr.mxu0 0.0
    %7329 = vmatpush2.msra.mxu0 0.0
    %7330 = vmatprep.subr.mxu0 0.0
    %7331 = vmatpush2.msra.mxu0 0.0
    %7332 = vmatprep.subr.mxu0 0.0
    %7333 = vmatpush2.msra.mxu0 0.0
    %7334 = vmatprep.subr.mxu0 0.0
    %7335 = vmatpush2.msra.mxu0 0.0
    %7336 = vmatprep.subr.mxu0 0.0
    %7337 = vmatpush2.msra.mxu0 0.0
    %7338 = vmatprep.subr.mxu0 0.0
    %7339 = vmatpush2.msra.mxu0 0.0
    %7340 = vmatprep.subr.mxu0 0.0
    %7341 = vmatpush2.msra.mxu0 0.0
    %7342 = vmatprep.subr.mxu0 0.0
    %7343 = vmatpush2.msra.mxu0 0.0
    %7344 = vmatprep.subr.mxu0 0.0
    %7345 = vmatpush2.msra.mxu0 0.0
    %7346 = vmatprep.subr.mxu0 0.0
    %7347 = vmatpush2.msra.mxu0 0.0
    %7348 = vmatprep.subr.mxu0 0.0
    %7349 = vmatpush2.msra.mxu0 0.0
    %7350 = vmatprep.subr.mxu0 0.0
    %7351 = vmatpush2.msra.mxu0 0.0
    %7352 = vmatprep.subr.mxu0 0.0
    %7353 = vmatpush2.msra.mxu0 0.0
    %7354 = vmatprep.subr.mxu0 0.0
    %7355 = vmatpush2.msra.mxu0 0.0
    %7356 = vmatprep.mubr.f32.mxu0 0.0
    %7357 = vmatmul.mubr.f32.gmra.mxu0 %v7219
    %v7358 = vpop.f32.mrf.mxu0
    %v7359 = vadd.f32 0.0, %v7358
    %v7360 = vpop.f32.mrf.mxu0
    %v7361 = vadd.f32 0.0, %v7360
    %7362 = vdwg.mxu0
    %7363 = vmatprep.subr.mxu0 0.0
    %7364 = vmatpush1.msra.mxu0 0.0
    %7365 = vmatprep.subr.mxu0 0.0
    %7366 = vmatpush1.msra.mxu0 0.0
    %7367 = vmatprep.subr.mxu0 0.0
    %7368 = vmatpush1.msra.mxu0 0.0
    %7369 = vmatprep.subr.mxu0 0.0
    %7370 = vmatpush1.msra.mxu0 0.0
    %7371 = vmatprep.subr.mxu0 0.0
    %7372 = vmatpush1.msra.mxu0 0.0
    %7373 = vmatprep.subr.mxu0 0.0
    %7374 = vmatpush1.msra.mxu0 0.0
    %7375 = vmatprep.subr.mxu0 0.0
    %7376 = vmatpush1.msra.mxu0 0.0
    %7377 = vmatprep.subr.mxu0 0.0
    %7378 = vmatpush1.msra.mxu0 0.0
    %7379 = vmatprep.subr.mxu0 0.0
    %7380 = vmatpush1.msra.mxu0 0.0
    %7381 = vmatprep.subr.mxu0 0.0
    %7382 = vmatpush1.msra.mxu0 0.0
    %7383 = vmatprep.subr.mxu0 0.0
    %7384 = vmatpush1.msra.mxu0 0.0
    %7385 = vmatprep.subr.mxu0 0.0
    %7386 = vmatpush1.msra.mxu0 0.0
    %7387 = vmatprep.subr.mxu0 0.0
    %7388 = vmatpush1.msra.mxu0 0.0
    %7389 = vmatprep.subr.mxu0 0.0
    %7390 = vmatpush1.msra.mxu0 0.0
    %7391 = vmatprep.subr.mxu0 0.0
    %7392 = vmatpush1.msra.mxu0 0.0
    %7393 = vmatprep.subr.mxu0 %v7206
    %7394 = vmatpush1.msra.mxu0 %v7205
    %7395 = vmatprep.subr.mxu0 0.0
    %7396 = vmatpush2.msra.mxu0 0.0
    %7397 = vmatprep.subr.mxu0 0.0
    %7398 = vmatpush2.msra.mxu0 0.0
    %7399 = vmatprep.subr.mxu0 0.0
    %7400 = vmatpush2.msra.mxu0 0.0
    %7401 = vmatprep.subr.mxu0 0.0
    %7402 = vmatpush2.msra.mxu0 0.0
    %7403 = vmatprep.subr.mxu0 0.0
    %7404 = vmatpush2.msra.mxu0 0.0
    %7405 = vmatprep.subr.mxu0 0.0
    %7406 = vmatpush2.msra.mxu0 0.0
    %7407 = vmatprep.subr.mxu0 0.0
    %7408 = vmatpush2.msra.mxu0 0.0
    %7409 = vmatprep.subr.mxu0 0.0
    %7410 = vmatpush2.msra.mxu0 0.0
    %7411 = vmatprep.subr.mxu0 0.0
    %7412 = vmatpush2.msra.mxu0 0.0
    %7413 = vmatprep.subr.mxu0 0.0
    %7414 = vmatpush2.msra.mxu0 0.0
    %7415 = vmatprep.subr.mxu0 0.0
    %7416 = vmatpush2.msra.mxu0 0.0
    %7417 = vmatprep.subr.mxu0 0.0
    %7418 = vmatpush2.msra.mxu0 0.0
    %7419 = vmatprep.subr.mxu0 0.0
    %7420 = vmatpush2.msra.mxu0 0.0
    %7421 = vmatprep.subr.mxu0 0.0
    %7422 = vmatpush2.msra.mxu0 0.0
    %7423 = vmatprep.subr.mxu0 0.0
    %7424 = vmatpush2.msra.mxu0 0.0
    %7425 = vmatprep.subr.mxu0 0.0
    %7426 = vmatpush2.msra.mxu0 0.0
    %7427 = vmatprep.mubr.f32.mxu0 0.0
    %7428 = vmatmul.mubr.f32.gmra.mxu0 %v7219
    %v7429 = vpop.f32.mrf.mxu0
    %v7430 = vadd.f32 0.0, %v7429
    %v7431 = vpop.f32.mrf.mxu0
    %v7432 = vadd.f32 0.0, %v7431
    %7433 = vdwg.mxu0
    %7434 = vmatprep.subr.mxu0 0.0
    %7435 = vmatpush1.msra.mxu0 0.0
    %7436 = vmatprep.subr.mxu0 0.0
    %7437 = vmatpush1.msra.mxu0 0.0
    %7438 = vmatprep.subr.mxu0 0.0
    %7439 = vmatpush1.msra.mxu0 0.0
    %7440 = vmatprep.subr.mxu0 0.0
    %7441 = vmatpush1.msra.mxu0 0.0
    %7442 = vmatprep.subr.mxu0 0.0
    %7443 = vmatpush1.msra.mxu0 0.0
    %7444 = vmatprep.subr.mxu0 0.0
    %7445 = vmatpush1.msra.mxu0 0.0
    %7446 = vmatprep.subr.mxu0 0.0
    %7447 = vmatpush1.msra.mxu0 0.0
    %7448 = vmatprep.subr.mxu0 0.0
    %7449 = vmatpush1.msra.mxu0 0.0
    %7450 = vmatprep.subr.mxu0 0.0
    %7451 = vmatpush1.msra.mxu0 0.0
    %7452 = vmatprep.subr.mxu0 0.0
    %7453 = vmatpush1.msra.mxu0 0.0
    %7454 = vmatprep.subr.mxu0 0.0
    %7455 = vmatpush1.msra.mxu0 0.0
    %7456 = vmatprep.subr.mxu0 0.0
    %7457 = vmatpush1.msra.mxu0 0.0
    %7458 = vmatprep.subr.mxu0 0.0
    %7459 = vmatpush1.msra.mxu0 0.0
    %7460 = vmatprep.subr.mxu0 0.0
    %7461 = vmatpush1.msra.mxu0 0.0
    %7462 = vmatprep.subr.mxu0 0.0
    %7463 = vmatpush1.msra.mxu0 0.0
    %7464 = vmatprep.subr.mxu0 %v7208
    %7465 = vmatpush1.msra.mxu0 %v7207
    %7466 = vmatprep.subr.mxu0 0.0
    %7467 = vmatpush2.msra.mxu0 0.0
    %7468 = vmatprep.subr.mxu0 0.0
    %7469 = vmatpush2.msra.mxu0 0.0
    %7470 = vmatprep.subr.mxu0 0.0
    %7471 = vmatpush2.msra.mxu0 0.0
    %7472 = vmatprep.subr.mxu0 0.0
    %7473 = vmatpush2.msra.mxu0 0.0
    %7474 = vmatprep.subr.mxu0 0.0
    %7475 = vmatpush2.msra.mxu0 0.0
    %7476 = vmatprep.subr.mxu0 0.0
    %7477 = vmatpush2.msra.mxu0 0.0
    %7478 = vmatprep.subr.mxu0 0.0
    %7479 = vmatpush2.msra.mxu0 0.0
    %7480 = vmatprep.subr.mxu0 0.0
    %7481 = vmatpush2.msra.mxu0 0.0
    %7482 = vmatprep.subr.mxu0 0.0
    %7483 = vmatpush2.msra.mxu0 0.0
    %7484 = vmatprep.subr.mxu0 0.0
    %7485 = vmatpush2.msra.mxu0 0.0
    %7486 = vmatprep.subr.mxu0 0.0
    %7487 = vmatpush2.msra.mxu0 0.0
    %7488 = vmatprep.subr.mxu0 0.0
    %7489 = vmatpush2.msra.mxu0 0.0
    %7490 = vmatprep.subr.mxu0 0.0
    %7491 = vmatpush2.msra.mxu0 0.0
    %7492 = vmatprep.subr.mxu0 0.0
    %7493 = vmatpush2.msra.mxu0 0.0
    %7494 = vmatprep.subr.mxu0 0.0
    %7495 = vmatpush2.msra.mxu0 0.0
    %7496 = vmatprep.subr.mxu0 0.0
    %7497 = vmatpush2.msra.mxu0 0.0
    %7498 = vmatprep.mubr.f32.mxu0 0.0
    %7499 = vmatmul.mubr.f32.gmra.mxu0 %v7219
    %v7500 = vpop.f32.mrf.mxu0
    %v7501 = vadd.f32 0.0, %v7500
    %v7502 = vpop.f32.mrf.mxu0
    %v7503 = vadd.f32 0.0, %v7502
    %7504 = vdwg.mxu0
    %7505 = vmatprep.subr.mxu0 0.0
    %7506 = vmatpush1.msra.mxu0 0.0
    %7507 = vmatprep.subr.mxu0 0.0
    %7508 = vmatpush1.msra.mxu0 0.0
    %7509 = vmatprep.subr.mxu0 0.0
    %7510 = vmatpush1.msra.mxu0 0.0
    %7511 = vmatprep.subr.mxu0 0.0
    %7512 = vmatpush1.msra.mxu0 0.0
    %7513 = vmatprep.subr.mxu0 0.0
    %7514 = vmatpush1.msra.mxu0 0.0
    %7515 = vmatprep.subr.mxu0 0.0
    %7516 = vmatpush1.msra.mxu0 0.0
    %7517 = vmatprep.subr.mxu0 0.0
    %7518 = vmatpush1.msra.mxu0 0.0
    %7519 = vmatprep.subr.mxu0 0.0
    %7520 = vmatpush1.msra.mxu0 0.0
    %7521 = vmatprep.subr.mxu0 0.0
    %7522 = vmatpush1.msra.mxu0 0.0
    %7523 = vmatprep.subr.mxu0 0.0
    %7524 = vmatpush1.msra.mxu0 0.0
    %7525 = vmatprep.subr.mxu0 0.0
    %7526 = vmatpush1.msra.mxu0 0.0
    %7527 = vmatprep.subr.mxu0 0.0
    %7528 = vmatpush1.msra.mxu0 0.0
    %7529 = vmatprep.subr.mxu0 0.0
    %7530 = vmatpush1.msra.mxu0 0.0
    %7531 = vmatprep.subr.mxu0 0.0
    %7532 = vmatpush1.msra.mxu0 0.0
    %7533 = vmatprep.subr.mxu0 0.0
    %7534 = vmatpush1.msra.mxu0 0.0
    %7535 = vmatprep.subr.mxu0 %v7210
    %7536 = vmatpush1.msra.mxu0 %v7209
    %7537 = vmatprep.subr.mxu0 0.0
    %7538 = vmatpush2.msra.mxu0 0.0
    %7539 = vmatprep.subr.mxu0 0.0
    %7540 = vmatpush2.msra.mxu0 0.0
    %7541 = vmatprep.subr.mxu0 0.0
    %7542 = vmatpush2.msra.mxu0 0.0
    %7543 = vmatprep.subr.mxu0 0.0
    %7544 = vmatpush2.msra.mxu0 0.0
    %7545 = vmatprep.subr.mxu0 0.0
    %7546 = vmatpush2.msra.mxu0 0.0
    %7547 = vmatprep.subr.mxu0 0.0
    %7548 = vmatpush2.msra.mxu0 0.0
    %7549 = vmatprep.subr.mxu0 0.0
    %7550 = vmatpush2.msra.mxu0 0.0
    %7551 = vmatprep.subr.mxu0 0.0
    %7552 = vmatpush2.msra.mxu0 0.0
    %7553 = vmatprep.subr.mxu0 0.0
    %7554 = vmatpush2.msra.mxu0 0.0
    %7555 = vmatprep.subr.mxu0 0.0
    %7556 = vmatpush2.msra.mxu0 0.0
    %7557 = vmatprep.subr.mxu0 0.0
    %7558 = vmatpush2.msra.mxu0 0.0
    %7559 = vmatprep.subr.mxu0 0.0
    %7560 = vmatpush2.msra.mxu0 0.0
    %7561 = vmatprep.subr.mxu0 0.0
    %7562 = vmatpush2.msra.mxu0 0.0
    %7563 = vmatprep.subr.mxu0 0.0
    %7564 = vmatpush2.msra.mxu0 0.0
    %7565 = vmatprep.subr.mxu0 0.0
    %7566 = vmatpush2.msra.mxu0 0.0
    %7567 = vmatprep.subr.mxu0 0.0
    %7568 = vmatpush2.msra.mxu0 0.0
    %7569 = vmatprep.mubr.f32.mxu0 0.0
    %7570 = vmatmul.mubr.f32.gmra.mxu0 %v7219
    %v7571 = vpop.f32.mrf.mxu0
    %v7572 = vadd.f32 0.0, %v7571
    %v7573 = vpop.f32.mrf.mxu0
    %v7574 = vadd.f32 0.0, %v7573
    %7575 = vdwg.mxu0
    %7576 = vmatprep.subr.mxu0 0.0
    %7577 = vmatpush1.msra.mxu0 0.0
    %7578 = vmatprep.subr.mxu0 0.0
    %7579 = vmatpush1.msra.mxu0 0.0
    %7580 = vmatprep.subr.mxu0 0.0
    %7581 = vmatpush1.msra.mxu0 0.0
    %7582 = vmatprep.subr.mxu0 0.0
    %7583 = vmatpush1.msra.mxu0 0.0
    %7584 = vmatprep.subr.mxu0 0.0
    %7585 = vmatpush1.msra.mxu0 0.0
    %7586 = vmatprep.subr.mxu0 0.0
    %7587 = vmatpush1.msra.mxu0 0.0
    %7588 = vmatprep.subr.mxu0 0.0
    %7589 = vmatpush1.msra.mxu0 0.0
    %7590 = vmatprep.subr.mxu0 0.0
    %7591 = vmatpush1.msra.mxu0 0.0
    %7592 = vmatprep.subr.mxu0 0.0
    %7593 = vmatpush1.msra.mxu0 0.0
    %7594 = vmatprep.subr.mxu0 0.0
    %7595 = vmatpush1.msra.mxu0 0.0
    %7596 = vmatprep.subr.mxu0 0.0
    %7597 = vmatpush1.msra.mxu0 0.0
    %7598 = vmatprep.subr.mxu0 0.0
    %7599 = vmatpush1.msra.mxu0 0.0
    %7600 = vmatprep.subr.mxu0 0.0
    %7601 = vmatpush1.msra.mxu0 0.0
    %7602 = vmatprep.subr.mxu0 0.0
    %7603 = vmatpush1.msra.mxu0 0.0
    %7604 = vmatprep.subr.mxu0 0.0
    %7605 = vmatpush1.msra.mxu0 0.0
    %7606 = vmatprep.subr.mxu0 %v7212
    %7607 = vmatpush1.msra.mxu0 %v7211
    %7608 = vmatprep.subr.mxu0 0.0
    %7609 = vmatpush2.msra.mxu0 0.0
    %7610 = vmatprep.subr.mxu0 0.0
    %7611 = vmatpush2.msra.mxu0 0.0
    %7612 = vmatprep.subr.mxu0 0.0
    %7613 = vmatpush2.msra.mxu0 0.0
    %7614 = vmatprep.subr.mxu0 0.0
    %7615 = vmatpush2.msra.mxu0 0.0
    %7616 = vmatprep.subr.mxu0 0.0
    %7617 = vmatpush2.msra.mxu0 0.0
    %7618 = vmatprep.subr.mxu0 0.0
    %7619 = vmatpush2.msra.mxu0 0.0
    %7620 = vmatprep.subr.mxu0 0.0
    %7621 = vmatpush2.msra.mxu0 0.0
    %7622 = vmatprep.subr.mxu0 0.0
    %7623 = vmatpush2.msra.mxu0 0.0
    %7624 = vmatprep.subr.mxu0 0.0
    %7625 = vmatpush2.msra.mxu0 0.0
    %7626 = vmatprep.subr.mxu0 0.0
    %7627 = vmatpush2.msra.mxu0 0.0
    %7628 = vmatprep.subr.mxu0 0.0
    %7629 = vmatpush2.msra.mxu0 0.0
    %7630 = vmatprep.subr.mxu0 0.0
    %7631 = vmatpush2.msra.mxu0 0.0
    %7632 = vmatprep.subr.mxu0 0.0
    %7633 = vmatpush2.msra.mxu0 0.0
    %7634 = vmatprep.subr.mxu0 0.0
    %7635 = vmatpush2.msra.mxu0 0.0
    %7636 = vmatprep.subr.mxu0 0.0
    %7637 = vmatpush2.msra.mxu0 0.0
    %7638 = vmatprep.subr.mxu0 0.0
    %7639 = vmatpush2.msra.mxu0 0.0
    %7640 = vmatprep.mubr.f32.mxu0 0.0
    %7641 = vmatmul.mubr.f32.gmra.mxu0 %v7219
    %v7642 = vpop.f32.mrf.mxu0
    %v7643 = vadd.f32 0.0, %v7642
    %v7644 = vpop.f32.mrf.mxu0
    %v7645 = vadd.f32 0.0, %v7644
    %7646 = vdwg.mxu0
    %7647 = vmatprep.subr.mxu0 0.0
    %7648 = vmatpush1.msra.mxu0 0.0
    %7649 = vmatprep.subr.mxu0 0.0
    %7650 = vmatpush1.msra.mxu0 0.0
    %7651 = vmatprep.subr.mxu0 0.0
    %7652 = vmatpush1.msra.mxu0 0.0
    %7653 = vmatprep.subr.mxu0 0.0
    %7654 = vmatpush1.msra.mxu0 0.0
    %7655 = vmatprep.subr.mxu0 0.0
    %7656 = vmatpush1.msra.mxu0 0.0
    %7657 = vmatprep.subr.mxu0 0.0
    %7658 = vmatpush1.msra.mxu0 0.0
    %7659 = vmatprep.subr.mxu0 0.0
    %7660 = vmatpush1.msra.mxu0 0.0
    %7661 = vmatprep.subr.mxu0 0.0
    %7662 = vmatpush1.msra.mxu0 0.0
    %7663 = vmatprep.subr.mxu0 0.0
    %7664 = vmatpush1.msra.mxu0 0.0
    %7665 = vmatprep.subr.mxu0 0.0
    %7666 = vmatpush1.msra.mxu0 0.0
    %7667 = vmatprep.subr.mxu0 0.0
    %7668 = vmatpush1.msra.mxu0 0.0
    %7669 = vmatprep.subr.mxu0 0.0
    %7670 = vmatpush1.msra.mxu0 0.0
    %7671 = vmatprep.subr.mxu0 0.0
    %7672 = vmatpush1.msra.mxu0 0.0
    %7673 = vmatprep.subr.mxu0 0.0
    %7674 = vmatpush1.msra.mxu0 0.0
    %7675 = vmatprep.subr.mxu0 0.0
    %7676 = vmatpush1.msra.mxu0 0.0
    %7677 = vmatprep.subr.mxu0 %v7214
    %7678 = vmatpush1.msra.mxu0 %v7213
    %7679 = vmatprep.subr.mxu0 0.0
    %7680 = vmatpush2.msra.mxu0 0.0
    %7681 = vmatprep.subr.mxu0 0.0
    %7682 = vmatpush2.msra.mxu0 0.0
    %7683 = vmatprep.subr.mxu0 0.0
    %7684 = vmatpush2.msra.mxu0 0.0
    %7685 = vmatprep.subr.mxu0 0.0
    %7686 = vmatpush2.msra.mxu0 0.0
    %7687 = vmatprep.subr.mxu0 0.0
    %7688 = vmatpush2.msra.mxu0 0.0
    %7689 = vmatprep.subr.mxu0 0.0
    %7690 = vmatpush2.msra.mxu0 0.0
    %7691 = vmatprep.subr.mxu0 0.0
    %7692 = vmatpush2.msra.mxu0 0.0
    %7693 = vmatprep.subr.mxu0 0.0
    %7694 = vmatpush2.msra.mxu0 0.0
    %7695 = vmatprep.subr.mxu0 0.0
    %7696 = vmatpush2.msra.mxu0 0.0
    %7697 = vmatprep.subr.mxu0 0.0
    %7698 = vmatpush2.msra.mxu0 0.0
    %7699 = vmatprep.subr.mxu0 0.0
    %7700 = vmatpush2.msra.mxu0 0.0
    %7701 = vmatprep.subr.mxu0 0.0
    %7702 = vmatpush2.msra.mxu0 0.0
    %7703 = vmatprep.subr.mxu0 0.0
    %7704 = vmatpush2.msra.mxu0 0.0
    %7705 = vmatprep.subr.mxu0 0.0
    %7706 = vmatpush2.msra.mxu0 0.0
    %7707 = vmatprep.subr.mxu0 0.0
    %7708 = vmatpush2.msra.mxu0 0.0
    %7709 = vmatprep.subr.mxu0 0.0
    %7710 = vmatpush2.msra.mxu0 0.0
    %7711 = vmatprep.mubr.f32.mxu0 0.0
    %7712 = vmatmul.mubr.f32.gmra.mxu0 %v7219
    %v7713 = vpop.f32.mrf.mxu0
    %v7714 = vadd.f32 0.0, %v7713
    %v7715 = vpop.f32.mrf.mxu0
    %v7716 = vadd.f32 0.0, %v7715
    %7717 = vdwg.mxu0
    %7718 = vmatprep.subr.mxu0 0.0
    %7719 = vmatpush1.msra.mxu0 0.0
    %7720 = vmatprep.subr.mxu0 0.0
    %7721 = vmatpush1.msra.mxu0 0.0
    %7722 = vmatprep.subr.mxu0 0.0
    %7723 = vmatpush1.msra.mxu0 0.0
    %7724 = vmatprep.subr.mxu0 0.0
    %7725 = vmatpush1.msra.mxu0 0.0
    %7726 = vmatprep.subr.mxu0 0.0
    %7727 = vmatpush1.msra.mxu0 0.0
    %7728 = vmatprep.subr.mxu0 0.0
    %7729 = vmatpush1.msra.mxu0 0.0
    %7730 = vmatprep.subr.mxu0 0.0
    %7731 = vmatpush1.msra.mxu0 0.0
    %7732 = vmatprep.subr.mxu0 0.0
    %7733 = vmatpush1.msra.mxu0 0.0
    %7734 = vmatprep.subr.mxu0 0.0
    %7735 = vmatpush1.msra.mxu0 0.0
    %7736 = vmatprep.subr.mxu0 0.0
    %7737 = vmatpush1.msra.mxu0 0.0
    %7738 = vmatprep.subr.mxu0 0.0
    %7739 = vmatpush1.msra.mxu0 0.0
    %7740 = vmatprep.subr.mxu0 0.0
    %7741 = vmatpush1.msra.mxu0 0.0
    %7742 = vmatprep.subr.mxu0 0.0
    %7743 = vmatpush1.msra.mxu0 0.0
    %7744 = vmatprep.subr.mxu0 0.0
    %7745 = vmatpush1.msra.mxu0 0.0
    %7746 = vmatprep.subr.mxu0 0.0
    %7747 = vmatpush1.msra.mxu0 0.0
    %7748 = vmatprep.subr.mxu0 %v7216
    %7749 = vmatpush1.msra.mxu0 %v7215
    %7750 = vmatprep.subr.mxu0 0.0
    %7751 = vmatpush2.msra.mxu0 0.0
    %7752 = vmatprep.subr.mxu0 0.0
    %7753 = vmatpush2.msra.mxu0 0.0
    %7754 = vmatprep.subr.mxu0 0.0
    %7755 = vmatpush2.msra.mxu0 0.0
    %7756 = vmatprep.subr.mxu0 0.0
    %7757 = vmatpush2.msra.mxu0 0.0
    %7758 = vmatprep.subr.mxu0 0.0
    %7759 = vmatpush2.msra.mxu0 0.0
    %7760 = vmatprep.subr.mxu0 0.0
    %7761 = vmatpush2.msra.mxu0 0.0
    %7762 = vmatprep.subr.mxu0 0.0
    %7763 = vmatpush2.msra.mxu0 0.0
    %7764 = vmatprep.subr.mxu0 0.0
    %7765 = vmatpush2.msra.mxu0 0.0
    %7766 = vmatprep.subr.mxu0 0.0
    %7767 = vmatpush2.msra.mxu0 0.0
    %7768 = vmatprep.subr.mxu0 0.0
    %7769 = vmatpush2.msra.mxu0 0.0
    %7770 = vmatprep.subr.mxu0 0.0
    %7771 = vmatpush2.msra.mxu0 0.0
    %7772 = vmatprep.subr.mxu0 0.0
    %7773 = vmatpush2.msra.mxu0 0.0
    %7774 = vmatprep.subr.mxu0 0.0
    %7775 = vmatpush2.msra.mxu0 0.0
    %7776 = vmatprep.subr.mxu0 0.0
    %7777 = vmatpush2.msra.mxu0 0.0
    %7778 = vmatprep.subr.mxu0 0.0
    %7779 = vmatpush2.msra.mxu0 0.0
    %7780 = vmatprep.subr.mxu0 0.0
    %7781 = vmatpush2.msra.mxu0 0.0
    %7782 = vmatprep.mubr.f32.mxu0 0.0
    %7783 = vmatmul.mubr.f32.gmra.mxu0 %v7219
    %v7784 = vpop.f32.mrf.mxu0
    %v7785 = vadd.f32 0.0, %v7784
    %v7786 = vpop.f32.mrf.mxu0
    %v7787 = vadd.f32 0.0, %v7786
    %7788 = vdwg.mxu0
    %v7790 = vsel %vm7217, %v7200, 0
    %7792 = vmatprep.subr.mxu0 0.0
    %7793 = vmatpush1.msra.mxu0 0.0
    %7794 = vmatprep.subr.mxu0 0.0
    %7795 = vmatpush1.msra.mxu0 0.0
    %7796 = vmatprep.subr.mxu0 0.0
    %7797 = vmatpush1.msra.mxu0 0.0
    %7798 = vmatprep.subr.mxu0 0.0
    %7799 = vmatpush1.msra.mxu0 0.0
    %7800 = vmatprep.subr.mxu0 0.0
    %7801 = vmatpush1.msra.mxu0 0.0
    %7802 = vmatprep.subr.mxu0 0.0
    %7803 = vmatpush1.msra.mxu0 0.0
    %7804 = vmatprep.subr.mxu0 0.0
    %7805 = vmatpush1.msra.mxu0 0.0
    %7806 = vmatprep.subr.mxu0 0.0
    %7807 = vmatpush1.msra.mxu0 0.0
    %7808 = vmatprep.subr.mxu0 0.0
    %7809 = vmatpush1.msra.mxu0 0.0
    %7810 = vmatprep.subr.mxu0 0.0
    %7811 = vmatpush1.msra.mxu0 0.0
    %7812 = vmatprep.subr.mxu0 0.0
    %7813 = vmatpush1.msra.mxu0 0.0
    %7814 = vmatprep.subr.mxu0 0.0
    %7815 = vmatpush1.msra.mxu0 0.0
    %7816 = vmatprep.subr.mxu0 0.0
    %7817 = vmatpush1.msra.mxu0 0.0
    %7818 = vmatprep.subr.mxu0 0.0
    %7819 = vmatpush1.msra.mxu0 0.0
    %7820 = vmatprep.subr.mxu0 0.0
    %7821 = vmatpush1.msra.mxu0 0.0
    %7822 = vmatprep.subr.mxu0 %v7202
    %7823 = vmatpush1.msra.mxu0 %v7201
    %7824 = vmatprep.subr.mxu0 0.0
    %7825 = vmatpush2.msra.mxu0 0.0
    %7826 = vmatprep.subr.mxu0 0.0
    %7827 = vmatpush2.msra.mxu0 0.0
    %7828 = vmatprep.subr.mxu0 0.0
    %7829 = vmatpush2.msra.mxu0 0.0
    %7830 = vmatprep.subr.mxu0 0.0
    %7831 = vmatpush2.msra.mxu0 0.0
    %7832 = vmatprep.subr.mxu0 0.0
    %7833 = vmatpush2.msra.mxu0 0.0
    %7834 = vmatprep.subr.mxu0 0.0
    %7835 = vmatpush2.msra.mxu0 0.0
    %7836 = vmatprep.subr.mxu0 0.0
    %7837 = vmatpush2.msra.mxu0 0.0
    %7838 = vmatprep.subr.mxu0 0.0
    %7839 = vmatpush2.msra.mxu0 0.0
    %7840 = vmatprep.subr.mxu0 0.0
    %7841 = vmatpush2.msra.mxu0 0.0
    %7842 = vmatprep.subr.mxu0 0.0
    %7843 = vmatpush2.msra.mxu0 0.0
    %7844 = vmatprep.subr.mxu0 0.0
    %7845 = vmatpush2.msra.mxu0 0.0
    %7846 = vmatprep.subr.mxu0 0.0
    %7847 = vmatpush2.msra.mxu0 0.0
    %7848 = vmatprep.subr.mxu0 0.0
    %7849 = vmatpush2.msra.mxu0 0.0
    %7850 = vmatprep.subr.mxu0 0.0
    %7851 = vmatpush2.msra.mxu0 0.0
    %7852 = vmatprep.subr.mxu0 0.0
    %7853 = vmatpush2.msra.mxu0 0.0
    %7854 = vmatprep.subr.mxu0 0.0
    %7855 = vmatpush2.msra.mxu0 0.0
    %7856 = vmatprep.mubr.f32.mxu0 0.0
    %7857 = vmatmul.mubr.f32.gmra.mxu0 %v7790
    %v7858 = vpop.f32.mrf.mxu0
    %v7859 = vadd.f32 0.0, %v7858
    %v7860 = vpop.f32.mrf.mxu0
    %v7861 = vadd.f32 0.0, %v7860
    %7862 = vdwg.mxu0
    %7863 = vmatprep.subr.mxu0 0.0
    %7864 = vmatpush1.msra.mxu0 0.0
    %7865 = vmatprep.subr.mxu0 0.0
    %7866 = vmatpush1.msra.mxu0 0.0
    %7867 = vmatprep.subr.mxu0 0.0
    %7868 = vmatpush1.msra.mxu0 0.0
    %7869 = vmatprep.subr.mxu0 0.0
    %7870 = vmatpush1.msra.mxu0 0.0
    %7871 = vmatprep.subr.mxu0 0.0
    %7872 = vmatpush1.msra.mxu0 0.0
    %7873 = vmatprep.subr.mxu0 0.0
    %7874 = vmatpush1.msra.mxu0 0.0
    %7875 = vmatprep.subr.mxu0 0.0
    %7876 = vmatpush1.msra.mxu0 0.0
    %7877 = vmatprep.subr.mxu0 0.0
    %7878 = vmatpush1.msra.mxu0 0.0
    %7879 = vmatprep.subr.mxu0 0.0
    %7880 = vmatpush1.msra.mxu0 0.0
    %7881 = vmatprep.subr.mxu0 0.0
    %7882 = vmatpush1.msra.mxu0 0.0
    %7883 = vmatprep.subr.mxu0 0.0
    %7884 = vmatpush1.msra.mxu0 0.0
    %7885 = vmatprep.subr.mxu0 0.0
    %7886 = vmatpush1.msra.mxu0 0.0
    %7887 = vmatprep.subr.mxu0 0.0
    %7888 = vmatpush1.msra.mxu0 0.0
    %7889 = vmatprep.subr.mxu0 0.0
    %7890 = vmatpush1.msra.mxu0 0.0
    %7891 = vmatprep.subr.mxu0 0.0
    %7892 = vmatpush1.msra.mxu0 0.0
    %7893 = vmatprep.subr.mxu0 %v7204
    %7894 = vmatpush1.msra.mxu0 %v7203
    %7895 = vmatprep.subr.mxu0 0.0
    %7896 = vmatpush2.msra.mxu0 0.0
    %7897 = vmatprep.subr.mxu0 0.0
    %7898 = vmatpush2.msra.mxu0 0.0
    %7899 = vmatprep.subr.mxu0 0.0
    %7900 = vmatpush2.msra.mxu0 0.0
    %7901 = vmatprep.subr.mxu0 0.0
    %7902 = vmatpush2.msra.mxu0 0.0
    %7903 = vmatprep.subr.mxu0 0.0
    %7904 = vmatpush2.msra.mxu0 0.0
    %7905 = vmatprep.subr.mxu0 0.0
    %7906 = vmatpush2.msra.mxu0 0.0
    %7907 = vmatprep.subr.mxu0 0.0
    %7908 = vmatpush2.msra.mxu0 0.0
    %7909 = vmatprep.subr.mxu0 0.0
    %7910 = vmatpush2.msra.mxu0 0.0
    %7911 = vmatprep.subr.mxu0 0.0
    %7912 = vmatpush2.msra.mxu0 0.0
    %7913 = vmatprep.subr.mxu0 0.0
    %7914 = vmatpush2.msra.mxu0 0.0
    %7915 = vmatprep.subr.mxu0 0.0
    %7916 = vmatpush2.msra.mxu0 0.0
    %7917 = vmatprep.subr.mxu0 0.0
    %7918 = vmatpush2.msra.mxu0 0.0
    %7919 = vmatprep.subr.mxu0 0.0
    %7920 = vmatpush2.msra.mxu0 0.0
    %7921 = vmatprep.subr.mxu0 0.0
    %7922 = vmatpush2.msra.mxu0 0.0
    %7923 = vmatprep.subr.mxu0 0.0
    %7924 = vmatpush2.msra.mxu0 0.0
    %7925 = vmatprep.subr.mxu0 0.0
    %7926 = vmatpush2.msra.mxu0 0.0
    %7927 = vmatprep.mubr.f32.mxu0 0.0
    %7928 = vmatmul.mubr.f32.gmra.mxu0 %v7790
    %v7929 = vpop.f32.mrf.mxu0
    %v7930 = vadd.f32 0.0, %v7929
    %v7931 = vpop.f32.mrf.mxu0
    %v7932 = vadd.f32 0.0, %v7931
    %7933 = vdwg.mxu0
    %7934 = vmatprep.subr.mxu0 0.0
    %7935 = vmatpush1.msra.mxu0 0.0
    %7936 = vmatprep.subr.mxu0 0.0
    %7937 = vmatpush1.msra.mxu0 0.0
    %7938 = vmatprep.subr.mxu0 0.0
    %7939 = vmatpush1.msra.mxu0 0.0
    %7940 = vmatprep.subr.mxu0 0.0
    %7941 = vmatpush1.msra.mxu0 0.0
    %7942 = vmatprep.subr.mxu0 0.0
    %7943 = vmatpush1.msra.mxu0 0.0
    %7944 = vmatprep.subr.mxu0 0.0
    %7945 = vmatpush1.msra.mxu0 0.0
    %7946 = vmatprep.subr.mxu0 0.0
    %7947 = vmatpush1.msra.mxu0 0.0
    %7948 = vmatprep.subr.mxu0 0.0
    %7949 = vmatpush1.msra.mxu0 0.0
    %7950 = vmatprep.subr.mxu0 0.0
    %7951 = vmatpush1.msra.mxu0 0.0
    %7952 = vmatprep.subr.mxu0 0.0
    %7953 = vmatpush1.msra.mxu0 0.0
    %7954 = vmatprep.subr.mxu0 0.0
    %7955 = vmatpush1.msra.mxu0 0.0
    %7956 = vmatprep.subr.mxu0 0.0
    %7957 = vmatpush1.msra.mxu0 0.0
    %7958 = vmatprep.subr.mxu0 0.0
    %7959 = vmatpush1.msra.mxu0 0.0
    %7960 = vmatprep.subr.mxu0 0.0
    %7961 = vmatpush1.msra.mxu0 0.0
    %7962 = vmatprep.subr.mxu0 0.0
    %7963 = vmatpush1.msra.mxu0 0.0
    %7964 = vmatprep.subr.mxu0 %v7206
    %7965 = vmatpush1.msra.mxu0 %v7205
    %7966 = vmatprep.subr.mxu0 0.0
    %7967 = vmatpush2.msra.mxu0 0.0
    %7968 = vmatprep.subr.mxu0 0.0
    %7969 = vmatpush2.msra.mxu0 0.0
    %7970 = vmatprep.subr.mxu0 0.0
    %7971 = vmatpush2.msra.mxu0 0.0
    %7972 = vmatprep.subr.mxu0 0.0
    %7973 = vmatpush2.msra.mxu0 0.0
    %7974 = vmatprep.subr.mxu0 0.0
    %7975 = vmatpush2.msra.mxu0 0.0
    %7976 = vmatprep.subr.mxu0 0.0
    %7977 = vmatpush2.msra.mxu0 0.0
    %7978 = vmatprep.subr.mxu0 0.0
    %7979 = vmatpush2.msra.mxu0 0.0
    %7980 = vmatprep.subr.mxu0 0.0
    %7981 = vmatpush2.msra.mxu0 0.0
    %7982 = vmatprep.subr.mxu0 0.0
    %7983 = vmatpush2.msra.mxu0 0.0
    %7984 = vmatprep.subr.mxu0 0.0
    %7985 = vmatpush2.msra.mxu0 0.0
    %7986 = vmatprep.subr.mxu0 0.0
    %7987 = vmatpush2.msra.mxu0 0.0
    %7988 = vmatprep.subr.mxu0 0.0
    %7989 = vmatpush2.msra.mxu0 0.0
    %7990 = vmatprep.subr.mxu0 0.0
    %7991 = vmatpush2.msra.mxu0 0.0
    %7992 = vmatprep.subr.mxu0 0.0
    %7993 = vmatpush2.msra.mxu0 0.0
    %7994 = vmatprep.subr.mxu0 0.0
    %7995 = vmatpush2.msra.mxu0 0.0
    %7996 = vmatprep.subr.mxu0 0.0
    %7997 = vmatpush2.msra.mxu0 0.0
    %7998 = vmatprep.mubr.f32.mxu0 0.0
    %7999 = vmatmul.mubr.f32.gmra.mxu0 %v7790
    %v8000 = vpop.f32.mrf.mxu0
    %v8001 = vadd.f32 0.0, %v8000
    %v8002 = vpop.f32.mrf.mxu0
    %v8003 = vadd.f32 0.0, %v8002
    %8004 = vdwg.mxu0
    %8005 = vmatprep.subr.mxu0 0.0
    %8006 = vmatpush1.msra.mxu0 0.0
    %8007 = vmatprep.subr.mxu0 0.0
    %8008 = vmatpush1.msra.mxu0 0.0
    %8009 = vmatprep.subr.mxu0 0.0
    %8010 = vmatpush1.msra.mxu0 0.0
    %8011 = vmatprep.subr.mxu0 0.0
    %8012 = vmatpush1.msra.mxu0 0.0
    %8013 = vmatprep.subr.mxu0 0.0
    %8014 = vmatpush1.msra.mxu0 0.0
    %8015 = vmatprep.subr.mxu0 0.0
    %8016 = vmatpush1.msra.mxu0 0.0
    %8017 = vmatprep.subr.mxu0 0.0
    %8018 = vmatpush1.msra.mxu0 0.0
    %8019 = vmatprep.subr.mxu0 0.0
    %8020 = vmatpush1.msra.mxu0 0.0
    %8021 = vmatprep.subr.mxu0 0.0
    %8022 = vmatpush1.msra.mxu0 0.0
    %8023 = vmatprep.subr.mxu0 0.0
    %8024 = vmatpush1.msra.mxu0 0.0
    %8025 = vmatprep.subr.mxu0 0.0
    %8026 = vmatpush1.msra.mxu0 0.0
    %8027 = vmatprep.subr.mxu0 0.0
    %8028 = vmatpush1.msra.mxu0 0.0
    %8029 = vmatprep.subr.mxu0 0.0
    %8030 = vmatpush1.msra.mxu0 0.0
    %8031 = vmatprep.subr.mxu0 0.0
    %8032 = vmatpush1.msra.mxu0 0.0
    %8033 = vmatprep.subr.mxu0 0.0
    %8034 = vmatpush1.msra.mxu0 0.0
    %8035 = vmatprep.subr.mxu0 %v7208
    %8036 = vmatpush1.msra.mxu0 %v7207
    %8037 = vmatprep.subr.mxu0 0.0
    %8038 = vmatpush2.msra.mxu0 0.0
    %8039 = vmatprep.subr.mxu0 0.0
    %8040 = vmatpush2.msra.mxu0 0.0
    %8041 = vmatprep.subr.mxu0 0.0
    %8042 = vmatpush2.msra.mxu0 0.0
    %8043 = vmatprep.subr.mxu0 0.0
    %8044 = vmatpush2.msra.mxu0 0.0
    %8045 = vmatprep.subr.mxu0 0.0
    %8046 = vmatpush2.msra.mxu0 0.0
    %8047 = vmatprep.subr.mxu0 0.0
    %8048 = vmatpush2.msra.mxu0 0.0
    %8049 = vmatprep.subr.mxu0 0.0
    %8050 = vmatpush2.msra.mxu0 0.0
    %8051 = vmatprep.subr.mxu0 0.0
    %8052 = vmatpush2.msra.mxu0 0.0
    %8053 = vmatprep.subr.mxu0 0.0
    %8054 = vmatpush2.msra.mxu0 0.0
    %8055 = vmatprep.subr.mxu0 0.0
    %8056 = vmatpush2.msra.mxu0 0.0
    %8057 = vmatprep.subr.mxu0 0.0
    %8058 = vmatpush2.msra.mxu0 0.0
    %8059 = vmatprep.subr.mxu0 0.0
    %8060 = vmatpush2.msra.mxu0 0.0
    %8061 = vmatprep.subr.mxu0 0.0
    %8062 = vmatpush2.msra.mxu0 0.0
    %8063 = vmatprep.subr.mxu0 0.0
    %8064 = vmatpush2.msra.mxu0 0.0
    %8065 = vmatprep.subr.mxu0 0.0
    %8066 = vmatpush2.msra.mxu0 0.0
    %8067 = vmatprep.subr.mxu0 0.0
    %8068 = vmatpush2.msra.mxu0 0.0
    %8069 = vmatprep.mubr.f32.mxu0 0.0
    %8070 = vmatmul.mubr.f32.gmra.mxu0 %v7790
    %v8071 = vpop.f32.mrf.mxu0
    %v8072 = vadd.f32 0.0, %v8071
    %v8073 = vpop.f32.mrf.mxu0
    %v8074 = vadd.f32 0.0, %v8073
    %8075 = vdwg.mxu0
    %8076 = vmatprep.subr.mxu0 0.0
    %8077 = vmatpush1.msra.mxu0 0.0
    %8078 = vmatprep.subr.mxu0 0.0
    %8079 = vmatpush1.msra.mxu0 0.0
    %8080 = vmatprep.subr.mxu0 0.0
    %8081 = vmatpush1.msra.mxu0 0.0
    %8082 = vmatprep.subr.mxu0 0.0
    %8083 = vmatpush1.msra.mxu0 0.0
    %8084 = vmatprep.subr.mxu0 0.0
    %8085 = vmatpush1.msra.mxu0 0.0
    %8086 = vmatprep.subr.mxu0 0.0
    %8087 = vmatpush1.msra.mxu0 0.0
    %8088 = vmatprep.subr.mxu0 0.0
    %8089 = vmatpush1.msra.mxu0 0.0
    %8090 = vmatprep.subr.mxu0 0.0
    %8091 = vmatpush1.msra.mxu0 0.0
    %8092 = vmatprep.subr.mxu0 0.0
    %8093 = vmatpush1.msra.mxu0 0.0
    %8094 = vmatprep.subr.mxu0 0.0
    %8095 = vmatpush1.msra.mxu0 0.0
    %8096 = vmatprep.subr.mxu0 0.0
    %8097 = vmatpush1.msra.mxu0 0.0
    %8098 = vmatprep.subr.mxu0 0.0
    %8099 = vmatpush1.msra.mxu0 0.0
    %8100 = vmatprep.subr.mxu0 0.0
    %8101 = vmatpush1.msra.mxu0 0.0
    %8102 = vmatprep.subr.mxu0 0.0
    %8103 = vmatpush1.msra.mxu0 0.0
    %8104 = vmatprep.subr.mxu0 0.0
    %8105 = vmatpush1.msra.mxu0 0.0
    %8106 = vmatprep.subr.mxu0 %v7210
    %8107 = vmatpush1.msra.mxu0 %v7209
    %8108 = vmatprep.subr.mxu0 0.0
    %8109 = vmatpush2.msra.mxu0 0.0
    %8110 = vmatprep.subr.mxu0 0.0
    %8111 = vmatpush2.msra.mxu0 0.0
    %8112 = vmatprep.subr.mxu0 0.0
    %8113 = vmatpush2.msra.mxu0 0.0
    %8114 = vmatprep.subr.mxu0 0.0
    %8115 = vmatpush2.msra.mxu0 0.0
    %8116 = vmatprep.subr.mxu0 0.0
    %8117 = vmatpush2.msra.mxu0 0.0
    %8118 = vmatprep.subr.mxu0 0.0
    %8119 = vmatpush2.msra.mxu0 0.0
    %8120 = vmatprep.subr.mxu0 0.0
    %8121 = vmatpush2.msra.mxu0 0.0
    %8122 = vmatprep.subr.mxu0 0.0
    %8123 = vmatpush2.msra.mxu0 0.0
    %8124 = vmatprep.subr.mxu0 0.0
    %8125 = vmatpush2.msra.mxu0 0.0
    %8126 = vmatprep.subr.mxu0 0.0
    %8127 = vmatpush2.msra.mxu0 0.0
    %8128 = vmatprep.subr.mxu0 0.0
    %8129 = vmatpush2.msra.mxu0 0.0
    %8130 = vmatprep.subr.mxu0 0.0
    %8131 = vmatpush2.msra.mxu0 0.0
    %8132 = vmatprep.subr.mxu0 0.0
    %8133 = vmatpush2.msra.mxu0 0.0
    %8134 = vmatprep.subr.mxu0 0.0
    %8135 = vmatpush2.msra.mxu0 0.0
    %8136 = vmatprep.subr.mxu0 0.0
    %8137 = vmatpush2.msra.mxu0 0.0
    %8138 = vmatprep.subr.mxu0 0.0
    %8139 = vmatpush2.msra.mxu0 0.0
    %8140 = vmatprep.mubr.f32.mxu0 0.0
    %8141 = vmatmul.mubr.f32.gmra.mxu0 %v7790
    %v8142 = vpop.f32.mrf.mxu0
    %v8143 = vadd.f32 0.0, %v8142
    %v8144 = vpop.f32.mrf.mxu0
    %v8145 = vadd.f32 0.0, %v8144
    %8146 = vdwg.mxu0
    %8147 = vmatprep.subr.mxu0 0.0
    %8148 = vmatpush1.msra.mxu0 0.0
    %8149 = vmatprep.subr.mxu0 0.0
    %8150 = vmatpush1.msra.mxu0 0.0
    %8151 = vmatprep.subr.mxu0 0.0
    %8152 = vmatpush1.msra.mxu0 0.0
    %8153 = vmatprep.subr.mxu0 0.0
    %8154 = vmatpush1.msra.mxu0 0.0
    %8155 = vmatprep.subr.mxu0 0.0
    %8156 = vmatpush1.msra.mxu0 0.0
    %8157 = vmatprep.subr.mxu0 0.0
    %8158 = vmatpush1.msra.mxu0 0.0
    %8159 = vmatprep.subr.mxu0 0.0
    %8160 = vmatpush1.msra.mxu0 0.0
    %8161 = vmatprep.subr.mxu0 0.0
    %8162 = vmatpush1.msra.mxu0 0.0
    %8163 = vmatprep.subr.mxu0 0.0
    %8164 = vmatpush1.msra.mxu0 0.0
    %8165 = vmatprep.subr.mxu0 0.0
    %8166 = vmatpush1.msra.mxu0 0.0
    %8167 = vmatprep.subr.mxu0 0.0
    %8168 = vmatpush1.msra.mxu0 0.0
    %8169 = vmatprep.subr.mxu0 0.0
    %8170 = vmatpush1.msra.mxu0 0.0
    %8171 = vmatprep.subr.mxu0 0.0
    %8172 = vmatpush1.msra.mxu0 0.0
    %8173 = vmatprep.subr.mxu0 0.0
    %8174 = vmatpush1.msra.mxu0 0.0
    %8175 = vmatprep.subr.mxu0 0.0
    %8176 = vmatpush1.msra.mxu0 0.0
    %8177 = vmatprep.subr.mxu0 %v7212
    %8178 = vmatpush1.msra.mxu0 %v7211
    %8179 = vmatprep.subr.mxu0 0.0
    %8180 = vmatpush2.msra.mxu0 0.0
    %8181 = vmatprep.subr.mxu0 0.0
    %8182 = vmatpush2.msra.mxu0 0.0
    %8183 = vmatprep.subr.mxu0 0.0
    %8184 = vmatpush2.msra.mxu0 0.0
    %8185 = vmatprep.subr.mxu0 0.0
    %8186 = vmatpush2.msra.mxu0 0.0
    %8187 = vmatprep.subr.mxu0 0.0
    %8188 = vmatpush2.msra.mxu0 0.0
    %8189 = vmatprep.subr.mxu0 0.0
    %8190 = vmatpush2.msra.mxu0 0.0
    %8191 = vmatprep.subr.mxu0 0.0
    %8192 = vmatpush2.msra.mxu0 0.0
    %8193 = vmatprep.subr.mxu0 0.0
    %8194 = vmatpush2.msra.mxu0 0.0
    %8195 = vmatprep.subr.mxu0 0.0
    %8196 = vmatpush2.msra.mxu0 0.0
    %8197 = vmatprep.subr.mxu0 0.0
    %8198 = vmatpush2.msra.mxu0 0.0
    %8199 = vmatprep.subr.mxu0 0.0
    %8200 = vmatpush2.msra.mxu0 0.0
    %8201 = vmatprep.subr.mxu0 0.0
    %8202 = vmatpush2.msra.mxu0 0.0
    %8203 = vmatprep.subr.mxu0 0.0
    %8204 = vmatpush2.msra.mxu0 0.0
    %8205 = vmatprep.subr.mxu0 0.0
    %8206 = vmatpush2.msra.mxu0 0.0
    %8207 = vmatprep.subr.mxu0 0.0
    %8208 = vmatpush2.msra.mxu0 0.0
    %8209 = vmatprep.subr.mxu0 0.0
    %8210 = vmatpush2.msra.mxu0 0.0
    %8211 = vmatprep.mubr.f32.mxu0 0.0
    %8212 = vmatmul.mubr.f32.gmra.mxu0 %v7790
    %v8213 = vpop.f32.mrf.mxu0
    %v8214 = vadd.f32 0.0, %v8213
    %v8215 = vpop.f32.mrf.mxu0
    %v8216 = vadd.f32 0.0, %v8215
    %8217 = vdwg.mxu0
    %8218 = vmatprep.subr.mxu0 0.0
    %8219 = vmatpush1.msra.mxu0 0.0
    %8220 = vmatprep.subr.mxu0 0.0
    %8221 = vmatpush1.msra.mxu0 0.0
    %8222 = vmatprep.subr.mxu0 0.0
    %8223 = vmatpush1.msra.mxu0 0.0
    %8224 = vmatprep.subr.mxu0 0.0
    %8225 = vmatpush1.msra.mxu0 0.0
    %8226 = vmatprep.subr.mxu0 0.0
    %8227 = vmatpush1.msra.mxu0 0.0
    %8228 = vmatprep.subr.mxu0 0.0
    %8229 = vmatpush1.msra.mxu0 0.0
    %8230 = vmatprep.subr.mxu0 0.0
    %8231 = vmatpush1.msra.mxu0 0.0
    %8232 = vmatprep.subr.mxu0 0.0
    %8233 = vmatpush1.msra.mxu0 0.0
    %8234 = vmatprep.subr.mxu0 0.0
    %8235 = vmatpush1.msra.mxu0 0.0
    %8236 = vmatprep.subr.mxu0 0.0
    %8237 = vmatpush1.msra.mxu0 0.0
    %8238 = vmatprep.subr.mxu0 0.0
    %8239 = vmatpush1.msra.mxu0 0.0
    %8240 = vmatprep.subr.mxu0 0.0
    %8241 = vmatpush1.msra.mxu0 0.0
    %8242 = vmatprep.subr.mxu0 0.0
    %8243 = vmatpush1.msra.mxu0 0.0
    %8244 = vmatprep.subr.mxu0 0.0
    %8245 = vmatpush1.msra.mxu0 0.0
    %8246 = vmatprep.subr.mxu0 0.0
    %8247 = vmatpush1.msra.mxu0 0.0
    %8248 = vmatprep.subr.mxu0 %v7214
    %8249 = vmatpush1.msra.mxu0 %v7213
    %8250 = vmatprep.subr.mxu0 0.0
    %8251 = vmatpush2.msra.mxu0 0.0
    %8252 = vmatprep.subr.mxu0 0.0
    %8253 = vmatpush2.msra.mxu0 0.0
    %8254 = vmatprep.subr.mxu0 0.0
    %8255 = vmatpush2.msra.mxu0 0.0
    %8256 = vmatprep.subr.mxu0 0.0
    %8257 = vmatpush2.msra.mxu0 0.0
    %8258 = vmatprep.subr.mxu0 0.0
    %8259 = vmatpush2.msra.mxu0 0.0
    %8260 = vmatprep.subr.mxu0 0.0
    %8261 = vmatpush2.msra.mxu0 0.0
    %8262 = vmatprep.subr.mxu0 0.0
    %8263 = vmatpush2.msra.mxu0 0.0
    %8264 = vmatprep.subr.mxu0 0.0
    %8265 = vmatpush2.msra.mxu0 0.0
    %8266 = vmatprep.subr.mxu0 0.0
    %8267 = vmatpush2.msra.mxu0 0.0
    %8268 = vmatprep.subr.mxu0 0.0
    %8269 = vmatpush2.msra.mxu0 0.0
    %8270 = vmatprep.subr.mxu0 0.0
    %8271 = vmatpush2.msra.mxu0 0.0
    %8272 = vmatprep.subr.mxu0 0.0
    %8273 = vmatpush2.msra.mxu0 0.0
    %8274 = vmatprep.subr.mxu0 0.0
    %8275 = vmatpush2.msra.mxu0 0.0
    %8276 = vmatprep.subr.mxu0 0.0
    %8277 = vmatpush2.msra.mxu0 0.0
    %8278 = vmatprep.subr.mxu0 0.0
    %8279 = vmatpush2.msra.mxu0 0.0
    %8280 = vmatprep.subr.mxu0 0.0
    %8281 = vmatpush2.msra.mxu0 0.0
    %8282 = vmatprep.mubr.f32.mxu0 0.0
    %8283 = vmatmul.mubr.f32.gmra.mxu0 %v7790
    %v8284 = vpop.f32.mrf.mxu0
    %v8285 = vadd.f32 0.0, %v8284
    %v8286 = vpop.f32.mrf.mxu0
    %v8287 = vadd.f32 0.0, %v8286
    %8288 = vdwg.mxu0
    %8289 = vmatprep.subr.mxu0 0.0
    %8290 = vmatpush1.msra.mxu0 0.0
    %8291 = vmatprep.subr.mxu0 0.0
    %8292 = vmatpush1.msra.mxu0 0.0
    %8293 = vmatprep.subr.mxu0 0.0
    %8294 = vmatpush1.msra.mxu0 0.0
    %8295 = vmatprep.subr.mxu0 0.0
    %8296 = vmatpush1.msra.mxu0 0.0
    %8297 = vmatprep.subr.mxu0 0.0
    %8298 = vmatpush1.msra.mxu0 0.0
    %8299 = vmatprep.subr.mxu0 0.0
    %8300 = vmatpush1.msra.mxu0 0.0
    %8301 = vmatprep.subr.mxu0 0.0
    %8302 = vmatpush1.msra.mxu0 0.0
    %8303 = vmatprep.subr.mxu0 0.0
    %8304 = vmatpush1.msra.mxu0 0.0
    %8305 = vmatprep.subr.mxu0 0.0
    %8306 = vmatpush1.msra.mxu0 0.0
    %8307 = vmatprep.subr.mxu0 0.0
    %8308 = vmatpush1.msra.mxu0 0.0
    %8309 = vmatprep.subr.mxu0 0.0
    %8310 = vmatpush1.msra.mxu0 0.0
    %8311 = vmatprep.subr.mxu0 0.0
    %8312 = vmatpush1.msra.mxu0 0.0
    %8313 = vmatprep.subr.mxu0 0.0
    %8314 = vmatpush1.msra.mxu0 0.0
    %8315 = vmatprep.subr.mxu0 0.0
    %8316 = vmatpush1.msra.mxu0 0.0
    %8317 = vmatprep.subr.mxu0 0.0
    %8318 = vmatpush1.msra.mxu0 0.0
    %8319 = vmatprep.subr.mxu0 %v7216
    %8320 = vmatpush1.msra.mxu0 %v7215
    %8321 = vmatprep.subr.mxu0 0.0
    %8322 = vmatpush2.msra.mxu0 0.0
    %8323 = vmatprep.subr.mxu0 0.0
    %8324 = vmatpush2.msra.mxu0 0.0
    %8325 = vmatprep.subr.mxu0 0.0
    %8326 = vmatpush2.msra.mxu0 0.0
    %8327 = vmatprep.subr.mxu0 0.0
    %8328 = vmatpush2.msra.mxu0 0.0
    %8329 = vmatprep.subr.mxu0 0.0
    %8330 = vmatpush2.msra.mxu0 0.0
    %8331 = vmatprep.subr.mxu0 0.0
    %8332 = vmatpush2.msra.mxu0 0.0
    %8333 = vmatprep.subr.mxu0 0.0
    %8334 = vmatpush2.msra.mxu0 0.0
    %8335 = vmatprep.subr.mxu0 0.0
    %8336 = vmatpush2.msra.mxu0 0.0
    %8337 = vmatprep.subr.mxu0 0.0
    %8338 = vmatpush2.msra.mxu0 0.0
    %8339 = vmatprep.subr.mxu0 0.0
    %8340 = vmatpush2.msra.mxu0 0.0
    %8341 = vmatprep.subr.mxu0 0.0
    %8342 = vmatpush2.msra.mxu0 0.0
    %8343 = vmatprep.subr.mxu0 0.0
    %8344 = vmatpush2.msra.mxu0 0.0
    %8345 = vmatprep.subr.mxu0 0.0
    %8346 = vmatpush2.msra.mxu0 0.0
    %8347 = vmatprep.subr.mxu0 0.0
    %8348 = vmatpush2.msra.mxu0 0.0
    %8349 = vmatprep.subr.mxu0 0.0
    %8350 = vmatpush2.msra.mxu0 0.0
    %8351 = vmatprep.subr.mxu0 0.0
    %8352 = vmatpush2.msra.mxu0 0.0
    %8353 = vmatprep.mubr.f32.mxu0 0.0
    %8354 = vmatmul.mubr.f32.gmra.mxu0 %v7790
    %v8355 = vpop.f32.mrf.mxu0
    %v8356 = vadd.f32 0.0, %v8355
    %v8357 = vpop.f32.mrf.mxu0
    %v8358 = vadd.f32 0.0, %v8357
    %8359 = vdwg.mxu0
    %v8360 = vlaneseq
    %v8361 = vshrl.u32 %v8360, 7
    %v8362 = vsub.s32 0, %v8361
    %v8363 = vrot.slane %v7288, %v8362
    %v8364 = vlaneseq
    %v8365 = vshrl.u32 %v8364, 7
    %v8366 = vsub.s32 0, %v8365
    %v8367 = vrot.slane %v7290, %v8366
    %v8368 = vlaneseq
    %v8369 = vshrl.u32 %v8368, 7
    %v8370 = vsub.s32 0, %v8369
    %v8371 = vrot.slane %v7359, %v8370
    %v8372 = vlaneseq
    %v8373 = vshrl.u32 %v8372, 7
    %v8374 = vsub.s32 0, %v8373
    %v8375 = vrot.slane %v7361, %v8374
    %v8376 = vlaneseq
    %v8377 = vshrl.u32 %v8376, 7
    %v8378 = vsub.s32 0, %v8377
    %v8379 = vrot.slane %v7430, %v8378
    %v8380 = vlaneseq
    %v8381 = vshrl.u32 %v8380, 7
    %v8382 = vsub.s32 0, %v8381
    %v8383 = vrot.slane %v7432, %v8382
    %v8384 = vlaneseq
    %v8385 = vshrl.u32 %v8384, 7
    %v8386 = vsub.s32 0, %v8385
    %v8387 = vrot.slane %v7501, %v8386
    %v8388 = vlaneseq
    %v8389 = vshrl.u32 %v8388, 7
    %v8390 = vsub.s32 0, %v8389
    %v8391 = vrot.slane %v7503, %v8390
    %v8392 = vlaneseq
    %v8393 = vshrl.u32 %v8392, 7
    %v8394 = vsub.s32 0, %v8393
    %v8395 = vrot.slane %v7572, %v8394
    %v8396 = vlaneseq
    %v8397 = vshrl.u32 %v8396, 7
    %v8398 = vsub.s32 0, %v8397
    %v8399 = vrot.slane %v7574, %v8398
    %v8400 = vlaneseq
    %v8401 = vshrl.u32 %v8400, 7
    %v8402 = vsub.s32 0, %v8401
    %v8403 = vrot.slane %v7643, %v8402
    %v8404 = vlaneseq
    %v8405 = vshrl.u32 %v8404, 7
    %v8406 = vsub.s32 0, %v8405
    %v8407 = vrot.slane %v7645, %v8406
    %v8408 = vlaneseq
    %v8409 = vshrl.u32 %v8408, 7
    %v8410 = vsub.s32 0, %v8409
    %v8411 = vrot.slane %v7714, %v8410
    %v8412 = vlaneseq
    %v8413 = vshrl.u32 %v8412, 7
    %v8414 = vsub.s32 0, %v8413
    %v8415 = vrot.slane %v7716, %v8414
    %v8416 = vlaneseq
    %v8417 = vshrl.u32 %v8416, 7
    %v8418 = vsub.s32 0, %v8417
    %v8419 = vrot.slane %v7785, %v8418
    %v8420 = vlaneseq
    %v8421 = vshrl.u32 %v8420, 7
    %v8422 = vsub.s32 0, %v8421
    %v8423 = vrot.slane %v7787, %v8422
    %v8424 = vmul.f32 %v5072, %v8363
    %v8425 = vmul.f32 %v5074, %v8367
    %v8426 = vmul.f32 %v5143, %v8371
    %v8427 = vmul.f32 %v5145, %v8375
    %v8428 = vmul.f32 %v5214, %v8379
    %v8429 = vmul.f32 %v5216, %v8383
    %v8430 = vmul.f32 %v5285, %v8387
    %v8431 = vmul.f32 %v5287, %v8391
    %v8432 = vmul.f32 %v5356, %v8395
    %v8433 = vmul.f32 %v5358, %v8399
    %v8434 = vmul.f32 %v5427, %v8403
    %v8435 = vmul.f32 %v5429, %v8407
    %v8436 = vmul.f32 %v5498, %v8411
    %v8437 = vmul.f32 %v5500, %v8415
    %v8438 = vmul.f32 %v5569, %v8419
    %v8439 = vmul.f32 %v5571, %v8423
    %v8440 = vlaneseq
    %v8441 = vshrl.u32 %v8440, 7
    %v8442 = vsub.s32 0, %v8441
    %v8443 = vrot.slane %v7859, %v8442
    %v8444 = vlaneseq
    %v8445 = vshrl.u32 %v8444, 7
    %v8446 = vsub.s32 0, %v8445
    %v8447 = vrot.slane %v7861, %v8446
    %v8448 = vlaneseq
    %v8449 = vshrl.u32 %v8448, 7
    %v8450 = vsub.s32 0, %v8449
    %v8451 = vrot.slane %v7930, %v8450
    %v8452 = vlaneseq
    %v8453 = vshrl.u32 %v8452, 7
    %v8454 = vsub.s32 0, %v8453
    %v8455 = vrot.slane %v7932, %v8454
    %v8456 = vlaneseq
    %v8457 = vshrl.u32 %v8456, 7
    %v8458 = vsub.s32 0, %v8457
    %v8459 = vrot.slane %v8001, %v8458
    %v8460 = vlaneseq
    %v8461 = vshrl.u32 %v8460, 7
    %v8462 = vsub.s32 0, %v8461
    %v8463 = vrot.slane %v8003, %v8462
    %v8464 = vlaneseq
    %v8465 = vshrl.u32 %v8464, 7
    %v8466 = vsub.s32 0, %v8465
    %v8467 = vrot.slane %v8072, %v8466
    %v8468 = vlaneseq
    %v8469 = vshrl.u32 %v8468, 7
    %v8470 = vsub.s32 0, %v8469
    %v8471 = vrot.slane %v8074, %v8470
    %v8472 = vlaneseq
    %v8473 = vshrl.u32 %v8472, 7
    %v8474 = vsub.s32 0, %v8473
    %v8475 = vrot.slane %v8143, %v8474
    %v8476 = vlaneseq
    %v8477 = vshrl.u32 %v8476, 7
    %v8478 = vsub.s32 0, %v8477
    %v8479 = vrot.slane %v8145, %v8478
    %v8480 = vlaneseq
    %v8481 = vshrl.u32 %v8480, 7
    %v8482 = vsub.s32 0, %v8481
    %v8483 = vrot.slane %v8214, %v8482
    %v8484 = vlaneseq
    %v8485 = vshrl.u32 %v8484, 7
    %v8486 = vsub.s32 0, %v8485
    %v8487 = vrot.slane %v8216, %v8486
    %v8488 = vlaneseq
    %v8489 = vshrl.u32 %v8488, 7
    %v8490 = vsub.s32 0, %v8489
    %v8491 = vrot.slane %v8285, %v8490
    %v8492 = vlaneseq
    %v8493 = vshrl.u32 %v8492, 7
    %v8494 = vsub.s32 0, %v8493
    %v8495 = vrot.slane %v8287, %v8494
    %v8496 = vlaneseq
    %v8497 = vshrl.u32 %v8496, 7
    %v8498 = vsub.s32 0, %v8497
    %v8499 = vrot.slane %v8356, %v8498
    %v8500 = vlaneseq
    %v8501 = vshrl.u32 %v8500, 7
    %v8502 = vsub.s32 0, %v8501
    %v8503 = vrot.slane %v8358, %v8502
    %v8504 = vadd.f32 %v8424, %v8443
    %v8505 = vadd.f32 %v8425, %v8447
    %v8506 = vadd.f32 %v8426, %v8451
    %v8507 = vadd.f32 %v8427, %v8455
    %v8508 = vadd.f32 %v8428, %v8459
    %v8509 = vadd.f32 %v8429, %v8463
    %v8510 = vadd.f32 %v8430, %v8467
    %v8511 = vadd.f32 %v8431, %v8471
    %v8512 = vadd.f32 %v8432, %v8475
    %v8513 = vadd.f32 %v8433, %v8479
    %v8514 = vadd.f32 %v8434, %v8483
    %v8515 = vadd.f32 %v8435, %v8487
    %v8516 = vadd.f32 %v8436, %v8491
    %v8517 = vadd.f32 %v8437, %v8495
    %v8518 = vadd.f32 %v8438, %v8499
    %v8519 = vadd.f32 %v8439, %v8503
    %vm8520 = vcmp.gt.f32.partialorder %v8504, 20.0
    %vm8521 = vcmp.gt.f32.partialorder %v8505, 20.0
    %vm8522 = vcmp.gt.f32.partialorder %v8506, 20.0
    %vm8523 = vcmp.gt.f32.partialorder %v8507, 20.0
    %vm8524 = vcmp.gt.f32.partialorder %v8508, 20.0
    %vm8525 = vcmp.gt.f32.partialorder %v8509, 20.0
    %vm8526 = vcmp.gt.f32.partialorder %v8510, 20.0
    %vm8527 = vcmp.gt.f32.partialorder %v8511, 20.0
    %vm8528 = vcmp.gt.f32.partialorder %v8512, 20.0
    %vm8529 = vcmp.gt.f32.partialorder %v8513, 20.0
    %vm8530 = vcmp.gt.f32.partialorder %v8514, 20.0
    %vm8531 = vcmp.gt.f32.partialorder %v8515, 20.0
    %vm8532 = vcmp.gt.f32.partialorder %v8516, 20.0
    %vm8533 = vcmp.gt.f32.partialorder %v8517, 20.0
    %vm8534 = vcmp.gt.f32.partialorder %v8518, 20.0
    %vm8535 = vcmp.gt.f32.partialorder %v8519, 20.0
    %v8536 = vmin.f32 %v8504, 20.0
    %v8537 = vmin.f32 %v8505, 20.0
    %v8538 = vmin.f32 %v8506, 20.0
    %v8539 = vmin.f32 %v8507, 20.0
    %v8540 = vmin.f32 %v8508, 20.0
    %v8541 = vmin.f32 %v8509, 20.0
    %v8542 = vmin.f32 %v8510, 20.0
    %v8543 = vmin.f32 %v8511, 20.0
    %v8544 = vmin.f32 %v8512, 20.0
    %v8545 = vmin.f32 %v8513, 20.0
    %v8546 = vmin.f32 %v8514, 20.0
    %v8547 = vmin.f32 %v8515, 20.0
    %v8548 = vmin.f32 %v8516, 20.0
    %v8549 = vmin.f32 %v8517, 20.0
    %v8550 = vmin.f32 %v8518, 20.0
    %v8551 = vmin.f32 %v8519, 20.0
    %v8552 = vmul.f32 %v8536, 1.442695
    %v8553 = vpow.pop %v8552
    %v8554 = vmul.f32 %v8537, 1.442695
    %v8555 = vpow.pop %v8554
    %v8556 = vmul.f32 %v8538, 1.442695
    %v8557 = vpow.pop %v8556
    %v8558 = vmul.f32 %v8539, 1.442695
    %v8559 = vpow.pop %v8558
    %v8560 = vmul.f32 %v8540, 1.442695
    %v8561 = vpow.pop %v8560
    %v8562 = vmul.f32 %v8541, 1.442695
    %v8563 = vpow.pop %v8562
    %v8564 = vmul.f32 %v8542, 1.442695
    %v8565 = vpow.pop %v8564
    %v8566 = vmul.f32 %v8543, 1.442695
    %v8567 = vpow.pop %v8566
    %v8568 = vmul.f32 %v8544, 1.442695
    %v8569 = vpow.pop %v8568
    %v8570 = vmul.f32 %v8545, 1.442695
    %v8571 = vpow.pop %v8570
    %v8572 = vmul.f32 %v8546, 1.442695
    %v8573 = vpow.pop %v8572
    %v8574 = vmul.f32 %v8547, 1.442695
    %v8575 = vpow.pop %v8574
    %v8576 = vmul.f32 %v8548, 1.442695
    %v8577 = vpow.pop %v8576
    %v8578 = vmul.f32 %v8549, 1.442695
    %v8579 = vpow.pop %v8578
    %v8580 = vmul.f32 %v8550, 1.442695
    %v8581 = vpow.pop %v8580
    %v8582 = vmul.f32 %v8551, 1.442695
    %v8583 = vpow.pop %v8582
    %v8584 = vadd.f32 %v8553, 1.0
    %v8585 = vlog2.pop %v8584
    %v8586 = vmul.f32 %v8585, 0.6931472
    %v8587 = vmul.f32 -0.5, %v8553
    %v8588 = vadd.f32 %v8587, 1.0
    %v8589 = vmul.f32 %v8588, %v8553
    %v8590 = vand.u32 2147483647, %v8553
    %vm8591 = vcmp.lt.f32.partialorder %v8590, 0.0004427343
    %v8592 = vsel %vm8591, %v8589, %v8586
    %v8593 = vadd.f32 %v8555, 1.0
    %v8594 = vlog2.pop %v8593
    %v8595 = vmul.f32 %v8594, 0.6931472
    %v8596 = vmul.f32 -0.5, %v8555
    %v8597 = vadd.f32 %v8596, 1.0
    %v8598 = vmul.f32 %v8597, %v8555
    %v8599 = vand.u32 2147483647, %v8555
    %vm8600 = vcmp.lt.f32.partialorder %v8599, 0.0004427343
    %v8601 = vsel %vm8600, %v8598, %v8595
    %v8602 = vadd.f32 %v8557, 1.0
    %v8603 = vlog2.pop %v8602
    %v8604 = vmul.f32 %v8603, 0.6931472
    %v8605 = vmul.f32 -0.5, %v8557
    %v8606 = vadd.f32 %v8605, 1.0
    %v8607 = vmul.f32 %v8606, %v8557
    %v8608 = vand.u32 2147483647, %v8557
    %vm8609 = vcmp.lt.f32.partialorder %v8608, 0.0004427343
    %v8610 = vsel %vm8609, %v8607, %v8604
    %v8611 = vadd.f32 %v8559, 1.0
    %v8612 = vlog2.pop %v8611
    %v8613 = vmul.f32 %v8612, 0.6931472
    %v8614 = vmul.f32 -0.5, %v8559
    %v8615 = vadd.f32 %v8614, 1.0
    %v8616 = vmul.f32 %v8615, %v8559
    %v8617 = vand.u32 2147483647, %v8559
    %vm8618 = vcmp.lt.f32.partialorder %v8617, 0.0004427343
    %v8619 = vsel %vm8618, %v8616, %v8613
    %v8620 = vadd.f32 %v8561, 1.0
    %v8621 = vlog2.pop %v8620
    %v8622 = vmul.f32 %v8621, 0.6931472
    %v8623 = vmul.f32 -0.5, %v8561
    %v8624 = vadd.f32 %v8623, 1.0
    %v8625 = vmul.f32 %v8624, %v8561
    %v8626 = vand.u32 2147483647, %v8561
    %vm8627 = vcmp.lt.f32.partialorder %v8626, 0.0004427343
    %v8628 = vsel %vm8627, %v8625, %v8622
    %v8629 = vadd.f32 %v8563, 1.0
    %v8630 = vlog2.pop %v8629
    %v8631 = vmul.f32 %v8630, 0.6931472
    %v8632 = vmul.f32 -0.5, %v8563
    %v8633 = vadd.f32 %v8632, 1.0
    %v8634 = vmul.f32 %v8633, %v8563
    %v8635 = vand.u32 2147483647, %v8563
    %vm8636 = vcmp.lt.f32.partialorder %v8635, 0.0004427343
    %v8637 = vsel %vm8636, %v8634, %v8631
    %v8638 = vadd.f32 %v8565, 1.0
    %v8639 = vlog2.pop %v8638
    %v8640 = vmul.f32 %v8639, 0.6931472
    %v8641 = vmul.f32 -0.5, %v8565
    %v8642 = vadd.f32 %v8641, 1.0
    %v8643 = vmul.f32 %v8642, %v8565
    %v8644 = vand.u32 2147483647, %v8565
    %vm8645 = vcmp.lt.f32.partialorder %v8644, 0.0004427343
    %v8646 = vsel %vm8645, %v8643, %v8640
    %v8647 = vadd.f32 %v8567, 1.0
    %v8648 = vlog2.pop %v8647
    %v8649 = vmul.f32 %v8648, 0.6931472
    %v8650 = vmul.f32 -0.5, %v8567
    %v8651 = vadd.f32 %v8650, 1.0
    %v8652 = vmul.f32 %v8651, %v8567
    %v8653 = vand.u32 2147483647, %v8567
    %vm8654 = vcmp.lt.f32.partialorder %v8653, 0.0004427343
    %v8655 = vsel %vm8654, %v8652, %v8649
    %v8656 = vadd.f32 %v8569, 1.0
    %v8657 = vlog2.pop %v8656
    %v8658 = vmul.f32 %v8657, 0.6931472
    %v8659 = vmul.f32 -0.5, %v8569
    %v8660 = vadd.f32 %v8659, 1.0
    %v8661 = vmul.f32 %v8660, %v8569
    %v8662 = vand.u32 2147483647, %v8569
    %vm8663 = vcmp.lt.f32.partialorder %v8662, 0.0004427343
    %v8664 = vsel %vm8663, %v8661, %v8658
    %v8665 = vadd.f32 %v8571, 1.0
    %v8666 = vlog2.pop %v8665
    %v8667 = vmul.f32 %v8666, 0.6931472
    %v8668 = vmul.f32 -0.5, %v8571
    %v8669 = vadd.f32 %v8668, 1.0
    %v8670 = vmul.f32 %v8669, %v8571
    %v8671 = vand.u32 2147483647, %v8571
    %vm8672 = vcmp.lt.f32.partialorder %v8671, 0.0004427343
    %v8673 = vsel %vm8672, %v8670, %v8667
    %v8674 = vadd.f32 %v8573, 1.0
    %v8675 = vlog2.pop %v8674
    %v8676 = vmul.f32 %v8675, 0.6931472
    %v8677 = vmul.f32 -0.5, %v8573
    %v8678 = vadd.f32 %v8677, 1.0
    %v8679 = vmul.f32 %v8678, %v8573
    %v8680 = vand.u32 2147483647, %v8573
    %vm8681 = vcmp.lt.f32.partialorder %v8680, 0.0004427343
    %v8682 = vsel %vm8681, %v8679, %v8676
    %v8683 = vadd.f32 %v8575, 1.0
    %v8684 = vlog2.pop %v8683
    %v8685 = vmul.f32 %v8684, 0.6931472
    %v8686 = vmul.f32 -0.5, %v8575
    %v8687 = vadd.f32 %v8686, 1.0
    %v8688 = vmul.f32 %v8687, %v8575
    %v8689 = vand.u32 2147483647, %v8575
    %vm8690 = vcmp.lt.f32.partialorder %v8689, 0.0004427343
    %v8691 = vsel %vm8690, %v8688, %v8685
    %v8692 = vadd.f32 %v8577, 1.0
    %v8693 = vlog2.pop %v8692
    %v8694 = vmul.f32 %v8693, 0.6931472
    %v8695 = vmul.f32 -0.5, %v8577
    %v8696 = vadd.f32 %v8695, 1.0
    %v8697 = vmul.f32 %v8696, %v8577
    %v8698 = vand.u32 2147483647, %v8577
    %vm8699 = vcmp.lt.f32.partialorder %v8698, 0.0004427343
    %v8700 = vsel %vm8699, %v8697, %v8694
    %v8701 = vadd.f32 %v8579, 1.0
    %v8702 = vlog2.pop %v8701
    %v8703 = vmul.f32 %v8702, 0.6931472
    %v8704 = vmul.f32 -0.5, %v8579
    %v8705 = vadd.f32 %v8704, 1.0
    %v8706 = vmul.f32 %v8705, %v8579
    %v8707 = vand.u32 2147483647, %v8579
    %vm8708 = vcmp.lt.f32.partialorder %v8707, 0.0004427343
    %v8709 = vsel %vm8708, %v8706, %v8703
    %v8710 = vadd.f32 %v8581, 1.0
    %v8711 = vlog2.pop %v8710
    %v8712 = vmul.f32 %v8711, 0.6931472
    %v8713 = vmul.f32 -0.5, %v8581
    %v8714 = vadd.f32 %v8713, 1.0
    %v8715 = vmul.f32 %v8714, %v8581
    %v8716 = vand.u32 2147483647, %v8581
    %vm8717 = vcmp.lt.f32.partialorder %v8716, 0.0004427343
    %v8718 = vsel %vm8717, %v8715, %v8712
    %v8719 = vadd.f32 %v8583, 1.0
    %v8720 = vlog2.pop %v8719
    %v8721 = vmul.f32 %v8720, 0.6931472
    %v8722 = vmul.f32 -0.5, %v8583
    %v8723 = vadd.f32 %v8722, 1.0
    %v8724 = vmul.f32 %v8723, %v8583
    %v8725 = vand.u32 2147483647, %v8583
    %vm8726 = vcmp.lt.f32.partialorder %v8725, 0.0004427343
    %v8727 = vsel %vm8726, %v8724, %v8721
    %v8728 = vsel %vm8520, %v8504, %v8592
    %v8729 = vsel %vm8521, %v8505, %v8601
    %v8730 = vsel %vm8522, %v8506, %v8610
    %v8731 = vsel %vm8523, %v8507, %v8619
    %v8732 = vsel %vm8524, %v8508, %v8628
    %v8733 = vsel %vm8525, %v8509, %v8637
    %v8734 = vsel %vm8526, %v8510, %v8646
    %v8735 = vsel %vm8527, %v8511, %v8655
    %v8736 = vsel %vm8528, %v8512, %v8664
    %v8737 = vsel %vm8529, %v8513, %v8673
    %v8738 = vsel %vm8530, %v8514, %v8682
    %v8739 = vsel %vm8531, %v8515, %v8691
    %v8740 = vsel %vm8532, %v8516, %v8700
    %v8741 = vsel %vm8533, %v8517, %v8709
    %v8742 = vsel %vm8534, %v8518, %v8718
    %v8743 = vsel %vm8535, %v8519, %v8727
    %v8744 = vtanh.pop %v8728
    %v8745 = vtanh.pop %v8729
    %v8746 = vtanh.pop %v8730
    %v8747 = vtanh.pop %v8731
    %v8748 = vtanh.pop %v8732
    %v8749 = vtanh.pop %v8733
    %v8750 = vtanh.pop %v8734
    %v8751 = vtanh.pop %v8735
    %v8752 = vtanh.pop %v8736
    %v8753 = vtanh.pop %v8737
    %v8754 = vtanh.pop %v8738
    %v8755 = vtanh.pop %v8739
    %v8756 = vtanh.pop %v8740
    %v8757 = vtanh.pop %v8741
    %v8758 = vtanh.pop %v8742
    %v8759 = vtanh.pop %v8743
    %v8760 = vmul.f32 %v8504, %v8744
    %v8761 = vmul.f32 %v8505, %v8745
    %v8762 = vmul.f32 %v8506, %v8746
    %v8763 = vmul.f32 %v8507, %v8747
    %v8764 = vmul.f32 %v8508, %v8748
    %v8765 = vmul.f32 %v8509, %v8749
    %v8766 = vmul.f32 %v8510, %v8750
    %v8767 = vmul.f32 %v8511, %v8751
    %v8768 = vmul.f32 %v8512, %v8752
    %v8769 = vmul.f32 %v8513, %v8753
    %v8770 = vmul.f32 %v8514, %v8754
    %v8771 = vmul.f32 %v8515, %v8755
    %v8772 = vmul.f32 %v8516, %v8756
    %v8773 = vmul.f32 %v8517, %v8757
    %v8774 = vmul.f32 %v8518, %v8758
    %v8775 = vmul.f32 %v8519, %v8759
    %v8792 = vcombine.low %v8760, %v8761
    %v8793 = vcombine.low %v8762, %v8763
    %v8795 = vunpack.c.l.s4 1983009808
    %v8796 = vunpack.c.0.s8 %v8795
    %v8797 = vlaneseq
    %v8798 = vshrl.u32 %v8797, 7
    %v8799 = vsub.s32 %v8796, %v8798
    %v8800 = vrot.slane %v8792, %v8799
    %v8802 = vunpack.c.l.s4 1983009808
    %v8803 = vunpack.c.0.s8 %v8802
    %v8804 = vlaneseq
    %v8805 = vshrl.u32 %v8804, 7
    %v8806 = vsub.s32 %v8803, %v8805
    %v8807 = vrot.slane %v8793, %v8806
    %v8808 = vcombine.low %v8800, %v8807
    %v8809 = vcombine.low %v8764, %v8765
    %v8810 = vcombine.low %v8766, %v8767
    %v8812 = vunpack.c.l.s4 1983009808
    %v8813 = vunpack.c.0.s8 %v8812
    %v8814 = vlaneseq
    %v8815 = vshrl.u32 %v8814, 7
    %v8816 = vsub.s32 %v8813, %v8815
    %v8817 = vrot.slane %v8809, %v8816
    %v8819 = vunpack.c.l.s4 1983009808
    %v8820 = vunpack.c.0.s8 %v8819
    %v8821 = vlaneseq
    %v8822 = vshrl.u32 %v8821, 7
    %v8823 = vsub.s32 %v8820, %v8822
    %v8824 = vrot.slane %v8810, %v8823
    %v8825 = vcombine.low %v8817, %v8824
    %v8826 = vcombine.low %v8768, %v8769
    %v8827 = vcombine.low %v8770, %v8771
    %v8829 = vunpack.c.l.s4 1983009808
    %v8830 = vunpack.c.0.s8 %v8829
    %v8831 = vlaneseq
    %v8832 = vshrl.u32 %v8831, 7
    %v8833 = vsub.s32 %v8830, %v8832
    %v8834 = vrot.slane %v8826, %v8833
    %v8836 = vunpack.c.l.s4 1983009808
    %v8837 = vunpack.c.0.s8 %v8836
    %v8838 = vlaneseq
    %v8839 = vshrl.u32 %v8838, 7
    %v8840 = vsub.s32 %v8837, %v8839
    %v8841 = vrot.slane %v8827, %v8840
    %v8842 = vcombine.low %v8834, %v8841
    %v8843 = vcombine.low %v8772, %v8773
    %v8844 = vcombine.low %v8774, %v8775
    %v8846 = vunpack.c.l.s4 1983009808
    %v8847 = vunpack.c.0.s8 %v8846
    %v8848 = vlaneseq
    %v8849 = vshrl.u32 %v8848, 7
    %v8850 = vsub.s32 %v8847, %v8849
    %v8851 = vrot.slane %v8843, %v8850
    %v8853 = vunpack.c.l.s4 1983009808
    %v8854 = vunpack.c.0.s8 %v8853
    %v8855 = vlaneseq
    %v8856 = vshrl.u32 %v8855, 7
    %v8857 = vsub.s32 %v8854, %v8856
    %v8858 = vrot.slane %v8844, %v8857
    %v8859 = vcombine.low %v8851, %v8858
    %8864 = vst [vmem:[#allocation14] sm:$0xff] %v8808
    %8865 = vst [vmem:[#allocation14 + $0x8] sm:$0xff] %v8825
    %8866 = vst [vmem:[#allocation14 + $0x10] sm:$0xff] %v8842
    %8867 = vst [vmem:[#allocation14 + $0x18] sm:$0xff] %v8859
    // Predicated region
    $region62: #{tpu_custom_call.1} parent=1 // pred_check
      _
    $region63: #{tpu_custom_call.1} parent=1 // pred_check_branch
      %8869 = sbr.rel (0) target = $region65
    $region64: #{tpu_custom_call.1} parent=1 // pred_region
      %s8871 = ssub.s32 512, 512
      %8872 = vsyncadd [#allocation4], %s8871
      %s8874 = sshll.u32 [#allocation14], 4
      %s8875 = int_to_ptr.vmem [resolvable:$true] %s8874
      %8877 = dma.vmem_to_hbm [thread:$0]  %s8875, 512, %s8, [#allocation4]
    $region65: #{tpu_custom_call.1} parent=1 // pred_fallthru
      _
    // Predicated region
    $region66: #{tpu_custom_call.1} parent=1 // pred_check
      _
    $region67: #{tpu_custom_call.1} parent=1 // pred_check_branch
      %8879 = sbr.rel (0) target = $region69
    $region68: #{tpu_custom_call.1} parent=1 // pred_region
      %8880 = dma.done [#allocation4], 512
    $region69: #{tpu_custom_call.1} parent=1 // pred_fallthru
      _
    %8881 = vsyncpa [#allocation3], 1
    %8882 = vsyncpa [#allocation6], 1
    %8883 = vsyncpa [#allocation9], 1
    %8884 = vsyncpa [#allocation12], 1
    %8885 = vsyncpa [#allocation4], 1

</llo_original>
